<compile_context>
chip_gen: v7x
topology: tpu7x:2x2x1
jax: 0.10.0
libtpu: 0.0.40
codegen_flags: <defaults>
</compile_context>

<pallas_src>
import functools

import jax
import jax.numpy as jnp
from jax.experimental import pallas as pl
from jax.experimental.pallas import tpu as pltpu


def _round_up(v, m):
    return (v + m - 1) // m * m


# ----------------------------------------------------------------------------
# Pallas kernel 1: phase-decomposed matmul + fused BatchNorm(batch stats) + ReLU.
# Whole (tiny) operands live in VMEM for the single invocation:
#   a_ref : (P or 1, Mp, Kp) bf16   (1 => same LHS shared by all phases)
#   b_ref : (P, Kp, Cp)      bf16
#   g_ref, beta_ref : (1, Cp) f32
#   o_ref : (P, Mp, Cp)      f32
# ----------------------------------------------------------------------------
def _phase_mm_bn_relu_kernel(a_ref, b_ref, g_ref, beta_ref, o_ref, *, m_valid, eps):
    n_phase = b_ref.shape[0]
    m_pad = o_ref.shape[1]
    c_pad = o_ref.shape[2]
    shared_lhs = a_ref.shape[0] == 1

    if m_valid < m_pad:  # only layer 1 (M = batch) needs row masking for the stats
        row = jax.lax.broadcasted_iota(jnp.int32, (m_pad, 1), 0)
        mask = (row < m_valid).astype(jnp.float32)
    else:
        mask = None

    col_sum = jnp.zeros((1, c_pad), jnp.float32)
    col_sqs = jnp.zeros((1, c_pad), jnp.float32)
    for p in range(n_phase):  # static unrolled loop, P in {4, 16}
        a = a_ref[0] if shared_lhs else a_ref[p]
        y = jnp.dot(a, b_ref[p], preferred_element_type=jnp.float32)
        ym = y if mask is None else y * mask
        col_sum = col_sum + jnp.sum(ym, axis=0, keepdims=True)
        col_sqs = col_sqs + jnp.sum(ym * ym, axis=0, keepdims=True)
        o_ref[p] = y  # stash raw accumulator in the (VMEM-resident) output block

    inv_cnt = 1.0 / float(n_phase * m_valid)
    mean = col_sum * inv_cnt
    var = col_sqs * inv_cnt - mean * mean          # one-pass biased variance
    scale = g_ref[...] * jax.lax.rsqrt(var + eps)  # computed once, reused per phase
    shift = beta_ref[...] - mean * scale
    for p in range(n_phase):
        o_ref[p] = jnp.maximum(o_ref[p] * scale + shift, 0.0)


def phase_matmul_bn_relu(A, B, gamma, beta, m_valid, eps=1e-5):
    n_phase, _, c_pad = B.shape
    m_pad = A.shape[1]
    return pl.pallas_call(
        functools.partial(_phase_mm_bn_relu_kernel, m_valid=m_valid, eps=eps),
        out_shape=jax.ShapeDtypeStruct((n_phase, m_pad, c_pad), jnp.float32),
    )(A, B, gamma, beta)


# ----------------------------------------------------------------------------
# Pallas kernel 2: phase matmul + fused tanh (last layer, no BN).
# Gridded over phases so the work can shard across TensorCores (v7x megacore).
# ----------------------------------------------------------------------------
def _phase_mm_tanh_kernel(a_ref, b_ref, o_ref):
    o_ref[0] = jnp.tanh(
        jnp.dot(a_ref[0], b_ref[0], preferred_element_type=jnp.float32))


def phase_matmul_tanh(A, B):
    n_phase, m_pad, k_pad = A.shape
    c_pad = B.shape[2]
    return pl.pallas_call(
        _phase_mm_tanh_kernel,
        out_shape=jax.ShapeDtypeStruct((n_phase, m_pad, c_pad), jnp.float32),
        grid=(n_phase,),
        in_specs=[
            pl.BlockSpec((1, m_pad, k_pad), lambda p: (p, 0, 0)),
            pl.BlockSpec((1, k_pad, c_pad), lambda p: (p, 0, 0)),
        ],
        out_specs=pl.BlockSpec((1, m_pad, c_pad), lambda p: (p, 0, 0)),
        compiler_params=pltpu.CompilerParams(dimension_semantics=("parallel",)),
    )(A, B)


# ----------------------------------------------------------------------------
# Glue (XLA, no FLOPs): phase-decomposed lowering of ConvTranspose2d(k=4,s=2,p=1).
# Output pixel (2*oy+a, 2*ox+b) only sees input pixels (oy+a-1+dh, ox+b-1+dw),
# dh,dw in {0,1}, with flipped-kernel weights wf[a+2dh, b+2dw].
# ----------------------------------------------------------------------------
def _lower_convT_s2(h_nhwc, w, cout_pad):
    N, H, W, C = h_nhwc.shape
    cin, cout = w.shape[0], w.shape[1]
    wp = jnp.pad(w, ((0, C - cin), (0, cout_pad - cout), (0, 0), (0, 0)))
    # flipped kernel of the equivalent regular conv: wf[kh,kw,ci,co] = w[ci,co,3-kh,3-kw]
    wf = jnp.transpose(wp[:, :, ::-1, ::-1], (2, 3, 0, 1))
    xp = jnp.pad(h_nhwc, ((0, 0), (1, 1), (1, 1), (0, 0)))

    a_phases, b_phases = [], []
    for a in range(2):
        for b in range(2):
            taps, wtaps = [], []
            for dh in range(2):
                for dw in range(2):
                    taps.append(xp[:, a + dh:a + dh + H, b + dw:b + dw + W, :])
                    wtaps.append(wf[a + 2 * dh, b + 2 * dw])          # (C, cout_pad)
            a_phases.append(jnp.stack(taps, axis=3).reshape(N * H * W, 4 * C))
            b_phases.append(jnp.concatenate(wtaps, axis=0))           # (4*C, cout_pad)
    A = jnp.stack(a_phases, axis=0).astype(jnp.bfloat16)  # (4, N*H*W, 4*C)
    B = jnp.stack(b_phases, axis=0).astype(jnp.bfloat16)  # (4, 4*C, cout_pad)
    return A, B


def _assemble_phases(y, n, h, w, s):
    """(s*s, n*h*w, C) phase-major -> (n, s*h, s*w, C) NHWC; phase p = s*a + b."""
    c = y.shape[-1]
    y = y.reshape(s, s, n, h, w, c)
    return jnp.transpose(y, (2, 3, 0, 4, 1, 5)).reshape(n, s * h, s * w, c)


# ----------------------------------------------------------------------------
# Full Generative.forward
# ----------------------------------------------------------------------------
def generative_forward(x_nchw, params):
    eps = 1e-5
    n = x_nchw.shape[0]

    # ---- Layer 1: ConvT(100->256, k=4, s=1, p=0) on a 1x1 input.
    # Each of the 16 output pixels is its own "phase": out[n,kh,kw,:] = x[n,:] @ w[:,:,kh,kw].
    cin, cout1 = 100, 256
    cin_p = _round_up(cin, 128)
    m_p = _round_up(n, 8)
    x_flat = x_nchw.reshape(n, cin).astype(jnp.float32)
    a1 = jnp.zeros((1, m_p, cin_p), jnp.float32).at[0, :n, :cin].set(x_flat)
    a1 = a1.astype(jnp.bfloat16)  # shared LHS for all 16 phases
    w1p = jnp.pad(params["w1"], ((0, cin_p - cin), (0, 0), (0, 0), (0, 0)))
    b1 = jnp.transpose(w1p, (2, 3, 0, 1)).reshape(16, cin_p, cout1).astype(jnp.bfloat16)
    g1 = params["g1"].reshape(1, cout1).astype(jnp.float32)
    be1 = params["b1"].reshape(1, cout1).astype(jnp.float32)
    y1 = phase_matmul_bn_relu(a1, b1, g1, be1, m_valid=n, eps=eps)
    h = _assemble_phases(y1[:, :n, :], n, 1, 1, 4)            # (n, 4, 4, 256)

    # ---- Layer 2: ConvT(256->128, k=4, s=2, p=1): 4x4 -> 8x8
    a2, b2 = _lower_convT_s2(h, params["w2"], cout_pad=128)
    g2 = params["g2"].reshape(1, 128).astype(jnp.float32)
    be2 = params["b2"].reshape(1, 128).astype(jnp.float32)
    y2 = phase_matmul_bn_relu(a2, b2, g2, be2, m_valid=a2.shape[1], eps=eps)
    h = _assemble_phases(y2, n, 4, 4, 2)                      # (n, 8, 8, 128)

    # ---- Layer 3: ConvT(128->64, k=4, s=2, p=1): 8x8 -> 16x16; keep channels padded to 128.
    # Padded channels have zero weights -> zero pre-BN -> BN/ReLU keeps them exactly 0.
    a3, b3 = _lower_convT_s2(h, params["w3"], cout_pad=128)
    g3 = jnp.concatenate([params["g3"], jnp.ones((64,), jnp.float32)]).reshape(1, 128)
    be3 = jnp.concatenate([params["b3"], jnp.zeros((64,), jnp.float32)]).reshape(1, 128)
    y3 = phase_matmul_bn_relu(a3, b3, g3, be3, m_valid=a3.shape[1], eps=eps)
    h = _assemble_phases(y3, n, 8, 8, 2)                      # (n, 16, 16, 128)

    # ---- Layer 4: ConvT(64->3, k=4, s=2, p=1) + tanh: 16x16 -> 32x32
    a4, b4 = _lower_convT_s2(h, params["w4"], cout_pad=128)
    y4 = phase_matmul_tanh(a4, b4)                            # (4, n*256, 128)
    h = _assemble_phases(y4, n, 16, 16, 2)[:, :, :, :3]       # (n, 32, 32, 3)

    return jnp.transpose(h, (0, 3, 1, 2))                     # NHWC -> NCHW


def init_params(key):
    k1, k2, k3, k4 = jax.random.split(key, 4)
    std = 0.02  # DCGAN-style deterministic init
    return {
        "w1": std * jax.random.normal(k1, (100, 256, 4, 4), jnp.float32),
        "w2": std * jax.random.normal(k2, (256, 128, 4, 4), jnp.float32),
        "w3": std * jax.random.normal(k3, (128, 64, 4, 4), jnp.float32),
        "w4": std * jax.random.normal(k4, (64, 3, 4, 4), jnp.float32),
        # BatchNorm affine params at PyTorch defaults (weight=1, bias=0)
        "g1": jnp.ones((256,), jnp.float32), "b1": jnp.zeros((256,), jnp.float32),
        "g2": jnp.ones((128,), jnp.float32), "b2": jnp.zeros((128,), jnp.float32),
        "g3": jnp.ones((64,), jnp.float32), "b3": jnp.zeros((64,), jnp.float32),
    }


# ----------------------------------------------------------------------------
# Pure-JAX f32 reference (for a numerical sanity check of the lowering).
# ----------------------------------------------------------------------------
def _ref_convT(x, w, stride, pad):
    k = w.shape[2]
    wc = jnp.transpose(w[:, :, ::-1, ::-1], (1, 0, 2, 3))  # (Cout, Cin, k, k)
    return jax.lax.conv_general_dilated(
        x, wc, window_strides=(1, 1),
        padding=[(k - 1 - pad, k - 1 - pad)] * 2,
        lhs_dilation=(stride, stride),
        dimension_numbers=("NCHW", "OIHW", "NCHW"),
        precision=jax.lax.Precision.HIGHEST)


def _ref_bn_relu(x, g, b, eps=1e-5):
    mean = jnp.mean(x, axis=(0, 2, 3), keepdims=True)
    var = jnp.mean(jnp.square(x - mean), axis=(0, 2, 3), keepdims=True)
    xh = (x - mean) * jax.lax.rsqrt(var + eps)
    return jnp.maximum(xh * g.reshape(1, -1, 1, 1) + b.reshape(1, -1, 1, 1), 0.0)


def reference_forward(x, params):
    h = _ref_bn_relu(_ref_convT(x.astype(jnp.float32), params["w1"], 1, 0),
                     params["g1"], params["b1"])
    h = _ref_bn_relu(_ref_convT(h, params["w2"], 2, 1), params["g2"], params["b2"])
    h = _ref_bn_relu(_ref_convT(h, params["w3"], 2, 1), params["g3"], params["b3"])
    return jnp.tanh(_ref_convT(h, params["w4"], 2, 1))


if __name__ == "__main__":
    key = jax.random.PRNGKey(0)
    kx, kp = jax.random.split(key)
    params = init_params(kp)

    # DCGAN generator input: latent noise (batch=2, 100, 1, 1)
    x = jax.random.normal(kx, (2, 100, 1, 1), jnp.float32)

    fwd = jax.jit(generative_forward)
    out = jax.block_until_ready(fwd(x, params))

    assert out.shape == (2, 3, 32, 32), out.shape
    assert bool(jnp.all(jnp.isfinite(out)))
    assert bool(jnp.all(jnp.abs(out) <= 1.0 + 1e-6))  # tanh output range

    ref = reference_forward(x, params)
    max_err = float(jnp.max(jnp.abs(out - ref)))
    assert max_err < 0.08, max_err  # bf16-MXU kernel vs f32 reference tolerance

    print("KERNEL_OK")
</pallas_src>

<mosaic_0001>
module attributes {stable_mosaic.version = 11 : i64} {
  func.func @_phase_mm_bn_relu_kernel(%arg0: memref<1x8x128xbf16, #tpu.memory_space<vmem>>, %arg1: memref<16x128x256xbf16, #tpu.memory_space<vmem>>, %arg2: memref<1x256xf32, #tpu.memory_space<vmem>>, %arg3: memref<1x256xf32, #tpu.memory_space<vmem>>, %arg4: memref<16x8x256xf32, #tpu.memory_space<vmem>>) attributes {dimension_semantics = [], scalar_prefetch = 0 : i64, scratch_operands = 0 : i64, tpu.core_type = #tpu.core_type<tc>} {
    %0 = tpu.iota {dimensions = array<i32: 0>} : vector<8x1xi32>
    %c2_i32 = arith.constant 2 : i32
    %1 = vector.broadcast %c2_i32 : i32 to vector<8x1xi32>
    %2 = arith.cmpi slt, %0, %1 : vector<8x1xi32>
    %3 = arith.extui %2 : vector<8x1xi1> to vector<8x1xi32>
    %4 = arith.sitofp %3 : vector<8x1xi32> to vector<8x1xf32>
    %cst = arith.constant 0.000000e+00 : f32
    %5 = vector.broadcast %cst : f32 to vector<1x256xf32>
    %cst_0 = arith.constant 0.000000e+00 : f32
    %6 = vector.broadcast %cst_0 : f32 to vector<1x256xf32>
    %c0 = arith.constant 0 : index
    %c0_1 = arith.constant 0 : index
    %c0_2 = arith.constant 0 : index
    %7 = vector.load %arg0[%c0, %c0_1, %c0_2] : memref<1x8x128xbf16, #tpu.memory_space<vmem>>, vector<1x8x128xbf16>
    %8 = vector.shape_cast %7 : vector<1x8x128xbf16> to vector<8x128xbf16>
    %c0_3 = arith.constant 0 : index
    %c0_4 = arith.constant 0 : index
    %c0_5 = arith.constant 0 : index
    %9 = vector.load %arg1[%c0_3, %c0_4, %c0_5] : memref<16x128x256xbf16, #tpu.memory_space<vmem>>, vector<1x128x256xbf16>
    %10 = vector.shape_cast %9 : vector<1x128x256xbf16> to vector<128x256xbf16>
    %cst_6 = arith.constant dense<0.000000e+00> : vector<8x256xf32>
    %11 = tpu.matmul %8, %10, %cst_6 {dimension_numbers = #tpu.dot_dimension_numbers<[1], [0], [0], [1], [0, 0, 1, 1], [], []>} : vector<8x128xbf16>, vector<128x256xbf16>, vector<8x256xf32> -> vector<8x256xf32>
    %12 = vector.broadcast %4 : vector<8x1xf32> to vector<8x256xf32>
    %13 = arith.mulf %11, %12 : vector<8x256xf32>
    %cst_7 = arith.constant dense<0.000000e+00> : vector<256xf32>
    %14 = vector.multi_reduction <add>, %13, %cst_7 [0] : vector<8x256xf32> to vector<256xf32>
    %15 = vector.shape_cast %14 : vector<256xf32> to vector<1x256xf32>
    %16 = arith.addf %5, %15 : vector<1x256xf32>
    %17 = arith.mulf %13, %13 : vector<8x256xf32>
    %cst_8 = arith.constant dense<0.000000e+00> : vector<256xf32>
    %18 = vector.multi_reduction <add>, %17, %cst_8 [0] : vector<8x256xf32> to vector<256xf32>
    %19 = vector.shape_cast %18 : vector<256xf32> to vector<1x256xf32>
    %20 = arith.addf %6, %19 : vector<1x256xf32>
    %c0_9 = arith.constant 0 : index
    %c0_10 = arith.constant 0 : index
    %c0_11 = arith.constant 0 : index
    %21 = vector.load %arg4[%c0_9, %c0_10, %c0_11] : memref<16x8x256xf32, #tpu.memory_space<vmem>>, vector<1x8x256xf32>
    %22 = vector.shape_cast %21 : vector<1x8x256xf32> to vector<8x256xf32>
    %23 = vector.shape_cast %11 : vector<8x256xf32> to vector<1x8x256xf32>
    tpu.vector_store %arg4[%c0_9, %c0_10, %c0_11], %23 {strides = array<i32>} : memref<16x8x256xf32, #tpu.memory_space<vmem>>, vector<1x8x256xf32>,
    %c0_12 = arith.constant 0 : index
    %c0_13 = arith.constant 0 : index
    %c0_14 = arith.constant 0 : index
    %24 = vector.load %arg0[%c0_12, %c0_13, %c0_14] : memref<1x8x128xbf16, #tpu.memory_space<vmem>>, vector<1x8x128xbf16>
    %25 = vector.shape_cast %24 : vector<1x8x128xbf16> to vector<8x128xbf16>
    %c1 = arith.constant 1 : index
    %c0_15 = arith.constant 0 : index
    %c0_16 = arith.constant 0 : index
    %26 = vector.load %arg1[%c1, %c0_15, %c0_16] : memref<16x128x256xbf16, #tpu.memory_space<vmem>>, vector<1x128x256xbf16>
    %27 = vector.shape_cast %26 : vector<1x128x256xbf16> to vector<128x256xbf16>
    %cst_17 = arith.constant dense<0.000000e+00> : vector<8x256xf32>
    %28 = tpu.matmul %25, %27, %cst_17 {dimension_numbers = #tpu.dot_dimension_numbers<[1], [0], [0], [1], [0, 0, 1, 1], [], []>} : vector<8x128xbf16>, vector<128x256xbf16>, vector<8x256xf32> -> vector<8x256xf32>
    %29 = vector.broadcast %4 : vector<8x1xf32> to vector<8x256xf32>
    %30 = arith.mulf %28, %29 : vector<8x256xf32>
    %cst_18 = arith.constant dense<0.000000e+00> : vector<256xf32>
    %31 = vector.multi_reduction <add>, %30, %cst_18 [0] : vector<8x256xf32> to vector<256xf32>
    %32 = vector.shape_cast %31 : vector<256xf32> to vector<1x256xf32>
    %33 = arith.addf %16, %32 : vector<1x256xf32>
    %34 = arith.mulf %30, %30 : vector<8x256xf32>
    %cst_19 = arith.constant dense<0.000000e+00> : vector<256xf32>
    %35 = vector.multi_reduction <add>, %34, %cst_19 [0] : vector<8x256xf32> to vector<256xf32>
    %36 = vector.shape_cast %35 : vector<256xf32> to vector<1x256xf32>
    %37 = arith.addf %20, %36 : vector<1x256xf32>
    %c1_20 = arith.constant 1 : index
    %c0_21 = arith.constant 0 : index
    %c0_22 = arith.constant 0 : index
    %38 = vector.load %arg4[%c1_20, %c0_21, %c0_22] : memref<16x8x256xf32, #tpu.memory_space<vmem>>, vector<1x8x256xf32>
    %39 = vector.shape_cast %38 : vector<1x8x256xf32> to vector<8x256xf32>
    %40 = vector.shape_cast %28 : vector<8x256xf32> to vector<1x8x256xf32>
    tpu.vector_store %arg4[%c1_20, %c0_21, %c0_22], %40 {strides = array<i32>} : memref<16x8x256xf32, #tpu.memory_space<vmem>>, vector<1x8x256xf32>,
    %c0_23 = arith.constant 0 : index
    %c0_24 = arith.constant 0 : index
    %c0_25 = arith.constant 0 : index
    %41 = vector.load %arg0[%c0_23, %c0_24, %c0_25] : memref<1x8x128xbf16, #tpu.memory_space<vmem>>, vector<1x8x128xbf16>
    %42 = vector.shape_cast %41 : vector<1x8x128xbf16> to vector<8x128xbf16>
    %c2 = arith.constant 2 : index
    %c0_26 = arith.constant 0 : index
    %c0_27 = arith.constant 0 : index
    %43 = vector.load %arg1[%c2, %c0_26, %c0_27] : memref<16x128x256xbf16, #tpu.memory_space<vmem>>, vector<1x128x256xbf16>
    %44 = vector.shape_cast %43 : vector<1x128x256xbf16> to vector<128x256xbf16>
    %cst_28 = arith.constant dense<0.000000e+00> : vector<8x256xf32>
    %45 = tpu.matmul %42, %44, %cst_28 {dimension_numbers = #tpu.dot_dimension_numbers<[1], [0], [0], [1], [0, 0, 1, 1], [], []>} : vector<8x128xbf16>, vector<128x256xbf16>, vector<8x256xf32> -> vector<8x256xf32>
    %46 = vector.broadcast %4 : vector<8x1xf32> to vector<8x256xf32>
    %47 = arith.mulf %45, %46 : vector<8x256xf32>
    %cst_29 = arith.constant dense<0.000000e+00> : vector<256xf32>
    %48 = vector.multi_reduction <add>, %47, %cst_29 [0] : vector<8x256xf32> to vector<256xf32>
    %49 = vector.shape_cast %48 : vector<256xf32> to vector<1x256xf32>
    %50 = arith.addf %33, %49 : vector<1x256xf32>
    %51 = arith.mulf %47, %47 : vector<8x256xf32>
    %cst_30 = arith.constant dense<0.000000e+00> : vector<256xf32>
    %52 = vector.multi_reduction <add>, %51, %cst_30 [0] : vector<8x256xf32> to vector<256xf32>
    %53 = vector.shape_cast %52 : vector<256xf32> to vector<1x256xf32>
    %54 = arith.addf %37, %53 : vector<1x256xf32>
    %c2_31 = arith.constant 2 : index
    %c0_32 = arith.constant 0 : index
    %c0_33 = arith.constant 0 : index
    %55 = vector.load %arg4[%c2_31, %c0_32, %c0_33] : memref<16x8x256xf32, #tpu.memory_space<vmem>>, vector<1x8x256xf32>
    %56 = vector.shape_cast %55 : vector<1x8x256xf32> to vector<8x256xf32>
    %57 = vector.shape_cast %45 : vector<8x256xf32> to vector<1x8x256xf32>
    tpu.vector_store %arg4[%c2_31, %c0_32, %c0_33], %57 {strides = array<i32>} : memref<16x8x256xf32, #tpu.memory_space<vmem>>, vector<1x8x256xf32>,
    %c0_34 = arith.constant 0 : index
    %c0_35 = arith.constant 0 : index
    %c0_36 = arith.constant 0 : index
    %58 = vector.load %arg0[%c0_34, %c0_35, %c0_36] : memref<1x8x128xbf16, #tpu.memory_space<vmem>>, vector<1x8x128xbf16>
    %59 = vector.shape_cast %58 : vector<1x8x128xbf16> to vector<8x128xbf16>
    %c3 = arith.constant 3 : index
    %c0_37 = arith.constant 0 : index
    %c0_38 = arith.constant 0 : index
    %60 = vector.load %arg1[%c3, %c0_37, %c0_38] : memref<16x128x256xbf16, #tpu.memory_space<vmem>>, vector<1x128x256xbf16>
    %61 = vector.shape_cast %60 : vector<1x128x256xbf16> to vector<128x256xbf16>
    %cst_39 = arith.constant dense<0.000000e+00> : vector<8x256xf32>
    %62 = tpu.matmul %59, %61, %cst_39 {dimension_numbers = #tpu.dot_dimension_numbers<[1], [0], [0], [1], [0, 0, 1, 1], [], []>} : vector<8x128xbf16>, vector<128x256xbf16>, vector<8x256xf32> -> vector<8x256xf32>
    %63 = vector.broadcast %4 : vector<8x1xf32> to vector<8x256xf32>
    %64 = arith.mulf %62, %63 : vector<8x256xf32>
    %cst_40 = arith.constant dense<0.000000e+00> : vector<256xf32>
    %65 = vector.multi_reduction <add>, %64, %cst_40 [0] : vector<8x256xf32> to vector<256xf32>
    %66 = vector.shape_cast %65 : vector<256xf32> to vector<1x256xf32>
    %67 = arith.addf %50, %66 : vector<1x256xf32>
    %68 = arith.mulf %64, %64 : vector<8x256xf32>
    %cst_41 = arith.constant dense<0.000000e+00> : vector<256xf32>
    %69 = vector.multi_reduction <add>, %68, %cst_41 [0] : vector<8x256xf32> to vector<256xf32>
    %70 = vector.shape_cast %69 : vector<256xf32> to vector<1x256xf32>
    %71 = arith.addf %54, %70 : vector<1x256xf32>
    %c3_42 = arith.constant 3 : index
    %c0_43 = arith.constant 0 : index
    %c0_44 = arith.constant 0 : index
    %72 = vector.load %arg4[%c3_42, %c0_43, %c0_44] : memref<16x8x256xf32, #tpu.memory_space<vmem>>, vector<1x8x256xf32>
    %73 = vector.shape_cast %72 : vector<1x8x256xf32> to vector<8x256xf32>
    %74 = vector.shape_cast %62 : vector<8x256xf32> to vector<1x8x256xf32>
    tpu.vector_store %arg4[%c3_42, %c0_43, %c0_44], %74 {strides = array<i32>} : memref<16x8x256xf32, #tpu.memory_space<vmem>>, vector<1x8x256xf32>,
    %c0_45 = arith.constant 0 : index
    %c0_46 = arith.constant 0 : index
    %c0_47 = arith.constant 0 : index
    %75 = vector.load %arg0[%c0_45, %c0_46, %c0_47] : memref<1x8x128xbf16, #tpu.memory_space<vmem>>, vector<1x8x128xbf16>
    %76 = vector.shape_cast %75 : vector<1x8x128xbf16> to vector<8x128xbf16>
    %c4 = arith.constant 4 : index
    %c0_48 = arith.constant 0 : index
    %c0_49 = arith.constant 0 : index
    %77 = vector.load %arg1[%c4, %c0_48, %c0_49] : memref<16x128x256xbf16, #tpu.memory_space<vmem>>, vector<1x128x256xbf16>
    %78 = vector.shape_cast %77 : vector<1x128x256xbf16> to vector<128x256xbf16>
    %cst_50 = arith.constant dense<0.000000e+00> : vector<8x256xf32>
    %79 = tpu.matmul %76, %78, %cst_50 {dimension_numbers = #tpu.dot_dimension_numbers<[1], [0], [0], [1], [0, 0, 1, 1], [], []>} : vector<8x128xbf16>, vector<128x256xbf16>, vector<8x256xf32> -> vector<8x256xf32>
    %80 = vector.broadcast %4 : vector<8x1xf32> to vector<8x256xf32>
    %81 = arith.mulf %79, %80 : vector<8x256xf32>
    %cst_51 = arith.constant dense<0.000000e+00> : vector<256xf32>
    %82 = vector.multi_reduction <add>, %81, %cst_51 [0] : vector<8x256xf32> to vector<256xf32>
    %83 = vector.shape_cast %82 : vector<256xf32> to vector<1x256xf32>
    %84 = arith.addf %67, %83 : vector<1x256xf32>
    %85 = arith.mulf %81, %81 : vector<8x256xf32>
    %cst_52 = arith.constant dense<0.000000e+00> : vector<256xf32>
    %86 = vector.multi_reduction <add>, %85, %cst_52 [0] : vector<8x256xf32> to vector<256xf32>
    %87 = vector.shape_cast %86 : vector<256xf32> to vector<1x256xf32>
    %88 = arith.addf %71, %87 : vector<1x256xf32>
    %c4_53 = arith.constant 4 : index
    %c0_54 = arith.constant 0 : index
    %c0_55 = arith.constant 0 : index
    %89 = vector.load %arg4[%c4_53, %c0_54, %c0_55] : memref<16x8x256xf32, #tpu.memory_space<vmem>>, vector<1x8x256xf32>
    %90 = vector.shape_cast %89 : vector<1x8x256xf32> to vector<8x256xf32>
    %91 = vector.shape_cast %79 : vector<8x256xf32> to vector<1x8x256xf32>
    tpu.vector_store %arg4[%c4_53, %c0_54, %c0_55], %91 {strides = array<i32>} : memref<16x8x256xf32, #tpu.memory_space<vmem>>, vector<1x8x256xf32>,
    %c0_56 = arith.constant 0 : index
    %c0_57 = arith.constant 0 : index
    %c0_58 = arith.constant 0 : index
    %92 = vector.load %arg0[%c0_56, %c0_57, %c0_58] : memref<1x8x128xbf16, #tpu.memory_space<vmem>>, vector<1x8x128xbf16>
    %93 = vector.shape_cast %92 : vector<1x8x128xbf16> to vector<8x128xbf16>
    %c5 = arith.constant 5 : index
    %c0_59 = arith.constant 0 : index
    %c0_60 = arith.constant 0 : index
    %94 = vector.load %arg1[%c5, %c0_59, %c0_60] : memref<16x128x256xbf16, #tpu.memory_space<vmem>>, vector<1x128x256xbf16>
    %95 = vector.shape_cast %94 : vector<1x128x256xbf16> to vector<128x256xbf16>
    %cst_61 = arith.constant dense<0.000000e+00> : vector<8x256xf32>
    %96 = tpu.matmul %93, %95, %cst_61 {dimension_numbers = #tpu.dot_dimension_numbers<[1], [0], [0], [1], [0, 0, 1, 1], [], []>} : vector<8x128xbf16>, vector<128x256xbf16>, vector<8x256xf32> -> vector<8x256xf32>
    %97 = vector.broadcast %4 : vector<8x1xf32> to vector<8x256xf32>
    %98 = arith.mulf %96, %97 : vector<8x256xf32>
    %cst_62 = arith.constant dense<0.000000e+00> : vector<256xf32>
    %99 = vector.multi_reduction <add>, %98, %cst_62 [0] : vector<8x256xf32> to vector<256xf32>
    %100 = vector.shape_cast %99 : vector<256xf32> to vector<1x256xf32>
    %101 = arith.addf %84, %100 : vector<1x256xf32>
    %102 = arith.mulf %98, %98 : vector<8x256xf32>
    %cst_63 = arith.constant dense<0.000000e+00> : vector<256xf32>
    %103 = vector.multi_reduction <add>, %102, %cst_63 [0] : vector<8x256xf32> to vector<256xf32>
    %104 = vector.shape_cast %103 : vector<256xf32> to vector<1x256xf32>
    %105 = arith.addf %88, %104 : vector<1x256xf32>
    %c5_64 = arith.constant 5 : index
    %c0_65 = arith.constant 0 : index
    %c0_66 = arith.constant 0 : index
    %106 = vector.load %arg4[%c5_64, %c0_65, %c0_66] : memref<16x8x256xf32, #tpu.memory_space<vmem>>, vector<1x8x256xf32>
    %107 = vector.shape_cast %106 : vector<1x8x256xf32> to vector<8x256xf32>
    %108 = vector.shape_cast %96 : vector<8x256xf32> to vector<1x8x256xf32>
    tpu.vector_store %arg4[%c5_64, %c0_65, %c0_66], %108 {strides = array<i32>} : memref<16x8x256xf32, #tpu.memory_space<vmem>>, vector<1x8x256xf32>,
    %c0_67 = arith.constant 0 : index
    %c0_68 = arith.constant 0 : index
    %c0_69 = arith.constant 0 : index
    %109 = vector.load %arg0[%c0_67, %c0_68, %c0_69] : memref<1x8x128xbf16, #tpu.memory_space<vmem>>, vector<1x8x128xbf16>
    %110 = vector.shape_cast %109 : vector<1x8x128xbf16> to vector<8x128xbf16>
    %c6 = arith.constant 6 : index
    %c0_70 = arith.constant 0 : index
    %c0_71 = arith.constant 0 : index
    %111 = vector.load %arg1[%c6, %c0_70, %c0_71] : memref<16x128x256xbf16, #tpu.memory_space<vmem>>, vector<1x128x256xbf16>
    %112 = vector.shape_cast %111 : vector<1x128x256xbf16> to vector<128x256xbf16>
    %cst_72 = arith.constant dense<0.000000e+00> : vector<8x256xf32>
    %113 = tpu.matmul %110, %112, %cst_72 {dimension_numbers = #tpu.dot_dimension_numbers<[1], [0], [0], [1], [0, 0, 1, 1], [], []>} : vector<8x128xbf16>, vector<128x256xbf16>, vector<8x256xf32> -> vector<8x256xf32>
    %114 = vector.broadcast %4 : vector<8x1xf32> to vector<8x256xf32>
    %115 = arith.mulf %113, %114 : vector<8x256xf32>
    %cst_73 = arith.constant dense<0.000000e+00> : vector<256xf32>
    %116 = vector.multi_reduction <add>, %115, %cst_73 [0] : vector<8x256xf32> to vector<256xf32>
    %117 = vector.shape_cast %116 : vector<256xf32> to vector<1x256xf32>
    %118 = arith.addf %101, %117 : vector<1x256xf32>
    %119 = arith.mulf %115, %115 : vector<8x256xf32>
    %cst_74 = arith.constant dense<0.000000e+00> : vector<256xf32>
    %120 = vector.multi_reduction <add>, %119, %cst_74 [0] : vector<8x256xf32> to vector<256xf32>
    %121 = vector.shape_cast %120 : vector<256xf32> to vector<1x256xf32>
    %122 = arith.addf %105, %121 : vector<1x256xf32>
    %c6_75 = arith.constant 6 : index
    %c0_76 = arith.constant 0 : index
    %c0_77 = arith.constant 0 : index
    %123 = vector.load %arg4[%c6_75, %c0_76, %c0_77] : memref<16x8x256xf32, #tpu.memory_space<vmem>>, vector<1x8x256xf32>
    %124 = vector.shape_cast %123 : vector<1x8x256xf32> to vector<8x256xf32>
    %125 = vector.shape_cast %113 : vector<8x256xf32> to vector<1x8x256xf32>
    tpu.vector_store %arg4[%c6_75, %c0_76, %c0_77], %125 {strides = array<i32>} : memref<16x8x256xf32, #tpu.memory_space<vmem>>, vector<1x8x256xf32>,
    %c0_78 = arith.constant 0 : index
    %c0_79 = arith.constant 0 : index
    %c0_80 = arith.constant 0 : index
    %126 = vector.load %arg0[%c0_78, %c0_79, %c0_80] : memref<1x8x128xbf16, #tpu.memory_space<vmem>>, vector<1x8x128xbf16>
    %127 = vector.shape_cast %126 : vector<1x8x128xbf16> to vector<8x128xbf16>
    %c7 = arith.constant 7 : index
    %c0_81 = arith.constant 0 : index
    %c0_82 = arith.constant 0 : index
    %128 = vector.load %arg1[%c7, %c0_81, %c0_82] : memref<16x128x256xbf16, #tpu.memory_space<vmem>>, vector<1x128x256xbf16>
    %129 = vector.shape_cast %128 : vector<1x128x256xbf16> to vector<128x256xbf16>
    %cst_83 = arith.constant dense<0.000000e+00> : vector<8x256xf32>
    %130 = tpu.matmul %127, %129, %cst_83 {dimension_numbers = #tpu.dot_dimension_numbers<[1], [0], [0], [1], [0, 0, 1, 1], [], []>} : vector<8x128xbf16>, vector<128x256xbf16>, vector<8x256xf32> -> vector<8x256xf32>
    %131 = vector.broadcast %4 : vector<8x1xf32> to vector<8x256xf32>
    %132 = arith.mulf %130, %131 : vector<8x256xf32>
    %cst_84 = arith.constant dense<0.000000e+00> : vector<256xf32>
    %133 = vector.multi_reduction <add>, %132, %cst_84 [0] : vector<8x256xf32> to vector<256xf32>
    %134 = vector.shape_cast %133 : vector<256xf32> to vector<1x256xf32>
    %135 = arith.addf %118, %134 : vector<1x256xf32>
    %136 = arith.mulf %132, %132 : vector<8x256xf32>
    %cst_85 = arith.constant dense<0.000000e+00> : vector<256xf32>
    %137 = vector.multi_reduction <add>, %136, %cst_85 [0] : vector<8x256xf32> to vector<256xf32>
    %138 = vector.shape_cast %137 : vector<256xf32> to vector<1x256xf32>
    %139 = arith.addf %122, %138 : vector<1x256xf32>
    %c7_86 = arith.constant 7 : index
    %c0_87 = arith.constant 0 : index
    %c0_88 = arith.constant 0 : index
    %140 = vector.load %arg4[%c7_86, %c0_87, %c0_88] : memref<16x8x256xf32, #tpu.memory_space<vmem>>, vector<1x8x256xf32>
    %141 = vector.shape_cast %140 : vector<1x8x256xf32> to vector<8x256xf32>
    %142 = vector.shape_cast %130 : vector<8x256xf32> to vector<1x8x256xf32>
    tpu.vector_store %arg4[%c7_86, %c0_87, %c0_88], %142 {strides = array<i32>} : memref<16x8x256xf32, #tpu.memory_space<vmem>>, vector<1x8x256xf32>,
    %c0_89 = arith.constant 0 : index
    %c0_90 = arith.constant 0 : index
    %c0_91 = arith.constant 0 : index
    %143 = vector.load %arg0[%c0_89, %c0_90, %c0_91] : memref<1x8x128xbf16, #tpu.memory_space<vmem>>, vector<1x8x128xbf16>
    %144 = vector.shape_cast %143 : vector<1x8x128xbf16> to vector<8x128xbf16>
    %c8 = arith.constant 8 : index
    %c0_92 = arith.constant 0 : index
    %c0_93 = arith.constant 0 : index
    %145 = vector.load %arg1[%c8, %c0_92, %c0_93] : memref<16x128x256xbf16, #tpu.memory_space<vmem>>, vector<1x128x256xbf16>
    %146 = vector.shape_cast %145 : vector<1x128x256xbf16> to vector<128x256xbf16>
    %cst_94 = arith.constant dense<0.000000e+00> : vector<8x256xf32>
    %147 = tpu.matmul %144, %146, %cst_94 {dimension_numbers = #tpu.dot_dimension_numbers<[1], [0], [0], [1], [0, 0, 1, 1], [], []>} : vector<8x128xbf16>, vector<128x256xbf16>, vector<8x256xf32> -> vector<8x256xf32>
    %148 = vector.broadcast %4 : vector<8x1xf32> to vector<8x256xf32>
    %149 = arith.mulf %147, %148 : vector<8x256xf32>
    %cst_95 = arith.constant dense<0.000000e+00> : vector<256xf32>
    %150 = vector.multi_reduction <add>, %149, %cst_95 [0] : vector<8x256xf32> to vector<256xf32>
    %151 = vector.shape_cast %150 : vector<256xf32> to vector<1x256xf32>
    %152 = arith.addf %135, %151 : vector<1x256xf32>
    %153 = arith.mulf %149, %149 : vector<8x256xf32>
    %cst_96 = arith.constant dense<0.000000e+00> : vector<256xf32>
    %154 = vector.multi_reduction <add>, %153, %cst_96 [0] : vector<8x256xf32> to vector<256xf32>
    %155 = vector.shape_cast %154 : vector<256xf32> to vector<1x256xf32>
    %156 = arith.addf %139, %155 : vector<1x256xf32>
    %c8_97 = arith.constant 8 : index
    %c0_98 = arith.constant 0 : index
    %c0_99 = arith.constant 0 : index
    %157 = vector.load %arg4[%c8_97, %c0_98, %c0_99] : memref<16x8x256xf32, #tpu.memory_space<vmem>>, vector<1x8x256xf32>
    %158 = vector.shape_cast %157 : vector<1x8x256xf32> to vector<8x256xf32>
    %159 = vector.shape_cast %147 : vector<8x256xf32> to vector<1x8x256xf32>
    tpu.vector_store %arg4[%c8_97, %c0_98, %c0_99], %159 {strides = array<i32>} : memref<16x8x256xf32, #tpu.memory_space<vmem>>, vector<1x8x256xf32>,
    %c0_100 = arith.constant 0 : index
    %c0_101 = arith.constant 0 : index
    %c0_102 = arith.constant 0 : index
    %160 = vector.load %arg0[%c0_100, %c0_101, %c0_102] : memref<1x8x128xbf16, #tpu.memory_space<vmem>>, vector<1x8x128xbf16>
    %161 = vector.shape_cast %160 : vector<1x8x128xbf16> to vector<8x128xbf16>
    %c9 = arith.constant 9 : index
    %c0_103 = arith.constant 0 : index
    %c0_104 = arith.constant 0 : index
    %162 = vector.load %arg1[%c9, %c0_103, %c0_104] : memref<16x128x256xbf16, #tpu.memory_space<vmem>>, vector<1x128x256xbf16>
    %163 = vector.shape_cast %162 : vector<1x128x256xbf16> to vector<128x256xbf16>
    %cst_105 = arith.constant dense<0.000000e+00> : vector<8x256xf32>
    %164 = tpu.matmul %161, %163, %cst_105 {dimension_numbers = #tpu.dot_dimension_numbers<[1], [0], [0], [1], [0, 0, 1, 1], [], []>} : vector<8x128xbf16>, vector<128x256xbf16>, vector<8x256xf32> -> vector<8x256xf32>
    %165 = vector.broadcast %4 : vector<8x1xf32> to vector<8x256xf32>
    %166 = arith.mulf %164, %165 : vector<8x256xf32>
    %cst_106 = arith.constant dense<0.000000e+00> : vector<256xf32>
    %167 = vector.multi_reduction <add>, %166, %cst_106 [0] : vector<8x256xf32> to vector<256xf32>
    %168 = vector.shape_cast %167 : vector<256xf32> to vector<1x256xf32>
    %169 = arith.addf %152, %168 : vector<1x256xf32>
    %170 = arith.mulf %166, %166 : vector<8x256xf32>
    %cst_107 = arith.constant dense<0.000000e+00> : vector<256xf32>
    %171 = vector.multi_reduction <add>, %170, %cst_107 [0] : vector<8x256xf32> to vector<256xf32>
    %172 = vector.shape_cast %171 : vector<256xf32> to vector<1x256xf32>
    %173 = arith.addf %156, %172 : vector<1x256xf32>
    %c9_108 = arith.constant 9 : index
    %c0_109 = arith.constant 0 : index
    %c0_110 = arith.constant 0 : index
    %174 = vector.load %arg4[%c9_108, %c0_109, %c0_110] : memref<16x8x256xf32, #tpu.memory_space<vmem>>, vector<1x8x256xf32>
    %175 = vector.shape_cast %174 : vector<1x8x256xf32> to vector<8x256xf32>
    %176 = vector.shape_cast %164 : vector<8x256xf32> to vector<1x8x256xf32>
    tpu.vector_store %arg4[%c9_108, %c0_109, %c0_110], %176 {strides = array<i32>} : memref<16x8x256xf32, #tpu.memory_space<vmem>>, vector<1x8x256xf32>,
    %c0_111 = arith.constant 0 : index
    %c0_112 = arith.constant 0 : index
    %c0_113 = arith.constant 0 : index
    %177 = vector.load %arg0[%c0_111, %c0_112, %c0_113] : memref<1x8x128xbf16, #tpu.memory_space<vmem>>, vector<1x8x128xbf16>
    %178 = vector.shape_cast %177 : vector<1x8x128xbf16> to vector<8x128xbf16>
    %c10 = arith.constant 10 : index
    %c0_114 = arith.constant 0 : index
    %c0_115 = arith.constant 0 : index
    %179 = vector.load %arg1[%c10, %c0_114, %c0_115] : memref<16x128x256xbf16, #tpu.memory_space<vmem>>, vector<1x128x256xbf16>
    %180 = vector.shape_cast %179 : vector<1x128x256xbf16> to vector<128x256xbf16>
    %cst_116 = arith.constant dense<0.000000e+00> : vector<8x256xf32>
    %181 = tpu.matmul %178, %180, %cst_116 {dimension_numbers = #tpu.dot_dimension_numbers<[1], [0], [0], [1], [0, 0, 1, 1], [], []>} : vector<8x128xbf16>, vector<128x256xbf16>, vector<8x256xf32> -> vector<8x256xf32>
    %182 = vector.broadcast %4 : vector<8x1xf32> to vector<8x256xf32>
    %183 = arith.mulf %181, %182 : vector<8x256xf32>
    %cst_117 = arith.constant dense<0.000000e+00> : vector<256xf32>
    %184 = vector.multi_reduction <add>, %183, %cst_117 [0] : vector<8x256xf32> to vector<256xf32>
    %185 = vector.shape_cast %184 : vector<256xf32> to vector<1x256xf32>
    %186 = arith.addf %169, %185 : vector<1x256xf32>
    %187 = arith.mulf %183, %183 : vector<8x256xf32>
    %cst_118 = arith.constant dense<0.000000e+00> : vector<256xf32>
    %188 = vector.multi_reduction <add>, %187, %cst_118 [0] : vector<8x256xf32> to vector<256xf32>
    %189 = vector.shape_cast %188 : vector<256xf32> to vector<1x256xf32>
    %190 = arith.addf %173, %189 : vector<1x256xf32>
    %c10_119 = arith.constant 10 : index
    %c0_120 = arith.constant 0 : index
    %c0_121 = arith.constant 0 : index
    %191 = vector.load %arg4[%c10_119, %c0_120, %c0_121] : memref<16x8x256xf32, #tpu.memory_space<vmem>>, vector<1x8x256xf32>
    %192 = vector.shape_cast %191 : vector<1x8x256xf32> to vector<8x256xf32>
    %193 = vector.shape_cast %181 : vector<8x256xf32> to vector<1x8x256xf32>
    tpu.vector_store %arg4[%c10_119, %c0_120, %c0_121], %193 {strides = array<i32>} : memref<16x8x256xf32, #tpu.memory_space<vmem>>, vector<1x8x256xf32>,
    %c0_122 = arith.constant 0 : index
    %c0_123 = arith.constant 0 : index
    %c0_124 = arith.constant 0 : index
    %194 = vector.load %arg0[%c0_122, %c0_123, %c0_124] : memref<1x8x128xbf16, #tpu.memory_space<vmem>>, vector<1x8x128xbf16>
    %195 = vector.shape_cast %194 : vector<1x8x128xbf16> to vector<8x128xbf16>
    %c11 = arith.constant 11 : index
    %c0_125 = arith.constant 0 : index
    %c0_126 = arith.constant 0 : index
    %196 = vector.load %arg1[%c11, %c0_125, %c0_126] : memref<16x128x256xbf16, #tpu.memory_space<vmem>>, vector<1x128x256xbf16>
    %197 = vector.shape_cast %196 : vector<1x128x256xbf16> to vector<128x256xbf16>
    %cst_127 = arith.constant dense<0.000000e+00> : vector<8x256xf32>
    %198 = tpu.matmul %195, %197, %cst_127 {dimension_numbers = #tpu.dot_dimension_numbers<[1], [0], [0], [1], [0, 0, 1, 1], [], []>} : vector<8x128xbf16>, vector<128x256xbf16>, vector<8x256xf32> -> vector<8x256xf32>
    %199 = vector.broadcast %4 : vector<8x1xf32> to vector<8x256xf32>
    %200 = arith.mulf %198, %199 : vector<8x256xf32>
    %cst_128 = arith.constant dense<0.000000e+00> : vector<256xf32>
    %201 = vector.multi_reduction <add>, %200, %cst_128 [0] : vector<8x256xf32> to vector<256xf32>
    %202 = vector.shape_cast %201 : vector<256xf32> to vector<1x256xf32>
    %203 = arith.addf %186, %202 : vector<1x256xf32>
    %204 = arith.mulf %200, %200 : vector<8x256xf32>
    %cst_129 = arith.constant dense<0.000000e+00> : vector<256xf32>
    %205 = vector.multi_reduction <add>, %204, %cst_129 [0] : vector<8x256xf32> to vector<256xf32>
    %206 = vector.shape_cast %205 : vector<256xf32> to vector<1x256xf32>
    %207 = arith.addf %190, %206 : vector<1x256xf32>
    %c11_130 = arith.constant 11 : index
    %c0_131 = arith.constant 0 : index
    %c0_132 = arith.constant 0 : index
    %208 = vector.load %arg4[%c11_130, %c0_131, %c0_132] : memref<16x8x256xf32, #tpu.memory_space<vmem>>, vector<1x8x256xf32>
    %209 = vector.shape_cast %208 : vector<1x8x256xf32> to vector<8x256xf32>
    %210 = vector.shape_cast %198 : vector<8x256xf32> to vector<1x8x256xf32>
    tpu.vector_store %arg4[%c11_130, %c0_131, %c0_132], %210 {strides = array<i32>} : memref<16x8x256xf32, #tpu.memory_space<vmem>>, vector<1x8x256xf32>,
    %c0_133 = arith.constant 0 : index
    %c0_134 = arith.constant 0 : index
    %c0_135 = arith.constant 0 : index
    %211 = vector.load %arg0[%c0_133, %c0_134, %c0_135] : memref<1x8x128xbf16, #tpu.memory_space<vmem>>, vector<1x8x128xbf16>
    %212 = vector.shape_cast %211 : vector<1x8x128xbf16> to vector<8x128xbf16>
    %c12 = arith.constant 12 : index
    %c0_136 = arith.constant 0 : index
    %c0_137 = arith.constant 0 : index
    %213 = vector.load %arg1[%c12, %c0_136, %c0_137] : memref<16x128x256xbf16, #tpu.memory_space<vmem>>, vector<1x128x256xbf16>
    %214 = vector.shape_cast %213 : vector<1x128x256xbf16> to vector<128x256xbf16>
    %cst_138 = arith.constant dense<0.000000e+00> : vector<8x256xf32>
    %215 = tpu.matmul %212, %214, %cst_138 {dimension_numbers = #tpu.dot_dimension_numbers<[1], [0], [0], [1], [0, 0, 1, 1], [], []>} : vector<8x128xbf16>, vector<128x256xbf16>, vector<8x256xf32> -> vector<8x256xf32>
    %216 = vector.broadcast %4 : vector<8x1xf32> to vector<8x256xf32>
    %217 = arith.mulf %215, %216 : vector<8x256xf32>
    %cst_139 = arith.constant dense<0.000000e+00> : vector<256xf32>
    %218 = vector.multi_reduction <add>, %217, %cst_139 [0] : vector<8x256xf32> to vector<256xf32>
    %219 = vector.shape_cast %218 : vector<256xf32> to vector<1x256xf32>
    %220 = arith.addf %203, %219 : vector<1x256xf32>
    %221 = arith.mulf %217, %217 : vector<8x256xf32>
    %cst_140 = arith.constant dense<0.000000e+00> : vector<256xf32>
    %222 = vector.multi_reduction <add>, %221, %cst_140 [0] : vector<8x256xf32> to vector<256xf32>
    %223 = vector.shape_cast %222 : vector<256xf32> to vector<1x256xf32>
    %224 = arith.addf %207, %223 : vector<1x256xf32>
    %c12_141 = arith.constant 12 : index
    %c0_142 = arith.constant 0 : index
    %c0_143 = arith.constant 0 : index
    %225 = vector.load %arg4[%c12_141, %c0_142, %c0_143] : memref<16x8x256xf32, #tpu.memory_space<vmem>>, vector<1x8x256xf32>
    %226 = vector.shape_cast %225 : vector<1x8x256xf32> to vector<8x256xf32>
    %227 = vector.shape_cast %215 : vector<8x256xf32> to vector<1x8x256xf32>
    tpu.vector_store %arg4[%c12_141, %c0_142, %c0_143], %227 {strides = array<i32>} : memref<16x8x256xf32, #tpu.memory_space<vmem>>, vector<1x8x256xf32>,
    %c0_144 = arith.constant 0 : index
    %c0_145 = arith.constant 0 : index
    %c0_146 = arith.constant 0 : index
    %228 = vector.load %arg0[%c0_144, %c0_145, %c0_146] : memref<1x8x128xbf16, #tpu.memory_space<vmem>>, vector<1x8x128xbf16>
    %229 = vector.shape_cast %228 : vector<1x8x128xbf16> to vector<8x128xbf16>
    %c13 = arith.constant 13 : index
    %c0_147 = arith.constant 0 : index
    %c0_148 = arith.constant 0 : index
    %230 = vector.load %arg1[%c13, %c0_147, %c0_148] : memref<16x128x256xbf16, #tpu.memory_space<vmem>>, vector<1x128x256xbf16>
    %231 = vector.shape_cast %230 : vector<1x128x256xbf16> to vector<128x256xbf16>
    %cst_149 = arith.constant dense<0.000000e+00> : vector<8x256xf32>
    %232 = tpu.matmul %229, %231, %cst_149 {dimension_numbers = #tpu.dot_dimension_numbers<[1], [0], [0], [1], [0, 0, 1, 1], [], []>} : vector<8x128xbf16>, vector<128x256xbf16>, vector<8x256xf32> -> vector<8x256xf32>
    %233 = vector.broadcast %4 : vector<8x1xf32> to vector<8x256xf32>
    %234 = arith.mulf %232, %233 : vector<8x256xf32>
    %cst_150 = arith.constant dense<0.000000e+00> : vector<256xf32>
    %235 = vector.multi_reduction <add>, %234, %cst_150 [0] : vector<8x256xf32> to vector<256xf32>
    %236 = vector.shape_cast %235 : vector<256xf32> to vector<1x256xf32>
    %237 = arith.addf %220, %236 : vector<1x256xf32>
    %238 = arith.mulf %234, %234 : vector<8x256xf32>
    %cst_151 = arith.constant dense<0.000000e+00> : vector<256xf32>
    %239 = vector.multi_reduction <add>, %238, %cst_151 [0] : vector<8x256xf32> to vector<256xf32>
    %240 = vector.shape_cast %239 : vector<256xf32> to vector<1x256xf32>
    %241 = arith.addf %224, %240 : vector<1x256xf32>
    %c13_152 = arith.constant 13 : index
    %c0_153 = arith.constant 0 : index
    %c0_154 = arith.constant 0 : index
    %242 = vector.load %arg4[%c13_152, %c0_153, %c0_154] : memref<16x8x256xf32, #tpu.memory_space<vmem>>, vector<1x8x256xf32>
    %243 = vector.shape_cast %242 : vector<1x8x256xf32> to vector<8x256xf32>
    %244 = vector.shape_cast %232 : vector<8x256xf32> to vector<1x8x256xf32>
    tpu.vector_store %arg4[%c13_152, %c0_153, %c0_154], %244 {strides = array<i32>} : memref<16x8x256xf32, #tpu.memory_space<vmem>>, vector<1x8x256xf32>,
    %c0_155 = arith.constant 0 : index
    %c0_156 = arith.constant 0 : index
    %c0_157 = arith.constant 0 : index
    %245 = vector.load %arg0[%c0_155, %c0_156, %c0_157] : memref<1x8x128xbf16, #tpu.memory_space<vmem>>, vector<1x8x128xbf16>
    %246 = vector.shape_cast %245 : vector<1x8x128xbf16> to vector<8x128xbf16>
    %c14 = arith.constant 14 : index
    %c0_158 = arith.constant 0 : index
    %c0_159 = arith.constant 0 : index
    %247 = vector.load %arg1[%c14, %c0_158, %c0_159] : memref<16x128x256xbf16, #tpu.memory_space<vmem>>, vector<1x128x256xbf16>
    %248 = vector.shape_cast %247 : vector<1x128x256xbf16> to vector<128x256xbf16>
    %cst_160 = arith.constant dense<0.000000e+00> : vector<8x256xf32>
    %249 = tpu.matmul %246, %248, %cst_160 {dimension_numbers = #tpu.dot_dimension_numbers<[1], [0], [0], [1], [0, 0, 1, 1], [], []>} : vector<8x128xbf16>, vector<128x256xbf16>, vector<8x256xf32> -> vector<8x256xf32>
    %250 = vector.broadcast %4 : vector<8x1xf32> to vector<8x256xf32>
    %251 = arith.mulf %249, %250 : vector<8x256xf32>
    %cst_161 = arith.constant dense<0.000000e+00> : vector<256xf32>
    %252 = vector.multi_reduction <add>, %251, %cst_161 [0] : vector<8x256xf32> to vector<256xf32>
    %253 = vector.shape_cast %252 : vector<256xf32> to vector<1x256xf32>
    %254 = arith.addf %237, %253 : vector<1x256xf32>
    %255 = arith.mulf %251, %251 : vector<8x256xf32>
    %cst_162 = arith.constant dense<0.000000e+00> : vector<256xf32>
    %256 = vector.multi_reduction <add>, %255, %cst_162 [0] : vector<8x256xf32> to vector<256xf32>
    %257 = vector.shape_cast %256 : vector<256xf32> to vector<1x256xf32>
    %258 = arith.addf %241, %257 : vector<1x256xf32>
    %c14_163 = arith.constant 14 : index
    %c0_164 = arith.constant 0 : index
    %c0_165 = arith.constant 0 : index
    %259 = vector.load %arg4[%c14_163, %c0_164, %c0_165] : memref<16x8x256xf32, #tpu.memory_space<vmem>>, vector<1x8x256xf32>
    %260 = vector.shape_cast %259 : vector<1x8x256xf32> to vector<8x256xf32>
    %261 = vector.shape_cast %249 : vector<8x256xf32> to vector<1x8x256xf32>
    tpu.vector_store %arg4[%c14_163, %c0_164, %c0_165], %261 {strides = array<i32>} : memref<16x8x256xf32, #tpu.memory_space<vmem>>, vector<1x8x256xf32>,
    %c0_166 = arith.constant 0 : index
    %c0_167 = arith.constant 0 : index
    %c0_168 = arith.constant 0 : index
    %262 = vector.load %arg0[%c0_166, %c0_167, %c0_168] : memref<1x8x128xbf16, #tpu.memory_space<vmem>>, vector<1x8x128xbf16>
    %263 = vector.shape_cast %262 : vector<1x8x128xbf16> to vector<8x128xbf16>
    %c15 = arith.constant 15 : index
    %c0_169 = arith.constant 0 : index
    %c0_170 = arith.constant 0 : index
    %264 = vector.load %arg1[%c15, %c0_169, %c0_170] : memref<16x128x256xbf16, #tpu.memory_space<vmem>>, vector<1x128x256xbf16>
    %265 = vector.shape_cast %264 : vector<1x128x256xbf16> to vector<128x256xbf16>
    %cst_171 = arith.constant dense<0.000000e+00> : vector<8x256xf32>
    %266 = tpu.matmul %263, %265, %cst_171 {dimension_numbers = #tpu.dot_dimension_numbers<[1], [0], [0], [1], [0, 0, 1, 1], [], []>} : vector<8x128xbf16>, vector<128x256xbf16>, vector<8x256xf32> -> vector<8x256xf32>
    %267 = vector.broadcast %4 : vector<8x1xf32> to vector<8x256xf32>
    %268 = arith.mulf %266, %267 : vector<8x256xf32>
    %cst_172 = arith.constant dense<0.000000e+00> : vector<256xf32>
    %269 = vector.multi_reduction <add>, %268, %cst_172 [0] : vector<8x256xf32> to vector<256xf32>
    %270 = vector.shape_cast %269 : vector<256xf32> to vector<1x256xf32>
    %271 = arith.addf %254, %270 : vector<1x256xf32>
    %272 = arith.mulf %268, %268 : vector<8x256xf32>
    %cst_173 = arith.constant dense<0.000000e+00> : vector<256xf32>
    %273 = vector.multi_reduction <add>, %272, %cst_173 [0] : vector<8x256xf32> to vector<256xf32>
    %274 = vector.shape_cast %273 : vector<256xf32> to vector<1x256xf32>
    %275 = arith.addf %258, %274 : vector<1x256xf32>
    %c15_174 = arith.constant 15 : index
    %c0_175 = arith.constant 0 : index
    %c0_176 = arith.constant 0 : index
    %276 = vector.load %arg4[%c15_174, %c0_175, %c0_176] : memref<16x8x256xf32, #tpu.memory_space<vmem>>, vector<1x8x256xf32>
    %277 = vector.shape_cast %276 : vector<1x8x256xf32> to vector<8x256xf32>
    %278 = vector.shape_cast %266 : vector<8x256xf32> to vector<1x8x256xf32>
    tpu.vector_store %arg4[%c15_174, %c0_175, %c0_176], %278 {strides = array<i32>} : memref<16x8x256xf32, #tpu.memory_space<vmem>>, vector<1x8x256xf32>,
    %cst_177 = arith.constant 3.125000e-02 : f32
    %279 = vector.broadcast %cst_177 : f32 to vector<1x256xf32>
    %280 = arith.mulf %271, %279 : vector<1x256xf32>
    %cst_178 = arith.constant 3.125000e-02 : f32
    %281 = vector.broadcast %cst_178 : f32 to vector<1x256xf32>
    %282 = arith.mulf %275, %281 : vector<1x256xf32>
    %283 = arith.mulf %280, %280 : vector<1x256xf32>
    %284 = arith.subf %282, %283 : vector<1x256xf32>
    %c0_179 = arith.constant 0 : index
    %c0_180 = arith.constant 0 : index
    %285 = vector.load %arg2[%c0_179, %c0_180] : memref<1x256xf32, #tpu.memory_space<vmem>>, vector<1x256xf32>
    %cst_181 = arith.constant 9.99999974E-6 : f32
    %286 = vector.broadcast %cst_181 : f32 to vector<1x256xf32>
    %287 = arith.addf %284, %286 : vector<1x256xf32>
    %288 = math.rsqrt %287 : vector<1x256xf32>
    %289 = arith.mulf %285, %288 : vector<1x256xf32>
    %c0_182 = arith.constant 0 : index
    %c0_183 = arith.constant 0 : index
    %290 = vector.load %arg3[%c0_182, %c0_183] : memref<1x256xf32, #tpu.memory_space<vmem>>, vector<1x256xf32>
    %291 = arith.mulf %280, %289 : vector<1x256xf32>
    %292 = arith.subf %290, %291 : vector<1x256xf32>
    %c0_184 = arith.constant 0 : index
    %c0_185 = arith.constant 0 : index
    %c0_186 = arith.constant 0 : index
    %293 = vector.load %arg4[%c0_184, %c0_185, %c0_186] : memref<16x8x256xf32, #tpu.memory_space<vmem>>, vector<1x8x256xf32>
    %294 = vector.shape_cast %293 : vector<1x8x256xf32> to vector<8x256xf32>
    %295 = vector.broadcast %289 : vector<1x256xf32> to vector<8x256xf32>
    %296 = arith.mulf %294, %295 : vector<8x256xf32>
    %297 = vector.broadcast %292 : vector<1x256xf32> to vector<8x256xf32>
    %298 = arith.addf %296, %297 : vector<8x256xf32>
    %cst_187 = arith.constant 0.000000e+00 : f32
    %299 = vector.broadcast %cst_187 : f32 to vector<8x256xf32>
    %300 = arith.maximumf %298, %299 : vector<8x256xf32>
    %c0_188 = arith.constant 0 : index
    %c0_189 = arith.constant 0 : index
    %c0_190 = arith.constant 0 : index
    %301 = vector.load %arg4[%c0_188, %c0_189, %c0_190] : memref<16x8x256xf32, #tpu.memory_space<vmem>>, vector<1x8x256xf32>
    %302 = vector.shape_cast %301 : vector<1x8x256xf32> to vector<8x256xf32>
    %303 = vector.shape_cast %300 : vector<8x256xf32> to vector<1x8x256xf32>
    tpu.vector_store %arg4[%c0_188, %c0_189, %c0_190], %303 {strides = array<i32>} : memref<16x8x256xf32, #tpu.memory_space<vmem>>, vector<1x8x256xf32>,
    %c1_191 = arith.constant 1 : index
    %c0_192 = arith.constant 0 : index
    %c0_193 = arith.constant 0 : index
    %304 = vector.load %arg4[%c1_191, %c0_192, %c0_193] : memref<16x8x256xf32, #tpu.memory_space<vmem>>, vector<1x8x256xf32>
    %305 = vector.shape_cast %304 : vector<1x8x256xf32> to vector<8x256xf32>
    %306 = vector.broadcast %289 : vector<1x256xf32> to vector<8x256xf32>
    %307 = arith.mulf %305, %306 : vector<8x256xf32>
    %308 = vector.broadcast %292 : vector<1x256xf32> to vector<8x256xf32>
    %309 = arith.addf %307, %308 : vector<8x256xf32>
    %cst_194 = arith.constant 0.000000e+00 : f32
    %310 = vector.broadcast %cst_194 : f32 to vector<8x256xf32>
    %311 = arith.maximumf %309, %310 : vector<8x256xf32>
    %c1_195 = arith.constant 1 : index
    %c0_196 = arith.constant 0 : index
    %c0_197 = arith.constant 0 : index
    %312 = vector.load %arg4[%c1_195, %c0_196, %c0_197] : memref<16x8x256xf32, #tpu.memory_space<vmem>>, vector<1x8x256xf32>
    %313 = vector.shape_cast %312 : vector<1x8x256xf32> to vector<8x256xf32>
    %314 = vector.shape_cast %311 : vector<8x256xf32> to vector<1x8x256xf32>
    tpu.vector_store %arg4[%c1_195, %c0_196, %c0_197], %314 {strides = array<i32>} : memref<16x8x256xf32, #tpu.memory_space<vmem>>, vector<1x8x256xf32>,
    %c2_198 = arith.constant 2 : index
    %c0_199 = arith.constant 0 : index
    %c0_200 = arith.constant 0 : index
    %315 = vector.load %arg4[%c2_198, %c0_199, %c0_200] : memref<16x8x256xf32, #tpu.memory_space<vmem>>, vector<1x8x256xf32>
    %316 = vector.shape_cast %315 : vector<1x8x256xf32> to vector<8x256xf32>
    %317 = vector.broadcast %289 : vector<1x256xf32> to vector<8x256xf32>
    %318 = arith.mulf %316, %317 : vector<8x256xf32>
    %319 = vector.broadcast %292 : vector<1x256xf32> to vector<8x256xf32>
    %320 = arith.addf %318, %319 : vector<8x256xf32>
    %cst_201 = arith.constant 0.000000e+00 : f32
    %321 = vector.broadcast %cst_201 : f32 to vector<8x256xf32>
    %322 = arith.maximumf %320, %321 : vector<8x256xf32>
    %c2_202 = arith.constant 2 : index
    %c0_203 = arith.constant 0 : index
    %c0_204 = arith.constant 0 : index
    %323 = vector.load %arg4[%c2_202, %c0_203, %c0_204] : memref<16x8x256xf32, #tpu.memory_space<vmem>>, vector<1x8x256xf32>
    %324 = vector.shape_cast %323 : vector<1x8x256xf32> to vector<8x256xf32>
    %325 = vector.shape_cast %322 : vector<8x256xf32> to vector<1x8x256xf32>
    tpu.vector_store %arg4[%c2_202, %c0_203, %c0_204], %325 {strides = array<i32>} : memref<16x8x256xf32, #tpu.memory_space<vmem>>, vector<1x8x256xf32>,
    %c3_205 = arith.constant 3 : index
    %c0_206 = arith.constant 0 : index
    %c0_207 = arith.constant 0 : index
    %326 = vector.load %arg4[%c3_205, %c0_206, %c0_207] : memref<16x8x256xf32, #tpu.memory_space<vmem>>, vector<1x8x256xf32>
    %327 = vector.shape_cast %326 : vector<1x8x256xf32> to vector<8x256xf32>
    %328 = vector.broadcast %289 : vector<1x256xf32> to vector<8x256xf32>
    %329 = arith.mulf %327, %328 : vector<8x256xf32>
    %330 = vector.broadcast %292 : vector<1x256xf32> to vector<8x256xf32>
    %331 = arith.addf %329, %330 : vector<8x256xf32>
    %cst_208 = arith.constant 0.000000e+00 : f32
    %332 = vector.broadcast %cst_208 : f32 to vector<8x256xf32>
    %333 = arith.maximumf %331, %332 : vector<8x256xf32>
    %c3_209 = arith.constant 3 : index
    %c0_210 = arith.constant 0 : index
    %c0_211 = arith.constant 0 : index
    %334 = vector.load %arg4[%c3_209, %c0_210, %c0_211] : memref<16x8x256xf32, #tpu.memory_space<vmem>>, vector<1x8x256xf32>
    %335 = vector.shape_cast %334 : vector<1x8x256xf32> to vector<8x256xf32>
    %336 = vector.shape_cast %333 : vector<8x256xf32> to vector<1x8x256xf32>
    tpu.vector_store %arg4[%c3_209, %c0_210, %c0_211], %336 {strides = array<i32>} : memref<16x8x256xf32, #tpu.memory_space<vmem>>, vector<1x8x256xf32>,
    %c4_212 = arith.constant 4 : index
    %c0_213 = arith.constant 0 : index
    %c0_214 = arith.constant 0 : index
    %337 = vector.load %arg4[%c4_212, %c0_213, %c0_214] : memref<16x8x256xf32, #tpu.memory_space<vmem>>, vector<1x8x256xf32>
    %338 = vector.shape_cast %337 : vector<1x8x256xf32> to vector<8x256xf32>
    %339 = vector.broadcast %289 : vector<1x256xf32> to vector<8x256xf32>
    %340 = arith.mulf %338, %339 : vector<8x256xf32>
    %341 = vector.broadcast %292 : vector<1x256xf32> to vector<8x256xf32>
    %342 = arith.addf %340, %341 : vector<8x256xf32>
    %cst_215 = arith.constant 0.000000e+00 : f32
    %343 = vector.broadcast %cst_215 : f32 to vector<8x256xf32>
    %344 = arith.maximumf %342, %343 : vector<8x256xf32>
    %c4_216 = arith.constant 4 : index
    %c0_217 = arith.constant 0 : index
    %c0_218 = arith.constant 0 : index
    %345 = vector.load %arg4[%c4_216, %c0_217, %c0_218] : memref<16x8x256xf32, #tpu.memory_space<vmem>>, vector<1x8x256xf32>
    %346 = vector.shape_cast %345 : vector<1x8x256xf32> to vector<8x256xf32>
    %347 = vector.shape_cast %344 : vector<8x256xf32> to vector<1x8x256xf32>
    tpu.vector_store %arg4[%c4_216, %c0_217, %c0_218], %347 {strides = array<i32>} : memref<16x8x256xf32, #tpu.memory_space<vmem>>, vector<1x8x256xf32>,
    %c5_219 = arith.constant 5 : index
    %c0_220 = arith.constant 0 : index
    %c0_221 = arith.constant 0 : index
    %348 = vector.load %arg4[%c5_219, %c0_220, %c0_221] : memref<16x8x256xf32, #tpu.memory_space<vmem>>, vector<1x8x256xf32>
    %349 = vector.shape_cast %348 : vector<1x8x256xf32> to vector<8x256xf32>
    %350 = vector.broadcast %289 : vector<1x256xf32> to vector<8x256xf32>
    %351 = arith.mulf %349, %350 : vector<8x256xf32>
    %352 = vector.broadcast %292 : vector<1x256xf32> to vector<8x256xf32>
    %353 = arith.addf %351, %352 : vector<8x256xf32>
    %cst_222 = arith.constant 0.000000e+00 : f32
    %354 = vector.broadcast %cst_222 : f32 to vector<8x256xf32>
    %355 = arith.maximumf %353, %354 : vector<8x256xf32>
    %c5_223 = arith.constant 5 : index
    %c0_224 = arith.constant 0 : index
    %c0_225 = arith.constant 0 : index
    %356 = vector.load %arg4[%c5_223, %c0_224, %c0_225] : memref<16x8x256xf32, #tpu.memory_space<vmem>>, vector<1x8x256xf32>
    %357 = vector.shape_cast %356 : vector<1x8x256xf32> to vector<8x256xf32>
    %358 = vector.shape_cast %355 : vector<8x256xf32> to vector<1x8x256xf32>
    tpu.vector_store %arg4[%c5_223, %c0_224, %c0_225], %358 {strides = array<i32>} : memref<16x8x256xf32, #tpu.memory_space<vmem>>, vector<1x8x256xf32>,
    %c6_226 = arith.constant 6 : index
    %c0_227 = arith.constant 0 : index
    %c0_228 = arith.constant 0 : index
    %359 = vector.load %arg4[%c6_226, %c0_227, %c0_228] : memref<16x8x256xf32, #tpu.memory_space<vmem>>, vector<1x8x256xf32>
    %360 = vector.shape_cast %359 : vector<1x8x256xf32> to vector<8x256xf32>
    %361 = vector.broadcast %289 : vector<1x256xf32> to vector<8x256xf32>
    %362 = arith.mulf %360, %361 : vector<8x256xf32>
    %363 = vector.broadcast %292 : vector<1x256xf32> to vector<8x256xf32>
    %364 = arith.addf %362, %363 : vector<8x256xf32>
    %cst_229 = arith.constant 0.000000e+00 : f32
    %365 = vector.broadcast %cst_229 : f32 to vector<8x256xf32>
    %366 = arith.maximumf %364, %365 : vector<8x256xf32>
    %c6_230 = arith.constant 6 : index
    %c0_231 = arith.constant 0 : index
    %c0_232 = arith.constant 0 : index
    %367 = vector.load %arg4[%c6_230, %c0_231, %c0_232] : memref<16x8x256xf32, #tpu.memory_space<vmem>>, vector<1x8x256xf32>
    %368 = vector.shape_cast %367 : vector<1x8x256xf32> to vector<8x256xf32>
    %369 = vector.shape_cast %366 : vector<8x256xf32> to vector<1x8x256xf32>
    tpu.vector_store %arg4[%c6_230, %c0_231, %c0_232], %369 {strides = array<i32>} : memref<16x8x256xf32, #tpu.memory_space<vmem>>, vector<1x8x256xf32>,
    %c7_233 = arith.constant 7 : index
    %c0_234 = arith.constant 0 : index
    %c0_235 = arith.constant 0 : index
    %370 = vector.load %arg4[%c7_233, %c0_234, %c0_235] : memref<16x8x256xf32, #tpu.memory_space<vmem>>, vector<1x8x256xf32>
    %371 = vector.shape_cast %370 : vector<1x8x256xf32> to vector<8x256xf32>
    %372 = vector.broadcast %289 : vector<1x256xf32> to vector<8x256xf32>
    %373 = arith.mulf %371, %372 : vector<8x256xf32>
    %374 = vector.broadcast %292 : vector<1x256xf32> to vector<8x256xf32>
    %375 = arith.addf %373, %374 : vector<8x256xf32>
    %cst_236 = arith.constant 0.000000e+00 : f32
    %376 = vector.broadcast %cst_236 : f32 to vector<8x256xf32>
    %377 = arith.maximumf %375, %376 : vector<8x256xf32>
    %c7_237 = arith.constant 7 : index
    %c0_238 = arith.constant 0 : index
    %c0_239 = arith.constant 0 : index
    %378 = vector.load %arg4[%c7_237, %c0_238, %c0_239] : memref<16x8x256xf32, #tpu.memory_space<vmem>>, vector<1x8x256xf32>
    %379 = vector.shape_cast %378 : vector<1x8x256xf32> to vector<8x256xf32>
    %380 = vector.shape_cast %377 : vector<8x256xf32> to vector<1x8x256xf32>
    tpu.vector_store %arg4[%c7_237, %c0_238, %c0_239], %380 {strides = array<i32>} : memref<16x8x256xf32, #tpu.memory_space<vmem>>, vector<1x8x256xf32>,
    %c8_240 = arith.constant 8 : index
    %c0_241 = arith.constant 0 : index
    %c0_242 = arith.constant 0 : index
    %381 = vector.load %arg4[%c8_240, %c0_241, %c0_242] : memref<16x8x256xf32, #tpu.memory_space<vmem>>, vector<1x8x256xf32>
    %382 = vector.shape_cast %381 : vector<1x8x256xf32> to vector<8x256xf32>
    %383 = vector.broadcast %289 : vector<1x256xf32> to vector<8x256xf32>
    %384 = arith.mulf %382, %383 : vector<8x256xf32>
    %385 = vector.broadcast %292 : vector<1x256xf32> to vector<8x256xf32>
    %386 = arith.addf %384, %385 : vector<8x256xf32>
    %cst_243 = arith.constant 0.000000e+00 : f32
    %387 = vector.broadcast %cst_243 : f32 to vector<8x256xf32>
    %388 = arith.maximumf %386, %387 : vector<8x256xf32>
    %c8_244 = arith.constant 8 : index
    %c0_245 = arith.constant 0 : index
    %c0_246 = arith.constant 0 : index
    %389 = vector.load %arg4[%c8_244, %c0_245, %c0_246] : memref<16x8x256xf32, #tpu.memory_space<vmem>>, vector<1x8x256xf32>
    %390 = vector.shape_cast %389 : vector<1x8x256xf32> to vector<8x256xf32>
    %391 = vector.shape_cast %388 : vector<8x256xf32> to vector<1x8x256xf32>
    tpu.vector_store %arg4[%c8_244, %c0_245, %c0_246], %391 {strides = array<i32>} : memref<16x8x256xf32, #tpu.memory_space<vmem>>, vector<1x8x256xf32>,
    %c9_247 = arith.constant 9 : index
    %c0_248 = arith.constant 0 : index
    %c0_249 = arith.constant 0 : index
    %392 = vector.load %arg4[%c9_247, %c0_248, %c0_249] : memref<16x8x256xf32, #tpu.memory_space<vmem>>, vector<1x8x256xf32>
    %393 = vector.shape_cast %392 : vector<1x8x256xf32> to vector<8x256xf32>
    %394 = vector.broadcast %289 : vector<1x256xf32> to vector<8x256xf32>
    %395 = arith.mulf %393, %394 : vector<8x256xf32>
    %396 = vector.broadcast %292 : vector<1x256xf32> to vector<8x256xf32>
    %397 = arith.addf %395, %396 : vector<8x256xf32>
    %cst_250 = arith.constant 0.000000e+00 : f32
    %398 = vector.broadcast %cst_250 : f32 to vector<8x256xf32>
    %399 = arith.maximumf %397, %398 : vector<8x256xf32>
    %c9_251 = arith.constant 9 : index
    %c0_252 = arith.constant 0 : index
    %c0_253 = arith.constant 0 : index
    %400 = vector.load %arg4[%c9_251, %c0_252, %c0_253] : memref<16x8x256xf32, #tpu.memory_space<vmem>>, vector<1x8x256xf32>
    %401 = vector.shape_cast %400 : vector<1x8x256xf32> to vector<8x256xf32>
    %402 = vector.shape_cast %399 : vector<8x256xf32> to vector<1x8x256xf32>
    tpu.vector_store %arg4[%c9_251, %c0_252, %c0_253], %402 {strides = array<i32>} : memref<16x8x256xf32, #tpu.memory_space<vmem>>, vector<1x8x256xf32>,
    %c10_254 = arith.constant 10 : index
    %c0_255 = arith.constant 0 : index
    %c0_256 = arith.constant 0 : index
    %403 = vector.load %arg4[%c10_254, %c0_255, %c0_256] : memref<16x8x256xf32, #tpu.memory_space<vmem>>, vector<1x8x256xf32>
    %404 = vector.shape_cast %403 : vector<1x8x256xf32> to vector<8x256xf32>
    %405 = vector.broadcast %289 : vector<1x256xf32> to vector<8x256xf32>
    %406 = arith.mulf %404, %405 : vector<8x256xf32>
    %407 = vector.broadcast %292 : vector<1x256xf32> to vector<8x256xf32>
    %408 = arith.addf %406, %407 : vector<8x256xf32>
    %cst_257 = arith.constant 0.000000e+00 : f32
    %409 = vector.broadcast %cst_257 : f32 to vector<8x256xf32>
    %410 = arith.maximumf %408, %409 : vector<8x256xf32>
    %c10_258 = arith.constant 10 : index
    %c0_259 = arith.constant 0 : index
    %c0_260 = arith.constant 0 : index
    %411 = vector.load %arg4[%c10_258, %c0_259, %c0_260] : memref<16x8x256xf32, #tpu.memory_space<vmem>>, vector<1x8x256xf32>
    %412 = vector.shape_cast %411 : vector<1x8x256xf32> to vector<8x256xf32>
    %413 = vector.shape_cast %410 : vector<8x256xf32> to vector<1x8x256xf32>
    tpu.vector_store %arg4[%c10_258, %c0_259, %c0_260], %413 {strides = array<i32>} : memref<16x8x256xf32, #tpu.memory_space<vmem>>, vector<1x8x256xf32>,
    %c11_261 = arith.constant 11 : index
    %c0_262 = arith.constant 0 : index
    %c0_263 = arith.constant 0 : index
    %414 = vector.load %arg4[%c11_261, %c0_262, %c0_263] : memref<16x8x256xf32, #tpu.memory_space<vmem>>, vector<1x8x256xf32>
    %415 = vector.shape_cast %414 : vector<1x8x256xf32> to vector<8x256xf32>
    %416 = vector.broadcast %289 : vector<1x256xf32> to vector<8x256xf32>
    %417 = arith.mulf %415, %416 : vector<8x256xf32>
    %418 = vector.broadcast %292 : vector<1x256xf32> to vector<8x256xf32>
    %419 = arith.addf %417, %418 : vector<8x256xf32>
    %cst_264 = arith.constant 0.000000e+00 : f32
    %420 = vector.broadcast %cst_264 : f32 to vector<8x256xf32>
    %421 = arith.maximumf %419, %420 : vector<8x256xf32>
    %c11_265 = arith.constant 11 : index
    %c0_266 = arith.constant 0 : index
    %c0_267 = arith.constant 0 : index
    %422 = vector.load %arg4[%c11_265, %c0_266, %c0_267] : memref<16x8x256xf32, #tpu.memory_space<vmem>>, vector<1x8x256xf32>
    %423 = vector.shape_cast %422 : vector<1x8x256xf32> to vector<8x256xf32>
    %424 = vector.shape_cast %421 : vector<8x256xf32> to vector<1x8x256xf32>
    tpu.vector_store %arg4[%c11_265, %c0_266, %c0_267], %424 {strides = array<i32>} : memref<16x8x256xf32, #tpu.memory_space<vmem>>, vector<1x8x256xf32>,
    %c12_268 = arith.constant 12 : index
    %c0_269 = arith.constant 0 : index
    %c0_270 = arith.constant 0 : index
    %425 = vector.load %arg4[%c12_268, %c0_269, %c0_270] : memref<16x8x256xf32, #tpu.memory_space<vmem>>, vector<1x8x256xf32>
    %426 = vector.shape_cast %425 : vector<1x8x256xf32> to vector<8x256xf32>
    %427 = vector.broadcast %289 : vector<1x256xf32> to vector<8x256xf32>
    %428 = arith.mulf %426, %427 : vector<8x256xf32>
    %429 = vector.broadcast %292 : vector<1x256xf32> to vector<8x256xf32>
    %430 = arith.addf %428, %429 : vector<8x256xf32>
    %cst_271 = arith.constant 0.000000e+00 : f32
    %431 = vector.broadcast %cst_271 : f32 to vector<8x256xf32>
    %432 = arith.maximumf %430, %431 : vector<8x256xf32>
    %c12_272 = arith.constant 12 : index
    %c0_273 = arith.constant 0 : index
    %c0_274 = arith.constant 0 : index
    %433 = vector.load %arg4[%c12_272, %c0_273, %c0_274] : memref<16x8x256xf32, #tpu.memory_space<vmem>>, vector<1x8x256xf32>
    %434 = vector.shape_cast %433 : vector<1x8x256xf32> to vector<8x256xf32>
    %435 = vector.shape_cast %432 : vector<8x256xf32> to vector<1x8x256xf32>
    tpu.vector_store %arg4[%c12_272, %c0_273, %c0_274], %435 {strides = array<i32>} : memref<16x8x256xf32, #tpu.memory_space<vmem>>, vector<1x8x256xf32>,
    %c13_275 = arith.constant 13 : index
    %c0_276 = arith.constant 0 : index
    %c0_277 = arith.constant 0 : index
    %436 = vector.load %arg4[%c13_275, %c0_276, %c0_277] : memref<16x8x256xf32, #tpu.memory_space<vmem>>, vector<1x8x256xf32>
    %437 = vector.shape_cast %436 : vector<1x8x256xf32> to vector<8x256xf32>
    %438 = vector.broadcast %289 : vector<1x256xf32> to vector<8x256xf32>
    %439 = arith.mulf %437, %438 : vector<8x256xf32>
    %440 = vector.broadcast %292 : vector<1x256xf32> to vector<8x256xf32>
    %441 = arith.addf %439, %440 : vector<8x256xf32>
    %cst_278 = arith.constant 0.000000e+00 : f32
    %442 = vector.broadcast %cst_278 : f32 to vector<8x256xf32>
    %443 = arith.maximumf %441, %442 : vector<8x256xf32>
    %c13_279 = arith.constant 13 : index
    %c0_280 = arith.constant 0 : index
    %c0_281 = arith.constant 0 : index
    %444 = vector.load %arg4[%c13_279, %c0_280, %c0_281] : memref<16x8x256xf32, #tpu.memory_space<vmem>>, vector<1x8x256xf32>
    %445 = vector.shape_cast %444 : vector<1x8x256xf32> to vector<8x256xf32>
    %446 = vector.shape_cast %443 : vector<8x256xf32> to vector<1x8x256xf32>
    tpu.vector_store %arg4[%c13_279, %c0_280, %c0_281], %446 {strides = array<i32>} : memref<16x8x256xf32, #tpu.memory_space<vmem>>, vector<1x8x256xf32>,
    %c14_282 = arith.constant 14 : index
    %c0_283 = arith.constant 0 : index
    %c0_284 = arith.constant 0 : index
    %447 = vector.load %arg4[%c14_282, %c0_283, %c0_284] : memref<16x8x256xf32, #tpu.memory_space<vmem>>, vector<1x8x256xf32>
    %448 = vector.shape_cast %447 : vector<1x8x256xf32> to vector<8x256xf32>
    %449 = vector.broadcast %289 : vector<1x256xf32> to vector<8x256xf32>
    %450 = arith.mulf %448, %449 : vector<8x256xf32>
    %451 = vector.broadcast %292 : vector<1x256xf32> to vector<8x256xf32>
    %452 = arith.addf %450, %451 : vector<8x256xf32>
    %cst_285 = arith.constant 0.000000e+00 : f32
    %453 = vector.broadcast %cst_285 : f32 to vector<8x256xf32>
    %454 = arith.maximumf %452, %453 : vector<8x256xf32>
    %c14_286 = arith.constant 14 : index
    %c0_287 = arith.constant 0 : index
    %c0_288 = arith.constant 0 : index
    %455 = vector.load %arg4[%c14_286, %c0_287, %c0_288] : memref<16x8x256xf32, #tpu.memory_space<vmem>>, vector<1x8x256xf32>
    %456 = vector.shape_cast %455 : vector<1x8x256xf32> to vector<8x256xf32>
    %457 = vector.shape_cast %454 : vector<8x256xf32> to vector<1x8x256xf32>
    tpu.vector_store %arg4[%c14_286, %c0_287, %c0_288], %457 {strides = array<i32>} : memref<16x8x256xf32, #tpu.memory_space<vmem>>, vector<1x8x256xf32>,
    %c15_289 = arith.constant 15 : index
    %c0_290 = arith.constant 0 : index
    %c0_291 = arith.constant 0 : index
    %458 = vector.load %arg4[%c15_289, %c0_290, %c0_291] : memref<16x8x256xf32, #tpu.memory_space<vmem>>, vector<1x8x256xf32>
    %459 = vector.shape_cast %458 : vector<1x8x256xf32> to vector<8x256xf32>
    %460 = vector.broadcast %289 : vector<1x256xf32> to vector<8x256xf32>
    %461 = arith.mulf %459, %460 : vector<8x256xf32>
    %462 = vector.broadcast %292 : vector<1x256xf32> to vector<8x256xf32>
    %463 = arith.addf %461, %462 : vector<8x256xf32>
    %cst_292 = arith.constant 0.000000e+00 : f32
    %464 = vector.broadcast %cst_292 : f32 to vector<8x256xf32>
    %465 = arith.maximumf %463, %464 : vector<8x256xf32>
    %c15_293 = arith.constant 15 : index
    %c0_294 = arith.constant 0 : index
    %c0_295 = arith.constant 0 : index
    %466 = vector.load %arg4[%c15_293, %c0_294, %c0_295] : memref<16x8x256xf32, #tpu.memory_space<vmem>>, vector<1x8x256xf32>
    %467 = vector.shape_cast %466 : vector<1x8x256xf32> to vector<8x256xf32>
    %468 = vector.shape_cast %465 : vector<8x256xf32> to vector<1x8x256xf32>
    tpu.vector_store %arg4[%c15_293, %c0_294, %c0_295], %468 {strides = array<i32>} : memref<16x8x256xf32, #tpu.memory_space<vmem>>, vector<1x8x256xf32>,
    return
  }
}

module attributes {stable_mosaic.version = 11 : i64} {
  func.func @_phase_mm_bn_relu_kernel(%arg0: memref<4x32x1024xbf16, #tpu.memory_space<vmem>>, %arg1: memref<4x1024x128xbf16, #tpu.memory_space<vmem>>, %arg2: memref<1x128xf32, #tpu.memory_space<vmem>>, %arg3: memref<1x128xf32, #tpu.memory_space<vmem>>, %arg4: memref<4x32x128xf32, #tpu.memory_space<vmem>>) attributes {dimension_semantics = [], scalar_prefetch = 0 : i64, scratch_operands = 0 : i64, tpu.core_type = #tpu.core_type<tc>} {
    %cst = arith.constant 0.000000e+00 : f32
    %0 = vector.broadcast %cst : f32 to vector<1x128xf32>
    %cst_0 = arith.constant 0.000000e+00 : f32
    %1 = vector.broadcast %cst_0 : f32 to vector<1x128xf32>
    %c0 = arith.constant 0 : index
    %c0_1 = arith.constant 0 : index
    %c0_2 = arith.constant 0 : index
    %2 = vector.load %arg0[%c0, %c0_1, %c0_2] : memref<4x32x1024xbf16, #tpu.memory_space<vmem>>, vector<1x32x1024xbf16>
    %3 = vector.shape_cast %2 : vector<1x32x1024xbf16> to vector<32x1024xbf16>
    %c0_3 = arith.constant 0 : index
    %c0_4 = arith.constant 0 : index
    %c0_5 = arith.constant 0 : index
    %4 = vector.load %arg1[%c0_3, %c0_4, %c0_5] : memref<4x1024x128xbf16, #tpu.memory_space<vmem>>, vector<1x1024x128xbf16>
    %5 = vector.shape_cast %4 : vector<1x1024x128xbf16> to vector<1024x128xbf16>
    %cst_6 = arith.constant dense<0.000000e+00> : vector<32x128xf32>
    %6 = tpu.matmul %3, %5, %cst_6 {dimension_numbers = #tpu.dot_dimension_numbers<[1], [0], [0], [1], [0, 0, 1, 1], [], []>} : vector<32x1024xbf16>, vector<1024x128xbf16>, vector<32x128xf32> -> vector<32x128xf32>
    %cst_7 = arith.constant dense<0.000000e+00> : vector<128xf32>
    %7 = vector.multi_reduction <add>, %6, %cst_7 [0] : vector<32x128xf32> to vector<128xf32>
    %8 = vector.shape_cast %7 : vector<128xf32> to vector<1x128xf32>
    %9 = arith.addf %0, %8 : vector<1x128xf32>
    %10 = arith.mulf %6, %6 : vector<32x128xf32>
    %cst_8 = arith.constant dense<0.000000e+00> : vector<128xf32>
    %11 = vector.multi_reduction <add>, %10, %cst_8 [0] : vector<32x128xf32> to vector<128xf32>
    %12 = vector.shape_cast %11 : vector<128xf32> to vector<1x128xf32>
    %13 = arith.addf %1, %12 : vector<1x128xf32>
    %c0_9 = arith.constant 0 : index
    %c0_10 = arith.constant 0 : index
    %c0_11 = arith.constant 0 : index
    %14 = vector.load %arg4[%c0_9, %c0_10, %c0_11] : memref<4x32x128xf32, #tpu.memory_space<vmem>>, vector<1x32x128xf32>
    %15 = vector.shape_cast %14 : vector<1x32x128xf32> to vector<32x128xf32>
    %16 = vector.shape_cast %6 : vector<32x128xf32> to vector<1x32x128xf32>
    tpu.vector_store %arg4[%c0_9, %c0_10, %c0_11], %16 {strides = array<i32>} : memref<4x32x128xf32, #tpu.memory_space<vmem>>, vector<1x32x128xf32>,
    %c1 = arith.constant 1 : index
    %c0_12 = arith.constant 0 : index
    %c0_13 = arith.constant 0 : index
    %17 = vector.load %arg0[%c1, %c0_12, %c0_13] : memref<4x32x1024xbf16, #tpu.memory_space<vmem>>, vector<1x32x1024xbf16>
    %18 = vector.shape_cast %17 : vector<1x32x1024xbf16> to vector<32x1024xbf16>
    %c1_14 = arith.constant 1 : index
    %c0_15 = arith.constant 0 : index
    %c0_16 = arith.constant 0 : index
    %19 = vector.load %arg1[%c1_14, %c0_15, %c0_16] : memref<4x1024x128xbf16, #tpu.memory_space<vmem>>, vector<1x1024x128xbf16>
    %20 = vector.shape_cast %19 : vector<1x1024x128xbf16> to vector<1024x128xbf16>
    %cst_17 = arith.constant dense<0.000000e+00> : vector<32x128xf32>
    %21 = tpu.matmul %18, %20, %cst_17 {dimension_numbers = #tpu.dot_dimension_numbers<[1], [0], [0], [1], [0, 0, 1, 1], [], []>} : vector<32x1024xbf16>, vector<1024x128xbf16>, vector<32x128xf32> -> vector<32x128xf32>
    %cst_18 = arith.constant dense<0.000000e+00> : vector<128xf32>
    %22 = vector.multi_reduction <add>, %21, %cst_18 [0] : vector<32x128xf32> to vector<128xf32>
    %23 = vector.shape_cast %22 : vector<128xf32> to vector<1x128xf32>
    %24 = arith.addf %9, %23 : vector<1x128xf32>
    %25 = arith.mulf %21, %21 : vector<32x128xf32>
    %cst_19 = arith.constant dense<0.000000e+00> : vector<128xf32>
    %26 = vector.multi_reduction <add>, %25, %cst_19 [0] : vector<32x128xf32> to vector<128xf32>
    %27 = vector.shape_cast %26 : vector<128xf32> to vector<1x128xf32>
    %28 = arith.addf %13, %27 : vector<1x128xf32>
    %c1_20 = arith.constant 1 : index
    %c0_21 = arith.constant 0 : index
    %c0_22 = arith.constant 0 : index
    %29 = vector.load %arg4[%c1_20, %c0_21, %c0_22] : memref<4x32x128xf32, #tpu.memory_space<vmem>>, vector<1x32x128xf32>
    %30 = vector.shape_cast %29 : vector<1x32x128xf32> to vector<32x128xf32>
    %31 = vector.shape_cast %21 : vector<32x128xf32> to vector<1x32x128xf32>
    tpu.vector_store %arg4[%c1_20, %c0_21, %c0_22], %31 {strides = array<i32>} : memref<4x32x128xf32, #tpu.memory_space<vmem>>, vector<1x32x128xf32>,
    %c2 = arith.constant 2 : index
    %c0_23 = arith.constant 0 : index
    %c0_24 = arith.constant 0 : index
    %32 = vector.load %arg0[%c2, %c0_23, %c0_24] : memref<4x32x1024xbf16, #tpu.memory_space<vmem>>, vector<1x32x1024xbf16>
    %33 = vector.shape_cast %32 : vector<1x32x1024xbf16> to vector<32x1024xbf16>
    %c2_25 = arith.constant 2 : index
    %c0_26 = arith.constant 0 : index
    %c0_27 = arith.constant 0 : index
    %34 = vector.load %arg1[%c2_25, %c0_26, %c0_27] : memref<4x1024x128xbf16, #tpu.memory_space<vmem>>, vector<1x1024x128xbf16>
    %35 = vector.shape_cast %34 : vector<1x1024x128xbf16> to vector<1024x128xbf16>
    %cst_28 = arith.constant dense<0.000000e+00> : vector<32x128xf32>
    %36 = tpu.matmul %33, %35, %cst_28 {dimension_numbers = #tpu.dot_dimension_numbers<[1], [0], [0], [1], [0, 0, 1, 1], [], []>} : vector<32x1024xbf16>, vector<1024x128xbf16>, vector<32x128xf32> -> vector<32x128xf32>
    %cst_29 = arith.constant dense<0.000000e+00> : vector<128xf32>
    %37 = vector.multi_reduction <add>, %36, %cst_29 [0] : vector<32x128xf32> to vector<128xf32>
    %38 = vector.shape_cast %37 : vector<128xf32> to vector<1x128xf32>
    %39 = arith.addf %24, %38 : vector<1x128xf32>
    %40 = arith.mulf %36, %36 : vector<32x128xf32>
    %cst_30 = arith.constant dense<0.000000e+00> : vector<128xf32>
    %41 = vector.multi_reduction <add>, %40, %cst_30 [0] : vector<32x128xf32> to vector<128xf32>
    %42 = vector.shape_cast %41 : vector<128xf32> to vector<1x128xf32>
    %43 = arith.addf %28, %42 : vector<1x128xf32>
    %c2_31 = arith.constant 2 : index
    %c0_32 = arith.constant 0 : index
    %c0_33 = arith.constant 0 : index
    %44 = vector.load %arg4[%c2_31, %c0_32, %c0_33] : memref<4x32x128xf32, #tpu.memory_space<vmem>>, vector<1x32x128xf32>
    %45 = vector.shape_cast %44 : vector<1x32x128xf32> to vector<32x128xf32>
    %46 = vector.shape_cast %36 : vector<32x128xf32> to vector<1x32x128xf32>
    tpu.vector_store %arg4[%c2_31, %c0_32, %c0_33], %46 {strides = array<i32>} : memref<4x32x128xf32, #tpu.memory_space<vmem>>, vector<1x32x128xf32>,
    %c3 = arith.constant 3 : index
    %c0_34 = arith.constant 0 : index
    %c0_35 = arith.constant 0 : index
    %47 = vector.load %arg0[%c3, %c0_34, %c0_35] : memref<4x32x1024xbf16, #tpu.memory_space<vmem>>, vector<1x32x1024xbf16>
    %48 = vector.shape_cast %47 : vector<1x32x1024xbf16> to vector<32x1024xbf16>
    %c3_36 = arith.constant 3 : index
    %c0_37 = arith.constant 0 : index
    %c0_38 = arith.constant 0 : index
    %49 = vector.load %arg1[%c3_36, %c0_37, %c0_38] : memref<4x1024x128xbf16, #tpu.memory_space<vmem>>, vector<1x1024x128xbf16>
    %50 = vector.shape_cast %49 : vector<1x1024x128xbf16> to vector<1024x128xbf16>
    %cst_39 = arith.constant dense<0.000000e+00> : vector<32x128xf32>
    %51 = tpu.matmul %48, %50, %cst_39 {dimension_numbers = #tpu.dot_dimension_numbers<[1], [0], [0], [1], [0, 0, 1, 1], [], []>} : vector<32x1024xbf16>, vector<1024x128xbf16>, vector<32x128xf32> -> vector<32x128xf32>
    %cst_40 = arith.constant dense<0.000000e+00> : vector<128xf32>
    %52 = vector.multi_reduction <add>, %51, %cst_40 [0] : vector<32x128xf32> to vector<128xf32>
    %53 = vector.shape_cast %52 : vector<128xf32> to vector<1x128xf32>
    %54 = arith.addf %39, %53 : vector<1x128xf32>
    %55 = arith.mulf %51, %51 : vector<32x128xf32>
    %cst_41 = arith.constant dense<0.000000e+00> : vector<128xf32>
    %56 = vector.multi_reduction <add>, %55, %cst_41 [0] : vector<32x128xf32> to vector<128xf32>
    %57 = vector.shape_cast %56 : vector<128xf32> to vector<1x128xf32>
    %58 = arith.addf %43, %57 : vector<1x128xf32>
    %c3_42 = arith.constant 3 : index
    %c0_43 = arith.constant 0 : index
    %c0_44 = arith.constant 0 : index
    %59 = vector.load %arg4[%c3_42, %c0_43, %c0_44] : memref<4x32x128xf32, #tpu.memory_space<vmem>>, vector<1x32x128xf32>
    %60 = vector.shape_cast %59 : vector<1x32x128xf32> to vector<32x128xf32>
    %61 = vector.shape_cast %51 : vector<32x128xf32> to vector<1x32x128xf32>
    tpu.vector_store %arg4[%c3_42, %c0_43, %c0_44], %61 {strides = array<i32>} : memref<4x32x128xf32, #tpu.memory_space<vmem>>, vector<1x32x128xf32>,
    %cst_45 = arith.constant 7.812500e-03 : f32
    %62 = vector.broadcast %cst_45 : f32 to vector<1x128xf32>
    %63 = arith.mulf %54, %62 : vector<1x128xf32>
    %cst_46 = arith.constant 7.812500e-03 : f32
    %64 = vector.broadcast %cst_46 : f32 to vector<1x128xf32>
    %65 = arith.mulf %58, %64 : vector<1x128xf32>
    %66 = arith.mulf %63, %63 : vector<1x128xf32>
    %67 = arith.subf %65, %66 : vector<1x128xf32>
    %c0_47 = arith.constant 0 : index
    %c0_48 = arith.constant 0 : index
    %68 = vector.load %arg2[%c0_47, %c0_48] : memref<1x128xf32, #tpu.memory_space<vmem>>, vector<1x128xf32>
    %cst_49 = arith.constant 9.99999974E-6 : f32
    %69 = vector.broadcast %cst_49 : f32 to vector<1x128xf32>
    %70 = arith.addf %67, %69 : vector<1x128xf32>
    %71 = math.rsqrt %70 : vector<1x128xf32>
    %72 = arith.mulf %68, %71 : vector<1x128xf32>
    %c0_50 = arith.constant 0 : index
    %c0_51 = arith.constant 0 : index
    %73 = vector.load %arg3[%c0_50, %c0_51] : memref<1x128xf32, #tpu.memory_space<vmem>>, vector<1x128xf32>
    %74 = arith.mulf %63, %72 : vector<1x128xf32>
    %75 = arith.subf %73, %74 : vector<1x128xf32>
    %c0_52 = arith.constant 0 : index
    %c0_53 = arith.constant 0 : index
    %c0_54 = arith.constant 0 : index
    %76 = vector.load %arg4[%c0_52, %c0_53, %c0_54] : memref<4x32x128xf32, #tpu.memory_space<vmem>>, vector<1x32x128xf32>
    %77 = vector.shape_cast %76 : vector<1x32x128xf32> to vector<32x128xf32>
    %78 = vector.broadcast %72 : vector<1x128xf32> to vector<32x128xf32>
    %79 = arith.mulf %77, %78 : vector<32x128xf32>
    %80 = vector.broadcast %75 : vector<1x128xf32> to vector<32x128xf32>
    %81 = arith.addf %79, %80 : vector<32x128xf32>
    %cst_55 = arith.constant 0.000000e+00 : f32
    %82 = vector.broadcast %cst_55 : f32 to vector<32x128xf32>
    %83 = arith.maximumf %81, %82 : vector<32x128xf32>
    %c0_56 = arith.constant 0 : index
    %c0_57 = arith.constant 0 : index
    %c0_58 = arith.constant 0 : index
    %84 = vector.load %arg4[%c0_56, %c0_57, %c0_58] : memref<4x32x128xf32, #tpu.memory_space<vmem>>, vector<1x32x128xf32>
    %85 = vector.shape_cast %84 : vector<1x32x128xf32> to vector<32x128xf32>
    %86 = vector.shape_cast %83 : vector<32x128xf32> to vector<1x32x128xf32>
    tpu.vector_store %arg4[%c0_56, %c0_57, %c0_58], %86 {strides = array<i32>} : memref<4x32x128xf32, #tpu.memory_space<vmem>>, vector<1x32x128xf32>,
    %c1_59 = arith.constant 1 : index
    %c0_60 = arith.constant 0 : index
    %c0_61 = arith.constant 0 : index
    %87 = vector.load %arg4[%c1_59, %c0_60, %c0_61] : memref<4x32x128xf32, #tpu.memory_space<vmem>>, vector<1x32x128xf32>
    %88 = vector.shape_cast %87 : vector<1x32x128xf32> to vector<32x128xf32>
    %89 = vector.broadcast %72 : vector<1x128xf32> to vector<32x128xf32>
    %90 = arith.mulf %88, %89 : vector<32x128xf32>
    %91 = vector.broadcast %75 : vector<1x128xf32> to vector<32x128xf32>
    %92 = arith.addf %90, %91 : vector<32x128xf32>
    %cst_62 = arith.constant 0.000000e+00 : f32
    %93 = vector.broadcast %cst_62 : f32 to vector<32x128xf32>
    %94 = arith.maximumf %92, %93 : vector<32x128xf32>
    %c1_63 = arith.constant 1 : index
    %c0_64 = arith.constant 0 : index
    %c0_65 = arith.constant 0 : index
    %95 = vector.load %arg4[%c1_63, %c0_64, %c0_65] : memref<4x32x128xf32, #tpu.memory_space<vmem>>, vector<1x32x128xf32>
    %96 = vector.shape_cast %95 : vector<1x32x128xf32> to vector<32x128xf32>
    %97 = vector.shape_cast %94 : vector<32x128xf32> to vector<1x32x128xf32>
    tpu.vector_store %arg4[%c1_63, %c0_64, %c0_65], %97 {strides = array<i32>} : memref<4x32x128xf32, #tpu.memory_space<vmem>>, vector<1x32x128xf32>,
    %c2_66 = arith.constant 2 : index
    %c0_67 = arith.constant 0 : index
    %c0_68 = arith.constant 0 : index
    %98 = vector.load %arg4[%c2_66, %c0_67, %c0_68] : memref<4x32x128xf32, #tpu.memory_space<vmem>>, vector<1x32x128xf32>
    %99 = vector.shape_cast %98 : vector<1x32x128xf32> to vector<32x128xf32>
    %100 = vector.broadcast %72 : vector<1x128xf32> to vector<32x128xf32>
    %101 = arith.mulf %99, %100 : vector<32x128xf32>
    %102 = vector.broadcast %75 : vector<1x128xf32> to vector<32x128xf32>
    %103 = arith.addf %101, %102 : vector<32x128xf32>
    %cst_69 = arith.constant 0.000000e+00 : f32
    %104 = vector.broadcast %cst_69 : f32 to vector<32x128xf32>
    %105 = arith.maximumf %103, %104 : vector<32x128xf32>
    %c2_70 = arith.constant 2 : index
    %c0_71 = arith.constant 0 : index
    %c0_72 = arith.constant 0 : index
    %106 = vector.load %arg4[%c2_70, %c0_71, %c0_72] : memref<4x32x128xf32, #tpu.memory_space<vmem>>, vector<1x32x128xf32>
    %107 = vector.shape_cast %106 : vector<1x32x128xf32> to vector<32x128xf32>
    %108 = vector.shape_cast %105 : vector<32x128xf32> to vector<1x32x128xf32>
    tpu.vector_store %arg4[%c2_70, %c0_71, %c0_72], %108 {strides = array<i32>} : memref<4x32x128xf32, #tpu.memory_space<vmem>>, vector<1x32x128xf32>,
    %c3_73 = arith.constant 3 : index
    %c0_74 = arith.constant 0 : index
    %c0_75 = arith.constant 0 : index
    %109 = vector.load %arg4[%c3_73, %c0_74, %c0_75] : memref<4x32x128xf32, #tpu.memory_space<vmem>>, vector<1x32x128xf32>
    %110 = vector.shape_cast %109 : vector<1x32x128xf32> to vector<32x128xf32>
    %111 = vector.broadcast %72 : vector<1x128xf32> to vector<32x128xf32>
    %112 = arith.mulf %110, %111 : vector<32x128xf32>
    %113 = vector.broadcast %75 : vector<1x128xf32> to vector<32x128xf32>
    %114 = arith.addf %112, %113 : vector<32x128xf32>
    %cst_76 = arith.constant 0.000000e+00 : f32
    %115 = vector.broadcast %cst_76 : f32 to vector<32x128xf32>
    %116 = arith.maximumf %114, %115 : vector<32x128xf32>
    %c3_77 = arith.constant 3 : index
    %c0_78 = arith.constant 0 : index
    %c0_79 = arith.constant 0 : index
    %117 = vector.load %arg4[%c3_77, %c0_78, %c0_79] : memref<4x32x128xf32, #tpu.memory_space<vmem>>, vector<1x32x128xf32>
    %118 = vector.shape_cast %117 : vector<1x32x128xf32> to vector<32x128xf32>
    %119 = vector.shape_cast %116 : vector<32x128xf32> to vector<1x32x128xf32>
    tpu.vector_store %arg4[%c3_77, %c0_78, %c0_79], %119 {strides = array<i32>} : memref<4x32x128xf32, #tpu.memory_space<vmem>>, vector<1x32x128xf32>,
    return
  }
}

module attributes {stable_mosaic.version = 11 : i64} {
  func.func @_phase_mm_bn_relu_kernel(%arg0: memref<4x128x512xbf16, #tpu.memory_space<vmem>>, %arg1: memref<4x512x128xbf16, #tpu.memory_space<vmem>>, %arg2: memref<1x128xf32, #tpu.memory_space<vmem>>, %arg3: memref<1x128xf32, #tpu.memory_space<vmem>>, %arg4: memref<4x128x128xf32, #tpu.memory_space<vmem>>) attributes {dimension_semantics = [], scalar_prefetch = 0 : i64, scratch_operands = 0 : i64, tpu.core_type = #tpu.core_type<tc>} {
    %cst = arith.constant 0.000000e+00 : f32
    %0 = vector.broadcast %cst : f32 to vector<1x128xf32>
    %cst_0 = arith.constant 0.000000e+00 : f32
    %1 = vector.broadcast %cst_0 : f32 to vector<1x128xf32>
    %c0 = arith.constant 0 : index
    %c0_1 = arith.constant 0 : index
    %c0_2 = arith.constant 0 : index
    %2 = vector.load %arg0[%c0, %c0_1, %c0_2] : memref<4x128x512xbf16, #tpu.memory_space<vmem>>, vector<1x128x512xbf16>
    %3 = vector.shape_cast %2 : vector<1x128x512xbf16> to vector<128x512xbf16>
    %c0_3 = arith.constant 0 : index
    %c0_4 = arith.constant 0 : index
    %c0_5 = arith.constant 0 : index
    %4 = vector.load %arg1[%c0_3, %c0_4, %c0_5] : memref<4x512x128xbf16, #tpu.memory_space<vmem>>, vector<1x512x128xbf16>
    %5 = vector.shape_cast %4 : vector<1x512x128xbf16> to vector<512x128xbf16>
    %cst_6 = arith.constant dense<0.000000e+00> : vector<128x128xf32>
    %6 = tpu.matmul %3, %5, %cst_6 {dimension_numbers = #tpu.dot_dimension_numbers<[1], [0], [0], [1], [0, 0, 1, 1], [], []>} : vector<128x512xbf16>, vector<512x128xbf16>, vector<128x128xf32> -> vector<128x128xf32>
    %cst_7 = arith.constant dense<0.000000e+00> : vector<128xf32>
    %7 = vector.multi_reduction <add>, %6, %cst_7 [0] : vector<128x128xf32> to vector<128xf32>
    %8 = vector.shape_cast %7 : vector<128xf32> to vector<1x128xf32>
    %9 = arith.addf %0, %8 : vector<1x128xf32>
    %10 = arith.mulf %6, %6 : vector<128x128xf32>
    %cst_8 = arith.constant dense<0.000000e+00> : vector<128xf32>
    %11 = vector.multi_reduction <add>, %10, %cst_8 [0] : vector<128x128xf32> to vector<128xf32>
    %12 = vector.shape_cast %11 : vector<128xf32> to vector<1x128xf32>
    %13 = arith.addf %1, %12 : vector<1x128xf32>
    %c0_9 = arith.constant 0 : index
    %c0_10 = arith.constant 0 : index
    %c0_11 = arith.constant 0 : index
    %14 = vector.load %arg4[%c0_9, %c0_10, %c0_11] : memref<4x128x128xf32, #tpu.memory_space<vmem>>, vector<1x128x128xf32>
    %15 = vector.shape_cast %14 : vector<1x128x128xf32> to vector<128x128xf32>
    %16 = vector.shape_cast %6 : vector<128x128xf32> to vector<1x128x128xf32>
    tpu.vector_store %arg4[%c0_9, %c0_10, %c0_11], %16 {strides = array<i32>} : memref<4x128x128xf32, #tpu.memory_space<vmem>>, vector<1x128x128xf32>,
    %c1 = arith.constant 1 : index
    %c0_12 = arith.constant 0 : index
    %c0_13 = arith.constant 0 : index
    %17 = vector.load %arg0[%c1, %c0_12, %c0_13] : memref<4x128x512xbf16, #tpu.memory_space<vmem>>, vector<1x128x512xbf16>
    %18 = vector.shape_cast %17 : vector<1x128x512xbf16> to vector<128x512xbf16>
    %c1_14 = arith.constant 1 : index
    %c0_15 = arith.constant 0 : index
    %c0_16 = arith.constant 0 : index
    %19 = vector.load %arg1[%c1_14, %c0_15, %c0_16] : memref<4x512x128xbf16, #tpu.memory_space<vmem>>, vector<1x512x128xbf16>
    %20 = vector.shape_cast %19 : vector<1x512x128xbf16> to vector<512x128xbf16>
    %cst_17 = arith.constant dense<0.000000e+00> : vector<128x128xf32>
    %21 = tpu.matmul %18, %20, %cst_17 {dimension_numbers = #tpu.dot_dimension_numbers<[1], [0], [0], [1], [0, 0, 1, 1], [], []>} : vector<128x512xbf16>, vector<512x128xbf16>, vector<128x128xf32> -> vector<128x128xf32>
    %cst_18 = arith.constant dense<0.000000e+00> : vector<128xf32>
    %22 = vector.multi_reduction <add>, %21, %cst_18 [0] : vector<128x128xf32> to vector<128xf32>
    %23 = vector.shape_cast %22 : vector<128xf32> to vector<1x128xf32>
    %24 = arith.addf %9, %23 : vector<1x128xf32>
    %25 = arith.mulf %21, %21 : vector<128x128xf32>
    %cst_19 = arith.constant dense<0.000000e+00> : vector<128xf32>
    %26 = vector.multi_reduction <add>, %25, %cst_19 [0] : vector<128x128xf32> to vector<128xf32>
    %27 = vector.shape_cast %26 : vector<128xf32> to vector<1x128xf32>
    %28 = arith.addf %13, %27 : vector<1x128xf32>
    %c1_20 = arith.constant 1 : index
    %c0_21 = arith.constant 0 : index
    %c0_22 = arith.constant 0 : index
    %29 = vector.load %arg4[%c1_20, %c0_21, %c0_22] : memref<4x128x128xf32, #tpu.memory_space<vmem>>, vector<1x128x128xf32>
    %30 = vector.shape_cast %29 : vector<1x128x128xf32> to vector<128x128xf32>
    %31 = vector.shape_cast %21 : vector<128x128xf32> to vector<1x128x128xf32>
    tpu.vector_store %arg4[%c1_20, %c0_21, %c0_22], %31 {strides = array<i32>} : memref<4x128x128xf32, #tpu.memory_space<vmem>>, vector<1x128x128xf32>,
    %c2 = arith.constant 2 : index
    %c0_23 = arith.constant 0 : index
    %c0_24 = arith.constant 0 : index
    %32 = vector.load %arg0[%c2, %c0_23, %c0_24] : memref<4x128x512xbf16, #tpu.memory_space<vmem>>, vector<1x128x512xbf16>
    %33 = vector.shape_cast %32 : vector<1x128x512xbf16> to vector<128x512xbf16>
    %c2_25 = arith.constant 2 : index
    %c0_26 = arith.constant 0 : index
    %c0_27 = arith.constant 0 : index
    %34 = vector.load %arg1[%c2_25, %c0_26, %c0_27] : memref<4x512x128xbf16, #tpu.memory_space<vmem>>, vector<1x512x128xbf16>
    %35 = vector.shape_cast %34 : vector<1x512x128xbf16> to vector<512x128xbf16>
    %cst_28 = arith.constant dense<0.000000e+00> : vector<128x128xf32>
    %36 = tpu.matmul %33, %35, %cst_28 {dimension_numbers = #tpu.dot_dimension_numbers<[1], [0], [0], [1], [0, 0, 1, 1], [], []>} : vector<128x512xbf16>, vector<512x128xbf16>, vector<128x128xf32> -> vector<128x128xf32>
    %cst_29 = arith.constant dense<0.000000e+00> : vector<128xf32>
    %37 = vector.multi_reduction <add>, %36, %cst_29 [0] : vector<128x128xf32> to vector<128xf32>
    %38 = vector.shape_cast %37 : vector<128xf32> to vector<1x128xf32>
    %39 = arith.addf %24, %38 : vector<1x128xf32>
    %40 = arith.mulf %36, %36 : vector<128x128xf32>
    %cst_30 = arith.constant dense<0.000000e+00> : vector<128xf32>
    %41 = vector.multi_reduction <add>, %40, %cst_30 [0] : vector<128x128xf32> to vector<128xf32>
    %42 = vector.shape_cast %41 : vector<128xf32> to vector<1x128xf32>
    %43 = arith.addf %28, %42 : vector<1x128xf32>
    %c2_31 = arith.constant 2 : index
    %c0_32 = arith.constant 0 : index
    %c0_33 = arith.constant 0 : index
    %44 = vector.load %arg4[%c2_31, %c0_32, %c0_33] : memref<4x128x128xf32, #tpu.memory_space<vmem>>, vector<1x128x128xf32>
    %45 = vector.shape_cast %44 : vector<1x128x128xf32> to vector<128x128xf32>
    %46 = vector.shape_cast %36 : vector<128x128xf32> to vector<1x128x128xf32>
    tpu.vector_store %arg4[%c2_31, %c0_32, %c0_33], %46 {strides = array<i32>} : memref<4x128x128xf32, #tpu.memory_space<vmem>>, vector<1x128x128xf32>,
    %c3 = arith.constant 3 : index
    %c0_34 = arith.constant 0 : index
    %c0_35 = arith.constant 0 : index
    %47 = vector.load %arg0[%c3, %c0_34, %c0_35] : memref<4x128x512xbf16, #tpu.memory_space<vmem>>, vector<1x128x512xbf16>
    %48 = vector.shape_cast %47 : vector<1x128x512xbf16> to vector<128x512xbf16>
    %c3_36 = arith.constant 3 : index
    %c0_37 = arith.constant 0 : index
    %c0_38 = arith.constant 0 : index
    %49 = vector.load %arg1[%c3_36, %c0_37, %c0_38] : memref<4x512x128xbf16, #tpu.memory_space<vmem>>, vector<1x512x128xbf16>
    %50 = vector.shape_cast %49 : vector<1x512x128xbf16> to vector<512x128xbf16>
    %cst_39 = arith.constant dense<0.000000e+00> : vector<128x128xf32>
    %51 = tpu.matmul %48, %50, %cst_39 {dimension_numbers = #tpu.dot_dimension_numbers<[1], [0], [0], [1], [0, 0, 1, 1], [], []>} : vector<128x512xbf16>, vector<512x128xbf16>, vector<128x128xf32> -> vector<128x128xf32>
    %cst_40 = arith.constant dense<0.000000e+00> : vector<128xf32>
    %52 = vector.multi_reduction <add>, %51, %cst_40 [0] : vector<128x128xf32> to vector<128xf32>
    %53 = vector.shape_cast %52 : vector<128xf32> to vector<1x128xf32>
    %54 = arith.addf %39, %53 : vector<1x128xf32>
    %55 = arith.mulf %51, %51 : vector<128x128xf32>
    %cst_41 = arith.constant dense<0.000000e+00> : vector<128xf32>
    %56 = vector.multi_reduction <add>, %55, %cst_41 [0] : vector<128x128xf32> to vector<128xf32>
    %57 = vector.shape_cast %56 : vector<128xf32> to vector<1x128xf32>
    %58 = arith.addf %43, %57 : vector<1x128xf32>
    %c3_42 = arith.constant 3 : index
    %c0_43 = arith.constant 0 : index
    %c0_44 = arith.constant 0 : index
    %59 = vector.load %arg4[%c3_42, %c0_43, %c0_44] : memref<4x128x128xf32, #tpu.memory_space<vmem>>, vector<1x128x128xf32>
    %60 = vector.shape_cast %59 : vector<1x128x128xf32> to vector<128x128xf32>
    %61 = vector.shape_cast %51 : vector<128x128xf32> to vector<1x128x128xf32>
    tpu.vector_store %arg4[%c3_42, %c0_43, %c0_44], %61 {strides = array<i32>} : memref<4x128x128xf32, #tpu.memory_space<vmem>>, vector<1x128x128xf32>,
    %cst_45 = arith.constant 0.001953125 : f32
    %62 = vector.broadcast %cst_45 : f32 to vector<1x128xf32>
    %63 = arith.mulf %54, %62 : vector<1x128xf32>
    %cst_46 = arith.constant 0.001953125 : f32
    %64 = vector.broadcast %cst_46 : f32 to vector<1x128xf32>
    %65 = arith.mulf %58, %64 : vector<1x128xf32>
    %66 = arith.mulf %63, %63 : vector<1x128xf32>
    %67 = arith.subf %65, %66 : vector<1x128xf32>
    %c0_47 = arith.constant 0 : index
    %c0_48 = arith.constant 0 : index
    %68 = vector.load %arg2[%c0_47, %c0_48] : memref<1x128xf32, #tpu.memory_space<vmem>>, vector<1x128xf32>
    %cst_49 = arith.constant 9.99999974E-6 : f32
    %69 = vector.broadcast %cst_49 : f32 to vector<1x128xf32>
    %70 = arith.addf %67, %69 : vector<1x128xf32>
    %71 = math.rsqrt %70 : vector<1x128xf32>
    %72 = arith.mulf %68, %71 : vector<1x128xf32>
    %c0_50 = arith.constant 0 : index
    %c0_51 = arith.constant 0 : index
    %73 = vector.load %arg3[%c0_50, %c0_51] : memref<1x128xf32, #tpu.memory_space<vmem>>, vector<1x128xf32>
    %74 = arith.mulf %63, %72 : vector<1x128xf32>
    %75 = arith.subf %73, %74 : vector<1x128xf32>
    %c0_52 = arith.constant 0 : index
    %c0_53 = arith.constant 0 : index
    %c0_54 = arith.constant 0 : index
    %76 = vector.load %arg4[%c0_52, %c0_53, %c0_54] : memref<4x128x128xf32, #tpu.memory_space<vmem>>, vector<1x128x128xf32>
    %77 = vector.shape_cast %76 : vector<1x128x128xf32> to vector<128x128xf32>
    %78 = vector.broadcast %72 : vector<1x128xf32> to vector<128x128xf32>
    %79 = arith.mulf %77, %78 : vector<128x128xf32>
    %80 = vector.broadcast %75 : vector<1x128xf32> to vector<128x128xf32>
    %81 = arith.addf %79, %80 : vector<128x128xf32>
    %cst_55 = arith.constant 0.000000e+00 : f32
    %82 = vector.broadcast %cst_55 : f32 to vector<128x128xf32>
    %83 = arith.maximumf %81, %82 : vector<128x128xf32>
    %c0_56 = arith.constant 0 : index
    %c0_57 = arith.constant 0 : index
    %c0_58 = arith.constant 0 : index
    %84 = vector.load %arg4[%c0_56, %c0_57, %c0_58] : memref<4x128x128xf32, #tpu.memory_space<vmem>>, vector<1x128x128xf32>
    %85 = vector.shape_cast %84 : vector<1x128x128xf32> to vector<128x128xf32>
    %86 = vector.shape_cast %83 : vector<128x128xf32> to vector<1x128x128xf32>
    tpu.vector_store %arg4[%c0_56, %c0_57, %c0_58], %86 {strides = array<i32>} : memref<4x128x128xf32, #tpu.memory_space<vmem>>, vector<1x128x128xf32>,
    %c1_59 = arith.constant 1 : index
    %c0_60 = arith.constant 0 : index
    %c0_61 = arith.constant 0 : index
    %87 = vector.load %arg4[%c1_59, %c0_60, %c0_61] : memref<4x128x128xf32, #tpu.memory_space<vmem>>, vector<1x128x128xf32>
    %88 = vector.shape_cast %87 : vector<1x128x128xf32> to vector<128x128xf32>
    %89 = vector.broadcast %72 : vector<1x128xf32> to vector<128x128xf32>
    %90 = arith.mulf %88, %89 : vector<128x128xf32>
    %91 = vector.broadcast %75 : vector<1x128xf32> to vector<128x128xf32>
    %92 = arith.addf %90, %91 : vector<128x128xf32>
    %cst_62 = arith.constant 0.000000e+00 : f32
    %93 = vector.broadcast %cst_62 : f32 to vector<128x128xf32>
    %94 = arith.maximumf %92, %93 : vector<128x128xf32>
    %c1_63 = arith.constant 1 : index
    %c0_64 = arith.constant 0 : index
    %c0_65 = arith.constant 0 : index
    %95 = vector.load %arg4[%c1_63, %c0_64, %c0_65] : memref<4x128x128xf32, #tpu.memory_space<vmem>>, vector<1x128x128xf32>
    %96 = vector.shape_cast %95 : vector<1x128x128xf32> to vector<128x128xf32>
    %97 = vector.shape_cast %94 : vector<128x128xf32> to vector<1x128x128xf32>
    tpu.vector_store %arg4[%c1_63, %c0_64, %c0_65], %97 {strides = array<i32>} : memref<4x128x128xf32, #tpu.memory_space<vmem>>, vector<1x128x128xf32>,
    %c2_66 = arith.constant 2 : index
    %c0_67 = arith.constant 0 : index
    %c0_68 = arith.constant 0 : index
    %98 = vector.load %arg4[%c2_66, %c0_67, %c0_68] : memref<4x128x128xf32, #tpu.memory_space<vmem>>, vector<1x128x128xf32>
    %99 = vector.shape_cast %98 : vector<1x128x128xf32> to vector<128x128xf32>
    %100 = vector.broadcast %72 : vector<1x128xf32> to vector<128x128xf32>
    %101 = arith.mulf %99, %100 : vector<128x128xf32>
    %102 = vector.broadcast %75 : vector<1x128xf32> to vector<128x128xf32>
    %103 = arith.addf %101, %102 : vector<128x128xf32>
    %cst_69 = arith.constant 0.000000e+00 : f32
    %104 = vector.broadcast %cst_69 : f32 to vector<128x128xf32>
    %105 = arith.maximumf %103, %104 : vector<128x128xf32>
    %c2_70 = arith.constant 2 : index
    %c0_71 = arith.constant 0 : index
    %c0_72 = arith.constant 0 : index
    %106 = vector.load %arg4[%c2_70, %c0_71, %c0_72] : memref<4x128x128xf32, #tpu.memory_space<vmem>>, vector<1x128x128xf32>
    %107 = vector.shape_cast %106 : vector<1x128x128xf32> to vector<128x128xf32>
    %108 = vector.shape_cast %105 : vector<128x128xf32> to vector<1x128x128xf32>
    tpu.vector_store %arg4[%c2_70, %c0_71, %c0_72], %108 {strides = array<i32>} : memref<4x128x128xf32, #tpu.memory_space<vmem>>, vector<1x128x128xf32>,
    %c3_73 = arith.constant 3 : index
    %c0_74 = arith.constant 0 : index
    %c0_75 = arith.constant 0 : index
    %109 = vector.load %arg4[%c3_73, %c0_74, %c0_75] : memref<4x128x128xf32, #tpu.memory_space<vmem>>, vector<1x128x128xf32>
    %110 = vector.shape_cast %109 : vector<1x128x128xf32> to vector<128x128xf32>
    %111 = vector.broadcast %72 : vector<1x128xf32> to vector<128x128xf32>
    %112 = arith.mulf %110, %111 : vector<128x128xf32>
    %113 = vector.broadcast %75 : vector<1x128xf32> to vector<128x128xf32>
    %114 = arith.addf %112, %113 : vector<128x128xf32>
    %cst_76 = arith.constant 0.000000e+00 : f32
    %115 = vector.broadcast %cst_76 : f32 to vector<128x128xf32>
    %116 = arith.maximumf %114, %115 : vector<128x128xf32>
    %c3_77 = arith.constant 3 : index
    %c0_78 = arith.constant 0 : index
    %c0_79 = arith.constant 0 : index
    %117 = vector.load %arg4[%c3_77, %c0_78, %c0_79] : memref<4x128x128xf32, #tpu.memory_space<vmem>>, vector<1x128x128xf32>
    %118 = vector.shape_cast %117 : vector<1x128x128xf32> to vector<128x128xf32>
    %119 = vector.shape_cast %116 : vector<128x128xf32> to vector<1x128x128xf32>
    tpu.vector_store %arg4[%c3_77, %c0_78, %c0_79], %119 {strides = array<i32>} : memref<4x128x128xf32, #tpu.memory_space<vmem>>, vector<1x128x128xf32>,
    return
  }
}

module attributes {stable_mosaic.version = 11 : i64} {
  func.func @_phase_mm_tanh_kernel(%arg0: i32, %arg1: memref<1x512x512xbf16, #tpu.memory_space<vmem>>, %arg2: memref<1x512x128xbf16, #tpu.memory_space<vmem>>, %arg3: memref<1x512x128xf32, #tpu.memory_space<vmem>>) attributes {dimension_semantics = [#tpu.dimension_semantics<parallel>], iteration_bounds = array<i64: 4>, scalar_prefetch = 0 : i64, scratch_operands = 0 : i64, tpu.core_type = #tpu.core_type<tc>, window_params = [{transform_indices = @transform_0, window_bounds = array<i64: 1, 512, 512>}, {transform_indices = @transform_1, window_bounds = array<i64: 1, 512, 128>}, {transform_indices = @transform_2, window_bounds = array<i64: 1, 512, 128>}]} {
    %c0 = arith.constant 0 : index
    %c0_0 = arith.constant 0 : index
    %c0_1 = arith.constant 0 : index
    %0 = vector.load %arg1[%c0, %c0_0, %c0_1] : memref<1x512x512xbf16, #tpu.memory_space<vmem>>, vector<1x512x512xbf16>
    %1 = vector.shape_cast %0 : vector<1x512x512xbf16> to vector<512x512xbf16>
    %c0_2 = arith.constant 0 : index
    %c0_3 = arith.constant 0 : index
    %c0_4 = arith.constant 0 : index
    %2 = vector.load %arg2[%c0_2, %c0_3, %c0_4] : memref<1x512x128xbf16, #tpu.memory_space<vmem>>, vector<1x512x128xbf16>
    %3 = vector.shape_cast %2 : vector<1x512x128xbf16> to vector<512x128xbf16>
    %cst = arith.constant dense<0.000000e+00> : vector<512x128xf32>
    %4 = tpu.matmul %1, %3, %cst {dimension_numbers = #tpu.dot_dimension_numbers<[1], [0], [0], [1], [0, 0, 1, 1], [], []>} : vector<512x512xbf16>, vector<512x128xbf16>, vector<512x128xf32> -> vector<512x128xf32>
    %5 = math.tanh %4 : vector<512x128xf32>
    %c0_5 = arith.constant 0 : index
    %c0_6 = arith.constant 0 : index
    %c0_7 = arith.constant 0 : index
    %6 = vector.load %arg3[%c0_5, %c0_6, %c0_7] : memref<1x512x128xf32, #tpu.memory_space<vmem>>, vector<1x512x128xf32>
    %7 = vector.shape_cast %6 : vector<1x512x128xf32> to vector<512x128xf32>
    %8 = vector.shape_cast %5 : vector<512x128xf32> to vector<1x512x128xf32>
    tpu.vector_store %arg3[%c0_5, %c0_6, %c0_7], %8 {strides = array<i32>} : memref<1x512x128xf32, #tpu.memory_space<vmem>>, vector<1x512x128xf32>,
    return
  }
  func.func @transform_0(%arg0: i32) -> (i32, i32, i32) {
    %c0_i32 = arith.constant 0 : i32
    %c0_i32_0 = arith.constant 0 : i32
    %c0_i32_1 = arith.constant 0 : i32
    return %arg0, %c0_i32, %c0_i32_0 : i32, i32, i32
  }
  func.func @transform_1(%arg0: i32) -> (i32, i32, i32) {
    %c0_i32 = arith.constant 0 : i32
    %c0_i32_0 = arith.constant 0 : i32
    %c0_i32_1 = arith.constant 0 : i32
    return %arg0, %c0_i32, %c0_i32_0 : i32, i32, i32
  }
  func.func @transform_2(%arg0: i32) -> (i32, i32, i32) {
    %c0_i32 = arith.constant 0 : i32
    %c0_i32_0 = arith.constant 0 : i32
    %c0_i32_1 = arith.constant 0 : i32
    return %arg0, %c0_i32, %c0_i32_0 : i32, i32, i32
  }
}

</mosaic_0001>

<llo_original>
// kernel: generative_forward.4
$region0: #{generative_forward.4}
  #allocation0 [shape = 'u32[]', space=smem, size = 0x4, offset = 0x4, fixed_abs, tag = 'smem constant byte address 0x4 - core index']
  #allocation1 [shape = 'u32[144,128]{1,0:T(1,128)}', space=vmem, size = 0x12000, scoped, tag = 'internal scratch']
  %s0 = inlined_call_operand.vmem [shape: bf16[1,8,128], index: 0, kind: input, shape index: {}]
  %s1 = inlined_call_operand.vmem [shape: bf16[16,128,256], index: 1, kind: input, shape index: {}]
  %s2 = inlined_call_operand.vmem [shape: f32[1,256], index: 2, kind: input, shape index: {}]
  %s3 = inlined_call_operand.vmem [shape: f32[1,256], index: 3, kind: input, shape index: {}]
  %s4 = inlined_call_operand.vmem [shape: f32[16,8,256], index: 4, kind: output, shape index: {}]
  %s5 = sld [smem:[#allocation0]]
  $region26: #{generative_forward.4} parent=0
    _
  %s7 = ssub.s32 1, %s5
  %s8 = scalar_select 0, %s7, %s5
  // Predicated region
  $region2: #{generative_forward.4} parent=0 // pred_check
    _
  $region3: #{generative_forward.4} parent=0 // pred_check_branch
    %10 = sbr.rel (0) target = $region5
  $region4: #{generative_forward.4} parent=0 // pred_region
    _
  $region5: #{generative_forward.4} parent=0 // pred_fallthru
    _
  // Predicated region
  $region6: #{generative_forward.4} parent=0 // pred_check
    _
  $region7: #{generative_forward.4} parent=0 // pred_check_branch
    %12 = sbr.rel (0) target = $region9
  $region8: #{generative_forward.4} parent=0 // pred_region
    _
  $region9: #{generative_forward.4} parent=0 // pred_fallthru
    _
  // Predicated region
  $region10: #{generative_forward.4} parent=0 // pred_check
    _
  $region11: #{generative_forward.4} parent=0 // pred_check_branch
    %14 = sbr.rel (0) target = $region13
  $region12: #{generative_forward.4} parent=0 // pred_region
    _
  $region13: #{generative_forward.4} parent=0 // pred_fallthru
    _
  // Predicated region
  $region14: #{generative_forward.4} parent=0 // pred_check
    _
  $region15: #{generative_forward.4} parent=0 // pred_check_branch
    %16 = sbr.rel (0) target = $region17
  $region16: #{generative_forward.4} parent=0 // pred_region
    _
  $region17: #{generative_forward.4} parent=0 // pred_fallthru
    _
  %v18 = vlaneseq
  %v19 = vshrl.u32 %v18, 7
  %vm20 = vcmp.lt.s32.totalorder %v19, 2
  %v21 = vsel %vm20, 1, 0
  %v22 = vcvt.s32.f32 %v21
  %v23 = vld [vmem:[%s0] sm:$0xf]
  %v24 = vld [vmem:[%s1] sm:$0xff]
  %v25 = vld [vmem:[%s1 + $0x8] sm:$0xff]
  %v26 = vld [vmem:[%s1 + $0x10] sm:$0xff]
  %v27 = vld [vmem:[%s1 + $0x18] sm:$0xff]
  %v28 = vld [vmem:[%s1 + $0x20] sm:$0xff]
  %v29 = vld [vmem:[%s1 + $0x28] sm:$0xff]
  %v30 = vld [vmem:[%s1 + $0x30] sm:$0xff]
  %v31 = vld [vmem:[%s1 + $0x38] sm:$0xff]
  %v32 = vld [vmem:[%s1 + $0x40] sm:$0xff]
  %v33 = vld [vmem:[%s1 + $0x48] sm:$0xff]
  %v34 = vld [vmem:[%s1 + $0x50] sm:$0xff]
  %v35 = vld [vmem:[%s1 + $0x58] sm:$0xff]
  %v36 = vld [vmem:[%s1 + $0x60] sm:$0xff]
  %v37 = vld [vmem:[%s1 + $0x68] sm:$0xff]
  %v38 = vld [vmem:[%s1 + $0x70] sm:$0xff]
  %v39 = vld [vmem:[%s1 + $0x78] sm:$0xff]
  %v56 = vunpack.c.l.b16 %v24
  %v57 = vunpack.c.h.b16 %v24
  %v58 = vunpack.c.l.b16 %v25
  %v59 = vunpack.c.h.b16 %v25
  %v60 = vunpack.c.l.b16 %v26
  %v61 = vunpack.c.h.b16 %v26
  %v62 = vunpack.c.l.b16 %v27
  %v63 = vunpack.c.h.b16 %v27
  %v64 = vunpack.c.l.b16 %v28
  %v65 = vunpack.c.h.b16 %v28
  %v66 = vunpack.c.l.b16 %v29
  %v67 = vunpack.c.h.b16 %v29
  %v68 = vunpack.c.l.b16 %v30
  %v69 = vunpack.c.h.b16 %v30
  %v70 = vunpack.c.l.b16 %v31
  %v71 = vunpack.c.h.b16 %v31
  %v72 = vunpack.c.l.b16 %v32
  %v73 = vunpack.c.h.b16 %v32
  %v74 = vunpack.c.l.b16 %v33
  %v75 = vunpack.c.h.b16 %v33
  %v76 = vunpack.c.l.b16 %v34
  %v77 = vunpack.c.h.b16 %v34
  %v78 = vunpack.c.l.b16 %v35
  %v79 = vunpack.c.h.b16 %v35
  %v80 = vunpack.c.l.b16 %v36
  %v81 = vunpack.c.h.b16 %v36
  %v82 = vunpack.c.l.b16 %v37
  %v83 = vunpack.c.h.b16 %v37
  %v84 = vunpack.c.l.b16 %v38
  %v85 = vunpack.c.h.b16 %v38
  %v86 = vunpack.c.l.b16 %v39
  %v87 = vunpack.c.h.b16 %v39
  %v88 = vpack.c.b16 %v58, %v56
  %v89 = vpack.c.b16 %v59, %v57
  %v90 = vpack.c.b16 %v62, %v60
  %v91 = vpack.c.b16 %v63, %v61
  %v92 = vpack.c.b16 %v66, %v64
  %v93 = vpack.c.b16 %v67, %v65
  %v94 = vpack.c.b16 %v70, %v68
  %v95 = vpack.c.b16 %v71, %v69
  %v96 = vpack.c.b16 %v74, %v72
  %v97 = vpack.c.b16 %v75, %v73
  %v98 = vpack.c.b16 %v78, %v76
  %v99 = vpack.c.b16 %v79, %v77
  %v100 = vpack.c.b16 %v82, %v80
  %v101 = vpack.c.b16 %v83, %v81
  %v102 = vpack.c.b16 %v86, %v84
  %v103 = vpack.c.b16 %v87, %v85
  %120 = vmatprep.subr.bf16.mxu0 %v89
  %121 = vmatpush1.bf16.msra.mxu0 %v88
  %122 = vmatprep.subr.bf16.mxu0 %v91
  %123 = vmatpush1.bf16.msra.mxu0 %v90
  %124 = vmatprep.subr.bf16.mxu0 %v93
  %125 = vmatpush1.bf16.msra.mxu0 %v92
  %126 = vmatprep.subr.bf16.mxu0 %v95
  %127 = vmatpush1.bf16.msra.mxu0 %v94
  %128 = vmatprep.subr.bf16.mxu0 %v97
  %129 = vmatpush1.bf16.msra.mxu0 %v96
  %130 = vmatprep.subr.bf16.mxu0 %v99
  %131 = vmatpush1.bf16.msra.mxu0 %v98
  %132 = vmatprep.subr.bf16.mxu0 %v101
  %133 = vmatpush1.bf16.msra.mxu0 %v100
  %134 = vmatprep.subr.bf16.mxu0 %v103
  %135 = vmatpush1.bf16.msra.mxu0 %v102
  %136 = vmatprep.subr.bf16.mxu0 0
  %137 = vmatpush1.bf16.msra.mxu0 0
  %138 = vmatprep.subr.bf16.mxu0 0
  %139 = vmatpush1.bf16.msra.mxu0 0
  %140 = vmatprep.subr.bf16.mxu0 0
  %141 = vmatpush1.bf16.msra.mxu0 0
  %142 = vmatprep.subr.bf16.mxu0 0
  %143 = vmatpush1.bf16.msra.mxu0 0
  %144 = vmatprep.subr.bf16.mxu0 0
  %145 = vmatpush1.bf16.msra.mxu0 0
  %146 = vmatprep.subr.bf16.mxu0 0
  %147 = vmatpush1.bf16.msra.mxu0 0
  %148 = vmatprep.subr.bf16.mxu0 0
  %149 = vmatpush1.bf16.msra.mxu0 0
  %150 = vmatprep.subr.bf16.mxu0 0
  %151 = vmatpush1.bf16.msra.mxu0 0
  %152 = vmatprep.mubr.bf16.mxu0 0
  %153 = vmatmul.mubr.bf16.gmra.mrb[0].mxu0 %v23
  %v154 = vpop.f32.mrb[0].mxu0
  %v155 = vadd.f32 0.0, %v154
  %v156 = vpop.f32.mrb[0].mxu0
  %v157 = vadd.f32 0.0, %v156
  %v158 = vpop.f32.mrb[0].mxu0
  %v159 = vpop.f32.mrb[0].mxu0
  %160 = vdwg.mxu0
  %v161 = vmul.f32 %v155, %v22
  %v162 = vmul.f32 %v157, %v22
  %v163 = vrot.slane %v161, 4
  %v164 = vadd.f32 %v161, %v163
  %v165 = vrot.slane %v164, 2
  %v166 = vadd.f32 %v164, %v165
  %v167 = vrot.slane %v166, 1
  %v168 = vadd.f32 %v166, %v167
  %v169 = vrot.slane %v162, 4
  %v170 = vadd.f32 %v162, %v169
  %v171 = vrot.slane %v170, 2
  %v172 = vadd.f32 %v170, %v171
  %v173 = vrot.slane %v172, 1
  %v174 = vadd.f32 %v172, %v173
  %v175 = vadd.f32 %v168, 0.0
  %v176 = vadd.f32 %v174, 0.0
  %v177 = vmul.f32 %v161, %v161
  %v178 = vmul.f32 %v162, %v162
  %v179 = vrot.slane %v177, 4
  %v180 = vadd.f32 %v177, %v179
  %v181 = vrot.slane %v180, 2
  %v182 = vadd.f32 %v180, %v181
  %v183 = vrot.slane %v182, 1
  %v184 = vadd.f32 %v182, %v183
  %v185 = vrot.slane %v178, 4
  %v186 = vadd.f32 %v178, %v185
  %v187 = vrot.slane %v186, 2
  %v188 = vadd.f32 %v186, %v187
  %v189 = vrot.slane %v188, 1
  %v190 = vadd.f32 %v188, %v189
  %v191 = vadd.f32 %v184, 0.0
  %v192 = vadd.f32 %v190, 0.0
  %193 = vst [vmem:[%s4] sm:$0xff] %v155
  %194 = vst [vmem:[%s4 + $0x8] sm:$0xff] %v157
  %v195 = vld [vmem:[%s0] sm:$0xf]
  %s196 = scalar_lea.vmem %s1, 128
  %v197 = vld [vmem:[%s196] sm:$0xff]
  %v198 = vld [vmem:[%s196 + $0x8] sm:$0xff]
  %v199 = vld [vmem:[%s196 + $0x10] sm:$0xff]
  %v200 = vld [vmem:[%s196 + $0x18] sm:$0xff]
  %v201 = vld [vmem:[%s196 + $0x20] sm:$0xff]
  %v202 = vld [vmem:[%s196 + $0x28] sm:$0xff]
  %v203 = vld [vmem:[%s196 + $0x30] sm:$0xff]
  %v204 = vld [vmem:[%s196 + $0x38] sm:$0xff]
  %v205 = vld [vmem:[%s196 + $0x40] sm:$0xff]
  %v206 = vld [vmem:[%s196 + $0x48] sm:$0xff]
  %v207 = vld [vmem:[%s196 + $0x50] sm:$0xff]
  %v208 = vld [vmem:[%s196 + $0x58] sm:$0xff]
  %v209 = vld [vmem:[%s196 + $0x60] sm:$0xff]
  %v210 = vld [vmem:[%s196 + $0x68] sm:$0xff]
  %v211 = vld [vmem:[%s196 + $0x70] sm:$0xff]
  %v212 = vld [vmem:[%s196 + $0x78] sm:$0xff]
  %v229 = vunpack.c.l.b16 %v197
  %v230 = vunpack.c.h.b16 %v197
  %v231 = vunpack.c.l.b16 %v198
  %v232 = vunpack.c.h.b16 %v198
  %v233 = vunpack.c.l.b16 %v199
  %v234 = vunpack.c.h.b16 %v199
  %v235 = vunpack.c.l.b16 %v200
  %v236 = vunpack.c.h.b16 %v200
  %v237 = vunpack.c.l.b16 %v201
  %v238 = vunpack.c.h.b16 %v201
  %v239 = vunpack.c.l.b16 %v202
  %v240 = vunpack.c.h.b16 %v202
  %v241 = vunpack.c.l.b16 %v203
  %v242 = vunpack.c.h.b16 %v203
  %v243 = vunpack.c.l.b16 %v204
  %v244 = vunpack.c.h.b16 %v204
  %v245 = vunpack.c.l.b16 %v205
  %v246 = vunpack.c.h.b16 %v205
  %v247 = vunpack.c.l.b16 %v206
  %v248 = vunpack.c.h.b16 %v206
  %v249 = vunpack.c.l.b16 %v207
  %v250 = vunpack.c.h.b16 %v207
  %v251 = vunpack.c.l.b16 %v208
  %v252 = vunpack.c.h.b16 %v208
  %v253 = vunpack.c.l.b16 %v209
  %v254 = vunpack.c.h.b16 %v209
  %v255 = vunpack.c.l.b16 %v210
  %v256 = vunpack.c.h.b16 %v210
  %v257 = vunpack.c.l.b16 %v211
  %v258 = vunpack.c.h.b16 %v211
  %v259 = vunpack.c.l.b16 %v212
  %v260 = vunpack.c.h.b16 %v212
  %v261 = vpack.c.b16 %v231, %v229
  %v262 = vpack.c.b16 %v232, %v230
  %v263 = vpack.c.b16 %v235, %v233
  %v264 = vpack.c.b16 %v236, %v234
  %v265 = vpack.c.b16 %v239, %v237
  %v266 = vpack.c.b16 %v240, %v238
  %v267 = vpack.c.b16 %v243, %v241
  %v268 = vpack.c.b16 %v244, %v242
  %v269 = vpack.c.b16 %v247, %v245
  %v270 = vpack.c.b16 %v248, %v246
  %v271 = vpack.c.b16 %v251, %v249
  %v272 = vpack.c.b16 %v252, %v250
  %v273 = vpack.c.b16 %v255, %v253
  %v274 = vpack.c.b16 %v256, %v254
  %v275 = vpack.c.b16 %v259, %v257
  %v276 = vpack.c.b16 %v260, %v258
  %293 = vmatprep.subr.bf16.mxu0 %v262
  %294 = vmatpush1.bf16.msra.mxu0 %v261
  %295 = vmatprep.subr.bf16.mxu0 %v264
  %296 = vmatpush1.bf16.msra.mxu0 %v263
  %297 = vmatprep.subr.bf16.mxu0 %v266
  %298 = vmatpush1.bf16.msra.mxu0 %v265
  %299 = vmatprep.subr.bf16.mxu0 %v268
  %300 = vmatpush1.bf16.msra.mxu0 %v267
  %301 = vmatprep.subr.bf16.mxu0 %v270
  %302 = vmatpush1.bf16.msra.mxu0 %v269
  %303 = vmatprep.subr.bf16.mxu0 %v272
  %304 = vmatpush1.bf16.msra.mxu0 %v271
  %305 = vmatprep.subr.bf16.mxu0 %v274
  %306 = vmatpush1.bf16.msra.mxu0 %v273
  %307 = vmatprep.subr.bf16.mxu0 %v276
  %308 = vmatpush1.bf16.msra.mxu0 %v275
  %309 = vmatprep.subr.bf16.mxu0 0
  %310 = vmatpush1.bf16.msra.mxu0 0
  %311 = vmatprep.subr.bf16.mxu0 0
  %312 = vmatpush1.bf16.msra.mxu0 0
  %313 = vmatprep.subr.bf16.mxu0 0
  %314 = vmatpush1.bf16.msra.mxu0 0
  %315 = vmatprep.subr.bf16.mxu0 0
  %316 = vmatpush1.bf16.msra.mxu0 0
  %317 = vmatprep.subr.bf16.mxu0 0
  %318 = vmatpush1.bf16.msra.mxu0 0
  %319 = vmatprep.subr.bf16.mxu0 0
  %320 = vmatpush1.bf16.msra.mxu0 0
  %321 = vmatprep.subr.bf16.mxu0 0
  %322 = vmatpush1.bf16.msra.mxu0 0
  %323 = vmatprep.subr.bf16.mxu0 0
  %324 = vmatpush1.bf16.msra.mxu0 0
  %325 = vmatprep.mubr.bf16.mxu0 0
  %326 = vmatmul.mubr.bf16.gmra.mrb[0].mxu0 %v195
  %v327 = vpop.f32.mrb[0].mxu0
  %v328 = vadd.f32 0.0, %v327
  %v329 = vpop.f32.mrb[0].mxu0
  %v330 = vadd.f32 0.0, %v329
  %v331 = vpop.f32.mrb[0].mxu0
  %v332 = vpop.f32.mrb[0].mxu0
  %333 = vdwg.mxu0
  %v334 = vmul.f32 %v328, %v22
  %v335 = vmul.f32 %v330, %v22
  %v336 = vrot.slane %v334, 4
  %v337 = vadd.f32 %v334, %v336
  %v338 = vrot.slane %v337, 2
  %v339 = vadd.f32 %v337, %v338
  %v340 = vrot.slane %v339, 1
  %v341 = vadd.f32 %v339, %v340
  %v342 = vrot.slane %v335, 4
  %v343 = vadd.f32 %v335, %v342
  %v344 = vrot.slane %v343, 2
  %v345 = vadd.f32 %v343, %v344
  %v346 = vrot.slane %v345, 1
  %v347 = vadd.f32 %v345, %v346
  %v348 = vadd.f32 %v175, %v341
  %v349 = vadd.f32 %v176, %v347
  %v350 = vmul.f32 %v334, %v334
  %v351 = vmul.f32 %v335, %v335
  %v352 = vrot.slane %v350, 4
  %v353 = vadd.f32 %v350, %v352
  %v354 = vrot.slane %v353, 2
  %v355 = vadd.f32 %v353, %v354
  %v356 = vrot.slane %v355, 1
  %v357 = vadd.f32 %v355, %v356
  %v358 = vrot.slane %v351, 4
  %v359 = vadd.f32 %v351, %v358
  %v360 = vrot.slane %v359, 2
  %v361 = vadd.f32 %v359, %v360
  %v362 = vrot.slane %v361, 1
  %v363 = vadd.f32 %v361, %v362
  %v364 = vadd.f32 %v191, %v357
  %v365 = vadd.f32 %v192, %v363
  %s366 = scalar_lea.vmem %s4, 16
  %367 = vst [vmem:[%s366] sm:$0xff] %v328
  %368 = vst [vmem:[%s366 + $0x8] sm:$0xff] %v330
  %v369 = vld [vmem:[%s0] sm:$0xf]
  %s370 = scalar_lea.vmem %s1, 256
  %v371 = vld [vmem:[%s370] sm:$0xff]
  %v372 = vld [vmem:[%s370 + $0x8] sm:$0xff]
  %v373 = vld [vmem:[%s370 + $0x10] sm:$0xff]
  %v374 = vld [vmem:[%s370 + $0x18] sm:$0xff]
  %v375 = vld [vmem:[%s370 + $0x20] sm:$0xff]
  %v376 = vld [vmem:[%s370 + $0x28] sm:$0xff]
  %v377 = vld [vmem:[%s370 + $0x30] sm:$0xff]
  %v378 = vld [vmem:[%s370 + $0x38] sm:$0xff]
  %v379 = vld [vmem:[%s370 + $0x40] sm:$0xff]
  %v380 = vld [vmem:[%s370 + $0x48] sm:$0xff]
  %v381 = vld [vmem:[%s370 + $0x50] sm:$0xff]
  %v382 = vld [vmem:[%s370 + $0x58] sm:$0xff]
  %v383 = vld [vmem:[%s370 + $0x60] sm:$0xff]
  %v384 = vld [vmem:[%s370 + $0x68] sm:$0xff]
  %v385 = vld [vmem:[%s370 + $0x70] sm:$0xff]
  %v386 = vld [vmem:[%s370 + $0x78] sm:$0xff]
  %v403 = vunpack.c.l.b16 %v371
  %v404 = vunpack.c.h.b16 %v371
  %v405 = vunpack.c.l.b16 %v372
  %v406 = vunpack.c.h.b16 %v372
  %v407 = vunpack.c.l.b16 %v373
  %v408 = vunpack.c.h.b16 %v373
  %v409 = vunpack.c.l.b16 %v374
  %v410 = vunpack.c.h.b16 %v374
  %v411 = vunpack.c.l.b16 %v375
  %v412 = vunpack.c.h.b16 %v375
  %v413 = vunpack.c.l.b16 %v376
  %v414 = vunpack.c.h.b16 %v376
  %v415 = vunpack.c.l.b16 %v377
  %v416 = vunpack.c.h.b16 %v377
  %v417 = vunpack.c.l.b16 %v378
  %v418 = vunpack.c.h.b16 %v378
  %v419 = vunpack.c.l.b16 %v379
  %v420 = vunpack.c.h.b16 %v379
  %v421 = vunpack.c.l.b16 %v380
  %v422 = vunpack.c.h.b16 %v380
  %v423 = vunpack.c.l.b16 %v381
  %v424 = vunpack.c.h.b16 %v381
  %v425 = vunpack.c.l.b16 %v382
  %v426 = vunpack.c.h.b16 %v382
  %v427 = vunpack.c.l.b16 %v383
  %v428 = vunpack.c.h.b16 %v383
  %v429 = vunpack.c.l.b16 %v384
  %v430 = vunpack.c.h.b16 %v384
  %v431 = vunpack.c.l.b16 %v385
  %v432 = vunpack.c.h.b16 %v385
  %v433 = vunpack.c.l.b16 %v386
  %v434 = vunpack.c.h.b16 %v386
  %v435 = vpack.c.b16 %v405, %v403
  %v436 = vpack.c.b16 %v406, %v404
  %v437 = vpack.c.b16 %v409, %v407
  %v438 = vpack.c.b16 %v410, %v408
  %v439 = vpack.c.b16 %v413, %v411
  %v440 = vpack.c.b16 %v414, %v412
  %v441 = vpack.c.b16 %v417, %v415
  %v442 = vpack.c.b16 %v418, %v416
  %v443 = vpack.c.b16 %v421, %v419
  %v444 = vpack.c.b16 %v422, %v420
  %v445 = vpack.c.b16 %v425, %v423
  %v446 = vpack.c.b16 %v426, %v424
  %v447 = vpack.c.b16 %v429, %v427
  %v448 = vpack.c.b16 %v430, %v428
  %v449 = vpack.c.b16 %v433, %v431
  %v450 = vpack.c.b16 %v434, %v432
  %467 = vmatprep.subr.bf16.mxu0 %v436
  %468 = vmatpush1.bf16.msra.mxu0 %v435
  %469 = vmatprep.subr.bf16.mxu0 %v438
  %470 = vmatpush1.bf16.msra.mxu0 %v437
  %471 = vmatprep.subr.bf16.mxu0 %v440
  %472 = vmatpush1.bf16.msra.mxu0 %v439
  %473 = vmatprep.subr.bf16.mxu0 %v442
  %474 = vmatpush1.bf16.msra.mxu0 %v441
  %475 = vmatprep.subr.bf16.mxu0 %v444
  %476 = vmatpush1.bf16.msra.mxu0 %v443
  %477 = vmatprep.subr.bf16.mxu0 %v446
  %478 = vmatpush1.bf16.msra.mxu0 %v445
  %479 = vmatprep.subr.bf16.mxu0 %v448
  %480 = vmatpush1.bf16.msra.mxu0 %v447
  %481 = vmatprep.subr.bf16.mxu0 %v450
  %482 = vmatpush1.bf16.msra.mxu0 %v449
  %483 = vmatprep.subr.bf16.mxu0 0
  %484 = vmatpush1.bf16.msra.mxu0 0
  %485 = vmatprep.subr.bf16.mxu0 0
  %486 = vmatpush1.bf16.msra.mxu0 0
  %487 = vmatprep.subr.bf16.mxu0 0
  %488 = vmatpush1.bf16.msra.mxu0 0
  %489 = vmatprep.subr.bf16.mxu0 0
  %490 = vmatpush1.bf16.msra.mxu0 0
  %491 = vmatprep.subr.bf16.mxu0 0
  %492 = vmatpush1.bf16.msra.mxu0 0
  %493 = vmatprep.subr.bf16.mxu0 0
  %494 = vmatpush1.bf16.msra.mxu0 0
  %495 = vmatprep.subr.bf16.mxu0 0
  %496 = vmatpush1.bf16.msra.mxu0 0
  %497 = vmatprep.subr.bf16.mxu0 0
  %498 = vmatpush1.bf16.msra.mxu0 0
  %499 = vmatprep.mubr.bf16.mxu0 0
  %500 = vmatmul.mubr.bf16.gmra.mrb[0].mxu0 %v369
  %v501 = vpop.f32.mrb[0].mxu0
  %v502 = vadd.f32 0.0, %v501
  %v503 = vpop.f32.mrb[0].mxu0
  %v504 = vadd.f32 0.0, %v503
  %v505 = vpop.f32.mrb[0].mxu0
  %v506 = vpop.f32.mrb[0].mxu0
  %507 = vdwg.mxu0
  %v508 = vmul.f32 %v502, %v22
  %v509 = vmul.f32 %v504, %v22
  %v510 = vrot.slane %v508, 4
  %v511 = vadd.f32 %v508, %v510
  %v512 = vrot.slane %v511, 2
  %v513 = vadd.f32 %v511, %v512
  %v514 = vrot.slane %v513, 1
  %v515 = vadd.f32 %v513, %v514
  %v516 = vrot.slane %v509, 4
  %v517 = vadd.f32 %v509, %v516
  %v518 = vrot.slane %v517, 2
  %v519 = vadd.f32 %v517, %v518
  %v520 = vrot.slane %v519, 1
  %v521 = vadd.f32 %v519, %v520
  %v522 = vadd.f32 %v348, %v515
  %v523 = vadd.f32 %v349, %v521
  %v524 = vmul.f32 %v508, %v508
  %v525 = vmul.f32 %v509, %v509
  %v526 = vrot.slane %v524, 4
  %v527 = vadd.f32 %v524, %v526
  %v528 = vrot.slane %v527, 2
  %v529 = vadd.f32 %v527, %v528
  %v530 = vrot.slane %v529, 1
  %v531 = vadd.f32 %v529, %v530
  %v532 = vrot.slane %v525, 4
  %v533 = vadd.f32 %v525, %v532
  %v534 = vrot.slane %v533, 2
  %v535 = vadd.f32 %v533, %v534
  %v536 = vrot.slane %v535, 1
  %v537 = vadd.f32 %v535, %v536
  %v538 = vadd.f32 %v364, %v531
  %v539 = vadd.f32 %v365, %v537
  %s540 = scalar_lea.vmem %s4, 32
  %541 = vst [vmem:[%s540] sm:$0xff] %v502
  %542 = vst [vmem:[%s540 + $0x8] sm:$0xff] %v504
  %v543 = vld [vmem:[%s0] sm:$0xf]
  %s544 = scalar_lea.vmem %s1, 384
  %v545 = vld [vmem:[%s544] sm:$0xff]
  %v546 = vld [vmem:[%s544 + $0x8] sm:$0xff]
  %v547 = vld [vmem:[%s544 + $0x10] sm:$0xff]
  %v548 = vld [vmem:[%s544 + $0x18] sm:$0xff]
  %v549 = vld [vmem:[%s544 + $0x20] sm:$0xff]
  %v550 = vld [vmem:[%s544 + $0x28] sm:$0xff]
  %v551 = vld [vmem:[%s544 + $0x30] sm:$0xff]
  %v552 = vld [vmem:[%s544 + $0x38] sm:$0xff]
  %v553 = vld [vmem:[%s544 + $0x40] sm:$0xff]
  %v554 = vld [vmem:[%s544 + $0x48] sm:$0xff]
  %v555 = vld [vmem:[%s544 + $0x50] sm:$0xff]
  %v556 = vld [vmem:[%s544 + $0x58] sm:$0xff]
  %v557 = vld [vmem:[%s544 + $0x60] sm:$0xff]
  %v558 = vld [vmem:[%s544 + $0x68] sm:$0xff]
  %v559 = vld [vmem:[%s544 + $0x70] sm:$0xff]
  %v560 = vld [vmem:[%s544 + $0x78] sm:$0xff]
  %v577 = vunpack.c.l.b16 %v545
  %v578 = vunpack.c.h.b16 %v545
  %v579 = vunpack.c.l.b16 %v546
  %v580 = vunpack.c.h.b16 %v546
  %v581 = vunpack.c.l.b16 %v547
  %v582 = vunpack.c.h.b16 %v547
  %v583 = vunpack.c.l.b16 %v548
  %v584 = vunpack.c.h.b16 %v548
  %v585 = vunpack.c.l.b16 %v549
  %v586 = vunpack.c.h.b16 %v549
  %v587 = vunpack.c.l.b16 %v550
  %v588 = vunpack.c.h.b16 %v550
  %v589 = vunpack.c.l.b16 %v551
  %v590 = vunpack.c.h.b16 %v551
  %v591 = vunpack.c.l.b16 %v552
  %v592 = vunpack.c.h.b16 %v552
  %v593 = vunpack.c.l.b16 %v553
  %v594 = vunpack.c.h.b16 %v553
  %v595 = vunpack.c.l.b16 %v554
  %v596 = vunpack.c.h.b16 %v554
  %v597 = vunpack.c.l.b16 %v555
  %v598 = vunpack.c.h.b16 %v555
  %v599 = vunpack.c.l.b16 %v556
  %v600 = vunpack.c.h.b16 %v556
  %v601 = vunpack.c.l.b16 %v557
  %v602 = vunpack.c.h.b16 %v557
  %v603 = vunpack.c.l.b16 %v558
  %v604 = vunpack.c.h.b16 %v558
  %v605 = vunpack.c.l.b16 %v559
  %v606 = vunpack.c.h.b16 %v559
  %v607 = vunpack.c.l.b16 %v560
  %v608 = vunpack.c.h.b16 %v560
  %v609 = vpack.c.b16 %v579, %v577
  %v610 = vpack.c.b16 %v580, %v578
  %v611 = vpack.c.b16 %v583, %v581
  %v612 = vpack.c.b16 %v584, %v582
  %v613 = vpack.c.b16 %v587, %v585
  %v614 = vpack.c.b16 %v588, %v586
  %v615 = vpack.c.b16 %v591, %v589
  %v616 = vpack.c.b16 %v592, %v590
  %v617 = vpack.c.b16 %v595, %v593
  %v618 = vpack.c.b16 %v596, %v594
  %v619 = vpack.c.b16 %v599, %v597
  %v620 = vpack.c.b16 %v600, %v598
  %v621 = vpack.c.b16 %v603, %v601
  %v622 = vpack.c.b16 %v604, %v602
  %v623 = vpack.c.b16 %v607, %v605
  %v624 = vpack.c.b16 %v608, %v606
  %641 = vmatprep.subr.bf16.mxu0 %v610
  %642 = vmatpush1.bf16.msra.mxu0 %v609
  %643 = vmatprep.subr.bf16.mxu0 %v612
  %644 = vmatpush1.bf16.msra.mxu0 %v611
  %645 = vmatprep.subr.bf16.mxu0 %v614
  %646 = vmatpush1.bf16.msra.mxu0 %v613
  %647 = vmatprep.subr.bf16.mxu0 %v616
  %648 = vmatpush1.bf16.msra.mxu0 %v615
  %649 = vmatprep.subr.bf16.mxu0 %v618
  %650 = vmatpush1.bf16.msra.mxu0 %v617
  %651 = vmatprep.subr.bf16.mxu0 %v620
  %652 = vmatpush1.bf16.msra.mxu0 %v619
  %653 = vmatprep.subr.bf16.mxu0 %v622
  %654 = vmatpush1.bf16.msra.mxu0 %v621
  %655 = vmatprep.subr.bf16.mxu0 %v624
  %656 = vmatpush1.bf16.msra.mxu0 %v623
  %657 = vmatprep.subr.bf16.mxu0 0
  %658 = vmatpush1.bf16.msra.mxu0 0
  %659 = vmatprep.subr.bf16.mxu0 0
  %660 = vmatpush1.bf16.msra.mxu0 0
  %661 = vmatprep.subr.bf16.mxu0 0
  %662 = vmatpush1.bf16.msra.mxu0 0
  %663 = vmatprep.subr.bf16.mxu0 0
  %664 = vmatpush1.bf16.msra.mxu0 0
  %665 = vmatprep.subr.bf16.mxu0 0
  %666 = vmatpush1.bf16.msra.mxu0 0
  %667 = vmatprep.subr.bf16.mxu0 0
  %668 = vmatpush1.bf16.msra.mxu0 0
  %669 = vmatprep.subr.bf16.mxu0 0
  %670 = vmatpush1.bf16.msra.mxu0 0
  %671 = vmatprep.subr.bf16.mxu0 0
  %672 = vmatpush1.bf16.msra.mxu0 0
  %673 = vmatprep.mubr.bf16.mxu0 0
  %674 = vmatmul.mubr.bf16.gmra.mrb[0].mxu0 %v543
  %v675 = vpop.f32.mrb[0].mxu0
  %v676 = vadd.f32 0.0, %v675
  %v677 = vpop.f32.mrb[0].mxu0
  %v678 = vadd.f32 0.0, %v677
  %v679 = vpop.f32.mrb[0].mxu0
  %v680 = vpop.f32.mrb[0].mxu0
  %681 = vdwg.mxu0
  %v682 = vmul.f32 %v676, %v22
  %v683 = vmul.f32 %v678, %v22
  %v684 = vrot.slane %v682, 4
  %v685 = vadd.f32 %v682, %v684
  %v686 = vrot.slane %v685, 2
  %v687 = vadd.f32 %v685, %v686
  %v688 = vrot.slane %v687, 1
  %v689 = vadd.f32 %v687, %v688
  %v690 = vrot.slane %v683, 4
  %v691 = vadd.f32 %v683, %v690
  %v692 = vrot.slane %v691, 2
  %v693 = vadd.f32 %v691, %v692
  %v694 = vrot.slane %v693, 1
  %v695 = vadd.f32 %v693, %v694
  %v696 = vadd.f32 %v522, %v689
  %v697 = vadd.f32 %v523, %v695
  %v698 = vmul.f32 %v682, %v682
  %v699 = vmul.f32 %v683, %v683
  %v700 = vrot.slane %v698, 4
  %v701 = vadd.f32 %v698, %v700
  %v702 = vrot.slane %v701, 2
  %v703 = vadd.f32 %v701, %v702
  %v704 = vrot.slane %v703, 1
  %v705 = vadd.f32 %v703, %v704
  %v706 = vrot.slane %v699, 4
  %v707 = vadd.f32 %v699, %v706
  %v708 = vrot.slane %v707, 2
  %v709 = vadd.f32 %v707, %v708
  %v710 = vrot.slane %v709, 1
  %v711 = vadd.f32 %v709, %v710
  %v712 = vadd.f32 %v538, %v705
  %v713 = vadd.f32 %v539, %v711
  %s714 = scalar_lea.vmem %s4, 48
  %715 = vst [vmem:[%s714] sm:$0xff] %v676
  %716 = vst [vmem:[%s714 + $0x8] sm:$0xff] %v678
  %v717 = vld [vmem:[%s0] sm:$0xf]
  %s718 = scalar_lea.vmem %s1, 512
  %v719 = vld [vmem:[%s718] sm:$0xff]
  %v720 = vld [vmem:[%s718 + $0x8] sm:$0xff]
  %v721 = vld [vmem:[%s718 + $0x10] sm:$0xff]
  %v722 = vld [vmem:[%s718 + $0x18] sm:$0xff]
  %v723 = vld [vmem:[%s718 + $0x20] sm:$0xff]
  %v724 = vld [vmem:[%s718 + $0x28] sm:$0xff]
  %v725 = vld [vmem:[%s718 + $0x30] sm:$0xff]
  %v726 = vld [vmem:[%s718 + $0x38] sm:$0xff]
  %v727 = vld [vmem:[%s718 + $0x40] sm:$0xff]
  %v728 = vld [vmem:[%s718 + $0x48] sm:$0xff]
  %v729 = vld [vmem:[%s718 + $0x50] sm:$0xff]
  %v730 = vld [vmem:[%s718 + $0x58] sm:$0xff]
  %v731 = vld [vmem:[%s718 + $0x60] sm:$0xff]
  %v732 = vld [vmem:[%s718 + $0x68] sm:$0xff]
  %v733 = vld [vmem:[%s718 + $0x70] sm:$0xff]
  %v734 = vld [vmem:[%s718 + $0x78] sm:$0xff]
  %v751 = vunpack.c.l.b16 %v719
  %v752 = vunpack.c.h.b16 %v719
  %v753 = vunpack.c.l.b16 %v720
  %v754 = vunpack.c.h.b16 %v720
  %v755 = vunpack.c.l.b16 %v721
  %v756 = vunpack.c.h.b16 %v721
  %v757 = vunpack.c.l.b16 %v722
  %v758 = vunpack.c.h.b16 %v722
  %v759 = vunpack.c.l.b16 %v723
  %v760 = vunpack.c.h.b16 %v723
  %v761 = vunpack.c.l.b16 %v724
  %v762 = vunpack.c.h.b16 %v724
  %v763 = vunpack.c.l.b16 %v725
  %v764 = vunpack.c.h.b16 %v725
  %v765 = vunpack.c.l.b16 %v726
  %v766 = vunpack.c.h.b16 %v726
  %v767 = vunpack.c.l.b16 %v727
  %v768 = vunpack.c.h.b16 %v727
  %v769 = vunpack.c.l.b16 %v728
  %v770 = vunpack.c.h.b16 %v728
  %v771 = vunpack.c.l.b16 %v729
  %v772 = vunpack.c.h.b16 %v729
  %v773 = vunpack.c.l.b16 %v730
  %v774 = vunpack.c.h.b16 %v730
  %v775 = vunpack.c.l.b16 %v731
  %v776 = vunpack.c.h.b16 %v731
  %v777 = vunpack.c.l.b16 %v732
  %v778 = vunpack.c.h.b16 %v732
  %v779 = vunpack.c.l.b16 %v733
  %v780 = vunpack.c.h.b16 %v733
  %v781 = vunpack.c.l.b16 %v734
  %v782 = vunpack.c.h.b16 %v734
  %v783 = vpack.c.b16 %v753, %v751
  %v784 = vpack.c.b16 %v754, %v752
  %v785 = vpack.c.b16 %v757, %v755
  %v786 = vpack.c.b16 %v758, %v756
  %v787 = vpack.c.b16 %v761, %v759
  %v788 = vpack.c.b16 %v762, %v760
  %v789 = vpack.c.b16 %v765, %v763
  %v790 = vpack.c.b16 %v766, %v764
  %v791 = vpack.c.b16 %v769, %v767
  %v792 = vpack.c.b16 %v770, %v768
  %v793 = vpack.c.b16 %v773, %v771
  %v794 = vpack.c.b16 %v774, %v772
  %v795 = vpack.c.b16 %v777, %v775
  %v796 = vpack.c.b16 %v778, %v776
  %v797 = vpack.c.b16 %v781, %v779
  %v798 = vpack.c.b16 %v782, %v780
  %815 = vmatprep.subr.bf16.mxu0 %v784
  %816 = vmatpush1.bf16.msra.mxu0 %v783
  %817 = vmatprep.subr.bf16.mxu0 %v786
  %818 = vmatpush1.bf16.msra.mxu0 %v785
  %819 = vmatprep.subr.bf16.mxu0 %v788
  %820 = vmatpush1.bf16.msra.mxu0 %v787
  %821 = vmatprep.subr.bf16.mxu0 %v790
  %822 = vmatpush1.bf16.msra.mxu0 %v789
  %823 = vmatprep.subr.bf16.mxu0 %v792
  %824 = vmatpush1.bf16.msra.mxu0 %v791
  %825 = vmatprep.subr.bf16.mxu0 %v794
  %826 = vmatpush1.bf16.msra.mxu0 %v793
  %827 = vmatprep.subr.bf16.mxu0 %v796
  %828 = vmatpush1.bf16.msra.mxu0 %v795
  %829 = vmatprep.subr.bf16.mxu0 %v798
  %830 = vmatpush1.bf16.msra.mxu0 %v797
  %831 = vmatprep.subr.bf16.mxu0 0
  %832 = vmatpush1.bf16.msra.mxu0 0
  %833 = vmatprep.subr.bf16.mxu0 0
  %834 = vmatpush1.bf16.msra.mxu0 0
  %835 = vmatprep.subr.bf16.mxu0 0
  %836 = vmatpush1.bf16.msra.mxu0 0
  %837 = vmatprep.subr.bf16.mxu0 0
  %838 = vmatpush1.bf16.msra.mxu0 0
  %839 = vmatprep.subr.bf16.mxu0 0
  %840 = vmatpush1.bf16.msra.mxu0 0
  %841 = vmatprep.subr.bf16.mxu0 0
  %842 = vmatpush1.bf16.msra.mxu0 0
  %843 = vmatprep.subr.bf16.mxu0 0
  %844 = vmatpush1.bf16.msra.mxu0 0
  %845 = vmatprep.subr.bf16.mxu0 0
  %846 = vmatpush1.bf16.msra.mxu0 0
  %847 = vmatprep.mubr.bf16.mxu0 0
  %848 = vmatmul.mubr.bf16.gmra.mrb[0].mxu0 %v717
  %v849 = vpop.f32.mrb[0].mxu0
  %v850 = vadd.f32 0.0, %v849
  %v851 = vpop.f32.mrb[0].mxu0
  %v852 = vadd.f32 0.0, %v851
  %v853 = vpop.f32.mrb[0].mxu0
  %v854 = vpop.f32.mrb[0].mxu0
  %855 = vdwg.mxu0
  %v856 = vmul.f32 %v850, %v22
  %v857 = vmul.f32 %v852, %v22
  %v858 = vrot.slane %v856, 4
  %v859 = vadd.f32 %v856, %v858
  %v860 = vrot.slane %v859, 2
  %v861 = vadd.f32 %v859, %v860
  %v862 = vrot.slane %v861, 1
  %v863 = vadd.f32 %v861, %v862
  %v864 = vrot.slane %v857, 4
  %v865 = vadd.f32 %v857, %v864
  %v866 = vrot.slane %v865, 2
  %v867 = vadd.f32 %v865, %v866
  %v868 = vrot.slane %v867, 1
  %v869 = vadd.f32 %v867, %v868
  %v870 = vadd.f32 %v696, %v863
  %v871 = vadd.f32 %v697, %v869
  %v872 = vmul.f32 %v856, %v856
  %v873 = vmul.f32 %v857, %v857
  %v874 = vrot.slane %v872, 4
  %v875 = vadd.f32 %v872, %v874
  %v876 = vrot.slane %v875, 2
  %v877 = vadd.f32 %v875, %v876
  %v878 = vrot.slane %v877, 1
  %v879 = vadd.f32 %v877, %v878
  %v880 = vrot.slane %v873, 4
  %v881 = vadd.f32 %v873, %v880
  %v882 = vrot.slane %v881, 2
  %v883 = vadd.f32 %v881, %v882
  %v884 = vrot.slane %v883, 1
  %v885 = vadd.f32 %v883, %v884
  %v886 = vadd.f32 %v712, %v879
  %v887 = vadd.f32 %v713, %v885
  %s888 = scalar_lea.vmem %s4, 64
  %889 = vst [vmem:[%s888] sm:$0xff] %v850
  %890 = vst [vmem:[%s888 + $0x8] sm:$0xff] %v852
  %v891 = vld [vmem:[%s0] sm:$0xf]
  %s892 = scalar_lea.vmem %s1, 640
  %v893 = vld [vmem:[%s892] sm:$0xff]
  %v894 = vld [vmem:[%s892 + $0x8] sm:$0xff]
  %v895 = vld [vmem:[%s892 + $0x10] sm:$0xff]
  %v896 = vld [vmem:[%s892 + $0x18] sm:$0xff]
  %v897 = vld [vmem:[%s892 + $0x20] sm:$0xff]
  %v898 = vld [vmem:[%s892 + $0x28] sm:$0xff]
  %v899 = vld [vmem:[%s892 + $0x30] sm:$0xff]
  %v900 = vld [vmem:[%s892 + $0x38] sm:$0xff]
  %v901 = vld [vmem:[%s892 + $0x40] sm:$0xff]
  %v902 = vld [vmem:[%s892 + $0x48] sm:$0xff]
  %v903 = vld [vmem:[%s892 + $0x50] sm:$0xff]
  %v904 = vld [vmem:[%s892 + $0x58] sm:$0xff]
  %v905 = vld [vmem:[%s892 + $0x60] sm:$0xff]
  %v906 = vld [vmem:[%s892 + $0x68] sm:$0xff]
  %v907 = vld [vmem:[%s892 + $0x70] sm:$0xff]
  %v908 = vld [vmem:[%s892 + $0x78] sm:$0xff]
  %v925 = vunpack.c.l.b16 %v893
  %v926 = vunpack.c.h.b16 %v893
  %v927 = vunpack.c.l.b16 %v894
  %v928 = vunpack.c.h.b16 %v894
  %v929 = vunpack.c.l.b16 %v895
  %v930 = vunpack.c.h.b16 %v895
  %v931 = vunpack.c.l.b16 %v896
  %v932 = vunpack.c.h.b16 %v896
  %v933 = vunpack.c.l.b16 %v897
  %v934 = vunpack.c.h.b16 %v897
  %v935 = vunpack.c.l.b16 %v898
  %v936 = vunpack.c.h.b16 %v898
  %v937 = vunpack.c.l.b16 %v899
  %v938 = vunpack.c.h.b16 %v899
  %v939 = vunpack.c.l.b16 %v900
  %v940 = vunpack.c.h.b16 %v900
  %v941 = vunpack.c.l.b16 %v901
  %v942 = vunpack.c.h.b16 %v901
  %v943 = vunpack.c.l.b16 %v902
  %v944 = vunpack.c.h.b16 %v902
  %v945 = vunpack.c.l.b16 %v903
  %v946 = vunpack.c.h.b16 %v903
  %v947 = vunpack.c.l.b16 %v904
  %v948 = vunpack.c.h.b16 %v904
  %v949 = vunpack.c.l.b16 %v905
  %v950 = vunpack.c.h.b16 %v905
  %v951 = vunpack.c.l.b16 %v906
  %v952 = vunpack.c.h.b16 %v906
  %v953 = vunpack.c.l.b16 %v907
  %v954 = vunpack.c.h.b16 %v907
  %v955 = vunpack.c.l.b16 %v908
  %v956 = vunpack.c.h.b16 %v908
  %v957 = vpack.c.b16 %v927, %v925
  %v958 = vpack.c.b16 %v928, %v926
  %v959 = vpack.c.b16 %v931, %v929
  %v960 = vpack.c.b16 %v932, %v930
  %v961 = vpack.c.b16 %v935, %v933
  %v962 = vpack.c.b16 %v936, %v934
  %v963 = vpack.c.b16 %v939, %v937
  %v964 = vpack.c.b16 %v940, %v938
  %v965 = vpack.c.b16 %v943, %v941
  %v966 = vpack.c.b16 %v944, %v942
  %v967 = vpack.c.b16 %v947, %v945
  %v968 = vpack.c.b16 %v948, %v946
  %v969 = vpack.c.b16 %v951, %v949
  %v970 = vpack.c.b16 %v952, %v950
  %v971 = vpack.c.b16 %v955, %v953
  %v972 = vpack.c.b16 %v956, %v954
  %989 = vmatprep.subr.bf16.mxu0 %v958
  %990 = vmatpush1.bf16.msra.mxu0 %v957
  %991 = vmatprep.subr.bf16.mxu0 %v960
  %992 = vmatpush1.bf16.msra.mxu0 %v959
  %993 = vmatprep.subr.bf16.mxu0 %v962
  %994 = vmatpush1.bf16.msra.mxu0 %v961
  %995 = vmatprep.subr.bf16.mxu0 %v964
  %996 = vmatpush1.bf16.msra.mxu0 %v963
  %997 = vmatprep.subr.bf16.mxu0 %v966
  %998 = vmatpush1.bf16.msra.mxu0 %v965
  %999 = vmatprep.subr.bf16.mxu0 %v968
  %1000 = vmatpush1.bf16.msra.mxu0 %v967
  %1001 = vmatprep.subr.bf16.mxu0 %v970
  %1002 = vmatpush1.bf16.msra.mxu0 %v969
  %1003 = vmatprep.subr.bf16.mxu0 %v972
  %1004 = vmatpush1.bf16.msra.mxu0 %v971
  %1005 = vmatprep.subr.bf16.mxu0 0
  %1006 = vmatpush1.bf16.msra.mxu0 0
  %1007 = vmatprep.subr.bf16.mxu0 0
  %1008 = vmatpush1.bf16.msra.mxu0 0
  %1009 = vmatprep.subr.bf16.mxu0 0
  %1010 = vmatpush1.bf16.msra.mxu0 0
  %1011 = vmatprep.subr.bf16.mxu0 0
  %1012 = vmatpush1.bf16.msra.mxu0 0
  %1013 = vmatprep.subr.bf16.mxu0 0
  %1014 = vmatpush1.bf16.msra.mxu0 0
  %1015 = vmatprep.subr.bf16.mxu0 0
  %1016 = vmatpush1.bf16.msra.mxu0 0
  %1017 = vmatprep.subr.bf16.mxu0 0
  %1018 = vmatpush1.bf16.msra.mxu0 0
  %1019 = vmatprep.subr.bf16.mxu0 0
  %1020 = vmatpush1.bf16.msra.mxu0 0
  %1021 = vmatprep.mubr.bf16.mxu0 0
  %1022 = vmatmul.mubr.bf16.gmra.mrb[0].mxu0 %v891
  %v1023 = vpop.f32.mrb[0].mxu0
  %v1024 = vadd.f32 0.0, %v1023
  %v1025 = vpop.f32.mrb[0].mxu0
  %v1026 = vadd.f32 0.0, %v1025
  %v1027 = vpop.f32.mrb[0].mxu0
  %v1028 = vpop.f32.mrb[0].mxu0
  %1029 = vdwg.mxu0
  %v1030 = vmul.f32 %v1024, %v22
  %v1031 = vmul.f32 %v1026, %v22
  %v1032 = vrot.slane %v1030, 4
  %v1033 = vadd.f32 %v1030, %v1032
  %v1034 = vrot.slane %v1033, 2
  %v1035 = vadd.f32 %v1033, %v1034
  %v1036 = vrot.slane %v1035, 1
  %v1037 = vadd.f32 %v1035, %v1036
  %v1038 = vrot.slane %v1031, 4
  %v1039 = vadd.f32 %v1031, %v1038
  %v1040 = vrot.slane %v1039, 2
  %v1041 = vadd.f32 %v1039, %v1040
  %v1042 = vrot.slane %v1041, 1
  %v1043 = vadd.f32 %v1041, %v1042
  %v1044 = vadd.f32 %v870, %v1037
  %v1045 = vadd.f32 %v871, %v1043
  %v1046 = vmul.f32 %v1030, %v1030
  %v1047 = vmul.f32 %v1031, %v1031
  %v1048 = vrot.slane %v1046, 4
  %v1049 = vadd.f32 %v1046, %v1048
  %v1050 = vrot.slane %v1049, 2
  %v1051 = vadd.f32 %v1049, %v1050
  %v1052 = vrot.slane %v1051, 1
  %v1053 = vadd.f32 %v1051, %v1052
  %v1054 = vrot.slane %v1047, 4
  %v1055 = vadd.f32 %v1047, %v1054
  %v1056 = vrot.slane %v1055, 2
  %v1057 = vadd.f32 %v1055, %v1056
  %v1058 = vrot.slane %v1057, 1
  %v1059 = vadd.f32 %v1057, %v1058
  %v1060 = vadd.f32 %v886, %v1053
  %v1061 = vadd.f32 %v887, %v1059
  %s1062 = scalar_lea.vmem %s4, 80
  %1063 = vst [vmem:[%s1062] sm:$0xff] %v1024
  %1064 = vst [vmem:[%s1062 + $0x8] sm:$0xff] %v1026
  %v1065 = vld [vmem:[%s0] sm:$0xf]
  %s1066 = scalar_lea.vmem %s1, 768
  %v1067 = vld [vmem:[%s1066] sm:$0xff]
  %v1068 = vld [vmem:[%s1066 + $0x8] sm:$0xff]
  %v1069 = vld [vmem:[%s1066 + $0x10] sm:$0xff]
  %v1070 = vld [vmem:[%s1066 + $0x18] sm:$0xff]
  %v1071 = vld [vmem:[%s1066 + $0x20] sm:$0xff]
  %v1072 = vld [vmem:[%s1066 + $0x28] sm:$0xff]
  %v1073 = vld [vmem:[%s1066 + $0x30] sm:$0xff]
  %v1074 = vld [vmem:[%s1066 + $0x38] sm:$0xff]
  %v1075 = vld [vmem:[%s1066 + $0x40] sm:$0xff]
  %v1076 = vld [vmem:[%s1066 + $0x48] sm:$0xff]
  %v1077 = vld [vmem:[%s1066 + $0x50] sm:$0xff]
  %v1078 = vld [vmem:[%s1066 + $0x58] sm:$0xff]
  %v1079 = vld [vmem:[%s1066 + $0x60] sm:$0xff]
  %v1080 = vld [vmem:[%s1066 + $0x68] sm:$0xff]
  %v1081 = vld [vmem:[%s1066 + $0x70] sm:$0xff]
  %v1082 = vld [vmem:[%s1066 + $0x78] sm:$0xff]
  %v1099 = vunpack.c.l.b16 %v1067
  %v1100 = vunpack.c.h.b16 %v1067
  %v1101 = vunpack.c.l.b16 %v1068
  %v1102 = vunpack.c.h.b16 %v1068
  %v1103 = vunpack.c.l.b16 %v1069
  %v1104 = vunpack.c.h.b16 %v1069
  %v1105 = vunpack.c.l.b16 %v1070
  %v1106 = vunpack.c.h.b16 %v1070
  %v1107 = vunpack.c.l.b16 %v1071
  %v1108 = vunpack.c.h.b16 %v1071
  %v1109 = vunpack.c.l.b16 %v1072
  %v1110 = vunpack.c.h.b16 %v1072
  %v1111 = vunpack.c.l.b16 %v1073
  %v1112 = vunpack.c.h.b16 %v1073
  %v1113 = vunpack.c.l.b16 %v1074
  %v1114 = vunpack.c.h.b16 %v1074
  %v1115 = vunpack.c.l.b16 %v1075
  %v1116 = vunpack.c.h.b16 %v1075
  %v1117 = vunpack.c.l.b16 %v1076
  %v1118 = vunpack.c.h.b16 %v1076
  %v1119 = vunpack.c.l.b16 %v1077
  %v1120 = vunpack.c.h.b16 %v1077
  %v1121 = vunpack.c.l.b16 %v1078
  %v1122 = vunpack.c.h.b16 %v1078
  %v1123 = vunpack.c.l.b16 %v1079
  %v1124 = vunpack.c.h.b16 %v1079
  %v1125 = vunpack.c.l.b16 %v1080
  %v1126 = vunpack.c.h.b16 %v1080
  %v1127 = vunpack.c.l.b16 %v1081
  %v1128 = vunpack.c.h.b16 %v1081
  %v1129 = vunpack.c.l.b16 %v1082
  %v1130 = vunpack.c.h.b16 %v1082
  %v1131 = vpack.c.b16 %v1101, %v1099
  %v1132 = vpack.c.b16 %v1102, %v1100
  %v1133 = vpack.c.b16 %v1105, %v1103
  %v1134 = vpack.c.b16 %v1106, %v1104
  %v1135 = vpack.c.b16 %v1109, %v1107
  %v1136 = vpack.c.b16 %v1110, %v1108
  %v1137 = vpack.c.b16 %v1113, %v1111
  %v1138 = vpack.c.b16 %v1114, %v1112
  %v1139 = vpack.c.b16 %v1117, %v1115
  %v1140 = vpack.c.b16 %v1118, %v1116
  %v1141 = vpack.c.b16 %v1121, %v1119
  %v1142 = vpack.c.b16 %v1122, %v1120
  %v1143 = vpack.c.b16 %v1125, %v1123
  %v1144 = vpack.c.b16 %v1126, %v1124
  %v1145 = vpack.c.b16 %v1129, %v1127
  %v1146 = vpack.c.b16 %v1130, %v1128
  %1163 = vmatprep.subr.bf16.mxu0 %v1132
  %1164 = vmatpush1.bf16.msra.mxu0 %v1131
  %1165 = vmatprep.subr.bf16.mxu0 %v1134
  %1166 = vmatpush1.bf16.msra.mxu0 %v1133
  %1167 = vmatprep.subr.bf16.mxu0 %v1136
  %1168 = vmatpush1.bf16.msra.mxu0 %v1135
  %1169 = vmatprep.subr.bf16.mxu0 %v1138
  %1170 = vmatpush1.bf16.msra.mxu0 %v1137
  %1171 = vmatprep.subr.bf16.mxu0 %v1140
  %1172 = vmatpush1.bf16.msra.mxu0 %v1139
  %1173 = vmatprep.subr.bf16.mxu0 %v1142
  %1174 = vmatpush1.bf16.msra.mxu0 %v1141
  %1175 = vmatprep.subr.bf16.mxu0 %v1144
  %1176 = vmatpush1.bf16.msra.mxu0 %v1143
  %1177 = vmatprep.subr.bf16.mxu0 %v1146
  %1178 = vmatpush1.bf16.msra.mxu0 %v1145
  %1179 = vmatprep.subr.bf16.mxu0 0
  %1180 = vmatpush1.bf16.msra.mxu0 0
  %1181 = vmatprep.subr.bf16.mxu0 0
  %1182 = vmatpush1.bf16.msra.mxu0 0
  %1183 = vmatprep.subr.bf16.mxu0 0
  %1184 = vmatpush1.bf16.msra.mxu0 0
  %1185 = vmatprep.subr.bf16.mxu0 0
  %1186 = vmatpush1.bf16.msra.mxu0 0
  %1187 = vmatprep.subr.bf16.mxu0 0
  %1188 = vmatpush1.bf16.msra.mxu0 0
  %1189 = vmatprep.subr.bf16.mxu0 0
  %1190 = vmatpush1.bf16.msra.mxu0 0
  %1191 = vmatprep.subr.bf16.mxu0 0
  %1192 = vmatpush1.bf16.msra.mxu0 0
  %1193 = vmatprep.subr.bf16.mxu0 0
  %1194 = vmatpush1.bf16.msra.mxu0 0
  %1195 = vmatprep.mubr.bf16.mxu0 0
  %1196 = vmatmul.mubr.bf16.gmra.mrb[0].mxu0 %v1065
  %v1197 = vpop.f32.mrb[0].mxu0
  %v1198 = vadd.f32 0.0, %v1197
  %v1199 = vpop.f32.mrb[0].mxu0
  %v1200 = vadd.f32 0.0, %v1199
  %v1201 = vpop.f32.mrb[0].mxu0
  %v1202 = vpop.f32.mrb[0].mxu0
  %1203 = vdwg.mxu0
  %v1204 = vmul.f32 %v1198, %v22
  %v1205 = vmul.f32 %v1200, %v22
  %v1206 = vrot.slane %v1204, 4
  %v1207 = vadd.f32 %v1204, %v1206
  %v1208 = vrot.slane %v1207, 2
  %v1209 = vadd.f32 %v1207, %v1208
  %v1210 = vrot.slane %v1209, 1
  %v1211 = vadd.f32 %v1209, %v1210
  %v1212 = vrot.slane %v1205, 4
  %v1213 = vadd.f32 %v1205, %v1212
  %v1214 = vrot.slane %v1213, 2
  %v1215 = vadd.f32 %v1213, %v1214
  %v1216 = vrot.slane %v1215, 1
  %v1217 = vadd.f32 %v1215, %v1216
  %v1218 = vadd.f32 %v1044, %v1211
  %v1219 = vadd.f32 %v1045, %v1217
  %v1220 = vmul.f32 %v1204, %v1204
  %v1221 = vmul.f32 %v1205, %v1205
  %v1222 = vrot.slane %v1220, 4
  %v1223 = vadd.f32 %v1220, %v1222
  %v1224 = vrot.slane %v1223, 2
  %v1225 = vadd.f32 %v1223, %v1224
  %v1226 = vrot.slane %v1225, 1
  %v1227 = vadd.f32 %v1225, %v1226
  %v1228 = vrot.slane %v1221, 4
  %v1229 = vadd.f32 %v1221, %v1228
  %v1230 = vrot.slane %v1229, 2
  %v1231 = vadd.f32 %v1229, %v1230
  %v1232 = vrot.slane %v1231, 1
  %v1233 = vadd.f32 %v1231, %v1232
  %v1234 = vadd.f32 %v1060, %v1227
  %v1235 = vadd.f32 %v1061, %v1233
  %s1236 = scalar_lea.vmem %s4, 96
  %1237 = vst [vmem:[%s1236] sm:$0xff] %v1198
  %1238 = vst [vmem:[%s1236 + $0x8] sm:$0xff] %v1200
  %v1239 = vld [vmem:[%s0] sm:$0xf]
  %s1240 = scalar_lea.vmem %s1, 896
  %v1241 = vld [vmem:[%s1240] sm:$0xff]
  %v1242 = vld [vmem:[%s1240 + $0x8] sm:$0xff]
  %v1243 = vld [vmem:[%s1240 + $0x10] sm:$0xff]
  %v1244 = vld [vmem:[%s1240 + $0x18] sm:$0xff]
  %v1245 = vld [vmem:[%s1240 + $0x20] sm:$0xff]
  %v1246 = vld [vmem:[%s1240 + $0x28] sm:$0xff]
  %v1247 = vld [vmem:[%s1240 + $0x30] sm:$0xff]
  %v1248 = vld [vmem:[%s1240 + $0x38] sm:$0xff]
  %v1249 = vld [vmem:[%s1240 + $0x40] sm:$0xff]
  %v1250 = vld [vmem:[%s1240 + $0x48] sm:$0xff]
  %v1251 = vld [vmem:[%s1240 + $0x50] sm:$0xff]
  %v1252 = vld [vmem:[%s1240 + $0x58] sm:$0xff]
  %v1253 = vld [vmem:[%s1240 + $0x60] sm:$0xff]
  %v1254 = vld [vmem:[%s1240 + $0x68] sm:$0xff]
  %v1255 = vld [vmem:[%s1240 + $0x70] sm:$0xff]
  %v1256 = vld [vmem:[%s1240 + $0x78] sm:$0xff]
  %v1273 = vunpack.c.l.b16 %v1241
  %v1274 = vunpack.c.h.b16 %v1241
  %v1275 = vunpack.c.l.b16 %v1242
  %v1276 = vunpack.c.h.b16 %v1242
  %v1277 = vunpack.c.l.b16 %v1243
  %v1278 = vunpack.c.h.b16 %v1243
  %v1279 = vunpack.c.l.b16 %v1244
  %v1280 = vunpack.c.h.b16 %v1244
  %v1281 = vunpack.c.l.b16 %v1245
  %v1282 = vunpack.c.h.b16 %v1245
  %v1283 = vunpack.c.l.b16 %v1246
  %v1284 = vunpack.c.h.b16 %v1246
  %v1285 = vunpack.c.l.b16 %v1247
  %v1286 = vunpack.c.h.b16 %v1247
  %v1287 = vunpack.c.l.b16 %v1248
  %v1288 = vunpack.c.h.b16 %v1248
  %v1289 = vunpack.c.l.b16 %v1249
  %v1290 = vunpack.c.h.b16 %v1249
  %v1291 = vunpack.c.l.b16 %v1250
  %v1292 = vunpack.c.h.b16 %v1250
  %v1293 = vunpack.c.l.b16 %v1251
  %v1294 = vunpack.c.h.b16 %v1251
  %v1295 = vunpack.c.l.b16 %v1252
  %v1296 = vunpack.c.h.b16 %v1252
  %v1297 = vunpack.c.l.b16 %v1253
  %v1298 = vunpack.c.h.b16 %v1253
  %v1299 = vunpack.c.l.b16 %v1254
  %v1300 = vunpack.c.h.b16 %v1254
  %v1301 = vunpack.c.l.b16 %v1255
  %v1302 = vunpack.c.h.b16 %v1255
  %v1303 = vunpack.c.l.b16 %v1256
  %v1304 = vunpack.c.h.b16 %v1256
  %v1305 = vpack.c.b16 %v1275, %v1273
  %v1306 = vpack.c.b16 %v1276, %v1274
  %v1307 = vpack.c.b16 %v1279, %v1277
  %v1308 = vpack.c.b16 %v1280, %v1278
  %v1309 = vpack.c.b16 %v1283, %v1281
  %v1310 = vpack.c.b16 %v1284, %v1282
  %v1311 = vpack.c.b16 %v1287, %v1285
  %v1312 = vpack.c.b16 %v1288, %v1286
  %v1313 = vpack.c.b16 %v1291, %v1289
  %v1314 = vpack.c.b16 %v1292, %v1290
  %v1315 = vpack.c.b16 %v1295, %v1293
  %v1316 = vpack.c.b16 %v1296, %v1294
  %v1317 = vpack.c.b16 %v1299, %v1297
  %v1318 = vpack.c.b16 %v1300, %v1298
  %v1319 = vpack.c.b16 %v1303, %v1301
  %v1320 = vpack.c.b16 %v1304, %v1302
  %1337 = vmatprep.subr.bf16.mxu0 %v1306
  %1338 = vmatpush1.bf16.msra.mxu0 %v1305
  %1339 = vmatprep.subr.bf16.mxu0 %v1308
  %1340 = vmatpush1.bf16.msra.mxu0 %v1307
  %1341 = vmatprep.subr.bf16.mxu0 %v1310
  %1342 = vmatpush1.bf16.msra.mxu0 %v1309
  %1343 = vmatprep.subr.bf16.mxu0 %v1312
  %1344 = vmatpush1.bf16.msra.mxu0 %v1311
  %1345 = vmatprep.subr.bf16.mxu0 %v1314
  %1346 = vmatpush1.bf16.msra.mxu0 %v1313
  %1347 = vmatprep.subr.bf16.mxu0 %v1316
  %1348 = vmatpush1.bf16.msra.mxu0 %v1315
  %1349 = vmatprep.subr.bf16.mxu0 %v1318
  %1350 = vmatpush1.bf16.msra.mxu0 %v1317
  %1351 = vmatprep.subr.bf16.mxu0 %v1320
  %1352 = vmatpush1.bf16.msra.mxu0 %v1319
  %1353 = vmatprep.subr.bf16.mxu0 0
  %1354 = vmatpush1.bf16.msra.mxu0 0
  %1355 = vmatprep.subr.bf16.mxu0 0
  %1356 = vmatpush1.bf16.msra.mxu0 0
  %1357 = vmatprep.subr.bf16.mxu0 0
  %1358 = vmatpush1.bf16.msra.mxu0 0
  %1359 = vmatprep.subr.bf16.mxu0 0
  %1360 = vmatpush1.bf16.msra.mxu0 0
  %1361 = vmatprep.subr.bf16.mxu0 0
  %1362 = vmatpush1.bf16.msra.mxu0 0
  %1363 = vmatprep.subr.bf16.mxu0 0
  %1364 = vmatpush1.bf16.msra.mxu0 0
  %1365 = vmatprep.subr.bf16.mxu0 0
  %1366 = vmatpush1.bf16.msra.mxu0 0
  %1367 = vmatprep.subr.bf16.mxu0 0
  %1368 = vmatpush1.bf16.msra.mxu0 0
  %1369 = vmatprep.mubr.bf16.mxu0 0
  %1370 = vmatmul.mubr.bf16.gmra.mrb[0].mxu0 %v1239
  %v1371 = vpop.f32.mrb[0].mxu0
  %v1372 = vadd.f32 0.0, %v1371
  %v1373 = vpop.f32.mrb[0].mxu0
  %v1374 = vadd.f32 0.0, %v1373
  %v1375 = vpop.f32.mrb[0].mxu0
  %v1376 = vpop.f32.mrb[0].mxu0
  %1377 = vdwg.mxu0
  %v1378 = vmul.f32 %v1372, %v22
  %v1379 = vmul.f32 %v1374, %v22
  %v1380 = vrot.slane %v1378, 4
  %v1381 = vadd.f32 %v1378, %v1380
  %v1382 = vrot.slane %v1381, 2
  %v1383 = vadd.f32 %v1381, %v1382
  %v1384 = vrot.slane %v1383, 1
  %v1385 = vadd.f32 %v1383, %v1384
  %v1386 = vrot.slane %v1379, 4
  %v1387 = vadd.f32 %v1379, %v1386
  %v1388 = vrot.slane %v1387, 2
  %v1389 = vadd.f32 %v1387, %v1388
  %v1390 = vrot.slane %v1389, 1
  %v1391 = vadd.f32 %v1389, %v1390
  %v1392 = vadd.f32 %v1218, %v1385
  %v1393 = vadd.f32 %v1219, %v1391
  %v1394 = vmul.f32 %v1378, %v1378
  %v1395 = vmul.f32 %v1379, %v1379
  %v1396 = vrot.slane %v1394, 4
  %v1397 = vadd.f32 %v1394, %v1396
  %v1398 = vrot.slane %v1397, 2
  %v1399 = vadd.f32 %v1397, %v1398
  %v1400 = vrot.slane %v1399, 1
  %v1401 = vadd.f32 %v1399, %v1400
  %v1402 = vrot.slane %v1395, 4
  %v1403 = vadd.f32 %v1395, %v1402
  %v1404 = vrot.slane %v1403, 2
  %v1405 = vadd.f32 %v1403, %v1404
  %v1406 = vrot.slane %v1405, 1
  %v1407 = vadd.f32 %v1405, %v1406
  %v1408 = vadd.f32 %v1234, %v1401
  %v1409 = vadd.f32 %v1235, %v1407
  %s1410 = scalar_lea.vmem %s4, 112
  %1411 = vst [vmem:[%s1410] sm:$0xff] %v1372
  %1412 = vst [vmem:[%s1410 + $0x8] sm:$0xff] %v1374
  %v1413 = vld [vmem:[%s0] sm:$0xf]
  %s1414 = scalar_lea.vmem %s1, 1024
  %v1415 = vld [vmem:[%s1414] sm:$0xff]
  %v1416 = vld [vmem:[%s1414 + $0x8] sm:$0xff]
  %v1417 = vld [vmem:[%s1414 + $0x10] sm:$0xff]
  %v1418 = vld [vmem:[%s1414 + $0x18] sm:$0xff]
  %v1419 = vld [vmem:[%s1414 + $0x20] sm:$0xff]
  %v1420 = vld [vmem:[%s1414 + $0x28] sm:$0xff]
  %v1421 = vld [vmem:[%s1414 + $0x30] sm:$0xff]
  %v1422 = vld [vmem:[%s1414 + $0x38] sm:$0xff]
  %v1423 = vld [vmem:[%s1414 + $0x40] sm:$0xff]
  %v1424 = vld [vmem:[%s1414 + $0x48] sm:$0xff]
  %v1425 = vld [vmem:[%s1414 + $0x50] sm:$0xff]
  %v1426 = vld [vmem:[%s1414 + $0x58] sm:$0xff]
  %v1427 = vld [vmem:[%s1414 + $0x60] sm:$0xff]
  %v1428 = vld [vmem:[%s1414 + $0x68] sm:$0xff]
  %v1429 = vld [vmem:[%s1414 + $0x70] sm:$0xff]
  %v1430 = vld [vmem:[%s1414 + $0x78] sm:$0xff]
  %v1447 = vunpack.c.l.b16 %v1415
  %v1448 = vunpack.c.h.b16 %v1415
  %v1449 = vunpack.c.l.b16 %v1416
  %v1450 = vunpack.c.h.b16 %v1416
  %v1451 = vunpack.c.l.b16 %v1417
  %v1452 = vunpack.c.h.b16 %v1417
  %v1453 = vunpack.c.l.b16 %v1418
  %v1454 = vunpack.c.h.b16 %v1418
  %v1455 = vunpack.c.l.b16 %v1419
  %v1456 = vunpack.c.h.b16 %v1419
  %v1457 = vunpack.c.l.b16 %v1420
  %v1458 = vunpack.c.h.b16 %v1420
  %v1459 = vunpack.c.l.b16 %v1421
  %v1460 = vunpack.c.h.b16 %v1421
  %v1461 = vunpack.c.l.b16 %v1422
  %v1462 = vunpack.c.h.b16 %v1422
  %v1463 = vunpack.c.l.b16 %v1423
  %v1464 = vunpack.c.h.b16 %v1423
  %v1465 = vunpack.c.l.b16 %v1424
  %v1466 = vunpack.c.h.b16 %v1424
  %v1467 = vunpack.c.l.b16 %v1425
  %v1468 = vunpack.c.h.b16 %v1425
  %v1469 = vunpack.c.l.b16 %v1426
  %v1470 = vunpack.c.h.b16 %v1426
  %v1471 = vunpack.c.l.b16 %v1427
  %v1472 = vunpack.c.h.b16 %v1427
  %v1473 = vunpack.c.l.b16 %v1428
  %v1474 = vunpack.c.h.b16 %v1428
  %v1475 = vunpack.c.l.b16 %v1429
  %v1476 = vunpack.c.h.b16 %v1429
  %v1477 = vunpack.c.l.b16 %v1430
  %v1478 = vunpack.c.h.b16 %v1430
  %v1479 = vpack.c.b16 %v1449, %v1447
  %v1480 = vpack.c.b16 %v1450, %v1448
  %v1481 = vpack.c.b16 %v1453, %v1451
  %v1482 = vpack.c.b16 %v1454, %v1452
  %v1483 = vpack.c.b16 %v1457, %v1455
  %v1484 = vpack.c.b16 %v1458, %v1456
  %v1485 = vpack.c.b16 %v1461, %v1459
  %v1486 = vpack.c.b16 %v1462, %v1460
  %v1487 = vpack.c.b16 %v1465, %v1463
  %v1488 = vpack.c.b16 %v1466, %v1464
  %v1489 = vpack.c.b16 %v1469, %v1467
  %v1490 = vpack.c.b16 %v1470, %v1468
  %v1491 = vpack.c.b16 %v1473, %v1471
  %v1492 = vpack.c.b16 %v1474, %v1472
  %v1493 = vpack.c.b16 %v1477, %v1475
  %v1494 = vpack.c.b16 %v1478, %v1476
  %1511 = vmatprep.subr.bf16.mxu0 %v1480
  %1512 = vmatpush1.bf16.msra.mxu0 %v1479
  %1513 = vmatprep.subr.bf16.mxu0 %v1482
  %1514 = vmatpush1.bf16.msra.mxu0 %v1481
  %1515 = vmatprep.subr.bf16.mxu0 %v1484
  %1516 = vmatpush1.bf16.msra.mxu0 %v1483
  %1517 = vmatprep.subr.bf16.mxu0 %v1486
  %1518 = vmatpush1.bf16.msra.mxu0 %v1485
  %1519 = vmatprep.subr.bf16.mxu0 %v1488
  %1520 = vmatpush1.bf16.msra.mxu0 %v1487
  %1521 = vmatprep.subr.bf16.mxu0 %v1490
  %1522 = vmatpush1.bf16.msra.mxu0 %v1489
  %1523 = vmatprep.subr.bf16.mxu0 %v1492
  %1524 = vmatpush1.bf16.msra.mxu0 %v1491
  %1525 = vmatprep.subr.bf16.mxu0 %v1494
  %1526 = vmatpush1.bf16.msra.mxu0 %v1493
  %1527 = vmatprep.subr.bf16.mxu0 0
  %1528 = vmatpush1.bf16.msra.mxu0 0
  %1529 = vmatprep.subr.bf16.mxu0 0
  %1530 = vmatpush1.bf16.msra.mxu0 0
  %1531 = vmatprep.subr.bf16.mxu0 0
  %1532 = vmatpush1.bf16.msra.mxu0 0
  %1533 = vmatprep.subr.bf16.mxu0 0
  %1534 = vmatpush1.bf16.msra.mxu0 0
  %1535 = vmatprep.subr.bf16.mxu0 0
  %1536 = vmatpush1.bf16.msra.mxu0 0
  %1537 = vmatprep.subr.bf16.mxu0 0
  %1538 = vmatpush1.bf16.msra.mxu0 0
  %1539 = vmatprep.subr.bf16.mxu0 0
  %1540 = vmatpush1.bf16.msra.mxu0 0
  %1541 = vmatprep.subr.bf16.mxu0 0
  %1542 = vmatpush1.bf16.msra.mxu0 0
  %1543 = vmatprep.mubr.bf16.mxu0 0
  %1544 = vmatmul.mubr.bf16.gmra.mrb[0].mxu0 %v1413
  %v1545 = vpop.f32.mrb[0].mxu0
  %v1546 = vadd.f32 0.0, %v1545
  %v1547 = vpop.f32.mrb[0].mxu0
  %v1548 = vadd.f32 0.0, %v1547
  %v1549 = vpop.f32.mrb[0].mxu0
  %v1550 = vpop.f32.mrb[0].mxu0
  %1551 = vdwg.mxu0
  %v1552 = vmul.f32 %v1546, %v22
  %v1553 = vmul.f32 %v1548, %v22
  %v1554 = vrot.slane %v1552, 4
  %v1555 = vadd.f32 %v1552, %v1554
  %v1556 = vrot.slane %v1555, 2
  %v1557 = vadd.f32 %v1555, %v1556
  %v1558 = vrot.slane %v1557, 1
  %v1559 = vadd.f32 %v1557, %v1558
  %v1560 = vrot.slane %v1553, 4
  %v1561 = vadd.f32 %v1553, %v1560
  %v1562 = vrot.slane %v1561, 2
  %v1563 = vadd.f32 %v1561, %v1562
  %v1564 = vrot.slane %v1563, 1
  %v1565 = vadd.f32 %v1563, %v1564
  %v1566 = vadd.f32 %v1392, %v1559
  %v1567 = vadd.f32 %v1393, %v1565
  %v1568 = vmul.f32 %v1552, %v1552
  %v1569 = vmul.f32 %v1553, %v1553
  %v1570 = vrot.slane %v1568, 4
  %v1571 = vadd.f32 %v1568, %v1570
  %v1572 = vrot.slane %v1571, 2
  %v1573 = vadd.f32 %v1571, %v1572
  %v1574 = vrot.slane %v1573, 1
  %v1575 = vadd.f32 %v1573, %v1574
  %v1576 = vrot.slane %v1569, 4
  %v1577 = vadd.f32 %v1569, %v1576
  %v1578 = vrot.slane %v1577, 2
  %v1579 = vadd.f32 %v1577, %v1578
  %v1580 = vrot.slane %v1579, 1
  %v1581 = vadd.f32 %v1579, %v1580
  %v1582 = vadd.f32 %v1408, %v1575
  %v1583 = vadd.f32 %v1409, %v1581
  %s1584 = scalar_lea.vmem %s4, 128
  %1585 = vst [vmem:[%s1584] sm:$0xff] %v1546
  %1586 = vst [vmem:[%s1584 + $0x8] sm:$0xff] %v1548
  %v1587 = vld [vmem:[%s0] sm:$0xf]
  %s1588 = scalar_lea.vmem %s1, 1152
  %v1589 = vld [vmem:[%s1588] sm:$0xff]
  %v1590 = vld [vmem:[%s1588 + $0x8] sm:$0xff]
  %v1591 = vld [vmem:[%s1588 + $0x10] sm:$0xff]
  %v1592 = vld [vmem:[%s1588 + $0x18] sm:$0xff]
  %v1593 = vld [vmem:[%s1588 + $0x20] sm:$0xff]
  %v1594 = vld [vmem:[%s1588 + $0x28] sm:$0xff]
  %v1595 = vld [vmem:[%s1588 + $0x30] sm:$0xff]
  %v1596 = vld [vmem:[%s1588 + $0x38] sm:$0xff]
  %v1597 = vld [vmem:[%s1588 + $0x40] sm:$0xff]
  %v1598 = vld [vmem:[%s1588 + $0x48] sm:$0xff]
  %v1599 = vld [vmem:[%s1588 + $0x50] sm:$0xff]
  %v1600 = vld [vmem:[%s1588 + $0x58] sm:$0xff]
  %v1601 = vld [vmem:[%s1588 + $0x60] sm:$0xff]
  %v1602 = vld [vmem:[%s1588 + $0x68] sm:$0xff]
  %v1603 = vld [vmem:[%s1588 + $0x70] sm:$0xff]
  %v1604 = vld [vmem:[%s1588 + $0x78] sm:$0xff]
  %v1621 = vunpack.c.l.b16 %v1589
  %v1622 = vunpack.c.h.b16 %v1589
  %v1623 = vunpack.c.l.b16 %v1590
  %v1624 = vunpack.c.h.b16 %v1590
  %v1625 = vunpack.c.l.b16 %v1591
  %v1626 = vunpack.c.h.b16 %v1591
  %v1627 = vunpack.c.l.b16 %v1592
  %v1628 = vunpack.c.h.b16 %v1592
  %v1629 = vunpack.c.l.b16 %v1593
  %v1630 = vunpack.c.h.b16 %v1593
  %v1631 = vunpack.c.l.b16 %v1594
  %v1632 = vunpack.c.h.b16 %v1594
  %v1633 = vunpack.c.l.b16 %v1595
  %v1634 = vunpack.c.h.b16 %v1595
  %v1635 = vunpack.c.l.b16 %v1596
  %v1636 = vunpack.c.h.b16 %v1596
  %v1637 = vunpack.c.l.b16 %v1597
  %v1638 = vunpack.c.h.b16 %v1597
  %v1639 = vunpack.c.l.b16 %v1598
  %v1640 = vunpack.c.h.b16 %v1598
  %v1641 = vunpack.c.l.b16 %v1599
  %v1642 = vunpack.c.h.b16 %v1599
  %v1643 = vunpack.c.l.b16 %v1600
  %v1644 = vunpack.c.h.b16 %v1600
  %v1645 = vunpack.c.l.b16 %v1601
  %v1646 = vunpack.c.h.b16 %v1601
  %v1647 = vunpack.c.l.b16 %v1602
  %v1648 = vunpack.c.h.b16 %v1602
  %v1649 = vunpack.c.l.b16 %v1603
  %v1650 = vunpack.c.h.b16 %v1603
  %v1651 = vunpack.c.l.b16 %v1604
  %v1652 = vunpack.c.h.b16 %v1604
  %v1653 = vpack.c.b16 %v1623, %v1621
  %v1654 = vpack.c.b16 %v1624, %v1622
  %v1655 = vpack.c.b16 %v1627, %v1625
  %v1656 = vpack.c.b16 %v1628, %v1626
  %v1657 = vpack.c.b16 %v1631, %v1629
  %v1658 = vpack.c.b16 %v1632, %v1630
  %v1659 = vpack.c.b16 %v1635, %v1633
  %v1660 = vpack.c.b16 %v1636, %v1634
  %v1661 = vpack.c.b16 %v1639, %v1637
  %v1662 = vpack.c.b16 %v1640, %v1638
  %v1663 = vpack.c.b16 %v1643, %v1641
  %v1664 = vpack.c.b16 %v1644, %v1642
  %v1665 = vpack.c.b16 %v1647, %v1645
  %v1666 = vpack.c.b16 %v1648, %v1646
  %v1667 = vpack.c.b16 %v1651, %v1649
  %v1668 = vpack.c.b16 %v1652, %v1650
  %1685 = vmatprep.subr.bf16.mxu0 %v1654
  %1686 = vmatpush1.bf16.msra.mxu0 %v1653
  %1687 = vmatprep.subr.bf16.mxu0 %v1656
  %1688 = vmatpush1.bf16.msra.mxu0 %v1655
  %1689 = vmatprep.subr.bf16.mxu0 %v1658
  %1690 = vmatpush1.bf16.msra.mxu0 %v1657
  %1691 = vmatprep.subr.bf16.mxu0 %v1660
  %1692 = vmatpush1.bf16.msra.mxu0 %v1659
  %1693 = vmatprep.subr.bf16.mxu0 %v1662
  %1694 = vmatpush1.bf16.msra.mxu0 %v1661
  %1695 = vmatprep.subr.bf16.mxu0 %v1664
  %1696 = vmatpush1.bf16.msra.mxu0 %v1663
  %1697 = vmatprep.subr.bf16.mxu0 %v1666
  %1698 = vmatpush1.bf16.msra.mxu0 %v1665
  %1699 = vmatprep.subr.bf16.mxu0 %v1668
  %1700 = vmatpush1.bf16.msra.mxu0 %v1667
  %1701 = vmatprep.subr.bf16.mxu0 0
  %1702 = vmatpush1.bf16.msra.mxu0 0
  %1703 = vmatprep.subr.bf16.mxu0 0
  %1704 = vmatpush1.bf16.msra.mxu0 0
  %1705 = vmatprep.subr.bf16.mxu0 0
  %1706 = vmatpush1.bf16.msra.mxu0 0
  %1707 = vmatprep.subr.bf16.mxu0 0
  %1708 = vmatpush1.bf16.msra.mxu0 0
  %1709 = vmatprep.subr.bf16.mxu0 0
  %1710 = vmatpush1.bf16.msra.mxu0 0
  %1711 = vmatprep.subr.bf16.mxu0 0
  %1712 = vmatpush1.bf16.msra.mxu0 0
  %1713 = vmatprep.subr.bf16.mxu0 0
  %1714 = vmatpush1.bf16.msra.mxu0 0
  %1715 = vmatprep.subr.bf16.mxu0 0
  %1716 = vmatpush1.bf16.msra.mxu0 0
  %1717 = vmatprep.mubr.bf16.mxu0 0
  %1718 = vmatmul.mubr.bf16.gmra.mrb[0].mxu0 %v1587
  %v1719 = vpop.f32.mrb[0].mxu0
  %v1720 = vadd.f32 0.0, %v1719
  %v1721 = vpop.f32.mrb[0].mxu0
  %v1722 = vadd.f32 0.0, %v1721
  %v1723 = vpop.f32.mrb[0].mxu0
  %v1724 = vpop.f32.mrb[0].mxu0
  %1725 = vdwg.mxu0
  %v1726 = vmul.f32 %v1720, %v22
  %v1727 = vmul.f32 %v1722, %v22
  %v1728 = vrot.slane %v1726, 4
  %v1729 = vadd.f32 %v1726, %v1728
  %v1730 = vrot.slane %v1729, 2
  %v1731 = vadd.f32 %v1729, %v1730
  %v1732 = vrot.slane %v1731, 1
  %v1733 = vadd.f32 %v1731, %v1732
  %v1734 = vrot.slane %v1727, 4
  %v1735 = vadd.f32 %v1727, %v1734
  %v1736 = vrot.slane %v1735, 2
  %v1737 = vadd.f32 %v1735, %v1736
  %v1738 = vrot.slane %v1737, 1
  %v1739 = vadd.f32 %v1737, %v1738
  %v1740 = vadd.f32 %v1566, %v1733
  %v1741 = vadd.f32 %v1567, %v1739
  %v1742 = vmul.f32 %v1726, %v1726
  %v1743 = vmul.f32 %v1727, %v1727
  %v1744 = vrot.slane %v1742, 4
  %v1745 = vadd.f32 %v1742, %v1744
  %v1746 = vrot.slane %v1745, 2
  %v1747 = vadd.f32 %v1745, %v1746
  %v1748 = vrot.slane %v1747, 1
  %v1749 = vadd.f32 %v1747, %v1748
  %v1750 = vrot.slane %v1743, 4
  %v1751 = vadd.f32 %v1743, %v1750
  %v1752 = vrot.slane %v1751, 2
  %v1753 = vadd.f32 %v1751, %v1752
  %v1754 = vrot.slane %v1753, 1
  %v1755 = vadd.f32 %v1753, %v1754
  %v1756 = vadd.f32 %v1582, %v1749
  %v1757 = vadd.f32 %v1583, %v1755
  %s1758 = scalar_lea.vmem %s4, 144
  %1759 = vst [vmem:[%s1758] sm:$0xff] %v1720
  %1760 = vst [vmem:[%s1758 + $0x8] sm:$0xff] %v1722
  %v1761 = vld [vmem:[%s0] sm:$0xf]
  %s1762 = scalar_lea.vmem %s1, 1280
  %v1763 = vld [vmem:[%s1762] sm:$0xff]
  %v1764 = vld [vmem:[%s1762 + $0x8] sm:$0xff]
  %v1765 = vld [vmem:[%s1762 + $0x10] sm:$0xff]
  %v1766 = vld [vmem:[%s1762 + $0x18] sm:$0xff]
  %v1767 = vld [vmem:[%s1762 + $0x20] sm:$0xff]
  %v1768 = vld [vmem:[%s1762 + $0x28] sm:$0xff]
  %v1769 = vld [vmem:[%s1762 + $0x30] sm:$0xff]
  %v1770 = vld [vmem:[%s1762 + $0x38] sm:$0xff]
  %v1771 = vld [vmem:[%s1762 + $0x40] sm:$0xff]
  %v1772 = vld [vmem:[%s1762 + $0x48] sm:$0xff]
  %v1773 = vld [vmem:[%s1762 + $0x50] sm:$0xff]
  %v1774 = vld [vmem:[%s1762 + $0x58] sm:$0xff]
  %v1775 = vld [vmem:[%s1762 + $0x60] sm:$0xff]
  %v1776 = vld [vmem:[%s1762 + $0x68] sm:$0xff]
  %v1777 = vld [vmem:[%s1762 + $0x70] sm:$0xff]
  %v1778 = vld [vmem:[%s1762 + $0x78] sm:$0xff]
  %v1795 = vunpack.c.l.b16 %v1763
  %v1796 = vunpack.c.h.b16 %v1763
  %v1797 = vunpack.c.l.b16 %v1764
  %v1798 = vunpack.c.h.b16 %v1764
  %v1799 = vunpack.c.l.b16 %v1765
  %v1800 = vunpack.c.h.b16 %v1765
  %v1801 = vunpack.c.l.b16 %v1766
  %v1802 = vunpack.c.h.b16 %v1766
  %v1803 = vunpack.c.l.b16 %v1767
  %v1804 = vunpack.c.h.b16 %v1767
  %v1805 = vunpack.c.l.b16 %v1768
  %v1806 = vunpack.c.h.b16 %v1768
  %v1807 = vunpack.c.l.b16 %v1769
  %v1808 = vunpack.c.h.b16 %v1769
  %v1809 = vunpack.c.l.b16 %v1770
  %v1810 = vunpack.c.h.b16 %v1770
  %v1811 = vunpack.c.l.b16 %v1771
  %v1812 = vunpack.c.h.b16 %v1771
  %v1813 = vunpack.c.l.b16 %v1772
  %v1814 = vunpack.c.h.b16 %v1772
  %v1815 = vunpack.c.l.b16 %v1773
  %v1816 = vunpack.c.h.b16 %v1773
  %v1817 = vunpack.c.l.b16 %v1774
  %v1818 = vunpack.c.h.b16 %v1774
  %v1819 = vunpack.c.l.b16 %v1775
  %v1820 = vunpack.c.h.b16 %v1775
  %v1821 = vunpack.c.l.b16 %v1776
  %v1822 = vunpack.c.h.b16 %v1776
  %v1823 = vunpack.c.l.b16 %v1777
  %v1824 = vunpack.c.h.b16 %v1777
  %v1825 = vunpack.c.l.b16 %v1778
  %v1826 = vunpack.c.h.b16 %v1778
  %v1827 = vpack.c.b16 %v1797, %v1795
  %v1828 = vpack.c.b16 %v1798, %v1796
  %v1829 = vpack.c.b16 %v1801, %v1799
  %v1830 = vpack.c.b16 %v1802, %v1800
  %v1831 = vpack.c.b16 %v1805, %v1803
  %v1832 = vpack.c.b16 %v1806, %v1804
  %v1833 = vpack.c.b16 %v1809, %v1807
  %v1834 = vpack.c.b16 %v1810, %v1808
  %v1835 = vpack.c.b16 %v1813, %v1811
  %v1836 = vpack.c.b16 %v1814, %v1812
  %v1837 = vpack.c.b16 %v1817, %v1815
  %v1838 = vpack.c.b16 %v1818, %v1816
  %v1839 = vpack.c.b16 %v1821, %v1819
  %v1840 = vpack.c.b16 %v1822, %v1820
  %v1841 = vpack.c.b16 %v1825, %v1823
  %v1842 = vpack.c.b16 %v1826, %v1824
  %1859 = vmatprep.subr.bf16.mxu0 %v1828
  %1860 = vmatpush1.bf16.msra.mxu0 %v1827
  %1861 = vmatprep.subr.bf16.mxu0 %v1830
  %1862 = vmatpush1.bf16.msra.mxu0 %v1829
  %1863 = vmatprep.subr.bf16.mxu0 %v1832
  %1864 = vmatpush1.bf16.msra.mxu0 %v1831
  %1865 = vmatprep.subr.bf16.mxu0 %v1834
  %1866 = vmatpush1.bf16.msra.mxu0 %v1833
  %1867 = vmatprep.subr.bf16.mxu0 %v1836
  %1868 = vmatpush1.bf16.msra.mxu0 %v1835
  %1869 = vmatprep.subr.bf16.mxu0 %v1838
  %1870 = vmatpush1.bf16.msra.mxu0 %v1837
  %1871 = vmatprep.subr.bf16.mxu0 %v1840
  %1872 = vmatpush1.bf16.msra.mxu0 %v1839
  %1873 = vmatprep.subr.bf16.mxu0 %v1842
  %1874 = vmatpush1.bf16.msra.mxu0 %v1841
  %1875 = vmatprep.subr.bf16.mxu0 0
  %1876 = vmatpush1.bf16.msra.mxu0 0
  %1877 = vmatprep.subr.bf16.mxu0 0
  %1878 = vmatpush1.bf16.msra.mxu0 0
  %1879 = vmatprep.subr.bf16.mxu0 0
  %1880 = vmatpush1.bf16.msra.mxu0 0
  %1881 = vmatprep.subr.bf16.mxu0 0
  %1882 = vmatpush1.bf16.msra.mxu0 0
  %1883 = vmatprep.subr.bf16.mxu0 0
  %1884 = vmatpush1.bf16.msra.mxu0 0
  %1885 = vmatprep.subr.bf16.mxu0 0
  %1886 = vmatpush1.bf16.msra.mxu0 0
  %1887 = vmatprep.subr.bf16.mxu0 0
  %1888 = vmatpush1.bf16.msra.mxu0 0
  %1889 = vmatprep.subr.bf16.mxu0 0
  %1890 = vmatpush1.bf16.msra.mxu0 0
  %1891 = vmatprep.mubr.bf16.mxu0 0
  %1892 = vmatmul.mubr.bf16.gmra.mrb[0].mxu0 %v1761
  %v1893 = vpop.f32.mrb[0].mxu0
  %v1894 = vadd.f32 0.0, %v1893
  %v1895 = vpop.f32.mrb[0].mxu0
  %v1896 = vadd.f32 0.0, %v1895
  %v1897 = vpop.f32.mrb[0].mxu0
  %v1898 = vpop.f32.mrb[0].mxu0
  %1899 = vdwg.mxu0
  %v1900 = vmul.f32 %v1894, %v22
  %v1901 = vmul.f32 %v1896, %v22
  %v1902 = vrot.slane %v1900, 4
  %v1903 = vadd.f32 %v1900, %v1902
  %v1904 = vrot.slane %v1903, 2
  %v1905 = vadd.f32 %v1903, %v1904
  %v1906 = vrot.slane %v1905, 1
  %v1907 = vadd.f32 %v1905, %v1906
  %v1908 = vrot.slane %v1901, 4
  %v1909 = vadd.f32 %v1901, %v1908
  %v1910 = vrot.slane %v1909, 2
  %v1911 = vadd.f32 %v1909, %v1910
  %v1912 = vrot.slane %v1911, 1
  %v1913 = vadd.f32 %v1911, %v1912
  %v1914 = vadd.f32 %v1740, %v1907
  %v1915 = vadd.f32 %v1741, %v1913
  %v1916 = vmul.f32 %v1900, %v1900
  %v1917 = vmul.f32 %v1901, %v1901
  %v1918 = vrot.slane %v1916, 4
  %v1919 = vadd.f32 %v1916, %v1918
  %v1920 = vrot.slane %v1919, 2
  %v1921 = vadd.f32 %v1919, %v1920
  %v1922 = vrot.slane %v1921, 1
  %v1923 = vadd.f32 %v1921, %v1922
  %v1924 = vrot.slane %v1917, 4
  %v1925 = vadd.f32 %v1917, %v1924
  %v1926 = vrot.slane %v1925, 2
  %v1927 = vadd.f32 %v1925, %v1926
  %v1928 = vrot.slane %v1927, 1
  %v1929 = vadd.f32 %v1927, %v1928
  %v1930 = vadd.f32 %v1756, %v1923
  %v1931 = vadd.f32 %v1757, %v1929
  %s1932 = scalar_lea.vmem %s4, 160
  %1933 = vst [vmem:[%s1932] sm:$0xff] %v1894
  %1934 = vst [vmem:[%s1932 + $0x8] sm:$0xff] %v1896
  %v1935 = vld [vmem:[%s0] sm:$0xf]
  %s1936 = scalar_lea.vmem %s1, 1408
  %v1937 = vld [vmem:[%s1936] sm:$0xff]
  %v1938 = vld [vmem:[%s1936 + $0x8] sm:$0xff]
  %v1939 = vld [vmem:[%s1936 + $0x10] sm:$0xff]
  %v1940 = vld [vmem:[%s1936 + $0x18] sm:$0xff]
  %v1941 = vld [vmem:[%s1936 + $0x20] sm:$0xff]
  %v1942 = vld [vmem:[%s1936 + $0x28] sm:$0xff]
  %v1943 = vld [vmem:[%s1936 + $0x30] sm:$0xff]
  %v1944 = vld [vmem:[%s1936 + $0x38] sm:$0xff]
  %v1945 = vld [vmem:[%s1936 + $0x40] sm:$0xff]
  %v1946 = vld [vmem:[%s1936 + $0x48] sm:$0xff]
  %v1947 = vld [vmem:[%s1936 + $0x50] sm:$0xff]
  %v1948 = vld [vmem:[%s1936 + $0x58] sm:$0xff]
  %v1949 = vld [vmem:[%s1936 + $0x60] sm:$0xff]
  %v1950 = vld [vmem:[%s1936 + $0x68] sm:$0xff]
  %v1951 = vld [vmem:[%s1936 + $0x70] sm:$0xff]
  %v1952 = vld [vmem:[%s1936 + $0x78] sm:$0xff]
  %v1969 = vunpack.c.l.b16 %v1937
  %v1970 = vunpack.c.h.b16 %v1937
  %v1971 = vunpack.c.l.b16 %v1938
  %v1972 = vunpack.c.h.b16 %v1938
  %v1973 = vunpack.c.l.b16 %v1939
  %v1974 = vunpack.c.h.b16 %v1939
  %v1975 = vunpack.c.l.b16 %v1940
  %v1976 = vunpack.c.h.b16 %v1940
  %v1977 = vunpack.c.l.b16 %v1941
  %v1978 = vunpack.c.h.b16 %v1941
  %v1979 = vunpack.c.l.b16 %v1942
  %v1980 = vunpack.c.h.b16 %v1942
  %v1981 = vunpack.c.l.b16 %v1943
  %v1982 = vunpack.c.h.b16 %v1943
  %v1983 = vunpack.c.l.b16 %v1944
  %v1984 = vunpack.c.h.b16 %v1944
  %v1985 = vunpack.c.l.b16 %v1945
  %v1986 = vunpack.c.h.b16 %v1945
  %v1987 = vunpack.c.l.b16 %v1946
  %v1988 = vunpack.c.h.b16 %v1946
  %v1989 = vunpack.c.l.b16 %v1947
  %v1990 = vunpack.c.h.b16 %v1947
  %v1991 = vunpack.c.l.b16 %v1948
  %v1992 = vunpack.c.h.b16 %v1948
  %v1993 = vunpack.c.l.b16 %v1949
  %v1994 = vunpack.c.h.b16 %v1949
  %v1995 = vunpack.c.l.b16 %v1950
  %v1996 = vunpack.c.h.b16 %v1950
  %v1997 = vunpack.c.l.b16 %v1951
  %v1998 = vunpack.c.h.b16 %v1951
  %v1999 = vunpack.c.l.b16 %v1952
  %v2000 = vunpack.c.h.b16 %v1952
  %v2001 = vpack.c.b16 %v1971, %v1969
  %v2002 = vpack.c.b16 %v1972, %v1970
  %v2003 = vpack.c.b16 %v1975, %v1973
  %v2004 = vpack.c.b16 %v1976, %v1974
  %v2005 = vpack.c.b16 %v1979, %v1977
  %v2006 = vpack.c.b16 %v1980, %v1978
  %v2007 = vpack.c.b16 %v1983, %v1981
  %v2008 = vpack.c.b16 %v1984, %v1982
  %v2009 = vpack.c.b16 %v1987, %v1985
  %v2010 = vpack.c.b16 %v1988, %v1986
  %v2011 = vpack.c.b16 %v1991, %v1989
  %v2012 = vpack.c.b16 %v1992, %v1990
  %v2013 = vpack.c.b16 %v1995, %v1993
  %v2014 = vpack.c.b16 %v1996, %v1994
  %v2015 = vpack.c.b16 %v1999, %v1997
  %v2016 = vpack.c.b16 %v2000, %v1998
  %2033 = vmatprep.subr.bf16.mxu0 %v2002
  %2034 = vmatpush1.bf16.msra.mxu0 %v2001
  %2035 = vmatprep.subr.bf16.mxu0 %v2004
  %2036 = vmatpush1.bf16.msra.mxu0 %v2003
  %2037 = vmatprep.subr.bf16.mxu0 %v2006
  %2038 = vmatpush1.bf16.msra.mxu0 %v2005
  %2039 = vmatprep.subr.bf16.mxu0 %v2008
  %2040 = vmatpush1.bf16.msra.mxu0 %v2007
  %2041 = vmatprep.subr.bf16.mxu0 %v2010
  %2042 = vmatpush1.bf16.msra.mxu0 %v2009
  %2043 = vmatprep.subr.bf16.mxu0 %v2012
  %2044 = vmatpush1.bf16.msra.mxu0 %v2011
  %2045 = vmatprep.subr.bf16.mxu0 %v2014
  %2046 = vmatpush1.bf16.msra.mxu0 %v2013
  %2047 = vmatprep.subr.bf16.mxu0 %v2016
  %2048 = vmatpush1.bf16.msra.mxu0 %v2015
  %2049 = vmatprep.subr.bf16.mxu0 0
  %2050 = vmatpush1.bf16.msra.mxu0 0
  %2051 = vmatprep.subr.bf16.mxu0 0
  %2052 = vmatpush1.bf16.msra.mxu0 0
  %2053 = vmatprep.subr.bf16.mxu0 0
  %2054 = vmatpush1.bf16.msra.mxu0 0
  %2055 = vmatprep.subr.bf16.mxu0 0
  %2056 = vmatpush1.bf16.msra.mxu0 0
  %2057 = vmatprep.subr.bf16.mxu0 0
  %2058 = vmatpush1.bf16.msra.mxu0 0
  %2059 = vmatprep.subr.bf16.mxu0 0
  %2060 = vmatpush1.bf16.msra.mxu0 0
  %2061 = vmatprep.subr.bf16.mxu0 0
  %2062 = vmatpush1.bf16.msra.mxu0 0
  %2063 = vmatprep.subr.bf16.mxu0 0
  %2064 = vmatpush1.bf16.msra.mxu0 0
  %2065 = vmatprep.mubr.bf16.mxu0 0
  %2066 = vmatmul.mubr.bf16.gmra.mrb[0].mxu0 %v1935
  %v2067 = vpop.f32.mrb[0].mxu0
  %v2068 = vadd.f32 0.0, %v2067
  %v2069 = vpop.f32.mrb[0].mxu0
  %v2070 = vadd.f32 0.0, %v2069
  %v2071 = vpop.f32.mrb[0].mxu0
  %v2072 = vpop.f32.mrb[0].mxu0
  %2073 = vdwg.mxu0
  %v2074 = vmul.f32 %v2068, %v22
  %v2075 = vmul.f32 %v2070, %v22
  %v2076 = vrot.slane %v2074, 4
  %v2077 = vadd.f32 %v2074, %v2076
  %v2078 = vrot.slane %v2077, 2
  %v2079 = vadd.f32 %v2077, %v2078
  %v2080 = vrot.slane %v2079, 1
  %v2081 = vadd.f32 %v2079, %v2080
  %v2082 = vrot.slane %v2075, 4
  %v2083 = vadd.f32 %v2075, %v2082
  %v2084 = vrot.slane %v2083, 2
  %v2085 = vadd.f32 %v2083, %v2084
  %v2086 = vrot.slane %v2085, 1
  %v2087 = vadd.f32 %v2085, %v2086
  %v2088 = vadd.f32 %v1914, %v2081
  %v2089 = vadd.f32 %v1915, %v2087
  %v2090 = vmul.f32 %v2074, %v2074
  %v2091 = vmul.f32 %v2075, %v2075
  %v2092 = vrot.slane %v2090, 4
  %v2093 = vadd.f32 %v2090, %v2092
  %v2094 = vrot.slane %v2093, 2
  %v2095 = vadd.f32 %v2093, %v2094
  %v2096 = vrot.slane %v2095, 1
  %v2097 = vadd.f32 %v2095, %v2096
  %v2098 = vrot.slane %v2091, 4
  %v2099 = vadd.f32 %v2091, %v2098
  %v2100 = vrot.slane %v2099, 2
  %v2101 = vadd.f32 %v2099, %v2100
  %v2102 = vrot.slane %v2101, 1
  %v2103 = vadd.f32 %v2101, %v2102
  %v2104 = vadd.f32 %v1930, %v2097
  %v2105 = vadd.f32 %v1931, %v2103
  %s2106 = scalar_lea.vmem %s4, 176
  %2107 = vst [vmem:[%s2106] sm:$0xff] %v2068
  %2108 = vst [vmem:[%s2106 + $0x8] sm:$0xff] %v2070
  %v2109 = vld [vmem:[%s0] sm:$0xf]
  %s2110 = scalar_lea.vmem %s1, 1536
  %v2111 = vld [vmem:[%s2110] sm:$0xff]
  %v2112 = vld [vmem:[%s2110 + $0x8] sm:$0xff]
  %v2113 = vld [vmem:[%s2110 + $0x10] sm:$0xff]
  %v2114 = vld [vmem:[%s2110 + $0x18] sm:$0xff]
  %v2115 = vld [vmem:[%s2110 + $0x20] sm:$0xff]
  %v2116 = vld [vmem:[%s2110 + $0x28] sm:$0xff]
  %v2117 = vld [vmem:[%s2110 + $0x30] sm:$0xff]
  %v2118 = vld [vmem:[%s2110 + $0x38] sm:$0xff]
  %v2119 = vld [vmem:[%s2110 + $0x40] sm:$0xff]
  %v2120 = vld [vmem:[%s2110 + $0x48] sm:$0xff]
  %v2121 = vld [vmem:[%s2110 + $0x50] sm:$0xff]
  %v2122 = vld [vmem:[%s2110 + $0x58] sm:$0xff]
  %v2123 = vld [vmem:[%s2110 + $0x60] sm:$0xff]
  %v2124 = vld [vmem:[%s2110 + $0x68] sm:$0xff]
  %v2125 = vld [vmem:[%s2110 + $0x70] sm:$0xff]
  %v2126 = vld [vmem:[%s2110 + $0x78] sm:$0xff]
  %v2143 = vunpack.c.l.b16 %v2111
  %v2144 = vunpack.c.h.b16 %v2111
  %v2145 = vunpack.c.l.b16 %v2112
  %v2146 = vunpack.c.h.b16 %v2112
  %v2147 = vunpack.c.l.b16 %v2113
  %v2148 = vunpack.c.h.b16 %v2113
  %v2149 = vunpack.c.l.b16 %v2114
  %v2150 = vunpack.c.h.b16 %v2114
  %v2151 = vunpack.c.l.b16 %v2115
  %v2152 = vunpack.c.h.b16 %v2115
  %v2153 = vunpack.c.l.b16 %v2116
  %v2154 = vunpack.c.h.b16 %v2116
  %v2155 = vunpack.c.l.b16 %v2117
  %v2156 = vunpack.c.h.b16 %v2117
  %v2157 = vunpack.c.l.b16 %v2118
  %v2158 = vunpack.c.h.b16 %v2118
  %v2159 = vunpack.c.l.b16 %v2119
  %v2160 = vunpack.c.h.b16 %v2119
  %v2161 = vunpack.c.l.b16 %v2120
  %v2162 = vunpack.c.h.b16 %v2120
  %v2163 = vunpack.c.l.b16 %v2121
  %v2164 = vunpack.c.h.b16 %v2121
  %v2165 = vunpack.c.l.b16 %v2122
  %v2166 = vunpack.c.h.b16 %v2122
  %v2167 = vunpack.c.l.b16 %v2123
  %v2168 = vunpack.c.h.b16 %v2123
  %v2169 = vunpack.c.l.b16 %v2124
  %v2170 = vunpack.c.h.b16 %v2124
  %v2171 = vunpack.c.l.b16 %v2125
  %v2172 = vunpack.c.h.b16 %v2125
  %v2173 = vunpack.c.l.b16 %v2126
  %v2174 = vunpack.c.h.b16 %v2126
  %v2175 = vpack.c.b16 %v2145, %v2143
  %v2176 = vpack.c.b16 %v2146, %v2144
  %v2177 = vpack.c.b16 %v2149, %v2147
  %v2178 = vpack.c.b16 %v2150, %v2148
  %v2179 = vpack.c.b16 %v2153, %v2151
  %v2180 = vpack.c.b16 %v2154, %v2152
  %v2181 = vpack.c.b16 %v2157, %v2155
  %v2182 = vpack.c.b16 %v2158, %v2156
  %v2183 = vpack.c.b16 %v2161, %v2159
  %v2184 = vpack.c.b16 %v2162, %v2160
  %v2185 = vpack.c.b16 %v2165, %v2163
  %v2186 = vpack.c.b16 %v2166, %v2164
  %v2187 = vpack.c.b16 %v2169, %v2167
  %v2188 = vpack.c.b16 %v2170, %v2168
  %v2189 = vpack.c.b16 %v2173, %v2171
  %v2190 = vpack.c.b16 %v2174, %v2172
  %2207 = vmatprep.subr.bf16.mxu0 %v2176
  %2208 = vmatpush1.bf16.msra.mxu0 %v2175
  %2209 = vmatprep.subr.bf16.mxu0 %v2178
  %2210 = vmatpush1.bf16.msra.mxu0 %v2177
  %2211 = vmatprep.subr.bf16.mxu0 %v2180
  %2212 = vmatpush1.bf16.msra.mxu0 %v2179
  %2213 = vmatprep.subr.bf16.mxu0 %v2182
  %2214 = vmatpush1.bf16.msra.mxu0 %v2181
  %2215 = vmatprep.subr.bf16.mxu0 %v2184
  %2216 = vmatpush1.bf16.msra.mxu0 %v2183
  %2217 = vmatprep.subr.bf16.mxu0 %v2186
  %2218 = vmatpush1.bf16.msra.mxu0 %v2185
  %2219 = vmatprep.subr.bf16.mxu0 %v2188
  %2220 = vmatpush1.bf16.msra.mxu0 %v2187
  %2221 = vmatprep.subr.bf16.mxu0 %v2190
  %2222 = vmatpush1.bf16.msra.mxu0 %v2189
  %2223 = vmatprep.subr.bf16.mxu0 0
  %2224 = vmatpush1.bf16.msra.mxu0 0
  %2225 = vmatprep.subr.bf16.mxu0 0
  %2226 = vmatpush1.bf16.msra.mxu0 0
  %2227 = vmatprep.subr.bf16.mxu0 0
  %2228 = vmatpush1.bf16.msra.mxu0 0
  %2229 = vmatprep.subr.bf16.mxu0 0
  %2230 = vmatpush1.bf16.msra.mxu0 0
  %2231 = vmatprep.subr.bf16.mxu0 0
  %2232 = vmatpush1.bf16.msra.mxu0 0
  %2233 = vmatprep.subr.bf16.mxu0 0
  %2234 = vmatpush1.bf16.msra.mxu0 0
  %2235 = vmatprep.subr.bf16.mxu0 0
  %2236 = vmatpush1.bf16.msra.mxu0 0
  %2237 = vmatprep.subr.bf16.mxu0 0
  %2238 = vmatpush1.bf16.msra.mxu0 0
  %2239 = vmatprep.mubr.bf16.mxu0 0
  %2240 = vmatmul.mubr.bf16.gmra.mrb[0].mxu0 %v2109
  %v2241 = vpop.f32.mrb[0].mxu0
  %v2242 = vadd.f32 0.0, %v2241
  %v2243 = vpop.f32.mrb[0].mxu0
  %v2244 = vadd.f32 0.0, %v2243
  %v2245 = vpop.f32.mrb[0].mxu0
  %v2246 = vpop.f32.mrb[0].mxu0
  %2247 = vdwg.mxu0
  %v2248 = vmul.f32 %v2242, %v22
  %v2249 = vmul.f32 %v2244, %v22
  %v2250 = vrot.slane %v2248, 4
  %v2251 = vadd.f32 %v2248, %v2250
  %v2252 = vrot.slane %v2251, 2
  %v2253 = vadd.f32 %v2251, %v2252
  %v2254 = vrot.slane %v2253, 1
  %v2255 = vadd.f32 %v2253, %v2254
  %v2256 = vrot.slane %v2249, 4
  %v2257 = vadd.f32 %v2249, %v2256
  %v2258 = vrot.slane %v2257, 2
  %v2259 = vadd.f32 %v2257, %v2258
  %v2260 = vrot.slane %v2259, 1
  %v2261 = vadd.f32 %v2259, %v2260
  %v2262 = vadd.f32 %v2088, %v2255
  %v2263 = vadd.f32 %v2089, %v2261
  %v2264 = vmul.f32 %v2248, %v2248
  %v2265 = vmul.f32 %v2249, %v2249
  %v2266 = vrot.slane %v2264, 4
  %v2267 = vadd.f32 %v2264, %v2266
  %v2268 = vrot.slane %v2267, 2
  %v2269 = vadd.f32 %v2267, %v2268
  %v2270 = vrot.slane %v2269, 1
  %v2271 = vadd.f32 %v2269, %v2270
  %v2272 = vrot.slane %v2265, 4
  %v2273 = vadd.f32 %v2265, %v2272
  %v2274 = vrot.slane %v2273, 2
  %v2275 = vadd.f32 %v2273, %v2274
  %v2276 = vrot.slane %v2275, 1
  %v2277 = vadd.f32 %v2275, %v2276
  %v2278 = vadd.f32 %v2104, %v2271
  %v2279 = vadd.f32 %v2105, %v2277
  %s2280 = scalar_lea.vmem %s4, 192
  %2281 = vst [vmem:[%s2280] sm:$0xff] %v2242
  %2282 = vst [vmem:[%s2280 + $0x8] sm:$0xff] %v2244
  %v2283 = vld [vmem:[%s0] sm:$0xf]
  %s2284 = scalar_lea.vmem %s1, 1664
  %v2285 = vld [vmem:[%s2284] sm:$0xff]
  %v2286 = vld [vmem:[%s2284 + $0x8] sm:$0xff]
  %v2287 = vld [vmem:[%s2284 + $0x10] sm:$0xff]
  %v2288 = vld [vmem:[%s2284 + $0x18] sm:$0xff]
  %v2289 = vld [vmem:[%s2284 + $0x20] sm:$0xff]
  %v2290 = vld [vmem:[%s2284 + $0x28] sm:$0xff]
  %v2291 = vld [vmem:[%s2284 + $0x30] sm:$0xff]
  %v2292 = vld [vmem:[%s2284 + $0x38] sm:$0xff]
  %v2293 = vld [vmem:[%s2284 + $0x40] sm:$0xff]
  %v2294 = vld [vmem:[%s2284 + $0x48] sm:$0xff]
  %v2295 = vld [vmem:[%s2284 + $0x50] sm:$0xff]
  %v2296 = vld [vmem:[%s2284 + $0x58] sm:$0xff]
  %v2297 = vld [vmem:[%s2284 + $0x60] sm:$0xff]
  %v2298 = vld [vmem:[%s2284 + $0x68] sm:$0xff]
  %v2299 = vld [vmem:[%s2284 + $0x70] sm:$0xff]
  %v2300 = vld [vmem:[%s2284 + $0x78] sm:$0xff]
  %v2317 = vunpack.c.l.b16 %v2285
  %v2318 = vunpack.c.h.b16 %v2285
  %v2319 = vunpack.c.l.b16 %v2286
  %v2320 = vunpack.c.h.b16 %v2286
  %v2321 = vunpack.c.l.b16 %v2287
  %v2322 = vunpack.c.h.b16 %v2287
  %v2323 = vunpack.c.l.b16 %v2288
  %v2324 = vunpack.c.h.b16 %v2288
  %v2325 = vunpack.c.l.b16 %v2289
  %v2326 = vunpack.c.h.b16 %v2289
  %v2327 = vunpack.c.l.b16 %v2290
  %v2328 = vunpack.c.h.b16 %v2290
  %v2329 = vunpack.c.l.b16 %v2291
  %v2330 = vunpack.c.h.b16 %v2291
  %v2331 = vunpack.c.l.b16 %v2292
  %v2332 = vunpack.c.h.b16 %v2292
  %v2333 = vunpack.c.l.b16 %v2293
  %v2334 = vunpack.c.h.b16 %v2293
  %v2335 = vunpack.c.l.b16 %v2294
  %v2336 = vunpack.c.h.b16 %v2294
  %v2337 = vunpack.c.l.b16 %v2295
  %v2338 = vunpack.c.h.b16 %v2295
  %v2339 = vunpack.c.l.b16 %v2296
  %v2340 = vunpack.c.h.b16 %v2296
  %v2341 = vunpack.c.l.b16 %v2297
  %v2342 = vunpack.c.h.b16 %v2297
  %v2343 = vunpack.c.l.b16 %v2298
  %v2344 = vunpack.c.h.b16 %v2298
  %v2345 = vunpack.c.l.b16 %v2299
  %v2346 = vunpack.c.h.b16 %v2299
  %v2347 = vunpack.c.l.b16 %v2300
  %v2348 = vunpack.c.h.b16 %v2300
  %v2349 = vpack.c.b16 %v2319, %v2317
  %v2350 = vpack.c.b16 %v2320, %v2318
  %v2351 = vpack.c.b16 %v2323, %v2321
  %v2352 = vpack.c.b16 %v2324, %v2322
  %v2353 = vpack.c.b16 %v2327, %v2325
  %v2354 = vpack.c.b16 %v2328, %v2326
  %v2355 = vpack.c.b16 %v2331, %v2329
  %v2356 = vpack.c.b16 %v2332, %v2330
  %v2357 = vpack.c.b16 %v2335, %v2333
  %v2358 = vpack.c.b16 %v2336, %v2334
  %v2359 = vpack.c.b16 %v2339, %v2337
  %v2360 = vpack.c.b16 %v2340, %v2338
  %v2361 = vpack.c.b16 %v2343, %v2341
  %v2362 = vpack.c.b16 %v2344, %v2342
  %v2363 = vpack.c.b16 %v2347, %v2345
  %v2364 = vpack.c.b16 %v2348, %v2346
  %2381 = vmatprep.subr.bf16.mxu0 %v2350
  %2382 = vmatpush1.bf16.msra.mxu0 %v2349
  %2383 = vmatprep.subr.bf16.mxu0 %v2352
  %2384 = vmatpush1.bf16.msra.mxu0 %v2351
  %2385 = vmatprep.subr.bf16.mxu0 %v2354
  %2386 = vmatpush1.bf16.msra.mxu0 %v2353
  %2387 = vmatprep.subr.bf16.mxu0 %v2356
  %2388 = vmatpush1.bf16.msra.mxu0 %v2355
  %2389 = vmatprep.subr.bf16.mxu0 %v2358
  %2390 = vmatpush1.bf16.msra.mxu0 %v2357
  %2391 = vmatprep.subr.bf16.mxu0 %v2360
  %2392 = vmatpush1.bf16.msra.mxu0 %v2359
  %2393 = vmatprep.subr.bf16.mxu0 %v2362
  %2394 = vmatpush1.bf16.msra.mxu0 %v2361
  %2395 = vmatprep.subr.bf16.mxu0 %v2364
  %2396 = vmatpush1.bf16.msra.mxu0 %v2363
  %2397 = vmatprep.subr.bf16.mxu0 0
  %2398 = vmatpush1.bf16.msra.mxu0 0
  %2399 = vmatprep.subr.bf16.mxu0 0
  %2400 = vmatpush1.bf16.msra.mxu0 0
  %2401 = vmatprep.subr.bf16.mxu0 0
  %2402 = vmatpush1.bf16.msra.mxu0 0
  %2403 = vmatprep.subr.bf16.mxu0 0
  %2404 = vmatpush1.bf16.msra.mxu0 0
  %2405 = vmatprep.subr.bf16.mxu0 0
  %2406 = vmatpush1.bf16.msra.mxu0 0
  %2407 = vmatprep.subr.bf16.mxu0 0
  %2408 = vmatpush1.bf16.msra.mxu0 0
  %2409 = vmatprep.subr.bf16.mxu0 0
  %2410 = vmatpush1.bf16.msra.mxu0 0
  %2411 = vmatprep.subr.bf16.mxu0 0
  %2412 = vmatpush1.bf16.msra.mxu0 0
  %2413 = vmatprep.mubr.bf16.mxu0 0
  %2414 = vmatmul.mubr.bf16.gmra.mrb[0].mxu0 %v2283
  %v2415 = vpop.f32.mrb[0].mxu0
  %v2416 = vadd.f32 0.0, %v2415
  %v2417 = vpop.f32.mrb[0].mxu0
  %v2418 = vadd.f32 0.0, %v2417
  %v2419 = vpop.f32.mrb[0].mxu0
  %v2420 = vpop.f32.mrb[0].mxu0
  %2421 = vdwg.mxu0
  %v2422 = vmul.f32 %v2416, %v22
  %v2423 = vmul.f32 %v2418, %v22
  %v2424 = vrot.slane %v2422, 4
  %v2425 = vadd.f32 %v2422, %v2424
  %v2426 = vrot.slane %v2425, 2
  %v2427 = vadd.f32 %v2425, %v2426
  %v2428 = vrot.slane %v2427, 1
  %v2429 = vadd.f32 %v2427, %v2428
  %v2430 = vrot.slane %v2423, 4
  %v2431 = vadd.f32 %v2423, %v2430
  %v2432 = vrot.slane %v2431, 2
  %v2433 = vadd.f32 %v2431, %v2432
  %v2434 = vrot.slane %v2433, 1
  %v2435 = vadd.f32 %v2433, %v2434
  %v2436 = vadd.f32 %v2262, %v2429
  %v2437 = vadd.f32 %v2263, %v2435
  %v2438 = vmul.f32 %v2422, %v2422
  %v2439 = vmul.f32 %v2423, %v2423
  %v2440 = vrot.slane %v2438, 4
  %v2441 = vadd.f32 %v2438, %v2440
  %v2442 = vrot.slane %v2441, 2
  %v2443 = vadd.f32 %v2441, %v2442
  %v2444 = vrot.slane %v2443, 1
  %v2445 = vadd.f32 %v2443, %v2444
  %v2446 = vrot.slane %v2439, 4
  %v2447 = vadd.f32 %v2439, %v2446
  %v2448 = vrot.slane %v2447, 2
  %v2449 = vadd.f32 %v2447, %v2448
  %v2450 = vrot.slane %v2449, 1
  %v2451 = vadd.f32 %v2449, %v2450
  %v2452 = vadd.f32 %v2278, %v2445
  %v2453 = vadd.f32 %v2279, %v2451
  %s2454 = scalar_lea.vmem %s4, 208
  %2455 = vst [vmem:[%s2454] sm:$0xff] %v2416
  %2456 = vst [vmem:[%s2454 + $0x8] sm:$0xff] %v2418
  %v2457 = vld [vmem:[%s0] sm:$0xf]
  %s2458 = scalar_lea.vmem %s1, 1792
  %v2459 = vld [vmem:[%s2458] sm:$0xff]
  %v2460 = vld [vmem:[%s2458 + $0x8] sm:$0xff]
  %v2461 = vld [vmem:[%s2458 + $0x10] sm:$0xff]
  %v2462 = vld [vmem:[%s2458 + $0x18] sm:$0xff]
  %v2463 = vld [vmem:[%s2458 + $0x20] sm:$0xff]
  %v2464 = vld [vmem:[%s2458 + $0x28] sm:$0xff]
  %v2465 = vld [vmem:[%s2458 + $0x30] sm:$0xff]
  %v2466 = vld [vmem:[%s2458 + $0x38] sm:$0xff]
  %v2467 = vld [vmem:[%s2458 + $0x40] sm:$0xff]
  %v2468 = vld [vmem:[%s2458 + $0x48] sm:$0xff]
  %v2469 = vld [vmem:[%s2458 + $0x50] sm:$0xff]
  %v2470 = vld [vmem:[%s2458 + $0x58] sm:$0xff]
  %v2471 = vld [vmem:[%s2458 + $0x60] sm:$0xff]
  %v2472 = vld [vmem:[%s2458 + $0x68] sm:$0xff]
  %v2473 = vld [vmem:[%s2458 + $0x70] sm:$0xff]
  %v2474 = vld [vmem:[%s2458 + $0x78] sm:$0xff]
  %v2491 = vunpack.c.l.b16 %v2459
  %v2492 = vunpack.c.h.b16 %v2459
  %v2493 = vunpack.c.l.b16 %v2460
  %v2494 = vunpack.c.h.b16 %v2460
  %v2495 = vunpack.c.l.b16 %v2461
  %v2496 = vunpack.c.h.b16 %v2461
  %v2497 = vunpack.c.l.b16 %v2462
  %v2498 = vunpack.c.h.b16 %v2462
  %v2499 = vunpack.c.l.b16 %v2463
  %v2500 = vunpack.c.h.b16 %v2463
  %v2501 = vunpack.c.l.b16 %v2464
  %v2502 = vunpack.c.h.b16 %v2464
  %v2503 = vunpack.c.l.b16 %v2465
  %v2504 = vunpack.c.h.b16 %v2465
  %v2505 = vunpack.c.l.b16 %v2466
  %v2506 = vunpack.c.h.b16 %v2466
  %v2507 = vunpack.c.l.b16 %v2467
  %v2508 = vunpack.c.h.b16 %v2467
  %v2509 = vunpack.c.l.b16 %v2468
  %v2510 = vunpack.c.h.b16 %v2468
  %v2511 = vunpack.c.l.b16 %v2469
  %v2512 = vunpack.c.h.b16 %v2469
  %v2513 = vunpack.c.l.b16 %v2470
  %v2514 = vunpack.c.h.b16 %v2470
  %v2515 = vunpack.c.l.b16 %v2471
  %v2516 = vunpack.c.h.b16 %v2471
  %v2517 = vunpack.c.l.b16 %v2472
  %v2518 = vunpack.c.h.b16 %v2472
  %v2519 = vunpack.c.l.b16 %v2473
  %v2520 = vunpack.c.h.b16 %v2473
  %v2521 = vunpack.c.l.b16 %v2474
  %v2522 = vunpack.c.h.b16 %v2474
  %v2523 = vpack.c.b16 %v2493, %v2491
  %v2524 = vpack.c.b16 %v2494, %v2492
  %v2525 = vpack.c.b16 %v2497, %v2495
  %v2526 = vpack.c.b16 %v2498, %v2496
  %v2527 = vpack.c.b16 %v2501, %v2499
  %v2528 = vpack.c.b16 %v2502, %v2500
  %v2529 = vpack.c.b16 %v2505, %v2503
  %v2530 = vpack.c.b16 %v2506, %v2504
  %v2531 = vpack.c.b16 %v2509, %v2507
  %v2532 = vpack.c.b16 %v2510, %v2508
  %v2533 = vpack.c.b16 %v2513, %v2511
  %v2534 = vpack.c.b16 %v2514, %v2512
  %v2535 = vpack.c.b16 %v2517, %v2515
  %v2536 = vpack.c.b16 %v2518, %v2516
  %v2537 = vpack.c.b16 %v2521, %v2519
  %v2538 = vpack.c.b16 %v2522, %v2520
  %2555 = vmatprep.subr.bf16.mxu0 %v2524
  %2556 = vmatpush1.bf16.msra.mxu0 %v2523
  %2557 = vmatprep.subr.bf16.mxu0 %v2526
  %2558 = vmatpush1.bf16.msra.mxu0 %v2525
  %2559 = vmatprep.subr.bf16.mxu0 %v2528
  %2560 = vmatpush1.bf16.msra.mxu0 %v2527
  %2561 = vmatprep.subr.bf16.mxu0 %v2530
  %2562 = vmatpush1.bf16.msra.mxu0 %v2529
  %2563 = vmatprep.subr.bf16.mxu0 %v2532
  %2564 = vmatpush1.bf16.msra.mxu0 %v2531
  %2565 = vmatprep.subr.bf16.mxu0 %v2534
  %2566 = vmatpush1.bf16.msra.mxu0 %v2533
  %2567 = vmatprep.subr.bf16.mxu0 %v2536
  %2568 = vmatpush1.bf16.msra.mxu0 %v2535
  %2569 = vmatprep.subr.bf16.mxu0 %v2538
  %2570 = vmatpush1.bf16.msra.mxu0 %v2537
  %2571 = vmatprep.subr.bf16.mxu0 0
  %2572 = vmatpush1.bf16.msra.mxu0 0
  %2573 = vmatprep.subr.bf16.mxu0 0
  %2574 = vmatpush1.bf16.msra.mxu0 0
  %2575 = vmatprep.subr.bf16.mxu0 0
  %2576 = vmatpush1.bf16.msra.mxu0 0
  %2577 = vmatprep.subr.bf16.mxu0 0
  %2578 = vmatpush1.bf16.msra.mxu0 0
  %2579 = vmatprep.subr.bf16.mxu0 0
  %2580 = vmatpush1.bf16.msra.mxu0 0
  %2581 = vmatprep.subr.bf16.mxu0 0
  %2582 = vmatpush1.bf16.msra.mxu0 0
  %2583 = vmatprep.subr.bf16.mxu0 0
  %2584 = vmatpush1.bf16.msra.mxu0 0
  %2585 = vmatprep.subr.bf16.mxu0 0
  %2586 = vmatpush1.bf16.msra.mxu0 0
  %2587 = vmatprep.mubr.bf16.mxu0 0
  %2588 = vmatmul.mubr.bf16.gmra.mrb[0].mxu0 %v2457
  %v2589 = vpop.f32.mrb[0].mxu0
  %v2590 = vadd.f32 0.0, %v2589
  %v2591 = vpop.f32.mrb[0].mxu0
  %v2592 = vadd.f32 0.0, %v2591
  %v2593 = vpop.f32.mrb[0].mxu0
  %v2594 = vpop.f32.mrb[0].mxu0
  %2595 = vdwg.mxu0
  %v2596 = vmul.f32 %v2590, %v22
  %v2597 = vmul.f32 %v2592, %v22
  %v2598 = vrot.slane %v2596, 4
  %v2599 = vadd.f32 %v2596, %v2598
  %v2600 = vrot.slane %v2599, 2
  %v2601 = vadd.f32 %v2599, %v2600
  %v2602 = vrot.slane %v2601, 1
  %v2603 = vadd.f32 %v2601, %v2602
  %v2604 = vrot.slane %v2597, 4
  %v2605 = vadd.f32 %v2597, %v2604
  %v2606 = vrot.slane %v2605, 2
  %v2607 = vadd.f32 %v2605, %v2606
  %v2608 = vrot.slane %v2607, 1
  %v2609 = vadd.f32 %v2607, %v2608
  %v2610 = vadd.f32 %v2436, %v2603
  %v2611 = vadd.f32 %v2437, %v2609
  %v2612 = vmul.f32 %v2596, %v2596
  %v2613 = vmul.f32 %v2597, %v2597
  %v2614 = vrot.slane %v2612, 4
  %v2615 = vadd.f32 %v2612, %v2614
  %v2616 = vrot.slane %v2615, 2
  %v2617 = vadd.f32 %v2615, %v2616
  %v2618 = vrot.slane %v2617, 1
  %v2619 = vadd.f32 %v2617, %v2618
  %v2620 = vrot.slane %v2613, 4
  %v2621 = vadd.f32 %v2613, %v2620
  %v2622 = vrot.slane %v2621, 2
  %v2623 = vadd.f32 %v2621, %v2622
  %v2624 = vrot.slane %v2623, 1
  %v2625 = vadd.f32 %v2623, %v2624
  %v2626 = vadd.f32 %v2452, %v2619
  %v2627 = vadd.f32 %v2453, %v2625
  %s2628 = scalar_lea.vmem %s4, 224
  %2629 = vst [vmem:[%s2628] sm:$0xff] %v2590
  %2630 = vst [vmem:[%s2628 + $0x8] sm:$0xff] %v2592
  %v2631 = vld [vmem:[%s0] sm:$0xf]
  %s2632 = scalar_lea.vmem %s1, 1920
  %v2633 = vld [vmem:[%s2632] sm:$0xff]
  %v2634 = vld [vmem:[%s2632 + $0x8] sm:$0xff]
  %v2635 = vld [vmem:[%s2632 + $0x10] sm:$0xff]
  %v2636 = vld [vmem:[%s2632 + $0x18] sm:$0xff]
  %v2637 = vld [vmem:[%s2632 + $0x20] sm:$0xff]
  %v2638 = vld [vmem:[%s2632 + $0x28] sm:$0xff]
  %v2639 = vld [vmem:[%s2632 + $0x30] sm:$0xff]
  %v2640 = vld [vmem:[%s2632 + $0x38] sm:$0xff]
  %v2641 = vld [vmem:[%s2632 + $0x40] sm:$0xff]
  %v2642 = vld [vmem:[%s2632 + $0x48] sm:$0xff]
  %v2643 = vld [vmem:[%s2632 + $0x50] sm:$0xff]
  %v2644 = vld [vmem:[%s2632 + $0x58] sm:$0xff]
  %v2645 = vld [vmem:[%s2632 + $0x60] sm:$0xff]
  %v2646 = vld [vmem:[%s2632 + $0x68] sm:$0xff]
  %v2647 = vld [vmem:[%s2632 + $0x70] sm:$0xff]
  %v2648 = vld [vmem:[%s2632 + $0x78] sm:$0xff]
  %v2665 = vunpack.c.l.b16 %v2633
  %v2666 = vunpack.c.h.b16 %v2633
  %v2667 = vunpack.c.l.b16 %v2634
  %v2668 = vunpack.c.h.b16 %v2634
  %v2669 = vunpack.c.l.b16 %v2635
  %v2670 = vunpack.c.h.b16 %v2635
  %v2671 = vunpack.c.l.b16 %v2636
  %v2672 = vunpack.c.h.b16 %v2636
  %v2673 = vunpack.c.l.b16 %v2637
  %v2674 = vunpack.c.h.b16 %v2637
  %v2675 = vunpack.c.l.b16 %v2638
  %v2676 = vunpack.c.h.b16 %v2638
  %v2677 = vunpack.c.l.b16 %v2639
  %v2678 = vunpack.c.h.b16 %v2639
  %v2679 = vunpack.c.l.b16 %v2640
  %v2680 = vunpack.c.h.b16 %v2640
  %v2681 = vunpack.c.l.b16 %v2641
  %v2682 = vunpack.c.h.b16 %v2641
  %v2683 = vunpack.c.l.b16 %v2642
  %v2684 = vunpack.c.h.b16 %v2642
  %v2685 = vunpack.c.l.b16 %v2643
  %v2686 = vunpack.c.h.b16 %v2643
  %v2687 = vunpack.c.l.b16 %v2644
  %v2688 = vunpack.c.h.b16 %v2644
  %v2689 = vunpack.c.l.b16 %v2645
  %v2690 = vunpack.c.h.b16 %v2645
  %v2691 = vunpack.c.l.b16 %v2646
  %v2692 = vunpack.c.h.b16 %v2646
  %v2693 = vunpack.c.l.b16 %v2647
  %v2694 = vunpack.c.h.b16 %v2647
  %v2695 = vunpack.c.l.b16 %v2648
  %v2696 = vunpack.c.h.b16 %v2648
  %v2697 = vpack.c.b16 %v2667, %v2665
  %v2698 = vpack.c.b16 %v2668, %v2666
  %v2699 = vpack.c.b16 %v2671, %v2669
  %v2700 = vpack.c.b16 %v2672, %v2670
  %v2701 = vpack.c.b16 %v2675, %v2673
  %v2702 = vpack.c.b16 %v2676, %v2674
  %v2703 = vpack.c.b16 %v2679, %v2677
  %v2704 = vpack.c.b16 %v2680, %v2678
  %v2705 = vpack.c.b16 %v2683, %v2681
  %v2706 = vpack.c.b16 %v2684, %v2682
  %v2707 = vpack.c.b16 %v2687, %v2685
  %v2708 = vpack.c.b16 %v2688, %v2686
  %v2709 = vpack.c.b16 %v2691, %v2689
  %v2710 = vpack.c.b16 %v2692, %v2690
  %v2711 = vpack.c.b16 %v2695, %v2693
  %v2712 = vpack.c.b16 %v2696, %v2694
  %2729 = vmatprep.subr.bf16.mxu0 %v2698
  %2730 = vmatpush1.bf16.msra.mxu0 %v2697
  %2731 = vmatprep.subr.bf16.mxu0 %v2700
  %2732 = vmatpush1.bf16.msra.mxu0 %v2699
  %2733 = vmatprep.subr.bf16.mxu0 %v2702
  %2734 = vmatpush1.bf16.msra.mxu0 %v2701
  %2735 = vmatprep.subr.bf16.mxu0 %v2704
  %2736 = vmatpush1.bf16.msra.mxu0 %v2703
  %2737 = vmatprep.subr.bf16.mxu0 %v2706
  %2738 = vmatpush1.bf16.msra.mxu0 %v2705
  %2739 = vmatprep.subr.bf16.mxu0 %v2708
  %2740 = vmatpush1.bf16.msra.mxu0 %v2707
  %2741 = vmatprep.subr.bf16.mxu0 %v2710
  %2742 = vmatpush1.bf16.msra.mxu0 %v2709
  %2743 = vmatprep.subr.bf16.mxu0 %v2712
  %2744 = vmatpush1.bf16.msra.mxu0 %v2711
  %2745 = vmatprep.subr.bf16.mxu0 0
  %2746 = vmatpush1.bf16.msra.mxu0 0
  %2747 = vmatprep.subr.bf16.mxu0 0
  %2748 = vmatpush1.bf16.msra.mxu0 0
  %2749 = vmatprep.subr.bf16.mxu0 0
  %2750 = vmatpush1.bf16.msra.mxu0 0
  %2751 = vmatprep.subr.bf16.mxu0 0
  %2752 = vmatpush1.bf16.msra.mxu0 0
  %2753 = vmatprep.subr.bf16.mxu0 0
  %2754 = vmatpush1.bf16.msra.mxu0 0
  %2755 = vmatprep.subr.bf16.mxu0 0
  %2756 = vmatpush1.bf16.msra.mxu0 0
  %2757 = vmatprep.subr.bf16.mxu0 0
  %2758 = vmatpush1.bf16.msra.mxu0 0
  %2759 = vmatprep.subr.bf16.mxu0 0
  %2760 = vmatpush1.bf16.msra.mxu0 0
  %2761 = vmatprep.mubr.bf16.mxu0 0
  %2762 = vmatmul.mubr.bf16.gmra.mrb[0].mxu0 %v2631
  %v2763 = vpop.f32.mrb[0].mxu0
  %v2764 = vadd.f32 0.0, %v2763
  %v2765 = vpop.f32.mrb[0].mxu0
  %v2766 = vadd.f32 0.0, %v2765
  %v2767 = vpop.f32.mrb[0].mxu0
  %v2768 = vpop.f32.mrb[0].mxu0
  %2769 = vdwg.mxu0
  %v2770 = vmul.f32 %v2764, %v22
  %v2771 = vmul.f32 %v2766, %v22
  %v2772 = vrot.slane %v2770, 4
  %v2773 = vadd.f32 %v2770, %v2772
  %v2774 = vrot.slane %v2773, 2
  %v2775 = vadd.f32 %v2773, %v2774
  %v2776 = vrot.slane %v2775, 1
  %v2777 = vadd.f32 %v2775, %v2776
  %v2778 = vrot.slane %v2771, 4
  %v2779 = vadd.f32 %v2771, %v2778
  %v2780 = vrot.slane %v2779, 2
  %v2781 = vadd.f32 %v2779, %v2780
  %v2782 = vrot.slane %v2781, 1
  %v2783 = vadd.f32 %v2781, %v2782
  %v2784 = vadd.f32 %v2610, %v2777
  %v2785 = vadd.f32 %v2611, %v2783
  %v2786 = vmul.f32 %v2770, %v2770
  %v2787 = vmul.f32 %v2771, %v2771
  %v2788 = vrot.slane %v2786, 4
  %v2789 = vadd.f32 %v2786, %v2788
  %v2790 = vrot.slane %v2789, 2
  %v2791 = vadd.f32 %v2789, %v2790
  %v2792 = vrot.slane %v2791, 1
  %v2793 = vadd.f32 %v2791, %v2792
  %v2794 = vrot.slane %v2787, 4
  %v2795 = vadd.f32 %v2787, %v2794
  %v2796 = vrot.slane %v2795, 2
  %v2797 = vadd.f32 %v2795, %v2796
  %v2798 = vrot.slane %v2797, 1
  %v2799 = vadd.f32 %v2797, %v2798
  %v2800 = vadd.f32 %v2626, %v2793
  %v2801 = vadd.f32 %v2627, %v2799
  %s2802 = scalar_lea.vmem %s4, 240
  %2803 = vst [vmem:[%s2802] sm:$0xff] %v2764
  %2804 = vst [vmem:[%s2802 + $0x8] sm:$0xff] %v2766
  %v2805 = vmul.f32 %v2784, 0.03125
  %v2806 = vmul.f32 %v2785, 0.03125
  %v2807 = vmul.f32 %v2800, 0.03125
  %v2808 = vmul.f32 %v2801, 0.03125
  %v2809 = vmul.f32 %v2805, %v2805
  %v2810 = vmul.f32 %v2806, %v2806
  %v2811 = vsub.f32 %v2807, %v2809
  %v2812 = vsub.f32 %v2808, %v2810
  %v2813 = vld [vmem:[%s2] sm:$0x3]
  %v2814 = vadd.f32 %v2811, 1e-05
  %v2815 = vadd.f32 %v2812, 1e-05
  %v2816 = vrsqrt.pop %v2814
  %v2817 = vrsqrt.pop %v2815
  %v2820 = vcombine.low %v2816, %v2817
  %v2822 = vunpack.c.l.s4 1966171168
  %v2823 = vunpack.c.0.s8 %v2822
  %v2824 = vlaneseq
  %v2825 = vshrl.u32 %v2824, 7
  %v2826 = vsub.s32 %v2823, %v2825
  %v2827 = vrot.slane %v2820, %v2826
  %v2829 = vunpack.c.l.s4 1966171168
  %v2830 = vunpack.c.0.s8 %v2829
  %v2831 = vlaneseq
  %v2832 = vshrl.u32 %v2831, 7
  %v2833 = vsub.s32 %v2830, %v2832
  %v2834 = vrot.slane %v2827, %v2833
  %v2836 = vmul.f32 %v2813, %v2834
  %v2837 = vld [vmem:[%s3] sm:$0x3]
  %v2839 = vlaneseq
  %v2840 = vshrl.u32 %v2839, 7
  %v2841 = vsub.s32 0, %v2840
  %v2842 = vrot.slane %v2836, %v2841
  %v2843 = vlaneseq
  %v2844 = vshrl.u32 %v2843, 7
  %v2845 = vsub.s32 1, %v2844
  %v2846 = vrot.slane %v2836, %v2845
  %v2849 = vmul.f32 %v2805, %v2842
  %v2850 = vmul.f32 %v2806, %v2846
  %v2853 = vcombine.low %v2849, %v2850
  %v2855 = vunpack.c.l.s4 1966171168
  %v2856 = vunpack.c.0.s8 %v2855
  %v2857 = vlaneseq
  %v2858 = vshrl.u32 %v2857, 7
  %v2859 = vsub.s32 %v2856, %v2858
  %v2860 = vrot.slane %v2853, %v2859
  %v2862 = vunpack.c.l.s4 1966171168
  %v2863 = vunpack.c.0.s8 %v2862
  %v2864 = vlaneseq
  %v2865 = vshrl.u32 %v2864, 7
  %v2866 = vsub.s32 %v2863, %v2865
  %v2867 = vrot.slane %v2860, %v2866
  %v2869 = vsub.f32 %v2837, %v2867
  %v2870 = vld [vmem:[%s4] sm:$0xff]
  %v2871 = vld [vmem:[%s4 + $0x8] sm:$0xff]
  %v2872 = vmul.f32 %v2870, %v2842
  %v2873 = vmul.f32 %v2871, %v2846
  %v2875 = vlaneseq
  %v2876 = vshrl.u32 %v2875, 7
  %v2877 = vsub.s32 0, %v2876
  %v2878 = vrot.slane %v2869, %v2877
  %v2879 = vlaneseq
  %v2880 = vshrl.u32 %v2879, 7
  %v2881 = vsub.s32 1, %v2880
  %v2882 = vrot.slane %v2869, %v2881
  %v2885 = vadd.f32 %v2872, %v2878
  %v2886 = vadd.f32 %v2873, %v2882
  %v2887 = vmax.f32 %v2885, 0.0
  %v2888 = vmax.f32 %v2886, 0.0
  %2889 = vst [vmem:[%s4] sm:$0xff] %v2887
  %2890 = vst [vmem:[%s4 + $0x8] sm:$0xff] %v2888
  %v2891 = vld [vmem:[%s366] sm:$0xff]
  %v2892 = vld [vmem:[%s366 + $0x8] sm:$0xff]
  %v2893 = vmul.f32 %v2891, %v2842
  %v2894 = vmul.f32 %v2892, %v2846
  %v2895 = vadd.f32 %v2893, %v2878
  %v2896 = vadd.f32 %v2894, %v2882
  %v2897 = vmax.f32 %v2895, 0.0
  %v2898 = vmax.f32 %v2896, 0.0
  %2899 = vst [vmem:[%s366] sm:$0xff] %v2897
  %2900 = vst [vmem:[%s366 + $0x8] sm:$0xff] %v2898
  %v2901 = vld [vmem:[%s540] sm:$0xff]
  %v2902 = vld [vmem:[%s540 + $0x8] sm:$0xff]
  %v2903 = vmul.f32 %v2901, %v2842
  %v2904 = vmul.f32 %v2902, %v2846
  %v2905 = vadd.f32 %v2903, %v2878
  %v2906 = vadd.f32 %v2904, %v2882
  %v2907 = vmax.f32 %v2905, 0.0
  %v2908 = vmax.f32 %v2906, 0.0
  %2909 = vst [vmem:[%s540] sm:$0xff] %v2907
  %2910 = vst [vmem:[%s540 + $0x8] sm:$0xff] %v2908
  %v2911 = vld [vmem:[%s714] sm:$0xff]
  %v2912 = vld [vmem:[%s714 + $0x8] sm:$0xff]
  %v2913 = vmul.f32 %v2911, %v2842
  %v2914 = vmul.f32 %v2912, %v2846
  %v2915 = vadd.f32 %v2913, %v2878
  %v2916 = vadd.f32 %v2914, %v2882
  %v2917 = vmax.f32 %v2915, 0.0
  %v2918 = vmax.f32 %v2916, 0.0
  %2919 = vst [vmem:[%s714] sm:$0xff] %v2917
  %2920 = vst [vmem:[%s714 + $0x8] sm:$0xff] %v2918
  %v2921 = vld [vmem:[%s888] sm:$0xff]
  %v2922 = vld [vmem:[%s888 + $0x8] sm:$0xff]
  %v2923 = vmul.f32 %v2921, %v2842
  %v2924 = vmul.f32 %v2922, %v2846
  %v2925 = vadd.f32 %v2923, %v2878
  %v2926 = vadd.f32 %v2924, %v2882
  %v2927 = vmax.f32 %v2925, 0.0
  %v2928 = vmax.f32 %v2926, 0.0
  %2929 = vst [vmem:[%s888] sm:$0xff] %v2927
  %2930 = vst [vmem:[%s888 + $0x8] sm:$0xff] %v2928
  %v2931 = vld [vmem:[%s1062] sm:$0xff]
  %v2932 = vld [vmem:[%s1062 + $0x8] sm:$0xff]
  %v2933 = vmul.f32 %v2931, %v2842
  %v2934 = vmul.f32 %v2932, %v2846
  %v2935 = vadd.f32 %v2933, %v2878
  %v2936 = vadd.f32 %v2934, %v2882
  %v2937 = vmax.f32 %v2935, 0.0
  %v2938 = vmax.f32 %v2936, 0.0
  %2939 = vst [vmem:[%s1062] sm:$0xff] %v2937
  %2940 = vst [vmem:[%s1062 + $0x8] sm:$0xff] %v2938
  %v2941 = vld [vmem:[%s1236] sm:$0xff]
  %v2942 = vld [vmem:[%s1236 + $0x8] sm:$0xff]
  %v2943 = vmul.f32 %v2941, %v2842
  %v2944 = vmul.f32 %v2942, %v2846
  %v2945 = vadd.f32 %v2943, %v2878
  %v2946 = vadd.f32 %v2944, %v2882
  %v2947 = vmax.f32 %v2945, 0.0
  %v2948 = vmax.f32 %v2946, 0.0
  %2949 = vst [vmem:[%s1236] sm:$0xff] %v2947
  %2950 = vst [vmem:[%s1236 + $0x8] sm:$0xff] %v2948
  %v2951 = vld [vmem:[%s1410] sm:$0xff]
  %v2952 = vld [vmem:[%s1410 + $0x8] sm:$0xff]
  %v2953 = vmul.f32 %v2951, %v2842
  %v2954 = vmul.f32 %v2952, %v2846
  %v2955 = vadd.f32 %v2953, %v2878
  %v2956 = vadd.f32 %v2954, %v2882
  %v2957 = vmax.f32 %v2955, 0.0
  %v2958 = vmax.f32 %v2956, 0.0
  %2959 = vst [vmem:[%s1410] sm:$0xff] %v2957
  %2960 = vst [vmem:[%s1410 + $0x8] sm:$0xff] %v2958
  %v2961 = vld [vmem:[%s1584] sm:$0xff]
  %v2962 = vld [vmem:[%s1584 + $0x8] sm:$0xff]
  %v2963 = vmul.f32 %v2961, %v2842
  %v2964 = vmul.f32 %v2962, %v2846
  %v2965 = vadd.f32 %v2963, %v2878
  %v2966 = vadd.f32 %v2964, %v2882
  %v2967 = vmax.f32 %v2965, 0.0
  %v2968 = vmax.f32 %v2966, 0.0
  %2969 = vst [vmem:[%s1584] sm:$0xff] %v2967
  %2970 = vst [vmem:[%s1584 + $0x8] sm:$0xff] %v2968
  %v2971 = vld [vmem:[%s1758] sm:$0xff]
  %v2972 = vld [vmem:[%s1758 + $0x8] sm:$0xff]
  %v2973 = vmul.f32 %v2971, %v2842
  %v2974 = vmul.f32 %v2972, %v2846
  %v2975 = vadd.f32 %v2973, %v2878
  %v2976 = vadd.f32 %v2974, %v2882
  %v2977 = vmax.f32 %v2975, 0.0
  %v2978 = vmax.f32 %v2976, 0.0
  %2979 = vst [vmem:[%s1758] sm:$0xff] %v2977
  %2980 = vst [vmem:[%s1758 + $0x8] sm:$0xff] %v2978
  %v2981 = vld [vmem:[%s1932] sm:$0xff]
  %v2982 = vld [vmem:[%s1932 + $0x8] sm:$0xff]
  %v2983 = vmul.f32 %v2981, %v2842
  %v2984 = vmul.f32 %v2982, %v2846
  %v2985 = vadd.f32 %v2983, %v2878
  %v2986 = vadd.f32 %v2984, %v2882
  %v2987 = vmax.f32 %v2985, 0.0
  %v2988 = vmax.f32 %v2986, 0.0
  %2989 = vst [vmem:[%s1932] sm:$0xff] %v2987
  %2990 = vst [vmem:[%s1932 + $0x8] sm:$0xff] %v2988
  %v2991 = vld [vmem:[%s2106] sm:$0xff]
  %v2992 = vld [vmem:[%s2106 + $0x8] sm:$0xff]
  %v2993 = vmul.f32 %v2991, %v2842
  %v2994 = vmul.f32 %v2992, %v2846
  %v2995 = vadd.f32 %v2993, %v2878
  %v2996 = vadd.f32 %v2994, %v2882
  %v2997 = vmax.f32 %v2995, 0.0
  %v2998 = vmax.f32 %v2996, 0.0
  %2999 = vst [vmem:[%s2106] sm:$0xff] %v2997
  %3000 = vst [vmem:[%s2106 + $0x8] sm:$0xff] %v2998
  %v3001 = vld [vmem:[%s2280] sm:$0xff]
  %v3002 = vld [vmem:[%s2280 + $0x8] sm:$0xff]
  %v3003 = vmul.f32 %v3001, %v2842
  %v3004 = vmul.f32 %v3002, %v2846
  %v3005 = vadd.f32 %v3003, %v2878
  %v3006 = vadd.f32 %v3004, %v2882
  %v3007 = vmax.f32 %v3005, 0.0
  %v3008 = vmax.f32 %v3006, 0.0
  %3009 = vst [vmem:[%s2280] sm:$0xff] %v3007
  %3010 = vst [vmem:[%s2280 + $0x8] sm:$0xff] %v3008
  %v3011 = vld [vmem:[%s2454] sm:$0xff]
  %v3012 = vld [vmem:[%s2454 + $0x8] sm:$0xff]
  %v3013 = vmul.f32 %v3011, %v2842
  %v3014 = vmul.f32 %v3012, %v2846
  %v3015 = vadd.f32 %v3013, %v2878
  %v3016 = vadd.f32 %v3014, %v2882
  %v3017 = vmax.f32 %v3015, 0.0
  %v3018 = vmax.f32 %v3016, 0.0
  %3019 = vst [vmem:[%s2454] sm:$0xff] %v3017
  %3020 = vst [vmem:[%s2454 + $0x8] sm:$0xff] %v3018
  %v3021 = vld [vmem:[%s2628] sm:$0xff]
  %v3022 = vld [vmem:[%s2628 + $0x8] sm:$0xff]
  %v3023 = vmul.f32 %v3021, %v2842
  %v3024 = vmul.f32 %v3022, %v2846
  %v3025 = vadd.f32 %v3023, %v2878
  %v3026 = vadd.f32 %v3024, %v2882
  %v3027 = vmax.f32 %v3025, 0.0
  %v3028 = vmax.f32 %v3026, 0.0
  %3029 = vst [vmem:[%s2628] sm:$0xff] %v3027
  %3030 = vst [vmem:[%s2628 + $0x8] sm:$0xff] %v3028
  %v3031 = vld [vmem:[%s2802] sm:$0xff]
  %v3032 = vld [vmem:[%s2802 + $0x8] sm:$0xff]
  %v3033 = vmul.f32 %v3031, %v2842
  %v3034 = vmul.f32 %v3032, %v2846
  %v3035 = vadd.f32 %v3033, %v2878
  %v3036 = vadd.f32 %v3034, %v2882
  %v3037 = vmax.f32 %v3035, 0.0
  %v3038 = vmax.f32 %v3036, 0.0
  %3039 = vst [vmem:[%s2802] sm:$0xff] %v3037
  %3040 = vst [vmem:[%s2802 + $0x8] sm:$0xff] %v3038
  // Predicated region
  $region18: #{generative_forward.4} parent=0 // pred_check
    _
  $region19: #{generative_forward.4} parent=0 // pred_check_branch
    %3042 = sbr.rel (0) target = $region21
  $region20: #{generative_forward.4} parent=0 // pred_region
    _
  $region21: #{generative_forward.4} parent=0 // pred_fallthru
    _
  // Predicated region
  $region22: #{generative_forward.4} parent=0 // pred_check
    _
  $region23: #{generative_forward.4} parent=0 // pred_check_branch
    %3044 = sbr.rel (0) target = $region25
  $region24: #{generative_forward.4} parent=0 // pred_region
    _
  $region25: #{generative_forward.4} parent=0 // pred_fallthru
    _

// kernel: generative_forward.5
$region0: #{generative_forward.5}
  #allocation0 [shape = 'u32[]', space=smem, size = 0x4, offset = 0x4, fixed_abs, tag = 'smem constant byte address 0x4 - core index']
  #allocation1 [shape = 'u32[144,128]{1,0:T(1,128)}', space=vmem, size = 0x12000, scoped, tag = 'internal scratch']
  %s0 = inlined_call_operand.vmem [shape: bf16[4,32,1024], index: 0, kind: input, shape index: {}]
  %s1 = inlined_call_operand.vmem [shape: bf16[4,1024,128], index: 1, kind: input, shape index: {}]
  %s2 = inlined_call_operand.vmem [shape: f32[1,128], index: 2, kind: input, shape index: {}]
  %s3 = inlined_call_operand.vmem [shape: f32[1,128], index: 3, kind: input, shape index: {}]
  %s4 = inlined_call_operand.vmem [shape: f32[4,32,128], index: 4, kind: output, shape index: {}]
  %s5 = sld [smem:[#allocation0]]
  $region26: #{generative_forward.5} parent=0
    _
  %s7 = ssub.s32 1, %s5
  %s8 = scalar_select 0, %s7, %s5
  // Predicated region
  $region2: #{generative_forward.5} parent=0 // pred_check
    _
  $region3: #{generative_forward.5} parent=0 // pred_check_branch
    %10 = sbr.rel (0) target = $region5
  $region4: #{generative_forward.5} parent=0 // pred_region
    _
  $region5: #{generative_forward.5} parent=0 // pred_fallthru
    _
  // Predicated region
  $region6: #{generative_forward.5} parent=0 // pred_check
    _
  $region7: #{generative_forward.5} parent=0 // pred_check_branch
    %12 = sbr.rel (0) target = $region9
  $region8: #{generative_forward.5} parent=0 // pred_region
    _
  $region9: #{generative_forward.5} parent=0 // pred_fallthru
    _
  // Predicated region
  $region10: #{generative_forward.5} parent=0 // pred_check
    _
  $region11: #{generative_forward.5} parent=0 // pred_check_branch
    %14 = sbr.rel (0) target = $region13
  $region12: #{generative_forward.5} parent=0 // pred_region
    _
  $region13: #{generative_forward.5} parent=0 // pred_fallthru
    _
  // Predicated region
  $region14: #{generative_forward.5} parent=0 // pred_check
    _
  $region15: #{generative_forward.5} parent=0 // pred_check_branch
    %16 = sbr.rel (0) target = $region17
  $region16: #{generative_forward.5} parent=0 // pred_region
    _
  $region17: #{generative_forward.5} parent=0 // pred_fallthru
    _
  %v18 = vld [vmem:[%s0] sm:$0xff]
  %v19 = vld [vmem:[%s0 + $0x8] sm:$0xff]
  %v20 = vld [vmem:[%s0 + $0x10] sm:$0xff]
  %v21 = vld [vmem:[%s0 + $0x18] sm:$0xff]
  %v22 = vld [vmem:[%s0 + $0x20] sm:$0xff]
  %v23 = vld [vmem:[%s0 + $0x28] sm:$0xff]
  %v24 = vld [vmem:[%s0 + $0x30] sm:$0xff]
  %v25 = vld [vmem:[%s0 + $0x38] sm:$0xff]
  %v26 = vld [vmem:[%s0 + $0x40] sm:$0xff]
  %v27 = vld [vmem:[%s0 + $0x48] sm:$0xff]
  %v28 = vld [vmem:[%s0 + $0x50] sm:$0xff]
  %v29 = vld [vmem:[%s0 + $0x58] sm:$0xff]
  %v30 = vld [vmem:[%s0 + $0x60] sm:$0xff]
  %v31 = vld [vmem:[%s0 + $0x68] sm:$0xff]
  %v32 = vld [vmem:[%s0 + $0x70] sm:$0xff]
  %v33 = vld [vmem:[%s0 + $0x78] sm:$0xff]
  %v34 = vld [vmem:[%s1] sm:$0xf]
  %v35 = vld [vmem:[%s1 + $0x4] sm:$0xf]
  %v36 = vld [vmem:[%s1 + $0x8] sm:$0xf]
  %v37 = vld [vmem:[%s1 + $0xc] sm:$0xf]
  %v38 = vld [vmem:[%s1 + $0x10] sm:$0xf]
  %v39 = vld [vmem:[%s1 + $0x14] sm:$0xf]
  %v40 = vld [vmem:[%s1 + $0x18] sm:$0xf]
  %v41 = vld [vmem:[%s1 + $0x1c] sm:$0xf]
  %v42 = vld [vmem:[%s1 + $0x20] sm:$0xf]
  %v43 = vld [vmem:[%s1 + $0x24] sm:$0xf]
  %v44 = vld [vmem:[%s1 + $0x28] sm:$0xf]
  %v45 = vld [vmem:[%s1 + $0x2c] sm:$0xf]
  %v46 = vld [vmem:[%s1 + $0x30] sm:$0xf]
  %v47 = vld [vmem:[%s1 + $0x34] sm:$0xf]
  %v48 = vld [vmem:[%s1 + $0x38] sm:$0xf]
  %v49 = vld [vmem:[%s1 + $0x3c] sm:$0xf]
  %v50 = vld [vmem:[%s1 + $0x40] sm:$0xf]
  %v51 = vld [vmem:[%s1 + $0x44] sm:$0xf]
  %v52 = vld [vmem:[%s1 + $0x48] sm:$0xf]
  %v53 = vld [vmem:[%s1 + $0x4c] sm:$0xf]
  %v54 = vld [vmem:[%s1 + $0x50] sm:$0xf]
  %v55 = vld [vmem:[%s1 + $0x54] sm:$0xf]
  %v56 = vld [vmem:[%s1 + $0x58] sm:$0xf]
  %v57 = vld [vmem:[%s1 + $0x5c] sm:$0xf]
  %v58 = vld [vmem:[%s1 + $0x60] sm:$0xf]
  %v59 = vld [vmem:[%s1 + $0x64] sm:$0xf]
  %v60 = vld [vmem:[%s1 + $0x68] sm:$0xf]
  %v61 = vld [vmem:[%s1 + $0x6c] sm:$0xf]
  %v62 = vld [vmem:[%s1 + $0x70] sm:$0xf]
  %v63 = vld [vmem:[%s1 + $0x74] sm:$0xf]
  %v64 = vld [vmem:[%s1 + $0x78] sm:$0xf]
  %v65 = vld [vmem:[%s1 + $0x7c] sm:$0xf]
  %v66 = vld [vmem:[%s1 + $0x80] sm:$0xf]
  %v67 = vld [vmem:[%s1 + $0x84] sm:$0xf]
  %v68 = vld [vmem:[%s1 + $0x88] sm:$0xf]
  %v69 = vld [vmem:[%s1 + $0x8c] sm:$0xf]
  %v70 = vld [vmem:[%s1 + $0x90] sm:$0xf]
  %v71 = vld [vmem:[%s1 + $0x94] sm:$0xf]
  %v72 = vld [vmem:[%s1 + $0x98] sm:$0xf]
  %v73 = vld [vmem:[%s1 + $0x9c] sm:$0xf]
  %v74 = vld [vmem:[%s1 + $0xa0] sm:$0xf]
  %v75 = vld [vmem:[%s1 + $0xa4] sm:$0xf]
  %v76 = vld [vmem:[%s1 + $0xa8] sm:$0xf]
  %v77 = vld [vmem:[%s1 + $0xac] sm:$0xf]
  %v78 = vld [vmem:[%s1 + $0xb0] sm:$0xf]
  %v79 = vld [vmem:[%s1 + $0xb4] sm:$0xf]
  %v80 = vld [vmem:[%s1 + $0xb8] sm:$0xf]
  %v81 = vld [vmem:[%s1 + $0xbc] sm:$0xf]
  %v82 = vld [vmem:[%s1 + $0xc0] sm:$0xf]
  %v83 = vld [vmem:[%s1 + $0xc4] sm:$0xf]
  %v84 = vld [vmem:[%s1 + $0xc8] sm:$0xf]
  %v85 = vld [vmem:[%s1 + $0xcc] sm:$0xf]
  %v86 = vld [vmem:[%s1 + $0xd0] sm:$0xf]
  %v87 = vld [vmem:[%s1 + $0xd4] sm:$0xf]
  %v88 = vld [vmem:[%s1 + $0xd8] sm:$0xf]
  %v89 = vld [vmem:[%s1 + $0xdc] sm:$0xf]
  %v90 = vld [vmem:[%s1 + $0xe0] sm:$0xf]
  %v91 = vld [vmem:[%s1 + $0xe4] sm:$0xf]
  %v92 = vld [vmem:[%s1 + $0xe8] sm:$0xf]
  %v93 = vld [vmem:[%s1 + $0xec] sm:$0xf]
  %v94 = vld [vmem:[%s1 + $0xf0] sm:$0xf]
  %v95 = vld [vmem:[%s1 + $0xf4] sm:$0xf]
  %v96 = vld [vmem:[%s1 + $0xf8] sm:$0xf]
  %v97 = vld [vmem:[%s1 + $0xfc] sm:$0xf]
  %v98 = vld [vmem:[%s1 + $0x100] sm:$0xf]
  %v99 = vld [vmem:[%s1 + $0x104] sm:$0xf]
  %v100 = vld [vmem:[%s1 + $0x108] sm:$0xf]
  %v101 = vld [vmem:[%s1 + $0x10c] sm:$0xf]
  %v102 = vld [vmem:[%s1 + $0x110] sm:$0xf]
  %v103 = vld [vmem:[%s1 + $0x114] sm:$0xf]
  %v104 = vld [vmem:[%s1 + $0x118] sm:$0xf]
  %v105 = vld [vmem:[%s1 + $0x11c] sm:$0xf]
  %v106 = vld [vmem:[%s1 + $0x120] sm:$0xf]
  %v107 = vld [vmem:[%s1 + $0x124] sm:$0xf]
  %v108 = vld [vmem:[%s1 + $0x128] sm:$0xf]
  %v109 = vld [vmem:[%s1 + $0x12c] sm:$0xf]
  %v110 = vld [vmem:[%s1 + $0x130] sm:$0xf]
  %v111 = vld [vmem:[%s1 + $0x134] sm:$0xf]
  %v112 = vld [vmem:[%s1 + $0x138] sm:$0xf]
  %v113 = vld [vmem:[%s1 + $0x13c] sm:$0xf]
  %v114 = vld [vmem:[%s1 + $0x140] sm:$0xf]
  %v115 = vld [vmem:[%s1 + $0x144] sm:$0xf]
  %v116 = vld [vmem:[%s1 + $0x148] sm:$0xf]
  %v117 = vld [vmem:[%s1 + $0x14c] sm:$0xf]
  %v118 = vld [vmem:[%s1 + $0x150] sm:$0xf]
  %v119 = vld [vmem:[%s1 + $0x154] sm:$0xf]
  %v120 = vld [vmem:[%s1 + $0x158] sm:$0xf]
  %v121 = vld [vmem:[%s1 + $0x15c] sm:$0xf]
  %v122 = vld [vmem:[%s1 + $0x160] sm:$0xf]
  %v123 = vld [vmem:[%s1 + $0x164] sm:$0xf]
  %v124 = vld [vmem:[%s1 + $0x168] sm:$0xf]
  %v125 = vld [vmem:[%s1 + $0x16c] sm:$0xf]
  %v126 = vld [vmem:[%s1 + $0x170] sm:$0xf]
  %v127 = vld [vmem:[%s1 + $0x174] sm:$0xf]
  %v128 = vld [vmem:[%s1 + $0x178] sm:$0xf]
  %v129 = vld [vmem:[%s1 + $0x17c] sm:$0xf]
  %v130 = vld [vmem:[%s1 + $0x180] sm:$0xf]
  %v131 = vld [vmem:[%s1 + $0x184] sm:$0xf]
  %v132 = vld [vmem:[%s1 + $0x188] sm:$0xf]
  %v133 = vld [vmem:[%s1 + $0x18c] sm:$0xf]
  %v134 = vld [vmem:[%s1 + $0x190] sm:$0xf]
  %v135 = vld [vmem:[%s1 + $0x194] sm:$0xf]
  %v136 = vld [vmem:[%s1 + $0x198] sm:$0xf]
  %v137 = vld [vmem:[%s1 + $0x19c] sm:$0xf]
  %v138 = vld [vmem:[%s1 + $0x1a0] sm:$0xf]
  %v139 = vld [vmem:[%s1 + $0x1a4] sm:$0xf]
  %v140 = vld [vmem:[%s1 + $0x1a8] sm:$0xf]
  %v141 = vld [vmem:[%s1 + $0x1ac] sm:$0xf]
  %v142 = vld [vmem:[%s1 + $0x1b0] sm:$0xf]
  %v143 = vld [vmem:[%s1 + $0x1b4] sm:$0xf]
  %v144 = vld [vmem:[%s1 + $0x1b8] sm:$0xf]
  %v145 = vld [vmem:[%s1 + $0x1bc] sm:$0xf]
  %v146 = vld [vmem:[%s1 + $0x1c0] sm:$0xf]
  %v147 = vld [vmem:[%s1 + $0x1c4] sm:$0xf]
  %v148 = vld [vmem:[%s1 + $0x1c8] sm:$0xf]
  %v149 = vld [vmem:[%s1 + $0x1cc] sm:$0xf]
  %v150 = vld [vmem:[%s1 + $0x1d0] sm:$0xf]
  %v151 = vld [vmem:[%s1 + $0x1d4] sm:$0xf]
  %v152 = vld [vmem:[%s1 + $0x1d8] sm:$0xf]
  %v153 = vld [vmem:[%s1 + $0x1dc] sm:$0xf]
  %v154 = vld [vmem:[%s1 + $0x1e0] sm:$0xf]
  %v155 = vld [vmem:[%s1 + $0x1e4] sm:$0xf]
  %v156 = vld [vmem:[%s1 + $0x1e8] sm:$0xf]
  %v157 = vld [vmem:[%s1 + $0x1ec] sm:$0xf]
  %v158 = vld [vmem:[%s1 + $0x1f0] sm:$0xf]
  %v159 = vld [vmem:[%s1 + $0x1f4] sm:$0xf]
  %v160 = vld [vmem:[%s1 + $0x1f8] sm:$0xf]
  %v161 = vld [vmem:[%s1 + $0x1fc] sm:$0xf]
  %v178 = vunpack.c.l.b16 %v18
  %v179 = vunpack.c.h.b16 %v18
  %v180 = vunpack.c.l.b16 %v19
  %v181 = vunpack.c.h.b16 %v19
  %v182 = vunpack.c.l.b16 %v20
  %v183 = vunpack.c.h.b16 %v20
  %v184 = vunpack.c.l.b16 %v21
  %v185 = vunpack.c.h.b16 %v21
  %v186 = vunpack.c.l.b16 %v22
  %v187 = vunpack.c.h.b16 %v22
  %v188 = vunpack.c.l.b16 %v23
  %v189 = vunpack.c.h.b16 %v23
  %v190 = vunpack.c.l.b16 %v24
  %v191 = vunpack.c.h.b16 %v24
  %v192 = vunpack.c.l.b16 %v25
  %v193 = vunpack.c.h.b16 %v25
  %v194 = vunpack.c.l.b16 %v26
  %v195 = vunpack.c.h.b16 %v26
  %v196 = vunpack.c.l.b16 %v27
  %v197 = vunpack.c.h.b16 %v27
  %v198 = vunpack.c.l.b16 %v28
  %v199 = vunpack.c.h.b16 %v28
  %v200 = vunpack.c.l.b16 %v29
  %v201 = vunpack.c.h.b16 %v29
  %v202 = vunpack.c.l.b16 %v30
  %v203 = vunpack.c.h.b16 %v30
  %v204 = vunpack.c.l.b16 %v31
  %v205 = vunpack.c.h.b16 %v31
  %v206 = vunpack.c.l.b16 %v32
  %v207 = vunpack.c.h.b16 %v32
  %v208 = vunpack.c.l.b16 %v33
  %v209 = vunpack.c.h.b16 %v33
  %v210 = vpack.c.b16 %v186, %v178
  %v211 = vpack.c.b16 %v187, %v179
  %v212 = vpack.c.b16 %v188, %v180
  %v213 = vpack.c.b16 %v189, %v181
  %v214 = vpack.c.b16 %v190, %v182
  %v215 = vpack.c.b16 %v191, %v183
  %v216 = vpack.c.b16 %v192, %v184
  %v217 = vpack.c.b16 %v193, %v185
  %v218 = vpack.c.b16 %v202, %v194
  %v219 = vpack.c.b16 %v203, %v195
  %v220 = vpack.c.b16 %v204, %v196
  %v221 = vpack.c.b16 %v205, %v197
  %v222 = vpack.c.b16 %v206, %v198
  %v223 = vpack.c.b16 %v207, %v199
  %v224 = vpack.c.b16 %v208, %v200
  %v225 = vpack.c.b16 %v209, %v201
  %v370 = vunpack.c.l.b16 %v34
  %v371 = vunpack.c.l.b16 %v35
  %v372 = vunpack.c.l.b16 %v36
  %v373 = vunpack.c.l.b16 %v37
  %v374 = vunpack.c.l.b16 %v38
  %v375 = vunpack.c.l.b16 %v39
  %v376 = vunpack.c.l.b16 %v40
  %v377 = vunpack.c.l.b16 %v41
  %v378 = vunpack.c.l.b16 %v42
  %v379 = vunpack.c.l.b16 %v43
  %v380 = vunpack.c.l.b16 %v44
  %v381 = vunpack.c.l.b16 %v45
  %v382 = vunpack.c.l.b16 %v46
  %v383 = vunpack.c.l.b16 %v47
  %v384 = vunpack.c.l.b16 %v48
  %v385 = vunpack.c.l.b16 %v49
  %v386 = vunpack.c.l.b16 %v50
  %v387 = vunpack.c.l.b16 %v51
  %v388 = vunpack.c.l.b16 %v52
  %v389 = vunpack.c.l.b16 %v53
  %v390 = vunpack.c.l.b16 %v54
  %v391 = vunpack.c.l.b16 %v55
  %v392 = vunpack.c.l.b16 %v56
  %v393 = vunpack.c.l.b16 %v57
  %v394 = vunpack.c.l.b16 %v58
  %v395 = vunpack.c.l.b16 %v59
  %v396 = vunpack.c.l.b16 %v60
  %v397 = vunpack.c.l.b16 %v61
  %v398 = vunpack.c.l.b16 %v62
  %v399 = vunpack.c.l.b16 %v63
  %v400 = vunpack.c.l.b16 %v64
  %v401 = vunpack.c.l.b16 %v65
  %v402 = vunpack.c.l.b16 %v66
  %v403 = vunpack.c.l.b16 %v67
  %v404 = vunpack.c.l.b16 %v68
  %v405 = vunpack.c.l.b16 %v69
  %v406 = vunpack.c.l.b16 %v70
  %v407 = vunpack.c.l.b16 %v71
  %v408 = vunpack.c.l.b16 %v72
  %v409 = vunpack.c.l.b16 %v73
  %v410 = vunpack.c.l.b16 %v74
  %v411 = vunpack.c.l.b16 %v75
  %v412 = vunpack.c.l.b16 %v76
  %v413 = vunpack.c.l.b16 %v77
  %v414 = vunpack.c.l.b16 %v78
  %v415 = vunpack.c.l.b16 %v79
  %v416 = vunpack.c.l.b16 %v80
  %v417 = vunpack.c.l.b16 %v81
  %v418 = vunpack.c.l.b16 %v82
  %v419 = vunpack.c.l.b16 %v83
  %v420 = vunpack.c.l.b16 %v84
  %v421 = vunpack.c.l.b16 %v85
  %v422 = vunpack.c.l.b16 %v86
  %v423 = vunpack.c.l.b16 %v87
  %v424 = vunpack.c.l.b16 %v88
  %v425 = vunpack.c.l.b16 %v89
  %v426 = vunpack.c.l.b16 %v90
  %v427 = vunpack.c.l.b16 %v91
  %v428 = vunpack.c.l.b16 %v92
  %v429 = vunpack.c.l.b16 %v93
  %v430 = vunpack.c.l.b16 %v94
  %v431 = vunpack.c.l.b16 %v95
  %v432 = vunpack.c.l.b16 %v96
  %v433 = vunpack.c.l.b16 %v97
  %v434 = vunpack.c.l.b16 %v98
  %v435 = vunpack.c.l.b16 %v99
  %v436 = vunpack.c.l.b16 %v100
  %v437 = vunpack.c.l.b16 %v101
  %v438 = vunpack.c.l.b16 %v102
  %v439 = vunpack.c.l.b16 %v103
  %v440 = vunpack.c.l.b16 %v104
  %v441 = vunpack.c.l.b16 %v105
  %v442 = vunpack.c.l.b16 %v106
  %v443 = vunpack.c.l.b16 %v107
  %v444 = vunpack.c.l.b16 %v108
  %v445 = vunpack.c.l.b16 %v109
  %v446 = vunpack.c.l.b16 %v110
  %v447 = vunpack.c.l.b16 %v111
  %v448 = vunpack.c.l.b16 %v112
  %v449 = vunpack.c.l.b16 %v113
  %v450 = vunpack.c.l.b16 %v114
  %v451 = vunpack.c.l.b16 %v115
  %v452 = vunpack.c.l.b16 %v116
  %v453 = vunpack.c.l.b16 %v117
  %v454 = vunpack.c.l.b16 %v118
  %v455 = vunpack.c.l.b16 %v119
  %v456 = vunpack.c.l.b16 %v120
  %v457 = vunpack.c.l.b16 %v121
  %v458 = vunpack.c.l.b16 %v122
  %v459 = vunpack.c.l.b16 %v123
  %v460 = vunpack.c.l.b16 %v124
  %v461 = vunpack.c.l.b16 %v125
  %v462 = vunpack.c.l.b16 %v126
  %v463 = vunpack.c.l.b16 %v127
  %v464 = vunpack.c.l.b16 %v128
  %v465 = vunpack.c.l.b16 %v129
  %v466 = vunpack.c.l.b16 %v130
  %v467 = vunpack.c.l.b16 %v131
  %v468 = vunpack.c.l.b16 %v132
  %v469 = vunpack.c.l.b16 %v133
  %v470 = vunpack.c.l.b16 %v134
  %v471 = vunpack.c.l.b16 %v135
  %v472 = vunpack.c.l.b16 %v136
  %v473 = vunpack.c.l.b16 %v137
  %v474 = vunpack.c.l.b16 %v138
  %v475 = vunpack.c.l.b16 %v139
  %v476 = vunpack.c.l.b16 %v140
  %v477 = vunpack.c.l.b16 %v141
  %v478 = vunpack.c.l.b16 %v142
  %v479 = vunpack.c.l.b16 %v143
  %v480 = vunpack.c.l.b16 %v144
  %v481 = vunpack.c.l.b16 %v145
  %v482 = vunpack.c.l.b16 %v146
  %v483 = vunpack.c.l.b16 %v147
  %v484 = vunpack.c.l.b16 %v148
  %v485 = vunpack.c.l.b16 %v149
  %v486 = vunpack.c.l.b16 %v150
  %v487 = vunpack.c.l.b16 %v151
  %v488 = vunpack.c.l.b16 %v152
  %v489 = vunpack.c.l.b16 %v153
  %v490 = vunpack.c.l.b16 %v154
  %v491 = vunpack.c.l.b16 %v155
  %v492 = vunpack.c.l.b16 %v156
  %v493 = vunpack.c.l.b16 %v157
  %v494 = vunpack.c.l.b16 %v158
  %v495 = vunpack.c.l.b16 %v159
  %v496 = vunpack.c.l.b16 %v160
  %v497 = vunpack.c.l.b16 %v161
  %v498 = vpack.c.b16 %v371, %v370
  %v499 = vpack.c.b16 %v373, %v372
  %v500 = vpack.c.b16 %v375, %v374
  %v501 = vpack.c.b16 %v377, %v376
  %v502 = vpack.c.b16 %v379, %v378
  %v503 = vpack.c.b16 %v381, %v380
  %v504 = vpack.c.b16 %v383, %v382
  %v505 = vpack.c.b16 %v385, %v384
  %v506 = vpack.c.b16 %v387, %v386
  %v507 = vpack.c.b16 %v389, %v388
  %v508 = vpack.c.b16 %v391, %v390
  %v509 = vpack.c.b16 %v393, %v392
  %v510 = vpack.c.b16 %v395, %v394
  %v511 = vpack.c.b16 %v397, %v396
  %v512 = vpack.c.b16 %v399, %v398
  %v513 = vpack.c.b16 %v401, %v400
  %v514 = vpack.c.b16 %v403, %v402
  %v515 = vpack.c.b16 %v405, %v404
  %v516 = vpack.c.b16 %v407, %v406
  %v517 = vpack.c.b16 %v409, %v408
  %v518 = vpack.c.b16 %v411, %v410
  %v519 = vpack.c.b16 %v413, %v412
  %v520 = vpack.c.b16 %v415, %v414
  %v521 = vpack.c.b16 %v417, %v416
  %v522 = vpack.c.b16 %v419, %v418
  %v523 = vpack.c.b16 %v421, %v420
  %v524 = vpack.c.b16 %v423, %v422
  %v525 = vpack.c.b16 %v425, %v424
  %v526 = vpack.c.b16 %v427, %v426
  %v527 = vpack.c.b16 %v429, %v428
  %v528 = vpack.c.b16 %v431, %v430
  %v529 = vpack.c.b16 %v433, %v432
  %v530 = vpack.c.b16 %v435, %v434
  %v531 = vpack.c.b16 %v437, %v436
  %v532 = vpack.c.b16 %v439, %v438
  %v533 = vpack.c.b16 %v441, %v440
  %v534 = vpack.c.b16 %v443, %v442
  %v535 = vpack.c.b16 %v445, %v444
  %v536 = vpack.c.b16 %v447, %v446
  %v537 = vpack.c.b16 %v449, %v448
  %v538 = vpack.c.b16 %v451, %v450
  %v539 = vpack.c.b16 %v453, %v452
  %v540 = vpack.c.b16 %v455, %v454
  %v541 = vpack.c.b16 %v457, %v456
  %v542 = vpack.c.b16 %v459, %v458
  %v543 = vpack.c.b16 %v461, %v460
  %v544 = vpack.c.b16 %v463, %v462
  %v545 = vpack.c.b16 %v465, %v464
  %v546 = vpack.c.b16 %v467, %v466
  %v547 = vpack.c.b16 %v469, %v468
  %v548 = vpack.c.b16 %v471, %v470
  %v549 = vpack.c.b16 %v473, %v472
  %v550 = vpack.c.b16 %v475, %v474
  %v551 = vpack.c.b16 %v477, %v476
  %v552 = vpack.c.b16 %v479, %v478
  %v553 = vpack.c.b16 %v481, %v480
  %v554 = vpack.c.b16 %v483, %v482
  %v555 = vpack.c.b16 %v485, %v484
  %v556 = vpack.c.b16 %v487, %v486
  %v557 = vpack.c.b16 %v489, %v488
  %v558 = vpack.c.b16 %v491, %v490
  %v559 = vpack.c.b16 %v493, %v492
  %v560 = vpack.c.b16 %v495, %v494
  %v561 = vpack.c.b16 %v497, %v496
  %626 = vmatprep.subr.bf16.mxu0 0
  %627 = vmatpush1.bf16.msra.mxu0 %v498
  %628 = vmatprep.subr.bf16.mxu0 0
  %629 = vmatpush1.bf16.msra.mxu0 %v499
  %630 = vmatprep.subr.bf16.mxu0 0
  %631 = vmatpush1.bf16.msra.mxu0 %v500
  %632 = vmatprep.subr.bf16.mxu0 0
  %633 = vmatpush1.bf16.msra.mxu0 %v501
  %634 = vmatprep.subr.bf16.mxu0 0
  %635 = vmatpush1.bf16.msra.mxu0 %v502
  %636 = vmatprep.subr.bf16.mxu0 0
  %637 = vmatpush1.bf16.msra.mxu0 %v503
  %638 = vmatprep.subr.bf16.mxu0 0
  %639 = vmatpush1.bf16.msra.mxu0 %v504
  %640 = vmatprep.subr.bf16.mxu0 0
  %641 = vmatpush1.bf16.msra.mxu0 %v505
  %642 = vmatprep.subr.bf16.mxu0 0
  %643 = vmatpush1.bf16.msra.mxu0 %v506
  %644 = vmatprep.subr.bf16.mxu0 0
  %645 = vmatpush1.bf16.msra.mxu0 %v507
  %646 = vmatprep.subr.bf16.mxu0 0
  %647 = vmatpush1.bf16.msra.mxu0 %v508
  %648 = vmatprep.subr.bf16.mxu0 0
  %649 = vmatpush1.bf16.msra.mxu0 %v509
  %650 = vmatprep.subr.bf16.mxu0 0
  %651 = vmatpush1.bf16.msra.mxu0 %v510
  %652 = vmatprep.subr.bf16.mxu0 0
  %653 = vmatpush1.bf16.msra.mxu0 %v511
  %654 = vmatprep.subr.bf16.mxu0 0
  %655 = vmatpush1.bf16.msra.mxu0 %v512
  %656 = vmatprep.subr.bf16.mxu0 0
  %657 = vmatpush1.bf16.msra.mxu0 %v513
  %658 = vmatprep.mubr.bf16.mxu0 %v211
  %659 = vmatmul.mubr.bf16.gmra.mrb[0].mxu0 %v210
  %v660 = vpop.f32.mrb[0].mxu0
  %v661 = vadd.f32 0.0, %v660
  %v662 = vpop.f32.mrb[0].mxu0
  %v663 = vpop.f32.mrb[0].mxu0
  %v664 = vadd.f32 0.0, %v663
  %v665 = vpop.f32.mrb[0].mxu0
  %666 = vmatprep.mubr.bf16.mxu0 %v219
  %667 = vmatmul.mubr.bf16.gmra.mrb[0].mxu0 %v218
  %v668 = vpop.f32.mrb[0].mxu0
  %v669 = vadd.f32 0.0, %v668
  %v670 = vpop.f32.mrb[0].mxu0
  %v671 = vpop.f32.mrb[0].mxu0
  %v672 = vadd.f32 0.0, %v671
  %v673 = vpop.f32.mrb[0].mxu0
  %674 = vdwg.mxu0
  %675 = vmatprep.subr.bf16.mxu0 0
  %676 = vmatpush1.bf16.msra.mxu0 %v514
  %677 = vmatprep.subr.bf16.mxu0 0
  %678 = vmatpush1.bf16.msra.mxu0 %v515
  %679 = vmatprep.subr.bf16.mxu0 0
  %680 = vmatpush1.bf16.msra.mxu0 %v516
  %681 = vmatprep.subr.bf16.mxu0 0
  %682 = vmatpush1.bf16.msra.mxu0 %v517
  %683 = vmatprep.subr.bf16.mxu0 0
  %684 = vmatpush1.bf16.msra.mxu0 %v518
  %685 = vmatprep.subr.bf16.mxu0 0
  %686 = vmatpush1.bf16.msra.mxu0 %v519
  %687 = vmatprep.subr.bf16.mxu0 0
  %688 = vmatpush1.bf16.msra.mxu0 %v520
  %689 = vmatprep.subr.bf16.mxu0 0
  %690 = vmatpush1.bf16.msra.mxu0 %v521
  %691 = vmatprep.subr.bf16.mxu0 0
  %692 = vmatpush1.bf16.msra.mxu0 %v522
  %693 = vmatprep.subr.bf16.mxu0 0
  %694 = vmatpush1.bf16.msra.mxu0 %v523
  %695 = vmatprep.subr.bf16.mxu0 0
  %696 = vmatpush1.bf16.msra.mxu0 %v524
  %697 = vmatprep.subr.bf16.mxu0 0
  %698 = vmatpush1.bf16.msra.mxu0 %v525
  %699 = vmatprep.subr.bf16.mxu0 0
  %700 = vmatpush1.bf16.msra.mxu0 %v526
  %701 = vmatprep.subr.bf16.mxu0 0
  %702 = vmatpush1.bf16.msra.mxu0 %v527
  %703 = vmatprep.subr.bf16.mxu0 0
  %704 = vmatpush1.bf16.msra.mxu0 %v528
  %705 = vmatprep.subr.bf16.mxu0 0
  %706 = vmatpush1.bf16.msra.mxu0 %v529
  %707 = vmatprep.mubr.bf16.mxu0 %v213
  %708 = vmatmul.mubr.bf16.gmra.mrb[0].mxu0 %v212
  %v709 = vpop.f32.mrb[0].mxu0
  %v710 = vadd.f32 %v661, %v709
  %v711 = vpop.f32.mrb[0].mxu0
  %v712 = vpop.f32.mrb[0].mxu0
  %v713 = vadd.f32 %v664, %v712
  %v714 = vpop.f32.mrb[0].mxu0
  %715 = vmatprep.mubr.bf16.mxu0 %v221
  %716 = vmatmul.mubr.bf16.gmra.mrb[0].mxu0 %v220
  %v717 = vpop.f32.mrb[0].mxu0
  %v718 = vadd.f32 %v669, %v717
  %v719 = vpop.f32.mrb[0].mxu0
  %v720 = vpop.f32.mrb[0].mxu0
  %v721 = vadd.f32 %v672, %v720
  %v722 = vpop.f32.mrb[0].mxu0
  %723 = vdwg.mxu0
  %724 = vmatprep.subr.bf16.mxu0 0
  %725 = vmatpush1.bf16.msra.mxu0 %v530
  %726 = vmatprep.subr.bf16.mxu0 0
  %727 = vmatpush1.bf16.msra.mxu0 %v531
  %728 = vmatprep.subr.bf16.mxu0 0
  %729 = vmatpush1.bf16.msra.mxu0 %v532
  %730 = vmatprep.subr.bf16.mxu0 0
  %731 = vmatpush1.bf16.msra.mxu0 %v533
  %732 = vmatprep.subr.bf16.mxu0 0
  %733 = vmatpush1.bf16.msra.mxu0 %v534
  %734 = vmatprep.subr.bf16.mxu0 0
  %735 = vmatpush1.bf16.msra.mxu0 %v535
  %736 = vmatprep.subr.bf16.mxu0 0
  %737 = vmatpush1.bf16.msra.mxu0 %v536
  %738 = vmatprep.subr.bf16.mxu0 0
  %739 = vmatpush1.bf16.msra.mxu0 %v537
  %740 = vmatprep.subr.bf16.mxu0 0
  %741 = vmatpush1.bf16.msra.mxu0 %v538
  %742 = vmatprep.subr.bf16.mxu0 0
  %743 = vmatpush1.bf16.msra.mxu0 %v539
  %744 = vmatprep.subr.bf16.mxu0 0
  %745 = vmatpush1.bf16.msra.mxu0 %v540
  %746 = vmatprep.subr.bf16.mxu0 0
  %747 = vmatpush1.bf16.msra.mxu0 %v541
  %748 = vmatprep.subr.bf16.mxu0 0
  %749 = vmatpush1.bf16.msra.mxu0 %v542
  %750 = vmatprep.subr.bf16.mxu0 0
  %751 = vmatpush1.bf16.msra.mxu0 %v543
  %752 = vmatprep.subr.bf16.mxu0 0
  %753 = vmatpush1.bf16.msra.mxu0 %v544
  %754 = vmatprep.subr.bf16.mxu0 0
  %755 = vmatpush1.bf16.msra.mxu0 %v545
  %756 = vmatprep.mubr.bf16.mxu0 %v215
  %757 = vmatmul.mubr.bf16.gmra.mrb[0].mxu0 %v214
  %v758 = vpop.f32.mrb[0].mxu0
  %v759 = vadd.f32 %v710, %v758
  %v760 = vpop.f32.mrb[0].mxu0
  %v761 = vpop.f32.mrb[0].mxu0
  %v762 = vadd.f32 %v713, %v761
  %v763 = vpop.f32.mrb[0].mxu0
  %764 = vmatprep.mubr.bf16.mxu0 %v223
  %765 = vmatmul.mubr.bf16.gmra.mrb[0].mxu0 %v222
  %v766 = vpop.f32.mrb[0].mxu0
  %v767 = vadd.f32 %v718, %v766
  %v768 = vpop.f32.mrb[0].mxu0
  %v769 = vpop.f32.mrb[0].mxu0
  %v770 = vadd.f32 %v721, %v769
  %v771 = vpop.f32.mrb[0].mxu0
  %772 = vdwg.mxu0
  %773 = vmatprep.subr.bf16.mxu0 0
  %774 = vmatpush1.bf16.msra.mxu0 %v546
  %775 = vmatprep.subr.bf16.mxu0 0
  %776 = vmatpush1.bf16.msra.mxu0 %v547
  %777 = vmatprep.subr.bf16.mxu0 0
  %778 = vmatpush1.bf16.msra.mxu0 %v548
  %779 = vmatprep.subr.bf16.mxu0 0
  %780 = vmatpush1.bf16.msra.mxu0 %v549
  %781 = vmatprep.subr.bf16.mxu0 0
  %782 = vmatpush1.bf16.msra.mxu0 %v550
  %783 = vmatprep.subr.bf16.mxu0 0
  %784 = vmatpush1.bf16.msra.mxu0 %v551
  %785 = vmatprep.subr.bf16.mxu0 0
  %786 = vmatpush1.bf16.msra.mxu0 %v552
  %787 = vmatprep.subr.bf16.mxu0 0
  %788 = vmatpush1.bf16.msra.mxu0 %v553
  %789 = vmatprep.subr.bf16.mxu0 0
  %790 = vmatpush1.bf16.msra.mxu0 %v554
  %791 = vmatprep.subr.bf16.mxu0 0
  %792 = vmatpush1.bf16.msra.mxu0 %v555
  %793 = vmatprep.subr.bf16.mxu0 0
  %794 = vmatpush1.bf16.msra.mxu0 %v556
  %795 = vmatprep.subr.bf16.mxu0 0
  %796 = vmatpush1.bf16.msra.mxu0 %v557
  %797 = vmatprep.subr.bf16.mxu0 0
  %798 = vmatpush1.bf16.msra.mxu0 %v558
  %799 = vmatprep.subr.bf16.mxu0 0
  %800 = vmatpush1.bf16.msra.mxu0 %v559
  %801 = vmatprep.subr.bf16.mxu0 0
  %802 = vmatpush1.bf16.msra.mxu0 %v560
  %803 = vmatprep.subr.bf16.mxu0 0
  %804 = vmatpush1.bf16.msra.mxu0 %v561
  %805 = vmatprep.mubr.bf16.mxu0 %v217
  %806 = vmatmul.mubr.bf16.gmra.mrb[0].mxu0 %v216
  %v807 = vpop.f32.mrb[0].mxu0
  %v808 = vadd.f32 %v759, %v807
  %v809 = vpop.f32.mrb[0].mxu0
  %v810 = vpop.f32.mrb[0].mxu0
  %v811 = vadd.f32 %v762, %v810
  %v812 = vpop.f32.mrb[0].mxu0
  %813 = vmatprep.mubr.bf16.mxu0 %v225
  %814 = vmatmul.mubr.bf16.gmra.mrb[0].mxu0 %v224
  %v815 = vpop.f32.mrb[0].mxu0
  %v816 = vadd.f32 %v767, %v815
  %v817 = vpop.f32.mrb[0].mxu0
  %v818 = vpop.f32.mrb[0].mxu0
  %v819 = vadd.f32 %v770, %v818
  %v820 = vpop.f32.mrb[0].mxu0
  %821 = vdwg.mxu0
  %v822 = vadd.f32 %v808, %v811
  %v823 = vadd.f32 %v822, %v816
  %v824 = vadd.f32 %v823, %v819
  %v825 = vrot.slane %v824, 4
  %v826 = vadd.f32 %v824, %v825
  %v827 = vrot.slane %v826, 2
  %v828 = vadd.f32 %v826, %v827
  %v829 = vrot.slane %v828, 1
  %v830 = vadd.f32 %v828, %v829
  %v831 = vadd.f32 %v830, 0.0
  %v832 = vmul.f32 %v808, %v808
  %v833 = vmul.f32 %v811, %v811
  %v834 = vmul.f32 %v816, %v816
  %v835 = vmul.f32 %v819, %v819
  %v836 = vadd.f32 %v832, %v833
  %v837 = vadd.f32 %v836, %v834
  %v838 = vadd.f32 %v837, %v835
  %v839 = vrot.slane %v838, 4
  %v840 = vadd.f32 %v838, %v839
  %v841 = vrot.slane %v840, 2
  %v842 = vadd.f32 %v840, %v841
  %v843 = vrot.slane %v842, 1
  %v844 = vadd.f32 %v842, %v843
  %v845 = vadd.f32 %v844, 0.0
  %846 = vst [vmem:[%s4] sm:$0xff] %v808
  %847 = vst [vmem:[%s4 + $0x8] sm:$0xff] %v811
  %848 = vst [vmem:[%s4 + $0x10] sm:$0xff] %v816
  %849 = vst [vmem:[%s4 + $0x18] sm:$0xff] %v819
  %s850 = scalar_lea.vmem %s0, 128
  %v851 = vld [vmem:[%s850] sm:$0xff]
  %v852 = vld [vmem:[%s850 + $0x8] sm:$0xff]
  %v853 = vld [vmem:[%s850 + $0x10] sm:$0xff]
  %v854 = vld [vmem:[%s850 + $0x18] sm:$0xff]
  %v855 = vld [vmem:[%s850 + $0x20] sm:$0xff]
  %v856 = vld [vmem:[%s850 + $0x28] sm:$0xff]
  %v857 = vld [vmem:[%s850 + $0x30] sm:$0xff]
  %v858 = vld [vmem:[%s850 + $0x38] sm:$0xff]
  %v859 = vld [vmem:[%s850 + $0x40] sm:$0xff]
  %v860 = vld [vmem:[%s850 + $0x48] sm:$0xff]
  %v861 = vld [vmem:[%s850 + $0x50] sm:$0xff]
  %v862 = vld [vmem:[%s850 + $0x58] sm:$0xff]
  %v863 = vld [vmem:[%s850 + $0x60] sm:$0xff]
  %v864 = vld [vmem:[%s850 + $0x68] sm:$0xff]
  %v865 = vld [vmem:[%s850 + $0x70] sm:$0xff]
  %v866 = vld [vmem:[%s850 + $0x78] sm:$0xff]
  %s867 = scalar_lea.vmem %s1, 512
  %v868 = vld [vmem:[%s867] sm:$0xf]
  %v869 = vld [vmem:[%s867 + $0x4] sm:$0xf]
  %v870 = vld [vmem:[%s867 + $0x8] sm:$0xf]
  %v871 = vld [vmem:[%s867 + $0xc] sm:$0xf]
  %v872 = vld [vmem:[%s867 + $0x10] sm:$0xf]
  %v873 = vld [vmem:[%s867 + $0x14] sm:$0xf]
  %v874 = vld [vmem:[%s867 + $0x18] sm:$0xf]
  %v875 = vld [vmem:[%s867 + $0x1c] sm:$0xf]
  %v876 = vld [vmem:[%s867 + $0x20] sm:$0xf]
  %v877 = vld [vmem:[%s867 + $0x24] sm:$0xf]
  %v878 = vld [vmem:[%s867 + $0x28] sm:$0xf]
  %v879 = vld [vmem:[%s867 + $0x2c] sm:$0xf]
  %v880 = vld [vmem:[%s867 + $0x30] sm:$0xf]
  %v881 = vld [vmem:[%s867 + $0x34] sm:$0xf]
  %v882 = vld [vmem:[%s867 + $0x38] sm:$0xf]
  %v883 = vld [vmem:[%s867 + $0x3c] sm:$0xf]
  %v884 = vld [vmem:[%s867 + $0x40] sm:$0xf]
  %v885 = vld [vmem:[%s867 + $0x44] sm:$0xf]
  %v886 = vld [vmem:[%s867 + $0x48] sm:$0xf]
  %v887 = vld [vmem:[%s867 + $0x4c] sm:$0xf]
  %v888 = vld [vmem:[%s867 + $0x50] sm:$0xf]
  %v889 = vld [vmem:[%s867 + $0x54] sm:$0xf]
  %v890 = vld [vmem:[%s867 + $0x58] sm:$0xf]
  %v891 = vld [vmem:[%s867 + $0x5c] sm:$0xf]
  %v892 = vld [vmem:[%s867 + $0x60] sm:$0xf]
  %v893 = vld [vmem:[%s867 + $0x64] sm:$0xf]
  %v894 = vld [vmem:[%s867 + $0x68] sm:$0xf]
  %v895 = vld [vmem:[%s867 + $0x6c] sm:$0xf]
  %v896 = vld [vmem:[%s867 + $0x70] sm:$0xf]
  %v897 = vld [vmem:[%s867 + $0x74] sm:$0xf]
  %v898 = vld [vmem:[%s867 + $0x78] sm:$0xf]
  %v899 = vld [vmem:[%s867 + $0x7c] sm:$0xf]
  %v900 = vld [vmem:[%s867 + $0x80] sm:$0xf]
  %v901 = vld [vmem:[%s867 + $0x84] sm:$0xf]
  %v902 = vld [vmem:[%s867 + $0x88] sm:$0xf]
  %v903 = vld [vmem:[%s867 + $0x8c] sm:$0xf]
  %v904 = vld [vmem:[%s867 + $0x90] sm:$0xf]
  %v905 = vld [vmem:[%s867 + $0x94] sm:$0xf]
  %v906 = vld [vmem:[%s867 + $0x98] sm:$0xf]
  %v907 = vld [vmem:[%s867 + $0x9c] sm:$0xf]
  %v908 = vld [vmem:[%s867 + $0xa0] sm:$0xf]
  %v909 = vld [vmem:[%s867 + $0xa4] sm:$0xf]
  %v910 = vld [vmem:[%s867 + $0xa8] sm:$0xf]
  %v911 = vld [vmem:[%s867 + $0xac] sm:$0xf]
  %v912 = vld [vmem:[%s867 + $0xb0] sm:$0xf]
  %v913 = vld [vmem:[%s867 + $0xb4] sm:$0xf]
  %v914 = vld [vmem:[%s867 + $0xb8] sm:$0xf]
  %v915 = vld [vmem:[%s867 + $0xbc] sm:$0xf]
  %v916 = vld [vmem:[%s867 + $0xc0] sm:$0xf]
  %v917 = vld [vmem:[%s867 + $0xc4] sm:$0xf]
  %v918 = vld [vmem:[%s867 + $0xc8] sm:$0xf]
  %v919 = vld [vmem:[%s867 + $0xcc] sm:$0xf]
  %v920 = vld [vmem:[%s867 + $0xd0] sm:$0xf]
  %v921 = vld [vmem:[%s867 + $0xd4] sm:$0xf]
  %v922 = vld [vmem:[%s867 + $0xd8] sm:$0xf]
  %v923 = vld [vmem:[%s867 + $0xdc] sm:$0xf]
  %v924 = vld [vmem:[%s867 + $0xe0] sm:$0xf]
  %v925 = vld [vmem:[%s867 + $0xe4] sm:$0xf]
  %v926 = vld [vmem:[%s867 + $0xe8] sm:$0xf]
  %v927 = vld [vmem:[%s867 + $0xec] sm:$0xf]
  %v928 = vld [vmem:[%s867 + $0xf0] sm:$0xf]
  %v929 = vld [vmem:[%s867 + $0xf4] sm:$0xf]
  %v930 = vld [vmem:[%s867 + $0xf8] sm:$0xf]
  %v931 = vld [vmem:[%s867 + $0xfc] sm:$0xf]
  %v932 = vld [vmem:[%s867 + $0x100] sm:$0xf]
  %v933 = vld [vmem:[%s867 + $0x104] sm:$0xf]
  %v934 = vld [vmem:[%s867 + $0x108] sm:$0xf]
  %v935 = vld [vmem:[%s867 + $0x10c] sm:$0xf]
  %v936 = vld [vmem:[%s867 + $0x110] sm:$0xf]
  %v937 = vld [vmem:[%s867 + $0x114] sm:$0xf]
  %v938 = vld [vmem:[%s867 + $0x118] sm:$0xf]
  %v939 = vld [vmem:[%s867 + $0x11c] sm:$0xf]
  %v940 = vld [vmem:[%s867 + $0x120] sm:$0xf]
  %v941 = vld [vmem:[%s867 + $0x124] sm:$0xf]
  %v942 = vld [vmem:[%s867 + $0x128] sm:$0xf]
  %v943 = vld [vmem:[%s867 + $0x12c] sm:$0xf]
  %v944 = vld [vmem:[%s867 + $0x130] sm:$0xf]
  %v945 = vld [vmem:[%s867 + $0x134] sm:$0xf]
  %v946 = vld [vmem:[%s867 + $0x138] sm:$0xf]
  %v947 = vld [vmem:[%s867 + $0x13c] sm:$0xf]
  %v948 = vld [vmem:[%s867 + $0x140] sm:$0xf]
  %v949 = vld [vmem:[%s867 + $0x144] sm:$0xf]
  %v950 = vld [vmem:[%s867 + $0x148] sm:$0xf]
  %v951 = vld [vmem:[%s867 + $0x14c] sm:$0xf]
  %v952 = vld [vmem:[%s867 + $0x150] sm:$0xf]
  %v953 = vld [vmem:[%s867 + $0x154] sm:$0xf]
  %v954 = vld [vmem:[%s867 + $0x158] sm:$0xf]
  %v955 = vld [vmem:[%s867 + $0x15c] sm:$0xf]
  %v956 = vld [vmem:[%s867 + $0x160] sm:$0xf]
  %v957 = vld [vmem:[%s867 + $0x164] sm:$0xf]
  %v958 = vld [vmem:[%s867 + $0x168] sm:$0xf]
  %v959 = vld [vmem:[%s867 + $0x16c] sm:$0xf]
  %v960 = vld [vmem:[%s867 + $0x170] sm:$0xf]
  %v961 = vld [vmem:[%s867 + $0x174] sm:$0xf]
  %v962 = vld [vmem:[%s867 + $0x178] sm:$0xf]
  %v963 = vld [vmem:[%s867 + $0x17c] sm:$0xf]
  %v964 = vld [vmem:[%s867 + $0x180] sm:$0xf]
  %v965 = vld [vmem:[%s867 + $0x184] sm:$0xf]
  %v966 = vld [vmem:[%s867 + $0x188] sm:$0xf]
  %v967 = vld [vmem:[%s867 + $0x18c] sm:$0xf]
  %v968 = vld [vmem:[%s867 + $0x190] sm:$0xf]
  %v969 = vld [vmem:[%s867 + $0x194] sm:$0xf]
  %v970 = vld [vmem:[%s867 + $0x198] sm:$0xf]
  %v971 = vld [vmem:[%s867 + $0x19c] sm:$0xf]
  %v972 = vld [vmem:[%s867 + $0x1a0] sm:$0xf]
  %v973 = vld [vmem:[%s867 + $0x1a4] sm:$0xf]
  %v974 = vld [vmem:[%s867 + $0x1a8] sm:$0xf]
  %v975 = vld [vmem:[%s867 + $0x1ac] sm:$0xf]
  %v976 = vld [vmem:[%s867 + $0x1b0] sm:$0xf]
  %v977 = vld [vmem:[%s867 + $0x1b4] sm:$0xf]
  %v978 = vld [vmem:[%s867 + $0x1b8] sm:$0xf]
  %v979 = vld [vmem:[%s867 + $0x1bc] sm:$0xf]
  %v980 = vld [vmem:[%s867 + $0x1c0] sm:$0xf]
  %v981 = vld [vmem:[%s867 + $0x1c4] sm:$0xf]
  %v982 = vld [vmem:[%s867 + $0x1c8] sm:$0xf]
  %v983 = vld [vmem:[%s867 + $0x1cc] sm:$0xf]
  %v984 = vld [vmem:[%s867 + $0x1d0] sm:$0xf]
  %v985 = vld [vmem:[%s867 + $0x1d4] sm:$0xf]
  %v986 = vld [vmem:[%s867 + $0x1d8] sm:$0xf]
  %v987 = vld [vmem:[%s867 + $0x1dc] sm:$0xf]
  %v988 = vld [vmem:[%s867 + $0x1e0] sm:$0xf]
  %v989 = vld [vmem:[%s867 + $0x1e4] sm:$0xf]
  %v990 = vld [vmem:[%s867 + $0x1e8] sm:$0xf]
  %v991 = vld [vmem:[%s867 + $0x1ec] sm:$0xf]
  %v992 = vld [vmem:[%s867 + $0x1f0] sm:$0xf]
  %v993 = vld [vmem:[%s867 + $0x1f4] sm:$0xf]
  %v994 = vld [vmem:[%s867 + $0x1f8] sm:$0xf]
  %v995 = vld [vmem:[%s867 + $0x1fc] sm:$0xf]
  %v1012 = vunpack.c.l.b16 %v851
  %v1013 = vunpack.c.h.b16 %v851
  %v1014 = vunpack.c.l.b16 %v852
  %v1015 = vunpack.c.h.b16 %v852
  %v1016 = vunpack.c.l.b16 %v853
  %v1017 = vunpack.c.h.b16 %v853
  %v1018 = vunpack.c.l.b16 %v854
  %v1019 = vunpack.c.h.b16 %v854
  %v1020 = vunpack.c.l.b16 %v855
  %v1021 = vunpack.c.h.b16 %v855
  %v1022 = vunpack.c.l.b16 %v856
  %v1023 = vunpack.c.h.b16 %v856
  %v1024 = vunpack.c.l.b16 %v857
  %v1025 = vunpack.c.h.b16 %v857
  %v1026 = vunpack.c.l.b16 %v858
  %v1027 = vunpack.c.h.b16 %v858
  %v1028 = vunpack.c.l.b16 %v859
  %v1029 = vunpack.c.h.b16 %v859
  %v1030 = vunpack.c.l.b16 %v860
  %v1031 = vunpack.c.h.b16 %v860
  %v1032 = vunpack.c.l.b16 %v861
  %v1033 = vunpack.c.h.b16 %v861
  %v1034 = vunpack.c.l.b16 %v862
  %v1035 = vunpack.c.h.b16 %v862
  %v1036 = vunpack.c.l.b16 %v863
  %v1037 = vunpack.c.h.b16 %v863
  %v1038 = vunpack.c.l.b16 %v864
  %v1039 = vunpack.c.h.b16 %v864
  %v1040 = vunpack.c.l.b16 %v865
  %v1041 = vunpack.c.h.b16 %v865
  %v1042 = vunpack.c.l.b16 %v866
  %v1043 = vunpack.c.h.b16 %v866
  %v1044 = vpack.c.b16 %v1020, %v1012
  %v1045 = vpack.c.b16 %v1021, %v1013
  %v1046 = vpack.c.b16 %v1022, %v1014
  %v1047 = vpack.c.b16 %v1023, %v1015
  %v1048 = vpack.c.b16 %v1024, %v1016
  %v1049 = vpack.c.b16 %v1025, %v1017
  %v1050 = vpack.c.b16 %v1026, %v1018
  %v1051 = vpack.c.b16 %v1027, %v1019
  %v1052 = vpack.c.b16 %v1036, %v1028
  %v1053 = vpack.c.b16 %v1037, %v1029
  %v1054 = vpack.c.b16 %v1038, %v1030
  %v1055 = vpack.c.b16 %v1039, %v1031
  %v1056 = vpack.c.b16 %v1040, %v1032
  %v1057 = vpack.c.b16 %v1041, %v1033
  %v1058 = vpack.c.b16 %v1042, %v1034
  %v1059 = vpack.c.b16 %v1043, %v1035
  %v1204 = vunpack.c.l.b16 %v868
  %v1205 = vunpack.c.l.b16 %v869
  %v1206 = vunpack.c.l.b16 %v870
  %v1207 = vunpack.c.l.b16 %v871
  %v1208 = vunpack.c.l.b16 %v872
  %v1209 = vunpack.c.l.b16 %v873
  %v1210 = vunpack.c.l.b16 %v874
  %v1211 = vunpack.c.l.b16 %v875
  %v1212 = vunpack.c.l.b16 %v876
  %v1213 = vunpack.c.l.b16 %v877
  %v1214 = vunpack.c.l.b16 %v878
  %v1215 = vunpack.c.l.b16 %v879
  %v1216 = vunpack.c.l.b16 %v880
  %v1217 = vunpack.c.l.b16 %v881
  %v1218 = vunpack.c.l.b16 %v882
  %v1219 = vunpack.c.l.b16 %v883
  %v1220 = vunpack.c.l.b16 %v884
  %v1221 = vunpack.c.l.b16 %v885
  %v1222 = vunpack.c.l.b16 %v886
  %v1223 = vunpack.c.l.b16 %v887
  %v1224 = vunpack.c.l.b16 %v888
  %v1225 = vunpack.c.l.b16 %v889
  %v1226 = vunpack.c.l.b16 %v890
  %v1227 = vunpack.c.l.b16 %v891
  %v1228 = vunpack.c.l.b16 %v892
  %v1229 = vunpack.c.l.b16 %v893
  %v1230 = vunpack.c.l.b16 %v894
  %v1231 = vunpack.c.l.b16 %v895
  %v1232 = vunpack.c.l.b16 %v896
  %v1233 = vunpack.c.l.b16 %v897
  %v1234 = vunpack.c.l.b16 %v898
  %v1235 = vunpack.c.l.b16 %v899
  %v1236 = vunpack.c.l.b16 %v900
  %v1237 = vunpack.c.l.b16 %v901
  %v1238 = vunpack.c.l.b16 %v902
  %v1239 = vunpack.c.l.b16 %v903
  %v1240 = vunpack.c.l.b16 %v904
  %v1241 = vunpack.c.l.b16 %v905
  %v1242 = vunpack.c.l.b16 %v906
  %v1243 = vunpack.c.l.b16 %v907
  %v1244 = vunpack.c.l.b16 %v908
  %v1245 = vunpack.c.l.b16 %v909
  %v1246 = vunpack.c.l.b16 %v910
  %v1247 = vunpack.c.l.b16 %v911
  %v1248 = vunpack.c.l.b16 %v912
  %v1249 = vunpack.c.l.b16 %v913
  %v1250 = vunpack.c.l.b16 %v914
  %v1251 = vunpack.c.l.b16 %v915
  %v1252 = vunpack.c.l.b16 %v916
  %v1253 = vunpack.c.l.b16 %v917
  %v1254 = vunpack.c.l.b16 %v918
  %v1255 = vunpack.c.l.b16 %v919
  %v1256 = vunpack.c.l.b16 %v920
  %v1257 = vunpack.c.l.b16 %v921
  %v1258 = vunpack.c.l.b16 %v922
  %v1259 = vunpack.c.l.b16 %v923
  %v1260 = vunpack.c.l.b16 %v924
  %v1261 = vunpack.c.l.b16 %v925
  %v1262 = vunpack.c.l.b16 %v926
  %v1263 = vunpack.c.l.b16 %v927
  %v1264 = vunpack.c.l.b16 %v928
  %v1265 = vunpack.c.l.b16 %v929
  %v1266 = vunpack.c.l.b16 %v930
  %v1267 = vunpack.c.l.b16 %v931
  %v1268 = vunpack.c.l.b16 %v932
  %v1269 = vunpack.c.l.b16 %v933
  %v1270 = vunpack.c.l.b16 %v934
  %v1271 = vunpack.c.l.b16 %v935
  %v1272 = vunpack.c.l.b16 %v936
  %v1273 = vunpack.c.l.b16 %v937
  %v1274 = vunpack.c.l.b16 %v938
  %v1275 = vunpack.c.l.b16 %v939
  %v1276 = vunpack.c.l.b16 %v940
  %v1277 = vunpack.c.l.b16 %v941
  %v1278 = vunpack.c.l.b16 %v942
  %v1279 = vunpack.c.l.b16 %v943
  %v1280 = vunpack.c.l.b16 %v944
  %v1281 = vunpack.c.l.b16 %v945
  %v1282 = vunpack.c.l.b16 %v946
  %v1283 = vunpack.c.l.b16 %v947
  %v1284 = vunpack.c.l.b16 %v948
  %v1285 = vunpack.c.l.b16 %v949
  %v1286 = vunpack.c.l.b16 %v950
  %v1287 = vunpack.c.l.b16 %v951
  %v1288 = vunpack.c.l.b16 %v952
  %v1289 = vunpack.c.l.b16 %v953
  %v1290 = vunpack.c.l.b16 %v954
  %v1291 = vunpack.c.l.b16 %v955
  %v1292 = vunpack.c.l.b16 %v956
  %v1293 = vunpack.c.l.b16 %v957
  %v1294 = vunpack.c.l.b16 %v958
  %v1295 = vunpack.c.l.b16 %v959
  %v1296 = vunpack.c.l.b16 %v960
  %v1297 = vunpack.c.l.b16 %v961
  %v1298 = vunpack.c.l.b16 %v962
  %v1299 = vunpack.c.l.b16 %v963
  %v1300 = vunpack.c.l.b16 %v964
  %v1301 = vunpack.c.l.b16 %v965
  %v1302 = vunpack.c.l.b16 %v966
  %v1303 = vunpack.c.l.b16 %v967
  %v1304 = vunpack.c.l.b16 %v968
  %v1305 = vunpack.c.l.b16 %v969
  %v1306 = vunpack.c.l.b16 %v970
  %v1307 = vunpack.c.l.b16 %v971
  %v1308 = vunpack.c.l.b16 %v972
  %v1309 = vunpack.c.l.b16 %v973
  %v1310 = vunpack.c.l.b16 %v974
  %v1311 = vunpack.c.l.b16 %v975
  %v1312 = vunpack.c.l.b16 %v976
  %v1313 = vunpack.c.l.b16 %v977
  %v1314 = vunpack.c.l.b16 %v978
  %v1315 = vunpack.c.l.b16 %v979
  %v1316 = vunpack.c.l.b16 %v980
  %v1317 = vunpack.c.l.b16 %v981
  %v1318 = vunpack.c.l.b16 %v982
  %v1319 = vunpack.c.l.b16 %v983
  %v1320 = vunpack.c.l.b16 %v984
  %v1321 = vunpack.c.l.b16 %v985
  %v1322 = vunpack.c.l.b16 %v986
  %v1323 = vunpack.c.l.b16 %v987
  %v1324 = vunpack.c.l.b16 %v988
  %v1325 = vunpack.c.l.b16 %v989
  %v1326 = vunpack.c.l.b16 %v990
  %v1327 = vunpack.c.l.b16 %v991
  %v1328 = vunpack.c.l.b16 %v992
  %v1329 = vunpack.c.l.b16 %v993
  %v1330 = vunpack.c.l.b16 %v994
  %v1331 = vunpack.c.l.b16 %v995
  %v1332 = vpack.c.b16 %v1205, %v1204
  %v1333 = vpack.c.b16 %v1207, %v1206
  %v1334 = vpack.c.b16 %v1209, %v1208
  %v1335 = vpack.c.b16 %v1211, %v1210
  %v1336 = vpack.c.b16 %v1213, %v1212
  %v1337 = vpack.c.b16 %v1215, %v1214
  %v1338 = vpack.c.b16 %v1217, %v1216
  %v1339 = vpack.c.b16 %v1219, %v1218
  %v1340 = vpack.c.b16 %v1221, %v1220
  %v1341 = vpack.c.b16 %v1223, %v1222
  %v1342 = vpack.c.b16 %v1225, %v1224
  %v1343 = vpack.c.b16 %v1227, %v1226
  %v1344 = vpack.c.b16 %v1229, %v1228
  %v1345 = vpack.c.b16 %v1231, %v1230
  %v1346 = vpack.c.b16 %v1233, %v1232
  %v1347 = vpack.c.b16 %v1235, %v1234
  %v1348 = vpack.c.b16 %v1237, %v1236
  %v1349 = vpack.c.b16 %v1239, %v1238
  %v1350 = vpack.c.b16 %v1241, %v1240
  %v1351 = vpack.c.b16 %v1243, %v1242
  %v1352 = vpack.c.b16 %v1245, %v1244
  %v1353 = vpack.c.b16 %v1247, %v1246
  %v1354 = vpack.c.b16 %v1249, %v1248
  %v1355 = vpack.c.b16 %v1251, %v1250
  %v1356 = vpack.c.b16 %v1253, %v1252
  %v1357 = vpack.c.b16 %v1255, %v1254
  %v1358 = vpack.c.b16 %v1257, %v1256
  %v1359 = vpack.c.b16 %v1259, %v1258
  %v1360 = vpack.c.b16 %v1261, %v1260
  %v1361 = vpack.c.b16 %v1263, %v1262
  %v1362 = vpack.c.b16 %v1265, %v1264
  %v1363 = vpack.c.b16 %v1267, %v1266
  %v1364 = vpack.c.b16 %v1269, %v1268
  %v1365 = vpack.c.b16 %v1271, %v1270
  %v1366 = vpack.c.b16 %v1273, %v1272
  %v1367 = vpack.c.b16 %v1275, %v1274
  %v1368 = vpack.c.b16 %v1277, %v1276
  %v1369 = vpack.c.b16 %v1279, %v1278
  %v1370 = vpack.c.b16 %v1281, %v1280
  %v1371 = vpack.c.b16 %v1283, %v1282
  %v1372 = vpack.c.b16 %v1285, %v1284
  %v1373 = vpack.c.b16 %v1287, %v1286
  %v1374 = vpack.c.b16 %v1289, %v1288
  %v1375 = vpack.c.b16 %v1291, %v1290
  %v1376 = vpack.c.b16 %v1293, %v1292
  %v1377 = vpack.c.b16 %v1295, %v1294
  %v1378 = vpack.c.b16 %v1297, %v1296
  %v1379 = vpack.c.b16 %v1299, %v1298
  %v1380 = vpack.c.b16 %v1301, %v1300
  %v1381 = vpack.c.b16 %v1303, %v1302
  %v1382 = vpack.c.b16 %v1305, %v1304
  %v1383 = vpack.c.b16 %v1307, %v1306
  %v1384 = vpack.c.b16 %v1309, %v1308
  %v1385 = vpack.c.b16 %v1311, %v1310
  %v1386 = vpack.c.b16 %v1313, %v1312
  %v1387 = vpack.c.b16 %v1315, %v1314
  %v1388 = vpack.c.b16 %v1317, %v1316
  %v1389 = vpack.c.b16 %v1319, %v1318
  %v1390 = vpack.c.b16 %v1321, %v1320
  %v1391 = vpack.c.b16 %v1323, %v1322
  %v1392 = vpack.c.b16 %v1325, %v1324
  %v1393 = vpack.c.b16 %v1327, %v1326
  %v1394 = vpack.c.b16 %v1329, %v1328
  %v1395 = vpack.c.b16 %v1331, %v1330
  %1460 = vmatprep.subr.bf16.mxu0 0
  %1461 = vmatpush1.bf16.msra.mxu0 %v1332
  %1462 = vmatprep.subr.bf16.mxu0 0
  %1463 = vmatpush1.bf16.msra.mxu0 %v1333
  %1464 = vmatprep.subr.bf16.mxu0 0
  %1465 = vmatpush1.bf16.msra.mxu0 %v1334
  %1466 = vmatprep.subr.bf16.mxu0 0
  %1467 = vmatpush1.bf16.msra.mxu0 %v1335
  %1468 = vmatprep.subr.bf16.mxu0 0
  %1469 = vmatpush1.bf16.msra.mxu0 %v1336
  %1470 = vmatprep.subr.bf16.mxu0 0
  %1471 = vmatpush1.bf16.msra.mxu0 %v1337
  %1472 = vmatprep.subr.bf16.mxu0 0
  %1473 = vmatpush1.bf16.msra.mxu0 %v1338
  %1474 = vmatprep.subr.bf16.mxu0 0
  %1475 = vmatpush1.bf16.msra.mxu0 %v1339
  %1476 = vmatprep.subr.bf16.mxu0 0
  %1477 = vmatpush1.bf16.msra.mxu0 %v1340
  %1478 = vmatprep.subr.bf16.mxu0 0
  %1479 = vmatpush1.bf16.msra.mxu0 %v1341
  %1480 = vmatprep.subr.bf16.mxu0 0
  %1481 = vmatpush1.bf16.msra.mxu0 %v1342
  %1482 = vmatprep.subr.bf16.mxu0 0
  %1483 = vmatpush1.bf16.msra.mxu0 %v1343
  %1484 = vmatprep.subr.bf16.mxu0 0
  %1485 = vmatpush1.bf16.msra.mxu0 %v1344
  %1486 = vmatprep.subr.bf16.mxu0 0
  %1487 = vmatpush1.bf16.msra.mxu0 %v1345
  %1488 = vmatprep.subr.bf16.mxu0 0
  %1489 = vmatpush1.bf16.msra.mxu0 %v1346
  %1490 = vmatprep.subr.bf16.mxu0 0
  %1491 = vmatpush1.bf16.msra.mxu0 %v1347
  %1492 = vmatprep.mubr.bf16.mxu0 %v1045
  %1493 = vmatmul.mubr.bf16.gmra.mrb[0].mxu0 %v1044
  %v1494 = vpop.f32.mrb[0].mxu0
  %v1495 = vadd.f32 0.0, %v1494
  %v1496 = vpop.f32.mrb[0].mxu0
  %v1497 = vpop.f32.mrb[0].mxu0
  %v1498 = vadd.f32 0.0, %v1497
  %v1499 = vpop.f32.mrb[0].mxu0
  %1500 = vmatprep.mubr.bf16.mxu0 %v1053
  %1501 = vmatmul.mubr.bf16.gmra.mrb[0].mxu0 %v1052
  %v1502 = vpop.f32.mrb[0].mxu0
  %v1503 = vadd.f32 0.0, %v1502
  %v1504 = vpop.f32.mrb[0].mxu0
  %v1505 = vpop.f32.mrb[0].mxu0
  %v1506 = vadd.f32 0.0, %v1505
  %v1507 = vpop.f32.mrb[0].mxu0
  %1508 = vdwg.mxu0
  %1509 = vmatprep.subr.bf16.mxu0 0
  %1510 = vmatpush1.bf16.msra.mxu0 %v1348
  %1511 = vmatprep.subr.bf16.mxu0 0
  %1512 = vmatpush1.bf16.msra.mxu0 %v1349
  %1513 = vmatprep.subr.bf16.mxu0 0
  %1514 = vmatpush1.bf16.msra.mxu0 %v1350
  %1515 = vmatprep.subr.bf16.mxu0 0
  %1516 = vmatpush1.bf16.msra.mxu0 %v1351
  %1517 = vmatprep.subr.bf16.mxu0 0
  %1518 = vmatpush1.bf16.msra.mxu0 %v1352
  %1519 = vmatprep.subr.bf16.mxu0 0
  %1520 = vmatpush1.bf16.msra.mxu0 %v1353
  %1521 = vmatprep.subr.bf16.mxu0 0
  %1522 = vmatpush1.bf16.msra.mxu0 %v1354
  %1523 = vmatprep.subr.bf16.mxu0 0
  %1524 = vmatpush1.bf16.msra.mxu0 %v1355
  %1525 = vmatprep.subr.bf16.mxu0 0
  %1526 = vmatpush1.bf16.msra.mxu0 %v1356
  %1527 = vmatprep.subr.bf16.mxu0 0
  %1528 = vmatpush1.bf16.msra.mxu0 %v1357
  %1529 = vmatprep.subr.bf16.mxu0 0
  %1530 = vmatpush1.bf16.msra.mxu0 %v1358
  %1531 = vmatprep.subr.bf16.mxu0 0
  %1532 = vmatpush1.bf16.msra.mxu0 %v1359
  %1533 = vmatprep.subr.bf16.mxu0 0
  %1534 = vmatpush1.bf16.msra.mxu0 %v1360
  %1535 = vmatprep.subr.bf16.mxu0 0
  %1536 = vmatpush1.bf16.msra.mxu0 %v1361
  %1537 = vmatprep.subr.bf16.mxu0 0
  %1538 = vmatpush1.bf16.msra.mxu0 %v1362
  %1539 = vmatprep.subr.bf16.mxu0 0
  %1540 = vmatpush1.bf16.msra.mxu0 %v1363
  %1541 = vmatprep.mubr.bf16.mxu0 %v1047
  %1542 = vmatmul.mubr.bf16.gmra.mrb[0].mxu0 %v1046
  %v1543 = vpop.f32.mrb[0].mxu0
  %v1544 = vadd.f32 %v1495, %v1543
  %v1545 = vpop.f32.mrb[0].mxu0
  %v1546 = vpop.f32.mrb[0].mxu0
  %v1547 = vadd.f32 %v1498, %v1546
  %v1548 = vpop.f32.mrb[0].mxu0
  %1549 = vmatprep.mubr.bf16.mxu0 %v1055
  %1550 = vmatmul.mubr.bf16.gmra.mrb[0].mxu0 %v1054
  %v1551 = vpop.f32.mrb[0].mxu0
  %v1552 = vadd.f32 %v1503, %v1551
  %v1553 = vpop.f32.mrb[0].mxu0
  %v1554 = vpop.f32.mrb[0].mxu0
  %v1555 = vadd.f32 %v1506, %v1554
  %v1556 = vpop.f32.mrb[0].mxu0
  %1557 = vdwg.mxu0
  %1558 = vmatprep.subr.bf16.mxu0 0
  %1559 = vmatpush1.bf16.msra.mxu0 %v1364
  %1560 = vmatprep.subr.bf16.mxu0 0
  %1561 = vmatpush1.bf16.msra.mxu0 %v1365
  %1562 = vmatprep.subr.bf16.mxu0 0
  %1563 = vmatpush1.bf16.msra.mxu0 %v1366
  %1564 = vmatprep.subr.bf16.mxu0 0
  %1565 = vmatpush1.bf16.msra.mxu0 %v1367
  %1566 = vmatprep.subr.bf16.mxu0 0
  %1567 = vmatpush1.bf16.msra.mxu0 %v1368
  %1568 = vmatprep.subr.bf16.mxu0 0
  %1569 = vmatpush1.bf16.msra.mxu0 %v1369
  %1570 = vmatprep.subr.bf16.mxu0 0
  %1571 = vmatpush1.bf16.msra.mxu0 %v1370
  %1572 = vmatprep.subr.bf16.mxu0 0
  %1573 = vmatpush1.bf16.msra.mxu0 %v1371
  %1574 = vmatprep.subr.bf16.mxu0 0
  %1575 = vmatpush1.bf16.msra.mxu0 %v1372
  %1576 = vmatprep.subr.bf16.mxu0 0
  %1577 = vmatpush1.bf16.msra.mxu0 %v1373
  %1578 = vmatprep.subr.bf16.mxu0 0
  %1579 = vmatpush1.bf16.msra.mxu0 %v1374
  %1580 = vmatprep.subr.bf16.mxu0 0
  %1581 = vmatpush1.bf16.msra.mxu0 %v1375
  %1582 = vmatprep.subr.bf16.mxu0 0
  %1583 = vmatpush1.bf16.msra.mxu0 %v1376
  %1584 = vmatprep.subr.bf16.mxu0 0
  %1585 = vmatpush1.bf16.msra.mxu0 %v1377
  %1586 = vmatprep.subr.bf16.mxu0 0
  %1587 = vmatpush1.bf16.msra.mxu0 %v1378
  %1588 = vmatprep.subr.bf16.mxu0 0
  %1589 = vmatpush1.bf16.msra.mxu0 %v1379
  %1590 = vmatprep.mubr.bf16.mxu0 %v1049
  %1591 = vmatmul.mubr.bf16.gmra.mrb[0].mxu0 %v1048
  %v1592 = vpop.f32.mrb[0].mxu0
  %v1593 = vadd.f32 %v1544, %v1592
  %v1594 = vpop.f32.mrb[0].mxu0
  %v1595 = vpop.f32.mrb[0].mxu0
  %v1596 = vadd.f32 %v1547, %v1595
  %v1597 = vpop.f32.mrb[0].mxu0
  %1598 = vmatprep.mubr.bf16.mxu0 %v1057
  %1599 = vmatmul.mubr.bf16.gmra.mrb[0].mxu0 %v1056
  %v1600 = vpop.f32.mrb[0].mxu0
  %v1601 = vadd.f32 %v1552, %v1600
  %v1602 = vpop.f32.mrb[0].mxu0
  %v1603 = vpop.f32.mrb[0].mxu0
  %v1604 = vadd.f32 %v1555, %v1603
  %v1605 = vpop.f32.mrb[0].mxu0
  %1606 = vdwg.mxu0
  %1607 = vmatprep.subr.bf16.mxu0 0
  %1608 = vmatpush1.bf16.msra.mxu0 %v1380
  %1609 = vmatprep.subr.bf16.mxu0 0
  %1610 = vmatpush1.bf16.msra.mxu0 %v1381
  %1611 = vmatprep.subr.bf16.mxu0 0
  %1612 = vmatpush1.bf16.msra.mxu0 %v1382
  %1613 = vmatprep.subr.bf16.mxu0 0
  %1614 = vmatpush1.bf16.msra.mxu0 %v1383
  %1615 = vmatprep.subr.bf16.mxu0 0
  %1616 = vmatpush1.bf16.msra.mxu0 %v1384
  %1617 = vmatprep.subr.bf16.mxu0 0
  %1618 = vmatpush1.bf16.msra.mxu0 %v1385
  %1619 = vmatprep.subr.bf16.mxu0 0
  %1620 = vmatpush1.bf16.msra.mxu0 %v1386
  %1621 = vmatprep.subr.bf16.mxu0 0
  %1622 = vmatpush1.bf16.msra.mxu0 %v1387
  %1623 = vmatprep.subr.bf16.mxu0 0
  %1624 = vmatpush1.bf16.msra.mxu0 %v1388
  %1625 = vmatprep.subr.bf16.mxu0 0
  %1626 = vmatpush1.bf16.msra.mxu0 %v1389
  %1627 = vmatprep.subr.bf16.mxu0 0
  %1628 = vmatpush1.bf16.msra.mxu0 %v1390
  %1629 = vmatprep.subr.bf16.mxu0 0
  %1630 = vmatpush1.bf16.msra.mxu0 %v1391
  %1631 = vmatprep.subr.bf16.mxu0 0
  %1632 = vmatpush1.bf16.msra.mxu0 %v1392
  %1633 = vmatprep.subr.bf16.mxu0 0
  %1634 = vmatpush1.bf16.msra.mxu0 %v1393
  %1635 = vmatprep.subr.bf16.mxu0 0
  %1636 = vmatpush1.bf16.msra.mxu0 %v1394
  %1637 = vmatprep.subr.bf16.mxu0 0
  %1638 = vmatpush1.bf16.msra.mxu0 %v1395
  %1639 = vmatprep.mubr.bf16.mxu0 %v1051
  %1640 = vmatmul.mubr.bf16.gmra.mrb[0].mxu0 %v1050
  %v1641 = vpop.f32.mrb[0].mxu0
  %v1642 = vadd.f32 %v1593, %v1641
  %v1643 = vpop.f32.mrb[0].mxu0
  %v1644 = vpop.f32.mrb[0].mxu0
  %v1645 = vadd.f32 %v1596, %v1644
  %v1646 = vpop.f32.mrb[0].mxu0
  %1647 = vmatprep.mubr.bf16.mxu0 %v1059
  %1648 = vmatmul.mubr.bf16.gmra.mrb[0].mxu0 %v1058
  %v1649 = vpop.f32.mrb[0].mxu0
  %v1650 = vadd.f32 %v1601, %v1649
  %v1651 = vpop.f32.mrb[0].mxu0
  %v1652 = vpop.f32.mrb[0].mxu0
  %v1653 = vadd.f32 %v1604, %v1652
  %v1654 = vpop.f32.mrb[0].mxu0
  %1655 = vdwg.mxu0
  %v1656 = vadd.f32 %v1642, %v1645
  %v1657 = vadd.f32 %v1656, %v1650
  %v1658 = vadd.f32 %v1657, %v1653
  %v1659 = vrot.slane %v1658, 4
  %v1660 = vadd.f32 %v1658, %v1659
  %v1661 = vrot.slane %v1660, 2
  %v1662 = vadd.f32 %v1660, %v1661
  %v1663 = vrot.slane %v1662, 1
  %v1664 = vadd.f32 %v1662, %v1663
  %v1665 = vadd.f32 %v831, %v1664
  %v1666 = vmul.f32 %v1642, %v1642
  %v1667 = vmul.f32 %v1645, %v1645
  %v1668 = vmul.f32 %v1650, %v1650
  %v1669 = vmul.f32 %v1653, %v1653
  %v1670 = vadd.f32 %v1666, %v1667
  %v1671 = vadd.f32 %v1670, %v1668
  %v1672 = vadd.f32 %v1671, %v1669
  %v1673 = vrot.slane %v1672, 4
  %v1674 = vadd.f32 %v1672, %v1673
  %v1675 = vrot.slane %v1674, 2
  %v1676 = vadd.f32 %v1674, %v1675
  %v1677 = vrot.slane %v1676, 1
  %v1678 = vadd.f32 %v1676, %v1677
  %v1679 = vadd.f32 %v845, %v1678
  %s1680 = scalar_lea.vmem %s4, 32
  %1681 = vst [vmem:[%s1680] sm:$0xff] %v1642
  %1682 = vst [vmem:[%s1680 + $0x8] sm:$0xff] %v1645
  %1683 = vst [vmem:[%s1680 + $0x10] sm:$0xff] %v1650
  %1684 = vst [vmem:[%s1680 + $0x18] sm:$0xff] %v1653
  %s1685 = scalar_lea.vmem %s0, 256
  %v1686 = vld [vmem:[%s1685] sm:$0xff]
  %v1687 = vld [vmem:[%s1685 + $0x8] sm:$0xff]
  %v1688 = vld [vmem:[%s1685 + $0x10] sm:$0xff]
  %v1689 = vld [vmem:[%s1685 + $0x18] sm:$0xff]
  %v1690 = vld [vmem:[%s1685 + $0x20] sm:$0xff]
  %v1691 = vld [vmem:[%s1685 + $0x28] sm:$0xff]
  %v1692 = vld [vmem:[%s1685 + $0x30] sm:$0xff]
  %v1693 = vld [vmem:[%s1685 + $0x38] sm:$0xff]
  %v1694 = vld [vmem:[%s1685 + $0x40] sm:$0xff]
  %v1695 = vld [vmem:[%s1685 + $0x48] sm:$0xff]
  %v1696 = vld [vmem:[%s1685 + $0x50] sm:$0xff]
  %v1697 = vld [vmem:[%s1685 + $0x58] sm:$0xff]
  %v1698 = vld [vmem:[%s1685 + $0x60] sm:$0xff]
  %v1699 = vld [vmem:[%s1685 + $0x68] sm:$0xff]
  %v1700 = vld [vmem:[%s1685 + $0x70] sm:$0xff]
  %v1701 = vld [vmem:[%s1685 + $0x78] sm:$0xff]
  %s1702 = scalar_lea.vmem %s1, 1024
  %v1703 = vld [vmem:[%s1702] sm:$0xf]
  %v1704 = vld [vmem:[%s1702 + $0x4] sm:$0xf]
  %v1705 = vld [vmem:[%s1702 + $0x8] sm:$0xf]
  %v1706 = vld [vmem:[%s1702 + $0xc] sm:$0xf]
  %v1707 = vld [vmem:[%s1702 + $0x10] sm:$0xf]
  %v1708 = vld [vmem:[%s1702 + $0x14] sm:$0xf]
  %v1709 = vld [vmem:[%s1702 + $0x18] sm:$0xf]
  %v1710 = vld [vmem:[%s1702 + $0x1c] sm:$0xf]
  %v1711 = vld [vmem:[%s1702 + $0x20] sm:$0xf]
  %v1712 = vld [vmem:[%s1702 + $0x24] sm:$0xf]
  %v1713 = vld [vmem:[%s1702 + $0x28] sm:$0xf]
  %v1714 = vld [vmem:[%s1702 + $0x2c] sm:$0xf]
  %v1715 = vld [vmem:[%s1702 + $0x30] sm:$0xf]
  %v1716 = vld [vmem:[%s1702 + $0x34] sm:$0xf]
  %v1717 = vld [vmem:[%s1702 + $0x38] sm:$0xf]
  %v1718 = vld [vmem:[%s1702 + $0x3c] sm:$0xf]
  %v1719 = vld [vmem:[%s1702 + $0x40] sm:$0xf]
  %v1720 = vld [vmem:[%s1702 + $0x44] sm:$0xf]
  %v1721 = vld [vmem:[%s1702 + $0x48] sm:$0xf]
  %v1722 = vld [vmem:[%s1702 + $0x4c] sm:$0xf]
  %v1723 = vld [vmem:[%s1702 + $0x50] sm:$0xf]
  %v1724 = vld [vmem:[%s1702 + $0x54] sm:$0xf]
  %v1725 = vld [vmem:[%s1702 + $0x58] sm:$0xf]
  %v1726 = vld [vmem:[%s1702 + $0x5c] sm:$0xf]
  %v1727 = vld [vmem:[%s1702 + $0x60] sm:$0xf]
  %v1728 = vld [vmem:[%s1702 + $0x64] sm:$0xf]
  %v1729 = vld [vmem:[%s1702 + $0x68] sm:$0xf]
  %v1730 = vld [vmem:[%s1702 + $0x6c] sm:$0xf]
  %v1731 = vld [vmem:[%s1702 + $0x70] sm:$0xf]
  %v1732 = vld [vmem:[%s1702 + $0x74] sm:$0xf]
  %v1733 = vld [vmem:[%s1702 + $0x78] sm:$0xf]
  %v1734 = vld [vmem:[%s1702 + $0x7c] sm:$0xf]
  %v1735 = vld [vmem:[%s1702 + $0x80] sm:$0xf]
  %v1736 = vld [vmem:[%s1702 + $0x84] sm:$0xf]
  %v1737 = vld [vmem:[%s1702 + $0x88] sm:$0xf]
  %v1738 = vld [vmem:[%s1702 + $0x8c] sm:$0xf]
  %v1739 = vld [vmem:[%s1702 + $0x90] sm:$0xf]
  %v1740 = vld [vmem:[%s1702 + $0x94] sm:$0xf]
  %v1741 = vld [vmem:[%s1702 + $0x98] sm:$0xf]
  %v1742 = vld [vmem:[%s1702 + $0x9c] sm:$0xf]
  %v1743 = vld [vmem:[%s1702 + $0xa0] sm:$0xf]
  %v1744 = vld [vmem:[%s1702 + $0xa4] sm:$0xf]
  %v1745 = vld [vmem:[%s1702 + $0xa8] sm:$0xf]
  %v1746 = vld [vmem:[%s1702 + $0xac] sm:$0xf]
  %v1747 = vld [vmem:[%s1702 + $0xb0] sm:$0xf]
  %v1748 = vld [vmem:[%s1702 + $0xb4] sm:$0xf]
  %v1749 = vld [vmem:[%s1702 + $0xb8] sm:$0xf]
  %v1750 = vld [vmem:[%s1702 + $0xbc] sm:$0xf]
  %v1751 = vld [vmem:[%s1702 + $0xc0] sm:$0xf]
  %v1752 = vld [vmem:[%s1702 + $0xc4] sm:$0xf]
  %v1753 = vld [vmem:[%s1702 + $0xc8] sm:$0xf]
  %v1754 = vld [vmem:[%s1702 + $0xcc] sm:$0xf]
  %v1755 = vld [vmem:[%s1702 + $0xd0] sm:$0xf]
  %v1756 = vld [vmem:[%s1702 + $0xd4] sm:$0xf]
  %v1757 = vld [vmem:[%s1702 + $0xd8] sm:$0xf]
  %v1758 = vld [vmem:[%s1702 + $0xdc] sm:$0xf]
  %v1759 = vld [vmem:[%s1702 + $0xe0] sm:$0xf]
  %v1760 = vld [vmem:[%s1702 + $0xe4] sm:$0xf]
  %v1761 = vld [vmem:[%s1702 + $0xe8] sm:$0xf]
  %v1762 = vld [vmem:[%s1702 + $0xec] sm:$0xf]
  %v1763 = vld [vmem:[%s1702 + $0xf0] sm:$0xf]
  %v1764 = vld [vmem:[%s1702 + $0xf4] sm:$0xf]
  %v1765 = vld [vmem:[%s1702 + $0xf8] sm:$0xf]
  %v1766 = vld [vmem:[%s1702 + $0xfc] sm:$0xf]
  %v1767 = vld [vmem:[%s1702 + $0x100] sm:$0xf]
  %v1768 = vld [vmem:[%s1702 + $0x104] sm:$0xf]
  %v1769 = vld [vmem:[%s1702 + $0x108] sm:$0xf]
  %v1770 = vld [vmem:[%s1702 + $0x10c] sm:$0xf]
  %v1771 = vld [vmem:[%s1702 + $0x110] sm:$0xf]
  %v1772 = vld [vmem:[%s1702 + $0x114] sm:$0xf]
  %v1773 = vld [vmem:[%s1702 + $0x118] sm:$0xf]
  %v1774 = vld [vmem:[%s1702 + $0x11c] sm:$0xf]
  %v1775 = vld [vmem:[%s1702 + $0x120] sm:$0xf]
  %v1776 = vld [vmem:[%s1702 + $0x124] sm:$0xf]
  %v1777 = vld [vmem:[%s1702 + $0x128] sm:$0xf]
  %v1778 = vld [vmem:[%s1702 + $0x12c] sm:$0xf]
  %v1779 = vld [vmem:[%s1702 + $0x130] sm:$0xf]
  %v1780 = vld [vmem:[%s1702 + $0x134] sm:$0xf]
  %v1781 = vld [vmem:[%s1702 + $0x138] sm:$0xf]
  %v1782 = vld [vmem:[%s1702 + $0x13c] sm:$0xf]
  %v1783 = vld [vmem:[%s1702 + $0x140] sm:$0xf]
  %v1784 = vld [vmem:[%s1702 + $0x144] sm:$0xf]
  %v1785 = vld [vmem:[%s1702 + $0x148] sm:$0xf]
  %v1786 = vld [vmem:[%s1702 + $0x14c] sm:$0xf]
  %v1787 = vld [vmem:[%s1702 + $0x150] sm:$0xf]
  %v1788 = vld [vmem:[%s1702 + $0x154] sm:$0xf]
  %v1789 = vld [vmem:[%s1702 + $0x158] sm:$0xf]
  %v1790 = vld [vmem:[%s1702 + $0x15c] sm:$0xf]
  %v1791 = vld [vmem:[%s1702 + $0x160] sm:$0xf]
  %v1792 = vld [vmem:[%s1702 + $0x164] sm:$0xf]
  %v1793 = vld [vmem:[%s1702 + $0x168] sm:$0xf]
  %v1794 = vld [vmem:[%s1702 + $0x16c] sm:$0xf]
  %v1795 = vld [vmem:[%s1702 + $0x170] sm:$0xf]
  %v1796 = vld [vmem:[%s1702 + $0x174] sm:$0xf]
  %v1797 = vld [vmem:[%s1702 + $0x178] sm:$0xf]
  %v1798 = vld [vmem:[%s1702 + $0x17c] sm:$0xf]
  %v1799 = vld [vmem:[%s1702 + $0x180] sm:$0xf]
  %v1800 = vld [vmem:[%s1702 + $0x184] sm:$0xf]
  %v1801 = vld [vmem:[%s1702 + $0x188] sm:$0xf]
  %v1802 = vld [vmem:[%s1702 + $0x18c] sm:$0xf]
  %v1803 = vld [vmem:[%s1702 + $0x190] sm:$0xf]
  %v1804 = vld [vmem:[%s1702 + $0x194] sm:$0xf]
  %v1805 = vld [vmem:[%s1702 + $0x198] sm:$0xf]
  %v1806 = vld [vmem:[%s1702 + $0x19c] sm:$0xf]
  %v1807 = vld [vmem:[%s1702 + $0x1a0] sm:$0xf]
  %v1808 = vld [vmem:[%s1702 + $0x1a4] sm:$0xf]
  %v1809 = vld [vmem:[%s1702 + $0x1a8] sm:$0xf]
  %v1810 = vld [vmem:[%s1702 + $0x1ac] sm:$0xf]
  %v1811 = vld [vmem:[%s1702 + $0x1b0] sm:$0xf]
  %v1812 = vld [vmem:[%s1702 + $0x1b4] sm:$0xf]
  %v1813 = vld [vmem:[%s1702 + $0x1b8] sm:$0xf]
  %v1814 = vld [vmem:[%s1702 + $0x1bc] sm:$0xf]
  %v1815 = vld [vmem:[%s1702 + $0x1c0] sm:$0xf]
  %v1816 = vld [vmem:[%s1702 + $0x1c4] sm:$0xf]
  %v1817 = vld [vmem:[%s1702 + $0x1c8] sm:$0xf]
  %v1818 = vld [vmem:[%s1702 + $0x1cc] sm:$0xf]
  %v1819 = vld [vmem:[%s1702 + $0x1d0] sm:$0xf]
  %v1820 = vld [vmem:[%s1702 + $0x1d4] sm:$0xf]
  %v1821 = vld [vmem:[%s1702 + $0x1d8] sm:$0xf]
  %v1822 = vld [vmem:[%s1702 + $0x1dc] sm:$0xf]
  %v1823 = vld [vmem:[%s1702 + $0x1e0] sm:$0xf]
  %v1824 = vld [vmem:[%s1702 + $0x1e4] sm:$0xf]
  %v1825 = vld [vmem:[%s1702 + $0x1e8] sm:$0xf]
  %v1826 = vld [vmem:[%s1702 + $0x1ec] sm:$0xf]
  %v1827 = vld [vmem:[%s1702 + $0x1f0] sm:$0xf]
  %v1828 = vld [vmem:[%s1702 + $0x1f4] sm:$0xf]
  %v1829 = vld [vmem:[%s1702 + $0x1f8] sm:$0xf]
  %v1830 = vld [vmem:[%s1702 + $0x1fc] sm:$0xf]
  %v1847 = vunpack.c.l.b16 %v1686
  %v1848 = vunpack.c.h.b16 %v1686
  %v1849 = vunpack.c.l.b16 %v1687
  %v1850 = vunpack.c.h.b16 %v1687
  %v1851 = vunpack.c.l.b16 %v1688
  %v1852 = vunpack.c.h.b16 %v1688
  %v1853 = vunpack.c.l.b16 %v1689
  %v1854 = vunpack.c.h.b16 %v1689
  %v1855 = vunpack.c.l.b16 %v1690
  %v1856 = vunpack.c.h.b16 %v1690
  %v1857 = vunpack.c.l.b16 %v1691
  %v1858 = vunpack.c.h.b16 %v1691
  %v1859 = vunpack.c.l.b16 %v1692
  %v1860 = vunpack.c.h.b16 %v1692
  %v1861 = vunpack.c.l.b16 %v1693
  %v1862 = vunpack.c.h.b16 %v1693
  %v1863 = vunpack.c.l.b16 %v1694
  %v1864 = vunpack.c.h.b16 %v1694
  %v1865 = vunpack.c.l.b16 %v1695
  %v1866 = vunpack.c.h.b16 %v1695
  %v1867 = vunpack.c.l.b16 %v1696
  %v1868 = vunpack.c.h.b16 %v1696
  %v1869 = vunpack.c.l.b16 %v1697
  %v1870 = vunpack.c.h.b16 %v1697
  %v1871 = vunpack.c.l.b16 %v1698
  %v1872 = vunpack.c.h.b16 %v1698
  %v1873 = vunpack.c.l.b16 %v1699
  %v1874 = vunpack.c.h.b16 %v1699
  %v1875 = vunpack.c.l.b16 %v1700
  %v1876 = vunpack.c.h.b16 %v1700
  %v1877 = vunpack.c.l.b16 %v1701
  %v1878 = vunpack.c.h.b16 %v1701
  %v1879 = vpack.c.b16 %v1855, %v1847
  %v1880 = vpack.c.b16 %v1856, %v1848
  %v1881 = vpack.c.b16 %v1857, %v1849
  %v1882 = vpack.c.b16 %v1858, %v1850
  %v1883 = vpack.c.b16 %v1859, %v1851
  %v1884 = vpack.c.b16 %v1860, %v1852
  %v1885 = vpack.c.b16 %v1861, %v1853
  %v1886 = vpack.c.b16 %v1862, %v1854
  %v1887 = vpack.c.b16 %v1871, %v1863
  %v1888 = vpack.c.b16 %v1872, %v1864
  %v1889 = vpack.c.b16 %v1873, %v1865
  %v1890 = vpack.c.b16 %v1874, %v1866
  %v1891 = vpack.c.b16 %v1875, %v1867
  %v1892 = vpack.c.b16 %v1876, %v1868
  %v1893 = vpack.c.b16 %v1877, %v1869
  %v1894 = vpack.c.b16 %v1878, %v1870
  %v2039 = vunpack.c.l.b16 %v1703
  %v2040 = vunpack.c.l.b16 %v1704
  %v2041 = vunpack.c.l.b16 %v1705
  %v2042 = vunpack.c.l.b16 %v1706
  %v2043 = vunpack.c.l.b16 %v1707
  %v2044 = vunpack.c.l.b16 %v1708
  %v2045 = vunpack.c.l.b16 %v1709
  %v2046 = vunpack.c.l.b16 %v1710
  %v2047 = vunpack.c.l.b16 %v1711
  %v2048 = vunpack.c.l.b16 %v1712
  %v2049 = vunpack.c.l.b16 %v1713
  %v2050 = vunpack.c.l.b16 %v1714
  %v2051 = vunpack.c.l.b16 %v1715
  %v2052 = vunpack.c.l.b16 %v1716
  %v2053 = vunpack.c.l.b16 %v1717
  %v2054 = vunpack.c.l.b16 %v1718
  %v2055 = vunpack.c.l.b16 %v1719
  %v2056 = vunpack.c.l.b16 %v1720
  %v2057 = vunpack.c.l.b16 %v1721
  %v2058 = vunpack.c.l.b16 %v1722
  %v2059 = vunpack.c.l.b16 %v1723
  %v2060 = vunpack.c.l.b16 %v1724
  %v2061 = vunpack.c.l.b16 %v1725
  %v2062 = vunpack.c.l.b16 %v1726
  %v2063 = vunpack.c.l.b16 %v1727
  %v2064 = vunpack.c.l.b16 %v1728
  %v2065 = vunpack.c.l.b16 %v1729
  %v2066 = vunpack.c.l.b16 %v1730
  %v2067 = vunpack.c.l.b16 %v1731
  %v2068 = vunpack.c.l.b16 %v1732
  %v2069 = vunpack.c.l.b16 %v1733
  %v2070 = vunpack.c.l.b16 %v1734
  %v2071 = vunpack.c.l.b16 %v1735
  %v2072 = vunpack.c.l.b16 %v1736
  %v2073 = vunpack.c.l.b16 %v1737
  %v2074 = vunpack.c.l.b16 %v1738
  %v2075 = vunpack.c.l.b16 %v1739
  %v2076 = vunpack.c.l.b16 %v1740
  %v2077 = vunpack.c.l.b16 %v1741
  %v2078 = vunpack.c.l.b16 %v1742
  %v2079 = vunpack.c.l.b16 %v1743
  %v2080 = vunpack.c.l.b16 %v1744
  %v2081 = vunpack.c.l.b16 %v1745
  %v2082 = vunpack.c.l.b16 %v1746
  %v2083 = vunpack.c.l.b16 %v1747
  %v2084 = vunpack.c.l.b16 %v1748
  %v2085 = vunpack.c.l.b16 %v1749
  %v2086 = vunpack.c.l.b16 %v1750
  %v2087 = vunpack.c.l.b16 %v1751
  %v2088 = vunpack.c.l.b16 %v1752
  %v2089 = vunpack.c.l.b16 %v1753
  %v2090 = vunpack.c.l.b16 %v1754
  %v2091 = vunpack.c.l.b16 %v1755
  %v2092 = vunpack.c.l.b16 %v1756
  %v2093 = vunpack.c.l.b16 %v1757
  %v2094 = vunpack.c.l.b16 %v1758
  %v2095 = vunpack.c.l.b16 %v1759
  %v2096 = vunpack.c.l.b16 %v1760
  %v2097 = vunpack.c.l.b16 %v1761
  %v2098 = vunpack.c.l.b16 %v1762
  %v2099 = vunpack.c.l.b16 %v1763
  %v2100 = vunpack.c.l.b16 %v1764
  %v2101 = vunpack.c.l.b16 %v1765
  %v2102 = vunpack.c.l.b16 %v1766
  %v2103 = vunpack.c.l.b16 %v1767
  %v2104 = vunpack.c.l.b16 %v1768
  %v2105 = vunpack.c.l.b16 %v1769
  %v2106 = vunpack.c.l.b16 %v1770
  %v2107 = vunpack.c.l.b16 %v1771
  %v2108 = vunpack.c.l.b16 %v1772
  %v2109 = vunpack.c.l.b16 %v1773
  %v2110 = vunpack.c.l.b16 %v1774
  %v2111 = vunpack.c.l.b16 %v1775
  %v2112 = vunpack.c.l.b16 %v1776
  %v2113 = vunpack.c.l.b16 %v1777
  %v2114 = vunpack.c.l.b16 %v1778
  %v2115 = vunpack.c.l.b16 %v1779
  %v2116 = vunpack.c.l.b16 %v1780
  %v2117 = vunpack.c.l.b16 %v1781
  %v2118 = vunpack.c.l.b16 %v1782
  %v2119 = vunpack.c.l.b16 %v1783
  %v2120 = vunpack.c.l.b16 %v1784
  %v2121 = vunpack.c.l.b16 %v1785
  %v2122 = vunpack.c.l.b16 %v1786
  %v2123 = vunpack.c.l.b16 %v1787
  %v2124 = vunpack.c.l.b16 %v1788
  %v2125 = vunpack.c.l.b16 %v1789
  %v2126 = vunpack.c.l.b16 %v1790
  %v2127 = vunpack.c.l.b16 %v1791
  %v2128 = vunpack.c.l.b16 %v1792
  %v2129 = vunpack.c.l.b16 %v1793
  %v2130 = vunpack.c.l.b16 %v1794
  %v2131 = vunpack.c.l.b16 %v1795
  %v2132 = vunpack.c.l.b16 %v1796
  %v2133 = vunpack.c.l.b16 %v1797
  %v2134 = vunpack.c.l.b16 %v1798
  %v2135 = vunpack.c.l.b16 %v1799
  %v2136 = vunpack.c.l.b16 %v1800
  %v2137 = vunpack.c.l.b16 %v1801
  %v2138 = vunpack.c.l.b16 %v1802
  %v2139 = vunpack.c.l.b16 %v1803
  %v2140 = vunpack.c.l.b16 %v1804
  %v2141 = vunpack.c.l.b16 %v1805
  %v2142 = vunpack.c.l.b16 %v1806
  %v2143 = vunpack.c.l.b16 %v1807
  %v2144 = vunpack.c.l.b16 %v1808
  %v2145 = vunpack.c.l.b16 %v1809
  %v2146 = vunpack.c.l.b16 %v1810
  %v2147 = vunpack.c.l.b16 %v1811
  %v2148 = vunpack.c.l.b16 %v1812
  %v2149 = vunpack.c.l.b16 %v1813
  %v2150 = vunpack.c.l.b16 %v1814
  %v2151 = vunpack.c.l.b16 %v1815
  %v2152 = vunpack.c.l.b16 %v1816
  %v2153 = vunpack.c.l.b16 %v1817
  %v2154 = vunpack.c.l.b16 %v1818
  %v2155 = vunpack.c.l.b16 %v1819
  %v2156 = vunpack.c.l.b16 %v1820
  %v2157 = vunpack.c.l.b16 %v1821
  %v2158 = vunpack.c.l.b16 %v1822
  %v2159 = vunpack.c.l.b16 %v1823
  %v2160 = vunpack.c.l.b16 %v1824
  %v2161 = vunpack.c.l.b16 %v1825
  %v2162 = vunpack.c.l.b16 %v1826
  %v2163 = vunpack.c.l.b16 %v1827
  %v2164 = vunpack.c.l.b16 %v1828
  %v2165 = vunpack.c.l.b16 %v1829
  %v2166 = vunpack.c.l.b16 %v1830
  %v2167 = vpack.c.b16 %v2040, %v2039
  %v2168 = vpack.c.b16 %v2042, %v2041
  %v2169 = vpack.c.b16 %v2044, %v2043
  %v2170 = vpack.c.b16 %v2046, %v2045
  %v2171 = vpack.c.b16 %v2048, %v2047
  %v2172 = vpack.c.b16 %v2050, %v2049
  %v2173 = vpack.c.b16 %v2052, %v2051
  %v2174 = vpack.c.b16 %v2054, %v2053
  %v2175 = vpack.c.b16 %v2056, %v2055
  %v2176 = vpack.c.b16 %v2058, %v2057
  %v2177 = vpack.c.b16 %v2060, %v2059
  %v2178 = vpack.c.b16 %v2062, %v2061
  %v2179 = vpack.c.b16 %v2064, %v2063
  %v2180 = vpack.c.b16 %v2066, %v2065
  %v2181 = vpack.c.b16 %v2068, %v2067
  %v2182 = vpack.c.b16 %v2070, %v2069
  %v2183 = vpack.c.b16 %v2072, %v2071
  %v2184 = vpack.c.b16 %v2074, %v2073
  %v2185 = vpack.c.b16 %v2076, %v2075
  %v2186 = vpack.c.b16 %v2078, %v2077
  %v2187 = vpack.c.b16 %v2080, %v2079
  %v2188 = vpack.c.b16 %v2082, %v2081
  %v2189 = vpack.c.b16 %v2084, %v2083
  %v2190 = vpack.c.b16 %v2086, %v2085
  %v2191 = vpack.c.b16 %v2088, %v2087
  %v2192 = vpack.c.b16 %v2090, %v2089
  %v2193 = vpack.c.b16 %v2092, %v2091
  %v2194 = vpack.c.b16 %v2094, %v2093
  %v2195 = vpack.c.b16 %v2096, %v2095
  %v2196 = vpack.c.b16 %v2098, %v2097
  %v2197 = vpack.c.b16 %v2100, %v2099
  %v2198 = vpack.c.b16 %v2102, %v2101
  %v2199 = vpack.c.b16 %v2104, %v2103
  %v2200 = vpack.c.b16 %v2106, %v2105
  %v2201 = vpack.c.b16 %v2108, %v2107
  %v2202 = vpack.c.b16 %v2110, %v2109
  %v2203 = vpack.c.b16 %v2112, %v2111
  %v2204 = vpack.c.b16 %v2114, %v2113
  %v2205 = vpack.c.b16 %v2116, %v2115
  %v2206 = vpack.c.b16 %v2118, %v2117
  %v2207 = vpack.c.b16 %v2120, %v2119
  %v2208 = vpack.c.b16 %v2122, %v2121
  %v2209 = vpack.c.b16 %v2124, %v2123
  %v2210 = vpack.c.b16 %v2126, %v2125
  %v2211 = vpack.c.b16 %v2128, %v2127
  %v2212 = vpack.c.b16 %v2130, %v2129
  %v2213 = vpack.c.b16 %v2132, %v2131
  %v2214 = vpack.c.b16 %v2134, %v2133
  %v2215 = vpack.c.b16 %v2136, %v2135
  %v2216 = vpack.c.b16 %v2138, %v2137
  %v2217 = vpack.c.b16 %v2140, %v2139
  %v2218 = vpack.c.b16 %v2142, %v2141
  %v2219 = vpack.c.b16 %v2144, %v2143
  %v2220 = vpack.c.b16 %v2146, %v2145
  %v2221 = vpack.c.b16 %v2148, %v2147
  %v2222 = vpack.c.b16 %v2150, %v2149
  %v2223 = vpack.c.b16 %v2152, %v2151
  %v2224 = vpack.c.b16 %v2154, %v2153
  %v2225 = vpack.c.b16 %v2156, %v2155
  %v2226 = vpack.c.b16 %v2158, %v2157
  %v2227 = vpack.c.b16 %v2160, %v2159
  %v2228 = vpack.c.b16 %v2162, %v2161
  %v2229 = vpack.c.b16 %v2164, %v2163
  %v2230 = vpack.c.b16 %v2166, %v2165
  %2295 = vmatprep.subr.bf16.mxu0 0
  %2296 = vmatpush1.bf16.msra.mxu0 %v2167
  %2297 = vmatprep.subr.bf16.mxu0 0
  %2298 = vmatpush1.bf16.msra.mxu0 %v2168
  %2299 = vmatprep.subr.bf16.mxu0 0
  %2300 = vmatpush1.bf16.msra.mxu0 %v2169
  %2301 = vmatprep.subr.bf16.mxu0 0
  %2302 = vmatpush1.bf16.msra.mxu0 %v2170
  %2303 = vmatprep.subr.bf16.mxu0 0
  %2304 = vmatpush1.bf16.msra.mxu0 %v2171
  %2305 = vmatprep.subr.bf16.mxu0 0
  %2306 = vmatpush1.bf16.msra.mxu0 %v2172
  %2307 = vmatprep.subr.bf16.mxu0 0
  %2308 = vmatpush1.bf16.msra.mxu0 %v2173
  %2309 = vmatprep.subr.bf16.mxu0 0
  %2310 = vmatpush1.bf16.msra.mxu0 %v2174
  %2311 = vmatprep.subr.bf16.mxu0 0
  %2312 = vmatpush1.bf16.msra.mxu0 %v2175
  %2313 = vmatprep.subr.bf16.mxu0 0
  %2314 = vmatpush1.bf16.msra.mxu0 %v2176
  %2315 = vmatprep.subr.bf16.mxu0 0
  %2316 = vmatpush1.bf16.msra.mxu0 %v2177
  %2317 = vmatprep.subr.bf16.mxu0 0
  %2318 = vmatpush1.bf16.msra.mxu0 %v2178
  %2319 = vmatprep.subr.bf16.mxu0 0
  %2320 = vmatpush1.bf16.msra.mxu0 %v2179
  %2321 = vmatprep.subr.bf16.mxu0 0
  %2322 = vmatpush1.bf16.msra.mxu0 %v2180
  %2323 = vmatprep.subr.bf16.mxu0 0
  %2324 = vmatpush1.bf16.msra.mxu0 %v2181
  %2325 = vmatprep.subr.bf16.mxu0 0
  %2326 = vmatpush1.bf16.msra.mxu0 %v2182
  %2327 = vmatprep.mubr.bf16.mxu0 %v1880
  %2328 = vmatmul.mubr.bf16.gmra.mrb[0].mxu0 %v1879
  %v2329 = vpop.f32.mrb[0].mxu0
  %v2330 = vadd.f32 0.0, %v2329
  %v2331 = vpop.f32.mrb[0].mxu0
  %v2332 = vpop.f32.mrb[0].mxu0
  %v2333 = vadd.f32 0.0, %v2332
  %v2334 = vpop.f32.mrb[0].mxu0
  %2335 = vmatprep.mubr.bf16.mxu0 %v1888
  %2336 = vmatmul.mubr.bf16.gmra.mrb[0].mxu0 %v1887
  %v2337 = vpop.f32.mrb[0].mxu0
  %v2338 = vadd.f32 0.0, %v2337
  %v2339 = vpop.f32.mrb[0].mxu0
  %v2340 = vpop.f32.mrb[0].mxu0
  %v2341 = vadd.f32 0.0, %v2340
  %v2342 = vpop.f32.mrb[0].mxu0
  %2343 = vdwg.mxu0
  %2344 = vmatprep.subr.bf16.mxu0 0
  %2345 = vmatpush1.bf16.msra.mxu0 %v2183
  %2346 = vmatprep.subr.bf16.mxu0 0
  %2347 = vmatpush1.bf16.msra.mxu0 %v2184
  %2348 = vmatprep.subr.bf16.mxu0 0
  %2349 = vmatpush1.bf16.msra.mxu0 %v2185
  %2350 = vmatprep.subr.bf16.mxu0 0
  %2351 = vmatpush1.bf16.msra.mxu0 %v2186
  %2352 = vmatprep.subr.bf16.mxu0 0
  %2353 = vmatpush1.bf16.msra.mxu0 %v2187
  %2354 = vmatprep.subr.bf16.mxu0 0
  %2355 = vmatpush1.bf16.msra.mxu0 %v2188
  %2356 = vmatprep.subr.bf16.mxu0 0
  %2357 = vmatpush1.bf16.msra.mxu0 %v2189
  %2358 = vmatprep.subr.bf16.mxu0 0
  %2359 = vmatpush1.bf16.msra.mxu0 %v2190
  %2360 = vmatprep.subr.bf16.mxu0 0
  %2361 = vmatpush1.bf16.msra.mxu0 %v2191
  %2362 = vmatprep.subr.bf16.mxu0 0
  %2363 = vmatpush1.bf16.msra.mxu0 %v2192
  %2364 = vmatprep.subr.bf16.mxu0 0
  %2365 = vmatpush1.bf16.msra.mxu0 %v2193
  %2366 = vmatprep.subr.bf16.mxu0 0
  %2367 = vmatpush1.bf16.msra.mxu0 %v2194
  %2368 = vmatprep.subr.bf16.mxu0 0
  %2369 = vmatpush1.bf16.msra.mxu0 %v2195
  %2370 = vmatprep.subr.bf16.mxu0 0
  %2371 = vmatpush1.bf16.msra.mxu0 %v2196
  %2372 = vmatprep.subr.bf16.mxu0 0
  %2373 = vmatpush1.bf16.msra.mxu0 %v2197
  %2374 = vmatprep.subr.bf16.mxu0 0
  %2375 = vmatpush1.bf16.msra.mxu0 %v2198
  %2376 = vmatprep.mubr.bf16.mxu0 %v1882
  %2377 = vmatmul.mubr.bf16.gmra.mrb[0].mxu0 %v1881
  %v2378 = vpop.f32.mrb[0].mxu0
  %v2379 = vadd.f32 %v2330, %v2378
  %v2380 = vpop.f32.mrb[0].mxu0
  %v2381 = vpop.f32.mrb[0].mxu0
  %v2382 = vadd.f32 %v2333, %v2381
  %v2383 = vpop.f32.mrb[0].mxu0
  %2384 = vmatprep.mubr.bf16.mxu0 %v1890
  %2385 = vmatmul.mubr.bf16.gmra.mrb[0].mxu0 %v1889
  %v2386 = vpop.f32.mrb[0].mxu0
  %v2387 = vadd.f32 %v2338, %v2386
  %v2388 = vpop.f32.mrb[0].mxu0
  %v2389 = vpop.f32.mrb[0].mxu0
  %v2390 = vadd.f32 %v2341, %v2389
  %v2391 = vpop.f32.mrb[0].mxu0
  %2392 = vdwg.mxu0
  %2393 = vmatprep.subr.bf16.mxu0 0
  %2394 = vmatpush1.bf16.msra.mxu0 %v2199
  %2395 = vmatprep.subr.bf16.mxu0 0
  %2396 = vmatpush1.bf16.msra.mxu0 %v2200
  %2397 = vmatprep.subr.bf16.mxu0 0
  %2398 = vmatpush1.bf16.msra.mxu0 %v2201
  %2399 = vmatprep.subr.bf16.mxu0 0
  %2400 = vmatpush1.bf16.msra.mxu0 %v2202
  %2401 = vmatprep.subr.bf16.mxu0 0
  %2402 = vmatpush1.bf16.msra.mxu0 %v2203
  %2403 = vmatprep.subr.bf16.mxu0 0
  %2404 = vmatpush1.bf16.msra.mxu0 %v2204
  %2405 = vmatprep.subr.bf16.mxu0 0
  %2406 = vmatpush1.bf16.msra.mxu0 %v2205
  %2407 = vmatprep.subr.bf16.mxu0 0
  %2408 = vmatpush1.bf16.msra.mxu0 %v2206
  %2409 = vmatprep.subr.bf16.mxu0 0
  %2410 = vmatpush1.bf16.msra.mxu0 %v2207
  %2411 = vmatprep.subr.bf16.mxu0 0
  %2412 = vmatpush1.bf16.msra.mxu0 %v2208
  %2413 = vmatprep.subr.bf16.mxu0 0
  %2414 = vmatpush1.bf16.msra.mxu0 %v2209
  %2415 = vmatprep.subr.bf16.mxu0 0
  %2416 = vmatpush1.bf16.msra.mxu0 %v2210
  %2417 = vmatprep.subr.bf16.mxu0 0
  %2418 = vmatpush1.bf16.msra.mxu0 %v2211
  %2419 = vmatprep.subr.bf16.mxu0 0
  %2420 = vmatpush1.bf16.msra.mxu0 %v2212
  %2421 = vmatprep.subr.bf16.mxu0 0
  %2422 = vmatpush1.bf16.msra.mxu0 %v2213
  %2423 = vmatprep.subr.bf16.mxu0 0
  %2424 = vmatpush1.bf16.msra.mxu0 %v2214
  %2425 = vmatprep.mubr.bf16.mxu0 %v1884
  %2426 = vmatmul.mubr.bf16.gmra.mrb[0].mxu0 %v1883
  %v2427 = vpop.f32.mrb[0].mxu0
  %v2428 = vadd.f32 %v2379, %v2427
  %v2429 = vpop.f32.mrb[0].mxu0
  %v2430 = vpop.f32.mrb[0].mxu0
  %v2431 = vadd.f32 %v2382, %v2430
  %v2432 = vpop.f32.mrb[0].mxu0
  %2433 = vmatprep.mubr.bf16.mxu0 %v1892
  %2434 = vmatmul.mubr.bf16.gmra.mrb[0].mxu0 %v1891
  %v2435 = vpop.f32.mrb[0].mxu0
  %v2436 = vadd.f32 %v2387, %v2435
  %v2437 = vpop.f32.mrb[0].mxu0
  %v2438 = vpop.f32.mrb[0].mxu0
  %v2439 = vadd.f32 %v2390, %v2438
  %v2440 = vpop.f32.mrb[0].mxu0
  %2441 = vdwg.mxu0
  %2442 = vmatprep.subr.bf16.mxu0 0
  %2443 = vmatpush1.bf16.msra.mxu0 %v2215
  %2444 = vmatprep.subr.bf16.mxu0 0
  %2445 = vmatpush1.bf16.msra.mxu0 %v2216
  %2446 = vmatprep.subr.bf16.mxu0 0
  %2447 = vmatpush1.bf16.msra.mxu0 %v2217
  %2448 = vmatprep.subr.bf16.mxu0 0
  %2449 = vmatpush1.bf16.msra.mxu0 %v2218
  %2450 = vmatprep.subr.bf16.mxu0 0
  %2451 = vmatpush1.bf16.msra.mxu0 %v2219
  %2452 = vmatprep.subr.bf16.mxu0 0
  %2453 = vmatpush1.bf16.msra.mxu0 %v2220
  %2454 = vmatprep.subr.bf16.mxu0 0
  %2455 = vmatpush1.bf16.msra.mxu0 %v2221
  %2456 = vmatprep.subr.bf16.mxu0 0
  %2457 = vmatpush1.bf16.msra.mxu0 %v2222
  %2458 = vmatprep.subr.bf16.mxu0 0
  %2459 = vmatpush1.bf16.msra.mxu0 %v2223
  %2460 = vmatprep.subr.bf16.mxu0 0
  %2461 = vmatpush1.bf16.msra.mxu0 %v2224
  %2462 = vmatprep.subr.bf16.mxu0 0
  %2463 = vmatpush1.bf16.msra.mxu0 %v2225
  %2464 = vmatprep.subr.bf16.mxu0 0
  %2465 = vmatpush1.bf16.msra.mxu0 %v2226
  %2466 = vmatprep.subr.bf16.mxu0 0
  %2467 = vmatpush1.bf16.msra.mxu0 %v2227
  %2468 = vmatprep.subr.bf16.mxu0 0
  %2469 = vmatpush1.bf16.msra.mxu0 %v2228
  %2470 = vmatprep.subr.bf16.mxu0 0
  %2471 = vmatpush1.bf16.msra.mxu0 %v2229
  %2472 = vmatprep.subr.bf16.mxu0 0
  %2473 = vmatpush1.bf16.msra.mxu0 %v2230
  %2474 = vmatprep.mubr.bf16.mxu0 %v1886
  %2475 = vmatmul.mubr.bf16.gmra.mrb[0].mxu0 %v1885
  %v2476 = vpop.f32.mrb[0].mxu0
  %v2477 = vadd.f32 %v2428, %v2476
  %v2478 = vpop.f32.mrb[0].mxu0
  %v2479 = vpop.f32.mrb[0].mxu0
  %v2480 = vadd.f32 %v2431, %v2479
  %v2481 = vpop.f32.mrb[0].mxu0
  %2482 = vmatprep.mubr.bf16.mxu0 %v1894
  %2483 = vmatmul.mubr.bf16.gmra.mrb[0].mxu0 %v1893
  %v2484 = vpop.f32.mrb[0].mxu0
  %v2485 = vadd.f32 %v2436, %v2484
  %v2486 = vpop.f32.mrb[0].mxu0
  %v2487 = vpop.f32.mrb[0].mxu0
  %v2488 = vadd.f32 %v2439, %v2487
  %v2489 = vpop.f32.mrb[0].mxu0
  %2490 = vdwg.mxu0
  %v2491 = vadd.f32 %v2477, %v2480
  %v2492 = vadd.f32 %v2491, %v2485
  %v2493 = vadd.f32 %v2492, %v2488
  %v2494 = vrot.slane %v2493, 4
  %v2495 = vadd.f32 %v2493, %v2494
  %v2496 = vrot.slane %v2495, 2
  %v2497 = vadd.f32 %v2495, %v2496
  %v2498 = vrot.slane %v2497, 1
  %v2499 = vadd.f32 %v2497, %v2498
  %v2500 = vadd.f32 %v1665, %v2499
  %v2501 = vmul.f32 %v2477, %v2477
  %v2502 = vmul.f32 %v2480, %v2480
  %v2503 = vmul.f32 %v2485, %v2485
  %v2504 = vmul.f32 %v2488, %v2488
  %v2505 = vadd.f32 %v2501, %v2502
  %v2506 = vadd.f32 %v2505, %v2503
  %v2507 = vadd.f32 %v2506, %v2504
  %v2508 = vrot.slane %v2507, 4
  %v2509 = vadd.f32 %v2507, %v2508
  %v2510 = vrot.slane %v2509, 2
  %v2511 = vadd.f32 %v2509, %v2510
  %v2512 = vrot.slane %v2511, 1
  %v2513 = vadd.f32 %v2511, %v2512
  %v2514 = vadd.f32 %v1679, %v2513
  %s2515 = scalar_lea.vmem %s4, 64
  %2516 = vst [vmem:[%s2515] sm:$0xff] %v2477
  %2517 = vst [vmem:[%s2515 + $0x8] sm:$0xff] %v2480
  %2518 = vst [vmem:[%s2515 + $0x10] sm:$0xff] %v2485
  %2519 = vst [vmem:[%s2515 + $0x18] sm:$0xff] %v2488
  %s2520 = scalar_lea.vmem %s0, 384
  %v2521 = vld [vmem:[%s2520] sm:$0xff]
  %v2522 = vld [vmem:[%s2520 + $0x8] sm:$0xff]
  %v2523 = vld [vmem:[%s2520 + $0x10] sm:$0xff]
  %v2524 = vld [vmem:[%s2520 + $0x18] sm:$0xff]
  %v2525 = vld [vmem:[%s2520 + $0x20] sm:$0xff]
  %v2526 = vld [vmem:[%s2520 + $0x28] sm:$0xff]
  %v2527 = vld [vmem:[%s2520 + $0x30] sm:$0xff]
  %v2528 = vld [vmem:[%s2520 + $0x38] sm:$0xff]
  %v2529 = vld [vmem:[%s2520 + $0x40] sm:$0xff]
  %v2530 = vld [vmem:[%s2520 + $0x48] sm:$0xff]
  %v2531 = vld [vmem:[%s2520 + $0x50] sm:$0xff]
  %v2532 = vld [vmem:[%s2520 + $0x58] sm:$0xff]
  %v2533 = vld [vmem:[%s2520 + $0x60] sm:$0xff]
  %v2534 = vld [vmem:[%s2520 + $0x68] sm:$0xff]
  %v2535 = vld [vmem:[%s2520 + $0x70] sm:$0xff]
  %v2536 = vld [vmem:[%s2520 + $0x78] sm:$0xff]
  %s2537 = scalar_lea.vmem %s1, 1536
  %v2538 = vld [vmem:[%s2537] sm:$0xf]
  %v2539 = vld [vmem:[%s2537 + $0x4] sm:$0xf]
  %v2540 = vld [vmem:[%s2537 + $0x8] sm:$0xf]
  %v2541 = vld [vmem:[%s2537 + $0xc] sm:$0xf]
  %v2542 = vld [vmem:[%s2537 + $0x10] sm:$0xf]
  %v2543 = vld [vmem:[%s2537 + $0x14] sm:$0xf]
  %v2544 = vld [vmem:[%s2537 + $0x18] sm:$0xf]
  %v2545 = vld [vmem:[%s2537 + $0x1c] sm:$0xf]
  %v2546 = vld [vmem:[%s2537 + $0x20] sm:$0xf]
  %v2547 = vld [vmem:[%s2537 + $0x24] sm:$0xf]
  %v2548 = vld [vmem:[%s2537 + $0x28] sm:$0xf]
  %v2549 = vld [vmem:[%s2537 + $0x2c] sm:$0xf]
  %v2550 = vld [vmem:[%s2537 + $0x30] sm:$0xf]
  %v2551 = vld [vmem:[%s2537 + $0x34] sm:$0xf]
  %v2552 = vld [vmem:[%s2537 + $0x38] sm:$0xf]
  %v2553 = vld [vmem:[%s2537 + $0x3c] sm:$0xf]
  %v2554 = vld [vmem:[%s2537 + $0x40] sm:$0xf]
  %v2555 = vld [vmem:[%s2537 + $0x44] sm:$0xf]
  %v2556 = vld [vmem:[%s2537 + $0x48] sm:$0xf]
  %v2557 = vld [vmem:[%s2537 + $0x4c] sm:$0xf]
  %v2558 = vld [vmem:[%s2537 + $0x50] sm:$0xf]
  %v2559 = vld [vmem:[%s2537 + $0x54] sm:$0xf]
  %v2560 = vld [vmem:[%s2537 + $0x58] sm:$0xf]
  %v2561 = vld [vmem:[%s2537 + $0x5c] sm:$0xf]
  %v2562 = vld [vmem:[%s2537 + $0x60] sm:$0xf]
  %v2563 = vld [vmem:[%s2537 + $0x64] sm:$0xf]
  %v2564 = vld [vmem:[%s2537 + $0x68] sm:$0xf]
  %v2565 = vld [vmem:[%s2537 + $0x6c] sm:$0xf]
  %v2566 = vld [vmem:[%s2537 + $0x70] sm:$0xf]
  %v2567 = vld [vmem:[%s2537 + $0x74] sm:$0xf]
  %v2568 = vld [vmem:[%s2537 + $0x78] sm:$0xf]
  %v2569 = vld [vmem:[%s2537 + $0x7c] sm:$0xf]
  %v2570 = vld [vmem:[%s2537 + $0x80] sm:$0xf]
  %v2571 = vld [vmem:[%s2537 + $0x84] sm:$0xf]
  %v2572 = vld [vmem:[%s2537 + $0x88] sm:$0xf]
  %v2573 = vld [vmem:[%s2537 + $0x8c] sm:$0xf]
  %v2574 = vld [vmem:[%s2537 + $0x90] sm:$0xf]
  %v2575 = vld [vmem:[%s2537 + $0x94] sm:$0xf]
  %v2576 = vld [vmem:[%s2537 + $0x98] sm:$0xf]
  %v2577 = vld [vmem:[%s2537 + $0x9c] sm:$0xf]
  %v2578 = vld [vmem:[%s2537 + $0xa0] sm:$0xf]
  %v2579 = vld [vmem:[%s2537 + $0xa4] sm:$0xf]
  %v2580 = vld [vmem:[%s2537 + $0xa8] sm:$0xf]
  %v2581 = vld [vmem:[%s2537 + $0xac] sm:$0xf]
  %v2582 = vld [vmem:[%s2537 + $0xb0] sm:$0xf]
  %v2583 = vld [vmem:[%s2537 + $0xb4] sm:$0xf]
  %v2584 = vld [vmem:[%s2537 + $0xb8] sm:$0xf]
  %v2585 = vld [vmem:[%s2537 + $0xbc] sm:$0xf]
  %v2586 = vld [vmem:[%s2537 + $0xc0] sm:$0xf]
  %v2587 = vld [vmem:[%s2537 + $0xc4] sm:$0xf]
  %v2588 = vld [vmem:[%s2537 + $0xc8] sm:$0xf]
  %v2589 = vld [vmem:[%s2537 + $0xcc] sm:$0xf]
  %v2590 = vld [vmem:[%s2537 + $0xd0] sm:$0xf]
  %v2591 = vld [vmem:[%s2537 + $0xd4] sm:$0xf]
  %v2592 = vld [vmem:[%s2537 + $0xd8] sm:$0xf]
  %v2593 = vld [vmem:[%s2537 + $0xdc] sm:$0xf]
  %v2594 = vld [vmem:[%s2537 + $0xe0] sm:$0xf]
  %v2595 = vld [vmem:[%s2537 + $0xe4] sm:$0xf]
  %v2596 = vld [vmem:[%s2537 + $0xe8] sm:$0xf]
  %v2597 = vld [vmem:[%s2537 + $0xec] sm:$0xf]
  %v2598 = vld [vmem:[%s2537 + $0xf0] sm:$0xf]
  %v2599 = vld [vmem:[%s2537 + $0xf4] sm:$0xf]
  %v2600 = vld [vmem:[%s2537 + $0xf8] sm:$0xf]
  %v2601 = vld [vmem:[%s2537 + $0xfc] sm:$0xf]
  %v2602 = vld [vmem:[%s2537 + $0x100] sm:$0xf]
  %v2603 = vld [vmem:[%s2537 + $0x104] sm:$0xf]
  %v2604 = vld [vmem:[%s2537 + $0x108] sm:$0xf]
  %v2605 = vld [vmem:[%s2537 + $0x10c] sm:$0xf]
  %v2606 = vld [vmem:[%s2537 + $0x110] sm:$0xf]
  %v2607 = vld [vmem:[%s2537 + $0x114] sm:$0xf]
  %v2608 = vld [vmem:[%s2537 + $0x118] sm:$0xf]
  %v2609 = vld [vmem:[%s2537 + $0x11c] sm:$0xf]
  %v2610 = vld [vmem:[%s2537 + $0x120] sm:$0xf]
  %v2611 = vld [vmem:[%s2537 + $0x124] sm:$0xf]
  %v2612 = vld [vmem:[%s2537 + $0x128] sm:$0xf]
  %v2613 = vld [vmem:[%s2537 + $0x12c] sm:$0xf]
  %v2614 = vld [vmem:[%s2537 + $0x130] sm:$0xf]
  %v2615 = vld [vmem:[%s2537 + $0x134] sm:$0xf]
  %v2616 = vld [vmem:[%s2537 + $0x138] sm:$0xf]
  %v2617 = vld [vmem:[%s2537 + $0x13c] sm:$0xf]
  %v2618 = vld [vmem:[%s2537 + $0x140] sm:$0xf]
  %v2619 = vld [vmem:[%s2537 + $0x144] sm:$0xf]
  %v2620 = vld [vmem:[%s2537 + $0x148] sm:$0xf]
  %v2621 = vld [vmem:[%s2537 + $0x14c] sm:$0xf]
  %v2622 = vld [vmem:[%s2537 + $0x150] sm:$0xf]
  %v2623 = vld [vmem:[%s2537 + $0x154] sm:$0xf]
  %v2624 = vld [vmem:[%s2537 + $0x158] sm:$0xf]
  %v2625 = vld [vmem:[%s2537 + $0x15c] sm:$0xf]
  %v2626 = vld [vmem:[%s2537 + $0x160] sm:$0xf]
  %v2627 = vld [vmem:[%s2537 + $0x164] sm:$0xf]
  %v2628 = vld [vmem:[%s2537 + $0x168] sm:$0xf]
  %v2629 = vld [vmem:[%s2537 + $0x16c] sm:$0xf]
  %v2630 = vld [vmem:[%s2537 + $0x170] sm:$0xf]
  %v2631 = vld [vmem:[%s2537 + $0x174] sm:$0xf]
  %v2632 = vld [vmem:[%s2537 + $0x178] sm:$0xf]
  %v2633 = vld [vmem:[%s2537 + $0x17c] sm:$0xf]
  %v2634 = vld [vmem:[%s2537 + $0x180] sm:$0xf]
  %v2635 = vld [vmem:[%s2537 + $0x184] sm:$0xf]
  %v2636 = vld [vmem:[%s2537 + $0x188] sm:$0xf]
  %v2637 = vld [vmem:[%s2537 + $0x18c] sm:$0xf]
  %v2638 = vld [vmem:[%s2537 + $0x190] sm:$0xf]
  %v2639 = vld [vmem:[%s2537 + $0x194] sm:$0xf]
  %v2640 = vld [vmem:[%s2537 + $0x198] sm:$0xf]
  %v2641 = vld [vmem:[%s2537 + $0x19c] sm:$0xf]
  %v2642 = vld [vmem:[%s2537 + $0x1a0] sm:$0xf]
  %v2643 = vld [vmem:[%s2537 + $0x1a4] sm:$0xf]
  %v2644 = vld [vmem:[%s2537 + $0x1a8] sm:$0xf]
  %v2645 = vld [vmem:[%s2537 + $0x1ac] sm:$0xf]
  %v2646 = vld [vmem:[%s2537 + $0x1b0] sm:$0xf]
  %v2647 = vld [vmem:[%s2537 + $0x1b4] sm:$0xf]
  %v2648 = vld [vmem:[%s2537 + $0x1b8] sm:$0xf]
  %v2649 = vld [vmem:[%s2537 + $0x1bc] sm:$0xf]
  %v2650 = vld [vmem:[%s2537 + $0x1c0] sm:$0xf]
  %v2651 = vld [vmem:[%s2537 + $0x1c4] sm:$0xf]
  %v2652 = vld [vmem:[%s2537 + $0x1c8] sm:$0xf]
  %v2653 = vld [vmem:[%s2537 + $0x1cc] sm:$0xf]
  %v2654 = vld [vmem:[%s2537 + $0x1d0] sm:$0xf]
  %v2655 = vld [vmem:[%s2537 + $0x1d4] sm:$0xf]
  %v2656 = vld [vmem:[%s2537 + $0x1d8] sm:$0xf]
  %v2657 = vld [vmem:[%s2537 + $0x1dc] sm:$0xf]
  %v2658 = vld [vmem:[%s2537 + $0x1e0] sm:$0xf]
  %v2659 = vld [vmem:[%s2537 + $0x1e4] sm:$0xf]
  %v2660 = vld [vmem:[%s2537 + $0x1e8] sm:$0xf]
  %v2661 = vld [vmem:[%s2537 + $0x1ec] sm:$0xf]
  %v2662 = vld [vmem:[%s2537 + $0x1f0] sm:$0xf]
  %v2663 = vld [vmem:[%s2537 + $0x1f4] sm:$0xf]
  %v2664 = vld [vmem:[%s2537 + $0x1f8] sm:$0xf]
  %v2665 = vld [vmem:[%s2537 + $0x1fc] sm:$0xf]
  %v2682 = vunpack.c.l.b16 %v2521
  %v2683 = vunpack.c.h.b16 %v2521
  %v2684 = vunpack.c.l.b16 %v2522
  %v2685 = vunpack.c.h.b16 %v2522
  %v2686 = vunpack.c.l.b16 %v2523
  %v2687 = vunpack.c.h.b16 %v2523
  %v2688 = vunpack.c.l.b16 %v2524
  %v2689 = vunpack.c.h.b16 %v2524
  %v2690 = vunpack.c.l.b16 %v2525
  %v2691 = vunpack.c.h.b16 %v2525
  %v2692 = vunpack.c.l.b16 %v2526
  %v2693 = vunpack.c.h.b16 %v2526
  %v2694 = vunpack.c.l.b16 %v2527
  %v2695 = vunpack.c.h.b16 %v2527
  %v2696 = vunpack.c.l.b16 %v2528
  %v2697 = vunpack.c.h.b16 %v2528
  %v2698 = vunpack.c.l.b16 %v2529
  %v2699 = vunpack.c.h.b16 %v2529
  %v2700 = vunpack.c.l.b16 %v2530
  %v2701 = vunpack.c.h.b16 %v2530
  %v2702 = vunpack.c.l.b16 %v2531
  %v2703 = vunpack.c.h.b16 %v2531
  %v2704 = vunpack.c.l.b16 %v2532
  %v2705 = vunpack.c.h.b16 %v2532
  %v2706 = vunpack.c.l.b16 %v2533
  %v2707 = vunpack.c.h.b16 %v2533
  %v2708 = vunpack.c.l.b16 %v2534
  %v2709 = vunpack.c.h.b16 %v2534
  %v2710 = vunpack.c.l.b16 %v2535
  %v2711 = vunpack.c.h.b16 %v2535
  %v2712 = vunpack.c.l.b16 %v2536
  %v2713 = vunpack.c.h.b16 %v2536
  %v2714 = vpack.c.b16 %v2690, %v2682
  %v2715 = vpack.c.b16 %v2691, %v2683
  %v2716 = vpack.c.b16 %v2692, %v2684
  %v2717 = vpack.c.b16 %v2693, %v2685
  %v2718 = vpack.c.b16 %v2694, %v2686
  %v2719 = vpack.c.b16 %v2695, %v2687
  %v2720 = vpack.c.b16 %v2696, %v2688
  %v2721 = vpack.c.b16 %v2697, %v2689
  %v2722 = vpack.c.b16 %v2706, %v2698
  %v2723 = vpack.c.b16 %v2707, %v2699
  %v2724 = vpack.c.b16 %v2708, %v2700
  %v2725 = vpack.c.b16 %v2709, %v2701
  %v2726 = vpack.c.b16 %v2710, %v2702
  %v2727 = vpack.c.b16 %v2711, %v2703
  %v2728 = vpack.c.b16 %v2712, %v2704
  %v2729 = vpack.c.b16 %v2713, %v2705
  %v2874 = vunpack.c.l.b16 %v2538
  %v2875 = vunpack.c.l.b16 %v2539
  %v2876 = vunpack.c.l.b16 %v2540
  %v2877 = vunpack.c.l.b16 %v2541
  %v2878 = vunpack.c.l.b16 %v2542
  %v2879 = vunpack.c.l.b16 %v2543
  %v2880 = vunpack.c.l.b16 %v2544
  %v2881 = vunpack.c.l.b16 %v2545
  %v2882 = vunpack.c.l.b16 %v2546
  %v2883 = vunpack.c.l.b16 %v2547
  %v2884 = vunpack.c.l.b16 %v2548
  %v2885 = vunpack.c.l.b16 %v2549
  %v2886 = vunpack.c.l.b16 %v2550
  %v2887 = vunpack.c.l.b16 %v2551
  %v2888 = vunpack.c.l.b16 %v2552
  %v2889 = vunpack.c.l.b16 %v2553
  %v2890 = vunpack.c.l.b16 %v2554
  %v2891 = vunpack.c.l.b16 %v2555
  %v2892 = vunpack.c.l.b16 %v2556
  %v2893 = vunpack.c.l.b16 %v2557
  %v2894 = vunpack.c.l.b16 %v2558
  %v2895 = vunpack.c.l.b16 %v2559
  %v2896 = vunpack.c.l.b16 %v2560
  %v2897 = vunpack.c.l.b16 %v2561
  %v2898 = vunpack.c.l.b16 %v2562
  %v2899 = vunpack.c.l.b16 %v2563
  %v2900 = vunpack.c.l.b16 %v2564
  %v2901 = vunpack.c.l.b16 %v2565
  %v2902 = vunpack.c.l.b16 %v2566
  %v2903 = vunpack.c.l.b16 %v2567
  %v2904 = vunpack.c.l.b16 %v2568
  %v2905 = vunpack.c.l.b16 %v2569
  %v2906 = vunpack.c.l.b16 %v2570
  %v2907 = vunpack.c.l.b16 %v2571
  %v2908 = vunpack.c.l.b16 %v2572
  %v2909 = vunpack.c.l.b16 %v2573
  %v2910 = vunpack.c.l.b16 %v2574
  %v2911 = vunpack.c.l.b16 %v2575
  %v2912 = vunpack.c.l.b16 %v2576
  %v2913 = vunpack.c.l.b16 %v2577
  %v2914 = vunpack.c.l.b16 %v2578
  %v2915 = vunpack.c.l.b16 %v2579
  %v2916 = vunpack.c.l.b16 %v2580
  %v2917 = vunpack.c.l.b16 %v2581
  %v2918 = vunpack.c.l.b16 %v2582
  %v2919 = vunpack.c.l.b16 %v2583
  %v2920 = vunpack.c.l.b16 %v2584
  %v2921 = vunpack.c.l.b16 %v2585
  %v2922 = vunpack.c.l.b16 %v2586
  %v2923 = vunpack.c.l.b16 %v2587
  %v2924 = vunpack.c.l.b16 %v2588
  %v2925 = vunpack.c.l.b16 %v2589
  %v2926 = vunpack.c.l.b16 %v2590
  %v2927 = vunpack.c.l.b16 %v2591
  %v2928 = vunpack.c.l.b16 %v2592
  %v2929 = vunpack.c.l.b16 %v2593
  %v2930 = vunpack.c.l.b16 %v2594
  %v2931 = vunpack.c.l.b16 %v2595
  %v2932 = vunpack.c.l.b16 %v2596
  %v2933 = vunpack.c.l.b16 %v2597
  %v2934 = vunpack.c.l.b16 %v2598
  %v2935 = vunpack.c.l.b16 %v2599
  %v2936 = vunpack.c.l.b16 %v2600
  %v2937 = vunpack.c.l.b16 %v2601
  %v2938 = vunpack.c.l.b16 %v2602
  %v2939 = vunpack.c.l.b16 %v2603
  %v2940 = vunpack.c.l.b16 %v2604
  %v2941 = vunpack.c.l.b16 %v2605
  %v2942 = vunpack.c.l.b16 %v2606
  %v2943 = vunpack.c.l.b16 %v2607
  %v2944 = vunpack.c.l.b16 %v2608
  %v2945 = vunpack.c.l.b16 %v2609
  %v2946 = vunpack.c.l.b16 %v2610
  %v2947 = vunpack.c.l.b16 %v2611
  %v2948 = vunpack.c.l.b16 %v2612
  %v2949 = vunpack.c.l.b16 %v2613
  %v2950 = vunpack.c.l.b16 %v2614
  %v2951 = vunpack.c.l.b16 %v2615
  %v2952 = vunpack.c.l.b16 %v2616
  %v2953 = vunpack.c.l.b16 %v2617
  %v2954 = vunpack.c.l.b16 %v2618
  %v2955 = vunpack.c.l.b16 %v2619
  %v2956 = vunpack.c.l.b16 %v2620
  %v2957 = vunpack.c.l.b16 %v2621
  %v2958 = vunpack.c.l.b16 %v2622
  %v2959 = vunpack.c.l.b16 %v2623
  %v2960 = vunpack.c.l.b16 %v2624
  %v2961 = vunpack.c.l.b16 %v2625
  %v2962 = vunpack.c.l.b16 %v2626
  %v2963 = vunpack.c.l.b16 %v2627
  %v2964 = vunpack.c.l.b16 %v2628
  %v2965 = vunpack.c.l.b16 %v2629
  %v2966 = vunpack.c.l.b16 %v2630
  %v2967 = vunpack.c.l.b16 %v2631
  %v2968 = vunpack.c.l.b16 %v2632
  %v2969 = vunpack.c.l.b16 %v2633
  %v2970 = vunpack.c.l.b16 %v2634
  %v2971 = vunpack.c.l.b16 %v2635
  %v2972 = vunpack.c.l.b16 %v2636
  %v2973 = vunpack.c.l.b16 %v2637
  %v2974 = vunpack.c.l.b16 %v2638
  %v2975 = vunpack.c.l.b16 %v2639
  %v2976 = vunpack.c.l.b16 %v2640
  %v2977 = vunpack.c.l.b16 %v2641
  %v2978 = vunpack.c.l.b16 %v2642
  %v2979 = vunpack.c.l.b16 %v2643
  %v2980 = vunpack.c.l.b16 %v2644
  %v2981 = vunpack.c.l.b16 %v2645
  %v2982 = vunpack.c.l.b16 %v2646
  %v2983 = vunpack.c.l.b16 %v2647
  %v2984 = vunpack.c.l.b16 %v2648
  %v2985 = vunpack.c.l.b16 %v2649
  %v2986 = vunpack.c.l.b16 %v2650
  %v2987 = vunpack.c.l.b16 %v2651
  %v2988 = vunpack.c.l.b16 %v2652
  %v2989 = vunpack.c.l.b16 %v2653
  %v2990 = vunpack.c.l.b16 %v2654
  %v2991 = vunpack.c.l.b16 %v2655
  %v2992 = vunpack.c.l.b16 %v2656
  %v2993 = vunpack.c.l.b16 %v2657
  %v2994 = vunpack.c.l.b16 %v2658
  %v2995 = vunpack.c.l.b16 %v2659
  %v2996 = vunpack.c.l.b16 %v2660
  %v2997 = vunpack.c.l.b16 %v2661
  %v2998 = vunpack.c.l.b16 %v2662
  %v2999 = vunpack.c.l.b16 %v2663
  %v3000 = vunpack.c.l.b16 %v2664
  %v3001 = vunpack.c.l.b16 %v2665
  %v3002 = vpack.c.b16 %v2875, %v2874
  %v3003 = vpack.c.b16 %v2877, %v2876
  %v3004 = vpack.c.b16 %v2879, %v2878
  %v3005 = vpack.c.b16 %v2881, %v2880
  %v3006 = vpack.c.b16 %v2883, %v2882
  %v3007 = vpack.c.b16 %v2885, %v2884
  %v3008 = vpack.c.b16 %v2887, %v2886
  %v3009 = vpack.c.b16 %v2889, %v2888
  %v3010 = vpack.c.b16 %v2891, %v2890
  %v3011 = vpack.c.b16 %v2893, %v2892
  %v3012 = vpack.c.b16 %v2895, %v2894
  %v3013 = vpack.c.b16 %v2897, %v2896
  %v3014 = vpack.c.b16 %v2899, %v2898
  %v3015 = vpack.c.b16 %v2901, %v2900
  %v3016 = vpack.c.b16 %v2903, %v2902
  %v3017 = vpack.c.b16 %v2905, %v2904
  %v3018 = vpack.c.b16 %v2907, %v2906
  %v3019 = vpack.c.b16 %v2909, %v2908
  %v3020 = vpack.c.b16 %v2911, %v2910
  %v3021 = vpack.c.b16 %v2913, %v2912
  %v3022 = vpack.c.b16 %v2915, %v2914
  %v3023 = vpack.c.b16 %v2917, %v2916
  %v3024 = vpack.c.b16 %v2919, %v2918
  %v3025 = vpack.c.b16 %v2921, %v2920
  %v3026 = vpack.c.b16 %v2923, %v2922
  %v3027 = vpack.c.b16 %v2925, %v2924
  %v3028 = vpack.c.b16 %v2927, %v2926
  %v3029 = vpack.c.b16 %v2929, %v2928
  %v3030 = vpack.c.b16 %v2931, %v2930
  %v3031 = vpack.c.b16 %v2933, %v2932
  %v3032 = vpack.c.b16 %v2935, %v2934
  %v3033 = vpack.c.b16 %v2937, %v2936
  %v3034 = vpack.c.b16 %v2939, %v2938
  %v3035 = vpack.c.b16 %v2941, %v2940
  %v3036 = vpack.c.b16 %v2943, %v2942
  %v3037 = vpack.c.b16 %v2945, %v2944
  %v3038 = vpack.c.b16 %v2947, %v2946
  %v3039 = vpack.c.b16 %v2949, %v2948
  %v3040 = vpack.c.b16 %v2951, %v2950
  %v3041 = vpack.c.b16 %v2953, %v2952
  %v3042 = vpack.c.b16 %v2955, %v2954
  %v3043 = vpack.c.b16 %v2957, %v2956
  %v3044 = vpack.c.b16 %v2959, %v2958
  %v3045 = vpack.c.b16 %v2961, %v2960
  %v3046 = vpack.c.b16 %v2963, %v2962
  %v3047 = vpack.c.b16 %v2965, %v2964
  %v3048 = vpack.c.b16 %v2967, %v2966
  %v3049 = vpack.c.b16 %v2969, %v2968
  %v3050 = vpack.c.b16 %v2971, %v2970
  %v3051 = vpack.c.b16 %v2973, %v2972
  %v3052 = vpack.c.b16 %v2975, %v2974
  %v3053 = vpack.c.b16 %v2977, %v2976
  %v3054 = vpack.c.b16 %v2979, %v2978
  %v3055 = vpack.c.b16 %v2981, %v2980
  %v3056 = vpack.c.b16 %v2983, %v2982
  %v3057 = vpack.c.b16 %v2985, %v2984
  %v3058 = vpack.c.b16 %v2987, %v2986
  %v3059 = vpack.c.b16 %v2989, %v2988
  %v3060 = vpack.c.b16 %v2991, %v2990
  %v3061 = vpack.c.b16 %v2993, %v2992
  %v3062 = vpack.c.b16 %v2995, %v2994
  %v3063 = vpack.c.b16 %v2997, %v2996
  %v3064 = vpack.c.b16 %v2999, %v2998
  %v3065 = vpack.c.b16 %v3001, %v3000
  %3130 = vmatprep.subr.bf16.mxu0 0
  %3131 = vmatpush1.bf16.msra.mxu0 %v3002
  %3132 = vmatprep.subr.bf16.mxu0 0
  %3133 = vmatpush1.bf16.msra.mxu0 %v3003
  %3134 = vmatprep.subr.bf16.mxu0 0
  %3135 = vmatpush1.bf16.msra.mxu0 %v3004
  %3136 = vmatprep.subr.bf16.mxu0 0
  %3137 = vmatpush1.bf16.msra.mxu0 %v3005
  %3138 = vmatprep.subr.bf16.mxu0 0
  %3139 = vmatpush1.bf16.msra.mxu0 %v3006
  %3140 = vmatprep.subr.bf16.mxu0 0
  %3141 = vmatpush1.bf16.msra.mxu0 %v3007
  %3142 = vmatprep.subr.bf16.mxu0 0
  %3143 = vmatpush1.bf16.msra.mxu0 %v3008
  %3144 = vmatprep.subr.bf16.mxu0 0
  %3145 = vmatpush1.bf16.msra.mxu0 %v3009
  %3146 = vmatprep.subr.bf16.mxu0 0
  %3147 = vmatpush1.bf16.msra.mxu0 %v3010
  %3148 = vmatprep.subr.bf16.mxu0 0
  %3149 = vmatpush1.bf16.msra.mxu0 %v3011
  %3150 = vmatprep.subr.bf16.mxu0 0
  %3151 = vmatpush1.bf16.msra.mxu0 %v3012
  %3152 = vmatprep.subr.bf16.mxu0 0
  %3153 = vmatpush1.bf16.msra.mxu0 %v3013
  %3154 = vmatprep.subr.bf16.mxu0 0
  %3155 = vmatpush1.bf16.msra.mxu0 %v3014
  %3156 = vmatprep.subr.bf16.mxu0 0
  %3157 = vmatpush1.bf16.msra.mxu0 %v3015
  %3158 = vmatprep.subr.bf16.mxu0 0
  %3159 = vmatpush1.bf16.msra.mxu0 %v3016
  %3160 = vmatprep.subr.bf16.mxu0 0
  %3161 = vmatpush1.bf16.msra.mxu0 %v3017
  %3162 = vmatprep.mubr.bf16.mxu0 %v2715
  %3163 = vmatmul.mubr.bf16.gmra.mrb[0].mxu0 %v2714
  %v3164 = vpop.f32.mrb[0].mxu0
  %v3165 = vadd.f32 0.0, %v3164
  %v3166 = vpop.f32.mrb[0].mxu0
  %v3167 = vpop.f32.mrb[0].mxu0
  %v3168 = vadd.f32 0.0, %v3167
  %v3169 = vpop.f32.mrb[0].mxu0
  %3170 = vmatprep.mubr.bf16.mxu0 %v2723
  %3171 = vmatmul.mubr.bf16.gmra.mrb[0].mxu0 %v2722
  %v3172 = vpop.f32.mrb[0].mxu0
  %v3173 = vadd.f32 0.0, %v3172
  %v3174 = vpop.f32.mrb[0].mxu0
  %v3175 = vpop.f32.mrb[0].mxu0
  %v3176 = vadd.f32 0.0, %v3175
  %v3177 = vpop.f32.mrb[0].mxu0
  %3178 = vdwg.mxu0
  %3179 = vmatprep.subr.bf16.mxu0 0
  %3180 = vmatpush1.bf16.msra.mxu0 %v3018
  %3181 = vmatprep.subr.bf16.mxu0 0
  %3182 = vmatpush1.bf16.msra.mxu0 %v3019
  %3183 = vmatprep.subr.bf16.mxu0 0
  %3184 = vmatpush1.bf16.msra.mxu0 %v3020
  %3185 = vmatprep.subr.bf16.mxu0 0
  %3186 = vmatpush1.bf16.msra.mxu0 %v3021
  %3187 = vmatprep.subr.bf16.mxu0 0
  %3188 = vmatpush1.bf16.msra.mxu0 %v3022
  %3189 = vmatprep.subr.bf16.mxu0 0
  %3190 = vmatpush1.bf16.msra.mxu0 %v3023
  %3191 = vmatprep.subr.bf16.mxu0 0
  %3192 = vmatpush1.bf16.msra.mxu0 %v3024
  %3193 = vmatprep.subr.bf16.mxu0 0
  %3194 = vmatpush1.bf16.msra.mxu0 %v3025
  %3195 = vmatprep.subr.bf16.mxu0 0
  %3196 = vmatpush1.bf16.msra.mxu0 %v3026
  %3197 = vmatprep.subr.bf16.mxu0 0
  %3198 = vmatpush1.bf16.msra.mxu0 %v3027
  %3199 = vmatprep.subr.bf16.mxu0 0
  %3200 = vmatpush1.bf16.msra.mxu0 %v3028
  %3201 = vmatprep.subr.bf16.mxu0 0
  %3202 = vmatpush1.bf16.msra.mxu0 %v3029
  %3203 = vmatprep.subr.bf16.mxu0 0
  %3204 = vmatpush1.bf16.msra.mxu0 %v3030
  %3205 = vmatprep.subr.bf16.mxu0 0
  %3206 = vmatpush1.bf16.msra.mxu0 %v3031
  %3207 = vmatprep.subr.bf16.mxu0 0
  %3208 = vmatpush1.bf16.msra.mxu0 %v3032
  %3209 = vmatprep.subr.bf16.mxu0 0
  %3210 = vmatpush1.bf16.msra.mxu0 %v3033
  %3211 = vmatprep.mubr.bf16.mxu0 %v2717
  %3212 = vmatmul.mubr.bf16.gmra.mrb[0].mxu0 %v2716
  %v3213 = vpop.f32.mrb[0].mxu0
  %v3214 = vadd.f32 %v3165, %v3213
  %v3215 = vpop.f32.mrb[0].mxu0
  %v3216 = vpop.f32.mrb[0].mxu0
  %v3217 = vadd.f32 %v3168, %v3216
  %v3218 = vpop.f32.mrb[0].mxu0
  %3219 = vmatprep.mubr.bf16.mxu0 %v2725
  %3220 = vmatmul.mubr.bf16.gmra.mrb[0].mxu0 %v2724
  %v3221 = vpop.f32.mrb[0].mxu0
  %v3222 = vadd.f32 %v3173, %v3221
  %v3223 = vpop.f32.mrb[0].mxu0
  %v3224 = vpop.f32.mrb[0].mxu0
  %v3225 = vadd.f32 %v3176, %v3224
  %v3226 = vpop.f32.mrb[0].mxu0
  %3227 = vdwg.mxu0
  %3228 = vmatprep.subr.bf16.mxu0 0
  %3229 = vmatpush1.bf16.msra.mxu0 %v3034
  %3230 = vmatprep.subr.bf16.mxu0 0
  %3231 = vmatpush1.bf16.msra.mxu0 %v3035
  %3232 = vmatprep.subr.bf16.mxu0 0
  %3233 = vmatpush1.bf16.msra.mxu0 %v3036
  %3234 = vmatprep.subr.bf16.mxu0 0
  %3235 = vmatpush1.bf16.msra.mxu0 %v3037
  %3236 = vmatprep.subr.bf16.mxu0 0
  %3237 = vmatpush1.bf16.msra.mxu0 %v3038
  %3238 = vmatprep.subr.bf16.mxu0 0
  %3239 = vmatpush1.bf16.msra.mxu0 %v3039
  %3240 = vmatprep.subr.bf16.mxu0 0
  %3241 = vmatpush1.bf16.msra.mxu0 %v3040
  %3242 = vmatprep.subr.bf16.mxu0 0
  %3243 = vmatpush1.bf16.msra.mxu0 %v3041
  %3244 = vmatprep.subr.bf16.mxu0 0
  %3245 = vmatpush1.bf16.msra.mxu0 %v3042
  %3246 = vmatprep.subr.bf16.mxu0 0
  %3247 = vmatpush1.bf16.msra.mxu0 %v3043
  %3248 = vmatprep.subr.bf16.mxu0 0
  %3249 = vmatpush1.bf16.msra.mxu0 %v3044
  %3250 = vmatprep.subr.bf16.mxu0 0
  %3251 = vmatpush1.bf16.msra.mxu0 %v3045
  %3252 = vmatprep.subr.bf16.mxu0 0
  %3253 = vmatpush1.bf16.msra.mxu0 %v3046
  %3254 = vmatprep.subr.bf16.mxu0 0
  %3255 = vmatpush1.bf16.msra.mxu0 %v3047
  %3256 = vmatprep.subr.bf16.mxu0 0
  %3257 = vmatpush1.bf16.msra.mxu0 %v3048
  %3258 = vmatprep.subr.bf16.mxu0 0
  %3259 = vmatpush1.bf16.msra.mxu0 %v3049
  %3260 = vmatprep.mubr.bf16.mxu0 %v2719
  %3261 = vmatmul.mubr.bf16.gmra.mrb[0].mxu0 %v2718
  %v3262 = vpop.f32.mrb[0].mxu0
  %v3263 = vadd.f32 %v3214, %v3262
  %v3264 = vpop.f32.mrb[0].mxu0
  %v3265 = vpop.f32.mrb[0].mxu0
  %v3266 = vadd.f32 %v3217, %v3265
  %v3267 = vpop.f32.mrb[0].mxu0
  %3268 = vmatprep.mubr.bf16.mxu0 %v2727
  %3269 = vmatmul.mubr.bf16.gmra.mrb[0].mxu0 %v2726
  %v3270 = vpop.f32.mrb[0].mxu0
  %v3271 = vadd.f32 %v3222, %v3270
  %v3272 = vpop.f32.mrb[0].mxu0
  %v3273 = vpop.f32.mrb[0].mxu0
  %v3274 = vadd.f32 %v3225, %v3273
  %v3275 = vpop.f32.mrb[0].mxu0
  %3276 = vdwg.mxu0
  %3277 = vmatprep.subr.bf16.mxu0 0
  %3278 = vmatpush1.bf16.msra.mxu0 %v3050
  %3279 = vmatprep.subr.bf16.mxu0 0
  %3280 = vmatpush1.bf16.msra.mxu0 %v3051
  %3281 = vmatprep.subr.bf16.mxu0 0
  %3282 = vmatpush1.bf16.msra.mxu0 %v3052
  %3283 = vmatprep.subr.bf16.mxu0 0
  %3284 = vmatpush1.bf16.msra.mxu0 %v3053
  %3285 = vmatprep.subr.bf16.mxu0 0
  %3286 = vmatpush1.bf16.msra.mxu0 %v3054
  %3287 = vmatprep.subr.bf16.mxu0 0
  %3288 = vmatpush1.bf16.msra.mxu0 %v3055
  %3289 = vmatprep.subr.bf16.mxu0 0
  %3290 = vmatpush1.bf16.msra.mxu0 %v3056
  %3291 = vmatprep.subr.bf16.mxu0 0
  %3292 = vmatpush1.bf16.msra.mxu0 %v3057
  %3293 = vmatprep.subr.bf16.mxu0 0
  %3294 = vmatpush1.bf16.msra.mxu0 %v3058
  %3295 = vmatprep.subr.bf16.mxu0 0
  %3296 = vmatpush1.bf16.msra.mxu0 %v3059
  %3297 = vmatprep.subr.bf16.mxu0 0
  %3298 = vmatpush1.bf16.msra.mxu0 %v3060
  %3299 = vmatprep.subr.bf16.mxu0 0
  %3300 = vmatpush1.bf16.msra.mxu0 %v3061
  %3301 = vmatprep.subr.bf16.mxu0 0
  %3302 = vmatpush1.bf16.msra.mxu0 %v3062
  %3303 = vmatprep.subr.bf16.mxu0 0
  %3304 = vmatpush1.bf16.msra.mxu0 %v3063
  %3305 = vmatprep.subr.bf16.mxu0 0
  %3306 = vmatpush1.bf16.msra.mxu0 %v3064
  %3307 = vmatprep.subr.bf16.mxu0 0
  %3308 = vmatpush1.bf16.msra.mxu0 %v3065
  %3309 = vmatprep.mubr.bf16.mxu0 %v2721
  %3310 = vmatmul.mubr.bf16.gmra.mrb[0].mxu0 %v2720
  %v3311 = vpop.f32.mrb[0].mxu0
  %v3312 = vadd.f32 %v3263, %v3311
  %v3313 = vpop.f32.mrb[0].mxu0
  %v3314 = vpop.f32.mrb[0].mxu0
  %v3315 = vadd.f32 %v3266, %v3314
  %v3316 = vpop.f32.mrb[0].mxu0
  %3317 = vmatprep.mubr.bf16.mxu0 %v2729
  %3318 = vmatmul.mubr.bf16.gmra.mrb[0].mxu0 %v2728
  %v3319 = vpop.f32.mrb[0].mxu0
  %v3320 = vadd.f32 %v3271, %v3319
  %v3321 = vpop.f32.mrb[0].mxu0
  %v3322 = vpop.f32.mrb[0].mxu0
  %v3323 = vadd.f32 %v3274, %v3322
  %v3324 = vpop.f32.mrb[0].mxu0
  %3325 = vdwg.mxu0
  %v3326 = vadd.f32 %v3312, %v3315
  %v3327 = vadd.f32 %v3326, %v3320
  %v3328 = vadd.f32 %v3327, %v3323
  %v3329 = vrot.slane %v3328, 4
  %v3330 = vadd.f32 %v3328, %v3329
  %v3331 = vrot.slane %v3330, 2
  %v3332 = vadd.f32 %v3330, %v3331
  %v3333 = vrot.slane %v3332, 1
  %v3334 = vadd.f32 %v3332, %v3333
  %v3335 = vadd.f32 %v2500, %v3334
  %v3336 = vmul.f32 %v3312, %v3312
  %v3337 = vmul.f32 %v3315, %v3315
  %v3338 = vmul.f32 %v3320, %v3320
  %v3339 = vmul.f32 %v3323, %v3323
  %v3340 = vadd.f32 %v3336, %v3337
  %v3341 = vadd.f32 %v3340, %v3338
  %v3342 = vadd.f32 %v3341, %v3339
  %v3343 = vrot.slane %v3342, 4
  %v3344 = vadd.f32 %v3342, %v3343
  %v3345 = vrot.slane %v3344, 2
  %v3346 = vadd.f32 %v3344, %v3345
  %v3347 = vrot.slane %v3346, 1
  %v3348 = vadd.f32 %v3346, %v3347
  %v3349 = vadd.f32 %v2514, %v3348
  %s3350 = scalar_lea.vmem %s4, 96
  %3351 = vst [vmem:[%s3350] sm:$0xff] %v3312
  %3352 = vst [vmem:[%s3350 + $0x8] sm:$0xff] %v3315
  %3353 = vst [vmem:[%s3350 + $0x10] sm:$0xff] %v3320
  %3354 = vst [vmem:[%s3350 + $0x18] sm:$0xff] %v3323
  %v3355 = vmul.f32 %v3335, 0.0078125
  %v3356 = vmul.f32 %v3349, 0.0078125
  %v3357 = vmul.f32 %v3355, %v3355
  %v3358 = vsub.f32 %v3356, %v3357
  %v3359 = vld [vmem:[%s2] sm:$0x1]
  %v3360 = vadd.f32 %v3358, 1e-05
  %v3361 = vrsqrt.pop %v3360
  %v3362 = vmul.f32 %v3359, %v3361
  %v3363 = vld [vmem:[%s3] sm:$0x1]
  %v3364 = vmul.f32 %v3355, %v3362
  %v3365 = vsub.f32 %v3363, %v3364
  %v3366 = vld [vmem:[%s4] sm:$0xff]
  %v3367 = vld [vmem:[%s4 + $0x8] sm:$0xff]
  %v3368 = vld [vmem:[%s4 + $0x10] sm:$0xff]
  %v3369 = vld [vmem:[%s4 + $0x18] sm:$0xff]
  %v3371 = vlaneseq
  %v3372 = vshrl.u32 %v3371, 7
  %v3373 = vsub.s32 0, %v3372
  %v3374 = vrot.slane %v3362, %v3373
  %v3376 = vmul.f32 %v3366, %v3374
  %v3377 = vmul.f32 %v3367, %v3374
  %v3378 = vmul.f32 %v3368, %v3374
  %v3379 = vmul.f32 %v3369, %v3374
  %v3381 = vlaneseq
  %v3382 = vshrl.u32 %v3381, 7
  %v3383 = vsub.s32 0, %v3382
  %v3384 = vrot.slane %v3365, %v3383
  %v3386 = vadd.f32 %v3376, %v3384
  %v3387 = vadd.f32 %v3377, %v3384
  %v3388 = vadd.f32 %v3378, %v3384
  %v3389 = vadd.f32 %v3379, %v3384
  %v3390 = vmax.f32 %v3386, 0.0
  %v3391 = vmax.f32 %v3387, 0.0
  %v3392 = vmax.f32 %v3388, 0.0
  %v3393 = vmax.f32 %v3389, 0.0
  %3394 = vst [vmem:[%s4] sm:$0xff] %v3390
  %3395 = vst [vmem:[%s4 + $0x8] sm:$0xff] %v3391
  %3396 = vst [vmem:[%s4 + $0x10] sm:$0xff] %v3392
  %3397 = vst [vmem:[%s4 + $0x18] sm:$0xff] %v3393
  %v3398 = vld [vmem:[%s1680] sm:$0xff]
  %v3399 = vld [vmem:[%s1680 + $0x8] sm:$0xff]
  %v3400 = vld [vmem:[%s1680 + $0x10] sm:$0xff]
  %v3401 = vld [vmem:[%s1680 + $0x18] sm:$0xff]
  %v3402 = vmul.f32 %v3398, %v3374
  %v3403 = vmul.f32 %v3399, %v3374
  %v3404 = vmul.f32 %v3400, %v3374
  %v3405 = vmul.f32 %v3401, %v3374
  %v3406 = vadd.f32 %v3402, %v3384
  %v3407 = vadd.f32 %v3403, %v3384
  %v3408 = vadd.f32 %v3404, %v3384
  %v3409 = vadd.f32 %v3405, %v3384
  %v3410 = vmax.f32 %v3406, 0.0
  %v3411 = vmax.f32 %v3407, 0.0
  %v3412 = vmax.f32 %v3408, 0.0
  %v3413 = vmax.f32 %v3409, 0.0
  %3414 = vst [vmem:[%s1680] sm:$0xff] %v3410
  %3415 = vst [vmem:[%s1680 + $0x8] sm:$0xff] %v3411
  %3416 = vst [vmem:[%s1680 + $0x10] sm:$0xff] %v3412
  %3417 = vst [vmem:[%s1680 + $0x18] sm:$0xff] %v3413
  %v3418 = vld [vmem:[%s2515] sm:$0xff]
  %v3419 = vld [vmem:[%s2515 + $0x8] sm:$0xff]
  %v3420 = vld [vmem:[%s2515 + $0x10] sm:$0xff]
  %v3421 = vld [vmem:[%s2515 + $0x18] sm:$0xff]
  %v3422 = vmul.f32 %v3418, %v3374
  %v3423 = vmul.f32 %v3419, %v3374
  %v3424 = vmul.f32 %v3420, %v3374
  %v3425 = vmul.f32 %v3421, %v3374
  %v3426 = vadd.f32 %v3422, %v3384
  %v3427 = vadd.f32 %v3423, %v3384
  %v3428 = vadd.f32 %v3424, %v3384
  %v3429 = vadd.f32 %v3425, %v3384
  %v3430 = vmax.f32 %v3426, 0.0
  %v3431 = vmax.f32 %v3427, 0.0
  %v3432 = vmax.f32 %v3428, 0.0
  %v3433 = vmax.f32 %v3429, 0.0
  %3434 = vst [vmem:[%s2515] sm:$0xff] %v3430
  %3435 = vst [vmem:[%s2515 + $0x8] sm:$0xff] %v3431
  %3436 = vst [vmem:[%s2515 + $0x10] sm:$0xff] %v3432
  %3437 = vst [vmem:[%s2515 + $0x18] sm:$0xff] %v3433
  %v3438 = vld [vmem:[%s3350] sm:$0xff]
  %v3439 = vld [vmem:[%s3350 + $0x8] sm:$0xff]
  %v3440 = vld [vmem:[%s3350 + $0x10] sm:$0xff]
  %v3441 = vld [vmem:[%s3350 + $0x18] sm:$0xff]
  %v3442 = vmul.f32 %v3438, %v3374
  %v3443 = vmul.f32 %v3439, %v3374
  %v3444 = vmul.f32 %v3440, %v3374
  %v3445 = vmul.f32 %v3441, %v3374
  %v3446 = vadd.f32 %v3442, %v3384
  %v3447 = vadd.f32 %v3443, %v3384
  %v3448 = vadd.f32 %v3444, %v3384
  %v3449 = vadd.f32 %v3445, %v3384
  %v3450 = vmax.f32 %v3446, 0.0
  %v3451 = vmax.f32 %v3447, 0.0
  %v3452 = vmax.f32 %v3448, 0.0
  %v3453 = vmax.f32 %v3449, 0.0
  %3454 = vst [vmem:[%s3350] sm:$0xff] %v3450
  %3455 = vst [vmem:[%s3350 + $0x8] sm:$0xff] %v3451
  %3456 = vst [vmem:[%s3350 + $0x10] sm:$0xff] %v3452
  %3457 = vst [vmem:[%s3350 + $0x18] sm:$0xff] %v3453
  // Predicated region
  $region18: #{generative_forward.5} parent=0 // pred_check
    _
  $region19: #{generative_forward.5} parent=0 // pred_check_branch
    %3459 = sbr.rel (0) target = $region21
  $region20: #{generative_forward.5} parent=0 // pred_region
    _
  $region21: #{generative_forward.5} parent=0 // pred_fallthru
    _
  // Predicated region
  $region22: #{generative_forward.5} parent=0 // pred_check
    _
  $region23: #{generative_forward.5} parent=0 // pred_check_branch
    %3461 = sbr.rel (0) target = $region25
  $region24: #{generative_forward.5} parent=0 // pred_region
    _
  $region25: #{generative_forward.5} parent=0 // pred_fallthru
    _

// kernel: generative_forward.6
$region0: #{generative_forward.6}
  #allocation0 [shape = 'u32[]', space=smem, size = 0x4, offset = 0x4, fixed_abs, tag = 'smem constant byte address 0x4 - core index']
  #allocation1 [shape = 'u32[144,128]{1,0:T(1,128)}', space=vmem, size = 0x12000, scoped, tag = 'internal scratch']
  %s0 = inlined_call_operand.vmem [shape: bf16[4,128,512], index: 0, kind: input, shape index: {}]
  %s1 = inlined_call_operand.vmem [shape: bf16[4,512,128], index: 1, kind: input, shape index: {}]
  %s2 = inlined_call_operand.vmem [shape: f32[1,128], index: 2, kind: input, shape index: {}]
  %s3 = inlined_call_operand.vmem [shape: f32[1,128], index: 3, kind: input, shape index: {}]
  %s4 = inlined_call_operand.vmem [shape: f32[4,128,128], index: 4, kind: output, shape index: {}]
  %s5 = sld [smem:[#allocation0]]
  $region26: #{generative_forward.6} parent=0
    _
  %s7 = ssub.s32 1, %s5
  %s8 = scalar_select 0, %s7, %s5
  // Predicated region
  $region2: #{generative_forward.6} parent=0 // pred_check
    _
  $region3: #{generative_forward.6} parent=0 // pred_check_branch
    %10 = sbr.rel (0) target = $region5
  $region4: #{generative_forward.6} parent=0 // pred_region
    _
  $region5: #{generative_forward.6} parent=0 // pred_fallthru
    _
  // Predicated region
  $region6: #{generative_forward.6} parent=0 // pred_check
    _
  $region7: #{generative_forward.6} parent=0 // pred_check_branch
    %12 = sbr.rel (0) target = $region9
  $region8: #{generative_forward.6} parent=0 // pred_region
    _
  $region9: #{generative_forward.6} parent=0 // pred_fallthru
    _
  // Predicated region
  $region10: #{generative_forward.6} parent=0 // pred_check
    _
  $region11: #{generative_forward.6} parent=0 // pred_check_branch
    %14 = sbr.rel (0) target = $region13
  $region12: #{generative_forward.6} parent=0 // pred_region
    _
  $region13: #{generative_forward.6} parent=0 // pred_fallthru
    _
  // Predicated region
  $region14: #{generative_forward.6} parent=0 // pred_check
    _
  $region15: #{generative_forward.6} parent=0 // pred_check_branch
    %16 = sbr.rel (0) target = $region17
  $region16: #{generative_forward.6} parent=0 // pred_region
    _
  $region17: #{generative_forward.6} parent=0 // pred_fallthru
    _
  %v18 = vld [vmem:[%s0] sm:$0xff]
  %v19 = vld [vmem:[%s0 + $0x8] sm:$0xff]
  %v20 = vld [vmem:[%s0 + $0x10] sm:$0xff]
  %v21 = vld [vmem:[%s0 + $0x18] sm:$0xff]
  %v22 = vld [vmem:[%s0 + $0x20] sm:$0xff]
  %v23 = vld [vmem:[%s0 + $0x28] sm:$0xff]
  %v24 = vld [vmem:[%s0 + $0x30] sm:$0xff]
  %v25 = vld [vmem:[%s0 + $0x38] sm:$0xff]
  %v26 = vld [vmem:[%s0 + $0x40] sm:$0xff]
  %v27 = vld [vmem:[%s0 + $0x48] sm:$0xff]
  %v28 = vld [vmem:[%s0 + $0x50] sm:$0xff]
  %v29 = vld [vmem:[%s0 + $0x58] sm:$0xff]
  %v30 = vld [vmem:[%s0 + $0x60] sm:$0xff]
  %v31 = vld [vmem:[%s0 + $0x68] sm:$0xff]
  %v32 = vld [vmem:[%s0 + $0x70] sm:$0xff]
  %v33 = vld [vmem:[%s0 + $0x78] sm:$0xff]
  %v34 = vld [vmem:[%s0 + $0x80] sm:$0xff]
  %v35 = vld [vmem:[%s0 + $0x88] sm:$0xff]
  %v36 = vld [vmem:[%s0 + $0x90] sm:$0xff]
  %v37 = vld [vmem:[%s0 + $0x98] sm:$0xff]
  %v38 = vld [vmem:[%s0 + $0xa0] sm:$0xff]
  %v39 = vld [vmem:[%s0 + $0xa8] sm:$0xff]
  %v40 = vld [vmem:[%s0 + $0xb0] sm:$0xff]
  %v41 = vld [vmem:[%s0 + $0xb8] sm:$0xff]
  %v42 = vld [vmem:[%s0 + $0xc0] sm:$0xff]
  %v43 = vld [vmem:[%s0 + $0xc8] sm:$0xff]
  %v44 = vld [vmem:[%s0 + $0xd0] sm:$0xff]
  %v45 = vld [vmem:[%s0 + $0xd8] sm:$0xff]
  %v46 = vld [vmem:[%s0 + $0xe0] sm:$0xff]
  %v47 = vld [vmem:[%s0 + $0xe8] sm:$0xff]
  %v48 = vld [vmem:[%s0 + $0xf0] sm:$0xff]
  %v49 = vld [vmem:[%s0 + $0xf8] sm:$0xff]
  %v50 = vld [vmem:[%s1] sm:$0xf]
  %v51 = vld [vmem:[%s1 + $0x4] sm:$0xf]
  %v52 = vld [vmem:[%s1 + $0x8] sm:$0xf]
  %v53 = vld [vmem:[%s1 + $0xc] sm:$0xf]
  %v54 = vld [vmem:[%s1 + $0x10] sm:$0xf]
  %v55 = vld [vmem:[%s1 + $0x14] sm:$0xf]
  %v56 = vld [vmem:[%s1 + $0x18] sm:$0xf]
  %v57 = vld [vmem:[%s1 + $0x1c] sm:$0xf]
  %v58 = vld [vmem:[%s1 + $0x20] sm:$0xf]
  %v59 = vld [vmem:[%s1 + $0x24] sm:$0xf]
  %v60 = vld [vmem:[%s1 + $0x28] sm:$0xf]
  %v61 = vld [vmem:[%s1 + $0x2c] sm:$0xf]
  %v62 = vld [vmem:[%s1 + $0x30] sm:$0xf]
  %v63 = vld [vmem:[%s1 + $0x34] sm:$0xf]
  %v64 = vld [vmem:[%s1 + $0x38] sm:$0xf]
  %v65 = vld [vmem:[%s1 + $0x3c] sm:$0xf]
  %v66 = vld [vmem:[%s1 + $0x40] sm:$0xf]
  %v67 = vld [vmem:[%s1 + $0x44] sm:$0xf]
  %v68 = vld [vmem:[%s1 + $0x48] sm:$0xf]
  %v69 = vld [vmem:[%s1 + $0x4c] sm:$0xf]
  %v70 = vld [vmem:[%s1 + $0x50] sm:$0xf]
  %v71 = vld [vmem:[%s1 + $0x54] sm:$0xf]
  %v72 = vld [vmem:[%s1 + $0x58] sm:$0xf]
  %v73 = vld [vmem:[%s1 + $0x5c] sm:$0xf]
  %v74 = vld [vmem:[%s1 + $0x60] sm:$0xf]
  %v75 = vld [vmem:[%s1 + $0x64] sm:$0xf]
  %v76 = vld [vmem:[%s1 + $0x68] sm:$0xf]
  %v77 = vld [vmem:[%s1 + $0x6c] sm:$0xf]
  %v78 = vld [vmem:[%s1 + $0x70] sm:$0xf]
  %v79 = vld [vmem:[%s1 + $0x74] sm:$0xf]
  %v80 = vld [vmem:[%s1 + $0x78] sm:$0xf]
  %v81 = vld [vmem:[%s1 + $0x7c] sm:$0xf]
  %v82 = vld [vmem:[%s1 + $0x80] sm:$0xf]
  %v83 = vld [vmem:[%s1 + $0x84] sm:$0xf]
  %v84 = vld [vmem:[%s1 + $0x88] sm:$0xf]
  %v85 = vld [vmem:[%s1 + $0x8c] sm:$0xf]
  %v86 = vld [vmem:[%s1 + $0x90] sm:$0xf]
  %v87 = vld [vmem:[%s1 + $0x94] sm:$0xf]
  %v88 = vld [vmem:[%s1 + $0x98] sm:$0xf]
  %v89 = vld [vmem:[%s1 + $0x9c] sm:$0xf]
  %v90 = vld [vmem:[%s1 + $0xa0] sm:$0xf]
  %v91 = vld [vmem:[%s1 + $0xa4] sm:$0xf]
  %v92 = vld [vmem:[%s1 + $0xa8] sm:$0xf]
  %v93 = vld [vmem:[%s1 + $0xac] sm:$0xf]
  %v94 = vld [vmem:[%s1 + $0xb0] sm:$0xf]
  %v95 = vld [vmem:[%s1 + $0xb4] sm:$0xf]
  %v96 = vld [vmem:[%s1 + $0xb8] sm:$0xf]
  %v97 = vld [vmem:[%s1 + $0xbc] sm:$0xf]
  %v98 = vld [vmem:[%s1 + $0xc0] sm:$0xf]
  %v99 = vld [vmem:[%s1 + $0xc4] sm:$0xf]
  %v100 = vld [vmem:[%s1 + $0xc8] sm:$0xf]
  %v101 = vld [vmem:[%s1 + $0xcc] sm:$0xf]
  %v102 = vld [vmem:[%s1 + $0xd0] sm:$0xf]
  %v103 = vld [vmem:[%s1 + $0xd4] sm:$0xf]
  %v104 = vld [vmem:[%s1 + $0xd8] sm:$0xf]
  %v105 = vld [vmem:[%s1 + $0xdc] sm:$0xf]
  %v106 = vld [vmem:[%s1 + $0xe0] sm:$0xf]
  %v107 = vld [vmem:[%s1 + $0xe4] sm:$0xf]
  %v108 = vld [vmem:[%s1 + $0xe8] sm:$0xf]
  %v109 = vld [vmem:[%s1 + $0xec] sm:$0xf]
  %v110 = vld [vmem:[%s1 + $0xf0] sm:$0xf]
  %v111 = vld [vmem:[%s1 + $0xf4] sm:$0xf]
  %v112 = vld [vmem:[%s1 + $0xf8] sm:$0xf]
  %v113 = vld [vmem:[%s1 + $0xfc] sm:$0xf]
  %v146 = vunpack.c.l.b16 %v18
  %v147 = vunpack.c.h.b16 %v18
  %v148 = vunpack.c.l.b16 %v19
  %v149 = vunpack.c.h.b16 %v19
  %v150 = vunpack.c.l.b16 %v20
  %v151 = vunpack.c.h.b16 %v20
  %v152 = vunpack.c.l.b16 %v21
  %v153 = vunpack.c.h.b16 %v21
  %v154 = vunpack.c.l.b16 %v22
  %v155 = vunpack.c.h.b16 %v22
  %v156 = vunpack.c.l.b16 %v23
  %v157 = vunpack.c.h.b16 %v23
  %v158 = vunpack.c.l.b16 %v24
  %v159 = vunpack.c.h.b16 %v24
  %v160 = vunpack.c.l.b16 %v25
  %v161 = vunpack.c.h.b16 %v25
  %v162 = vunpack.c.l.b16 %v26
  %v163 = vunpack.c.h.b16 %v26
  %v164 = vunpack.c.l.b16 %v27
  %v165 = vunpack.c.h.b16 %v27
  %v166 = vunpack.c.l.b16 %v28
  %v167 = vunpack.c.h.b16 %v28
  %v168 = vunpack.c.l.b16 %v29
  %v169 = vunpack.c.h.b16 %v29
  %v170 = vunpack.c.l.b16 %v30
  %v171 = vunpack.c.h.b16 %v30
  %v172 = vunpack.c.l.b16 %v31
  %v173 = vunpack.c.h.b16 %v31
  %v174 = vunpack.c.l.b16 %v32
  %v175 = vunpack.c.h.b16 %v32
  %v176 = vunpack.c.l.b16 %v33
  %v177 = vunpack.c.h.b16 %v33
  %v178 = vunpack.c.l.b16 %v34
  %v179 = vunpack.c.h.b16 %v34
  %v180 = vunpack.c.l.b16 %v35
  %v181 = vunpack.c.h.b16 %v35
  %v182 = vunpack.c.l.b16 %v36
  %v183 = vunpack.c.h.b16 %v36
  %v184 = vunpack.c.l.b16 %v37
  %v185 = vunpack.c.h.b16 %v37
  %v186 = vunpack.c.l.b16 %v38
  %v187 = vunpack.c.h.b16 %v38
  %v188 = vunpack.c.l.b16 %v39
  %v189 = vunpack.c.h.b16 %v39
  %v190 = vunpack.c.l.b16 %v40
  %v191 = vunpack.c.h.b16 %v40
  %v192 = vunpack.c.l.b16 %v41
  %v193 = vunpack.c.h.b16 %v41
  %v194 = vunpack.c.l.b16 %v42
  %v195 = vunpack.c.h.b16 %v42
  %v196 = vunpack.c.l.b16 %v43
  %v197 = vunpack.c.h.b16 %v43
  %v198 = vunpack.c.l.b16 %v44
  %v199 = vunpack.c.h.b16 %v44
  %v200 = vunpack.c.l.b16 %v45
  %v201 = vunpack.c.h.b16 %v45
  %v202 = vunpack.c.l.b16 %v46
  %v203 = vunpack.c.h.b16 %v46
  %v204 = vunpack.c.l.b16 %v47
  %v205 = vunpack.c.h.b16 %v47
  %v206 = vunpack.c.l.b16 %v48
  %v207 = vunpack.c.h.b16 %v48
  %v208 = vunpack.c.l.b16 %v49
  %v209 = vunpack.c.h.b16 %v49
  %v210 = vpack.c.b16 %v150, %v146
  %v211 = vpack.c.b16 %v151, %v147
  %v212 = vpack.c.b16 %v152, %v148
  %v213 = vpack.c.b16 %v153, %v149
  %v214 = vpack.c.b16 %v158, %v154
  %v215 = vpack.c.b16 %v159, %v155
  %v216 = vpack.c.b16 %v160, %v156
  %v217 = vpack.c.b16 %v161, %v157
  %v218 = vpack.c.b16 %v166, %v162
  %v219 = vpack.c.b16 %v167, %v163
  %v220 = vpack.c.b16 %v168, %v164
  %v221 = vpack.c.b16 %v169, %v165
  %v222 = vpack.c.b16 %v174, %v170
  %v223 = vpack.c.b16 %v175, %v171
  %v224 = vpack.c.b16 %v176, %v172
  %v225 = vpack.c.b16 %v177, %v173
  %v226 = vpack.c.b16 %v182, %v178
  %v227 = vpack.c.b16 %v183, %v179
  %v228 = vpack.c.b16 %v184, %v180
  %v229 = vpack.c.b16 %v185, %v181
  %v230 = vpack.c.b16 %v190, %v186
  %v231 = vpack.c.b16 %v191, %v187
  %v232 = vpack.c.b16 %v192, %v188
  %v233 = vpack.c.b16 %v193, %v189
  %v234 = vpack.c.b16 %v198, %v194
  %v235 = vpack.c.b16 %v199, %v195
  %v236 = vpack.c.b16 %v200, %v196
  %v237 = vpack.c.b16 %v201, %v197
  %v238 = vpack.c.b16 %v206, %v202
  %v239 = vpack.c.b16 %v207, %v203
  %v240 = vpack.c.b16 %v208, %v204
  %v241 = vpack.c.b16 %v209, %v205
  %v338 = vunpack.c.l.b16 %v50
  %v339 = vunpack.c.l.b16 %v51
  %v340 = vunpack.c.l.b16 %v52
  %v341 = vunpack.c.l.b16 %v53
  %v342 = vunpack.c.l.b16 %v54
  %v343 = vunpack.c.l.b16 %v55
  %v344 = vunpack.c.l.b16 %v56
  %v345 = vunpack.c.l.b16 %v57
  %v346 = vunpack.c.l.b16 %v58
  %v347 = vunpack.c.l.b16 %v59
  %v348 = vunpack.c.l.b16 %v60
  %v349 = vunpack.c.l.b16 %v61
  %v350 = vunpack.c.l.b16 %v62
  %v351 = vunpack.c.l.b16 %v63
  %v352 = vunpack.c.l.b16 %v64
  %v353 = vunpack.c.l.b16 %v65
  %v354 = vunpack.c.l.b16 %v66
  %v355 = vunpack.c.l.b16 %v67
  %v356 = vunpack.c.l.b16 %v68
  %v357 = vunpack.c.l.b16 %v69
  %v358 = vunpack.c.l.b16 %v70
  %v359 = vunpack.c.l.b16 %v71
  %v360 = vunpack.c.l.b16 %v72
  %v361 = vunpack.c.l.b16 %v73
  %v362 = vunpack.c.l.b16 %v74
  %v363 = vunpack.c.l.b16 %v75
  %v364 = vunpack.c.l.b16 %v76
  %v365 = vunpack.c.l.b16 %v77
  %v366 = vunpack.c.l.b16 %v78
  %v367 = vunpack.c.l.b16 %v79
  %v368 = vunpack.c.l.b16 %v80
  %v369 = vunpack.c.l.b16 %v81
  %v370 = vunpack.c.l.b16 %v82
  %v371 = vunpack.c.l.b16 %v83
  %v372 = vunpack.c.l.b16 %v84
  %v373 = vunpack.c.l.b16 %v85
  %v374 = vunpack.c.l.b16 %v86
  %v375 = vunpack.c.l.b16 %v87
  %v376 = vunpack.c.l.b16 %v88
  %v377 = vunpack.c.l.b16 %v89
  %v378 = vunpack.c.l.b16 %v90
  %v379 = vunpack.c.l.b16 %v91
  %v380 = vunpack.c.l.b16 %v92
  %v381 = vunpack.c.l.b16 %v93
  %v382 = vunpack.c.l.b16 %v94
  %v383 = vunpack.c.l.b16 %v95
  %v384 = vunpack.c.l.b16 %v96
  %v385 = vunpack.c.l.b16 %v97
  %v386 = vunpack.c.l.b16 %v98
  %v387 = vunpack.c.l.b16 %v99
  %v388 = vunpack.c.l.b16 %v100
  %v389 = vunpack.c.l.b16 %v101
  %v390 = vunpack.c.l.b16 %v102
  %v391 = vunpack.c.l.b16 %v103
  %v392 = vunpack.c.l.b16 %v104
  %v393 = vunpack.c.l.b16 %v105
  %v394 = vunpack.c.l.b16 %v106
  %v395 = vunpack.c.l.b16 %v107
  %v396 = vunpack.c.l.b16 %v108
  %v397 = vunpack.c.l.b16 %v109
  %v398 = vunpack.c.l.b16 %v110
  %v399 = vunpack.c.l.b16 %v111
  %v400 = vunpack.c.l.b16 %v112
  %v401 = vunpack.c.l.b16 %v113
  %v402 = vpack.c.b16 %v339, %v338
  %v403 = vpack.c.b16 %v341, %v340
  %v404 = vpack.c.b16 %v343, %v342
  %v405 = vpack.c.b16 %v345, %v344
  %v406 = vpack.c.b16 %v347, %v346
  %v407 = vpack.c.b16 %v349, %v348
  %v408 = vpack.c.b16 %v351, %v350
  %v409 = vpack.c.b16 %v353, %v352
  %v410 = vpack.c.b16 %v355, %v354
  %v411 = vpack.c.b16 %v357, %v356
  %v412 = vpack.c.b16 %v359, %v358
  %v413 = vpack.c.b16 %v361, %v360
  %v414 = vpack.c.b16 %v363, %v362
  %v415 = vpack.c.b16 %v365, %v364
  %v416 = vpack.c.b16 %v367, %v366
  %v417 = vpack.c.b16 %v369, %v368
  %v418 = vpack.c.b16 %v371, %v370
  %v419 = vpack.c.b16 %v373, %v372
  %v420 = vpack.c.b16 %v375, %v374
  %v421 = vpack.c.b16 %v377, %v376
  %v422 = vpack.c.b16 %v379, %v378
  %v423 = vpack.c.b16 %v381, %v380
  %v424 = vpack.c.b16 %v383, %v382
  %v425 = vpack.c.b16 %v385, %v384
  %v426 = vpack.c.b16 %v387, %v386
  %v427 = vpack.c.b16 %v389, %v388
  %v428 = vpack.c.b16 %v391, %v390
  %v429 = vpack.c.b16 %v393, %v392
  %v430 = vpack.c.b16 %v395, %v394
  %v431 = vpack.c.b16 %v397, %v396
  %v432 = vpack.c.b16 %v399, %v398
  %v433 = vpack.c.b16 %v401, %v400
  %466 = vmatprep.subr.bf16.mxu0 0
  %467 = vmatpush1.bf16.msra.mxu0 %v402
  %468 = vmatprep.subr.bf16.mxu0 0
  %469 = vmatpush1.bf16.msra.mxu0 %v403
  %470 = vmatprep.subr.bf16.mxu0 0
  %471 = vmatpush1.bf16.msra.mxu0 %v404
  %472 = vmatprep.subr.bf16.mxu0 0
  %473 = vmatpush1.bf16.msra.mxu0 %v405
  %474 = vmatprep.subr.bf16.mxu0 0
  %475 = vmatpush1.bf16.msra.mxu0 %v406
  %476 = vmatprep.subr.bf16.mxu0 0
  %477 = vmatpush1.bf16.msra.mxu0 %v407
  %478 = vmatprep.subr.bf16.mxu0 0
  %479 = vmatpush1.bf16.msra.mxu0 %v408
  %480 = vmatprep.subr.bf16.mxu0 0
  %481 = vmatpush1.bf16.msra.mxu0 %v409
  %482 = vmatprep.subr.bf16.mxu0 0
  %483 = vmatpush1.bf16.msra.mxu0 %v410
  %484 = vmatprep.subr.bf16.mxu0 0
  %485 = vmatpush1.bf16.msra.mxu0 %v411
  %486 = vmatprep.subr.bf16.mxu0 0
  %487 = vmatpush1.bf16.msra.mxu0 %v412
  %488 = vmatprep.subr.bf16.mxu0 0
  %489 = vmatpush1.bf16.msra.mxu0 %v413
  %490 = vmatprep.subr.bf16.mxu0 0
  %491 = vmatpush1.bf16.msra.mxu0 %v414
  %492 = vmatprep.subr.bf16.mxu0 0
  %493 = vmatpush1.bf16.msra.mxu0 %v415
  %494 = vmatprep.subr.bf16.mxu0 0
  %495 = vmatpush1.bf16.msra.mxu0 %v416
  %496 = vmatprep.subr.bf16.mxu0 0
  %497 = vmatpush1.bf16.msra.mxu0 %v417
  %498 = vmatprep.mubr.bf16.mxu0 %v211
  %499 = vmatmul.mubr.bf16.gmra.mrb[0].mxu0 %v210
  %v500 = vpop.f32.mrb[0].mxu0
  %v501 = vadd.f32 0.0, %v500
  %v502 = vpop.f32.mrb[0].mxu0
  %v503 = vpop.f32.mrb[0].mxu0
  %v504 = vadd.f32 0.0, %v503
  %v505 = vpop.f32.mrb[0].mxu0
  %506 = vmatprep.mubr.bf16.mxu0 %v215
  %507 = vmatmul.mubr.bf16.gmra.mrb[0].mxu0 %v214
  %v508 = vpop.f32.mrb[0].mxu0
  %v509 = vadd.f32 0.0, %v508
  %v510 = vpop.f32.mrb[0].mxu0
  %v511 = vpop.f32.mrb[0].mxu0
  %v512 = vadd.f32 0.0, %v511
  %v513 = vpop.f32.mrb[0].mxu0
  %514 = vmatprep.mubr.bf16.mxu0 %v219
  %515 = vmatmul.mubr.bf16.gmra.mrb[0].mxu0 %v218
  %v516 = vpop.f32.mrb[0].mxu0
  %v517 = vadd.f32 0.0, %v516
  %v518 = vpop.f32.mrb[0].mxu0
  %v519 = vpop.f32.mrb[0].mxu0
  %v520 = vadd.f32 0.0, %v519
  %v521 = vpop.f32.mrb[0].mxu0
  %522 = vmatprep.mubr.bf16.mxu0 %v223
  %523 = vmatmul.mubr.bf16.gmra.mrb[0].mxu0 %v222
  %v524 = vpop.f32.mrb[0].mxu0
  %v525 = vadd.f32 0.0, %v524
  %v526 = vpop.f32.mrb[0].mxu0
  %v527 = vpop.f32.mrb[0].mxu0
  %v528 = vadd.f32 0.0, %v527
  %v529 = vpop.f32.mrb[0].mxu0
  %530 = vmatprep.mubr.bf16.mxu0 %v227
  %531 = vmatmul.mubr.bf16.gmra.mrb[0].mxu0 %v226
  %v532 = vpop.f32.mrb[0].mxu0
  %v533 = vadd.f32 0.0, %v532
  %v534 = vpop.f32.mrb[0].mxu0
  %v535 = vpop.f32.mrb[0].mxu0
  %v536 = vadd.f32 0.0, %v535
  %v537 = vpop.f32.mrb[0].mxu0
  %538 = vmatprep.mubr.bf16.mxu0 %v231
  %539 = vmatmul.mubr.bf16.gmra.mrb[0].mxu0 %v230
  %v540 = vpop.f32.mrb[0].mxu0
  %v541 = vadd.f32 0.0, %v540
  %v542 = vpop.f32.mrb[0].mxu0
  %v543 = vpop.f32.mrb[0].mxu0
  %v544 = vadd.f32 0.0, %v543
  %v545 = vpop.f32.mrb[0].mxu0
  %546 = vmatprep.mubr.bf16.mxu0 %v235
  %547 = vmatmul.mubr.bf16.gmra.mrb[0].mxu0 %v234
  %v548 = vpop.f32.mrb[0].mxu0
  %v549 = vadd.f32 0.0, %v548
  %v550 = vpop.f32.mrb[0].mxu0
  %v551 = vpop.f32.mrb[0].mxu0
  %v552 = vadd.f32 0.0, %v551
  %v553 = vpop.f32.mrb[0].mxu0
  %554 = vmatprep.mubr.bf16.mxu0 %v239
  %555 = vmatmul.mubr.bf16.gmra.mrb[0].mxu0 %v238
  %v556 = vpop.f32.mrb[0].mxu0
  %v557 = vadd.f32 0.0, %v556
  %v558 = vpop.f32.mrb[0].mxu0
  %v559 = vpop.f32.mrb[0].mxu0
  %v560 = vadd.f32 0.0, %v559
  %v561 = vpop.f32.mrb[0].mxu0
  %562 = vdwg.mxu0
  %563 = vmatprep.subr.bf16.mxu0 0
  %564 = vmatpush1.bf16.msra.mxu0 %v418
  %565 = vmatprep.subr.bf16.mxu0 0
  %566 = vmatpush1.bf16.msra.mxu0 %v419
  %567 = vmatprep.subr.bf16.mxu0 0
  %568 = vmatpush1.bf16.msra.mxu0 %v420
  %569 = vmatprep.subr.bf16.mxu0 0
  %570 = vmatpush1.bf16.msra.mxu0 %v421
  %571 = vmatprep.subr.bf16.mxu0 0
  %572 = vmatpush1.bf16.msra.mxu0 %v422
  %573 = vmatprep.subr.bf16.mxu0 0
  %574 = vmatpush1.bf16.msra.mxu0 %v423
  %575 = vmatprep.subr.bf16.mxu0 0
  %576 = vmatpush1.bf16.msra.mxu0 %v424
  %577 = vmatprep.subr.bf16.mxu0 0
  %578 = vmatpush1.bf16.msra.mxu0 %v425
  %579 = vmatprep.subr.bf16.mxu0 0
  %580 = vmatpush1.bf16.msra.mxu0 %v426
  %581 = vmatprep.subr.bf16.mxu0 0
  %582 = vmatpush1.bf16.msra.mxu0 %v427
  %583 = vmatprep.subr.bf16.mxu0 0
  %584 = vmatpush1.bf16.msra.mxu0 %v428
  %585 = vmatprep.subr.bf16.mxu0 0
  %586 = vmatpush1.bf16.msra.mxu0 %v429
  %587 = vmatprep.subr.bf16.mxu0 0
  %588 = vmatpush1.bf16.msra.mxu0 %v430
  %589 = vmatprep.subr.bf16.mxu0 0
  %590 = vmatpush1.bf16.msra.mxu0 %v431
  %591 = vmatprep.subr.bf16.mxu0 0
  %592 = vmatpush1.bf16.msra.mxu0 %v432
  %593 = vmatprep.subr.bf16.mxu0 0
  %594 = vmatpush1.bf16.msra.mxu0 %v433
  %595 = vmatprep.mubr.bf16.mxu0 %v213
  %596 = vmatmul.mubr.bf16.gmra.mrb[0].mxu0 %v212
  %v597 = vpop.f32.mrb[0].mxu0
  %v598 = vadd.f32 %v501, %v597
  %v599 = vpop.f32.mrb[0].mxu0
  %v600 = vpop.f32.mrb[0].mxu0
  %v601 = vadd.f32 %v504, %v600
  %v602 = vpop.f32.mrb[0].mxu0
  %603 = vmatprep.mubr.bf16.mxu0 %v217
  %604 = vmatmul.mubr.bf16.gmra.mrb[0].mxu0 %v216
  %v605 = vpop.f32.mrb[0].mxu0
  %v606 = vadd.f32 %v509, %v605
  %v607 = vpop.f32.mrb[0].mxu0
  %v608 = vpop.f32.mrb[0].mxu0
  %v609 = vadd.f32 %v512, %v608
  %v610 = vpop.f32.mrb[0].mxu0
  %611 = vmatprep.mubr.bf16.mxu0 %v221
  %612 = vmatmul.mubr.bf16.gmra.mrb[0].mxu0 %v220
  %v613 = vpop.f32.mrb[0].mxu0
  %v614 = vadd.f32 %v517, %v613
  %v615 = vpop.f32.mrb[0].mxu0
  %v616 = vpop.f32.mrb[0].mxu0
  %v617 = vadd.f32 %v520, %v616
  %v618 = vpop.f32.mrb[0].mxu0
  %619 = vmatprep.mubr.bf16.mxu0 %v225
  %620 = vmatmul.mubr.bf16.gmra.mrb[0].mxu0 %v224
  %v621 = vpop.f32.mrb[0].mxu0
  %v622 = vadd.f32 %v525, %v621
  %v623 = vpop.f32.mrb[0].mxu0
  %v624 = vpop.f32.mrb[0].mxu0
  %v625 = vadd.f32 %v528, %v624
  %v626 = vpop.f32.mrb[0].mxu0
  %627 = vmatprep.mubr.bf16.mxu0 %v229
  %628 = vmatmul.mubr.bf16.gmra.mrb[0].mxu0 %v228
  %v629 = vpop.f32.mrb[0].mxu0
  %v630 = vadd.f32 %v533, %v629
  %v631 = vpop.f32.mrb[0].mxu0
  %v632 = vpop.f32.mrb[0].mxu0
  %v633 = vadd.f32 %v536, %v632
  %v634 = vpop.f32.mrb[0].mxu0
  %635 = vmatprep.mubr.bf16.mxu0 %v233
  %636 = vmatmul.mubr.bf16.gmra.mrb[0].mxu0 %v232
  %v637 = vpop.f32.mrb[0].mxu0
  %v638 = vadd.f32 %v541, %v637
  %v639 = vpop.f32.mrb[0].mxu0
  %v640 = vpop.f32.mrb[0].mxu0
  %v641 = vadd.f32 %v544, %v640
  %v642 = vpop.f32.mrb[0].mxu0
  %643 = vmatprep.mubr.bf16.mxu0 %v237
  %644 = vmatmul.mubr.bf16.gmra.mrb[0].mxu0 %v236
  %v645 = vpop.f32.mrb[0].mxu0
  %v646 = vadd.f32 %v549, %v645
  %v647 = vpop.f32.mrb[0].mxu0
  %v648 = vpop.f32.mrb[0].mxu0
  %v649 = vadd.f32 %v552, %v648
  %v650 = vpop.f32.mrb[0].mxu0
  %651 = vmatprep.mubr.bf16.mxu0 %v241
  %652 = vmatmul.mubr.bf16.gmra.mrb[0].mxu0 %v240
  %v653 = vpop.f32.mrb[0].mxu0
  %v654 = vadd.f32 %v557, %v653
  %v655 = vpop.f32.mrb[0].mxu0
  %v656 = vpop.f32.mrb[0].mxu0
  %v657 = vadd.f32 %v560, %v656
  %v658 = vpop.f32.mrb[0].mxu0
  %659 = vdwg.mxu0
  %v660 = vadd.f32 %v598, %v601
  %v661 = vadd.f32 %v660, %v606
  %v662 = vadd.f32 %v661, %v609
  %v663 = vadd.f32 %v662, %v614
  %v664 = vadd.f32 %v663, %v617
  %v665 = vadd.f32 %v664, %v622
  %v666 = vadd.f32 %v665, %v625
  %v667 = vadd.f32 %v666, %v630
  %v668 = vadd.f32 %v667, %v633
  %v669 = vadd.f32 %v668, %v638
  %v670 = vadd.f32 %v669, %v641
  %v671 = vadd.f32 %v670, %v646
  %v672 = vadd.f32 %v671, %v649
  %v673 = vadd.f32 %v672, %v654
  %v674 = vadd.f32 %v673, %v657
  %v675 = vrot.slane %v674, 4
  %v676 = vadd.f32 %v674, %v675
  %v677 = vrot.slane %v676, 2
  %v678 = vadd.f32 %v676, %v677
  %v679 = vrot.slane %v678, 1
  %v680 = vadd.f32 %v678, %v679
  %v681 = vadd.f32 %v680, 0.0
  %v682 = vmul.f32 %v598, %v598
  %v683 = vmul.f32 %v601, %v601
  %v684 = vmul.f32 %v606, %v606
  %v685 = vmul.f32 %v609, %v609
  %v686 = vmul.f32 %v614, %v614
  %v687 = vmul.f32 %v617, %v617
  %v688 = vmul.f32 %v622, %v622
  %v689 = vmul.f32 %v625, %v625
  %v690 = vmul.f32 %v630, %v630
  %v691 = vmul.f32 %v633, %v633
  %v692 = vmul.f32 %v638, %v638
  %v693 = vmul.f32 %v641, %v641
  %v694 = vmul.f32 %v646, %v646
  %v695 = vmul.f32 %v649, %v649
  %v696 = vmul.f32 %v654, %v654
  %v697 = vmul.f32 %v657, %v657
  %v698 = vadd.f32 %v682, %v683
  %v699 = vadd.f32 %v698, %v684
  %v700 = vadd.f32 %v699, %v685
  %v701 = vadd.f32 %v700, %v686
  %v702 = vadd.f32 %v701, %v687
  %v703 = vadd.f32 %v702, %v688
  %v704 = vadd.f32 %v703, %v689
  %v705 = vadd.f32 %v704, %v690
  %v706 = vadd.f32 %v705, %v691
  %v707 = vadd.f32 %v706, %v692
  %v708 = vadd.f32 %v707, %v693
  %v709 = vadd.f32 %v708, %v694
  %v710 = vadd.f32 %v709, %v695
  %v711 = vadd.f32 %v710, %v696
  %v712 = vadd.f32 %v711, %v697
  %v713 = vrot.slane %v712, 4
  %v714 = vadd.f32 %v712, %v713
  %v715 = vrot.slane %v714, 2
  %v716 = vadd.f32 %v714, %v715
  %v717 = vrot.slane %v716, 1
  %v718 = vadd.f32 %v716, %v717
  %v719 = vadd.f32 %v718, 0.0
  %720 = vst [vmem:[%s4] sm:$0xff] %v598
  %721 = vst [vmem:[%s4 + $0x8] sm:$0xff] %v601
  %722 = vst [vmem:[%s4 + $0x10] sm:$0xff] %v606
  %723 = vst [vmem:[%s4 + $0x18] sm:$0xff] %v609
  %724 = vst [vmem:[%s4 + $0x20] sm:$0xff] %v614
  %725 = vst [vmem:[%s4 + $0x28] sm:$0xff] %v617
  %726 = vst [vmem:[%s4 + $0x30] sm:$0xff] %v622
  %727 = vst [vmem:[%s4 + $0x38] sm:$0xff] %v625
  %728 = vst [vmem:[%s4 + $0x40] sm:$0xff] %v630
  %729 = vst [vmem:[%s4 + $0x48] sm:$0xff] %v633
  %730 = vst [vmem:[%s4 + $0x50] sm:$0xff] %v638
  %731 = vst [vmem:[%s4 + $0x58] sm:$0xff] %v641
  %732 = vst [vmem:[%s4 + $0x60] sm:$0xff] %v646
  %733 = vst [vmem:[%s4 + $0x68] sm:$0xff] %v649
  %734 = vst [vmem:[%s4 + $0x70] sm:$0xff] %v654
  %735 = vst [vmem:[%s4 + $0x78] sm:$0xff] %v657
  %s736 = scalar_lea.vmem %s0, 256
  %v737 = vld [vmem:[%s736] sm:$0xff]
  %v738 = vld [vmem:[%s736 + $0x8] sm:$0xff]
  %v739 = vld [vmem:[%s736 + $0x10] sm:$0xff]
  %v740 = vld [vmem:[%s736 + $0x18] sm:$0xff]
  %v741 = vld [vmem:[%s736 + $0x20] sm:$0xff]
  %v742 = vld [vmem:[%s736 + $0x28] sm:$0xff]
  %v743 = vld [vmem:[%s736 + $0x30] sm:$0xff]
  %v744 = vld [vmem:[%s736 + $0x38] sm:$0xff]
  %v745 = vld [vmem:[%s736 + $0x40] sm:$0xff]
  %v746 = vld [vmem:[%s736 + $0x48] sm:$0xff]
  %v747 = vld [vmem:[%s736 + $0x50] sm:$0xff]
  %v748 = vld [vmem:[%s736 + $0x58] sm:$0xff]
  %v749 = vld [vmem:[%s736 + $0x60] sm:$0xff]
  %v750 = vld [vmem:[%s736 + $0x68] sm:$0xff]
  %v751 = vld [vmem:[%s736 + $0x70] sm:$0xff]
  %v752 = vld [vmem:[%s736 + $0x78] sm:$0xff]
  %v753 = vld [vmem:[%s736 + $0x80] sm:$0xff]
  %v754 = vld [vmem:[%s736 + $0x88] sm:$0xff]
  %v755 = vld [vmem:[%s736 + $0x90] sm:$0xff]
  %v756 = vld [vmem:[%s736 + $0x98] sm:$0xff]
  %v757 = vld [vmem:[%s736 + $0xa0] sm:$0xff]
  %v758 = vld [vmem:[%s736 + $0xa8] sm:$0xff]
  %v759 = vld [vmem:[%s736 + $0xb0] sm:$0xff]
  %v760 = vld [vmem:[%s736 + $0xb8] sm:$0xff]
  %v761 = vld [vmem:[%s736 + $0xc0] sm:$0xff]
  %v762 = vld [vmem:[%s736 + $0xc8] sm:$0xff]
  %v763 = vld [vmem:[%s736 + $0xd0] sm:$0xff]
  %v764 = vld [vmem:[%s736 + $0xd8] sm:$0xff]
  %v765 = vld [vmem:[%s736 + $0xe0] sm:$0xff]
  %v766 = vld [vmem:[%s736 + $0xe8] sm:$0xff]
  %v767 = vld [vmem:[%s736 + $0xf0] sm:$0xff]
  %v768 = vld [vmem:[%s736 + $0xf8] sm:$0xff]
  %s769 = scalar_lea.vmem %s1, 256
  %v770 = vld [vmem:[%s769] sm:$0xf]
  %v771 = vld [vmem:[%s769 + $0x4] sm:$0xf]
  %v772 = vld [vmem:[%s769 + $0x8] sm:$0xf]
  %v773 = vld [vmem:[%s769 + $0xc] sm:$0xf]
  %v774 = vld [vmem:[%s769 + $0x10] sm:$0xf]
  %v775 = vld [vmem:[%s769 + $0x14] sm:$0xf]
  %v776 = vld [vmem:[%s769 + $0x18] sm:$0xf]
  %v777 = vld [vmem:[%s769 + $0x1c] sm:$0xf]
  %v778 = vld [vmem:[%s769 + $0x20] sm:$0xf]
  %v779 = vld [vmem:[%s769 + $0x24] sm:$0xf]
  %v780 = vld [vmem:[%s769 + $0x28] sm:$0xf]
  %v781 = vld [vmem:[%s769 + $0x2c] sm:$0xf]
  %v782 = vld [vmem:[%s769 + $0x30] sm:$0xf]
  %v783 = vld [vmem:[%s769 + $0x34] sm:$0xf]
  %v784 = vld [vmem:[%s769 + $0x38] sm:$0xf]
  %v785 = vld [vmem:[%s769 + $0x3c] sm:$0xf]
  %v786 = vld [vmem:[%s769 + $0x40] sm:$0xf]
  %v787 = vld [vmem:[%s769 + $0x44] sm:$0xf]
  %v788 = vld [vmem:[%s769 + $0x48] sm:$0xf]
  %v789 = vld [vmem:[%s769 + $0x4c] sm:$0xf]
  %v790 = vld [vmem:[%s769 + $0x50] sm:$0xf]
  %v791 = vld [vmem:[%s769 + $0x54] sm:$0xf]
  %v792 = vld [vmem:[%s769 + $0x58] sm:$0xf]
  %v793 = vld [vmem:[%s769 + $0x5c] sm:$0xf]
  %v794 = vld [vmem:[%s769 + $0x60] sm:$0xf]
  %v795 = vld [vmem:[%s769 + $0x64] sm:$0xf]
  %v796 = vld [vmem:[%s769 + $0x68] sm:$0xf]
  %v797 = vld [vmem:[%s769 + $0x6c] sm:$0xf]
  %v798 = vld [vmem:[%s769 + $0x70] sm:$0xf]
  %v799 = vld [vmem:[%s769 + $0x74] sm:$0xf]
  %v800 = vld [vmem:[%s769 + $0x78] sm:$0xf]
  %v801 = vld [vmem:[%s769 + $0x7c] sm:$0xf]
  %v802 = vld [vmem:[%s769 + $0x80] sm:$0xf]
  %v803 = vld [vmem:[%s769 + $0x84] sm:$0xf]
  %v804 = vld [vmem:[%s769 + $0x88] sm:$0xf]
  %v805 = vld [vmem:[%s769 + $0x8c] sm:$0xf]
  %v806 = vld [vmem:[%s769 + $0x90] sm:$0xf]
  %v807 = vld [vmem:[%s769 + $0x94] sm:$0xf]
  %v808 = vld [vmem:[%s769 + $0x98] sm:$0xf]
  %v809 = vld [vmem:[%s769 + $0x9c] sm:$0xf]
  %v810 = vld [vmem:[%s769 + $0xa0] sm:$0xf]
  %v811 = vld [vmem:[%s769 + $0xa4] sm:$0xf]
  %v812 = vld [vmem:[%s769 + $0xa8] sm:$0xf]
  %v813 = vld [vmem:[%s769 + $0xac] sm:$0xf]
  %v814 = vld [vmem:[%s769 + $0xb0] sm:$0xf]
  %v815 = vld [vmem:[%s769 + $0xb4] sm:$0xf]
  %v816 = vld [vmem:[%s769 + $0xb8] sm:$0xf]
  %v817 = vld [vmem:[%s769 + $0xbc] sm:$0xf]
  %v818 = vld [vmem:[%s769 + $0xc0] sm:$0xf]
  %v819 = vld [vmem:[%s769 + $0xc4] sm:$0xf]
  %v820 = vld [vmem:[%s769 + $0xc8] sm:$0xf]
  %v821 = vld [vmem:[%s769 + $0xcc] sm:$0xf]
  %v822 = vld [vmem:[%s769 + $0xd0] sm:$0xf]
  %v823 = vld [vmem:[%s769 + $0xd4] sm:$0xf]
  %v824 = vld [vmem:[%s769 + $0xd8] sm:$0xf]
  %v825 = vld [vmem:[%s769 + $0xdc] sm:$0xf]
  %v826 = vld [vmem:[%s769 + $0xe0] sm:$0xf]
  %v827 = vld [vmem:[%s769 + $0xe4] sm:$0xf]
  %v828 = vld [vmem:[%s769 + $0xe8] sm:$0xf]
  %v829 = vld [vmem:[%s769 + $0xec] sm:$0xf]
  %v830 = vld [vmem:[%s769 + $0xf0] sm:$0xf]
  %v831 = vld [vmem:[%s769 + $0xf4] sm:$0xf]
  %v832 = vld [vmem:[%s769 + $0xf8] sm:$0xf]
  %v833 = vld [vmem:[%s769 + $0xfc] sm:$0xf]
  %v866 = vunpack.c.l.b16 %v737
  %v867 = vunpack.c.h.b16 %v737
  %v868 = vunpack.c.l.b16 %v738
  %v869 = vunpack.c.h.b16 %v738
  %v870 = vunpack.c.l.b16 %v739
  %v871 = vunpack.c.h.b16 %v739
  %v872 = vunpack.c.l.b16 %v740
  %v873 = vunpack.c.h.b16 %v740
  %v874 = vunpack.c.l.b16 %v741
  %v875 = vunpack.c.h.b16 %v741
  %v876 = vunpack.c.l.b16 %v742
  %v877 = vunpack.c.h.b16 %v742
  %v878 = vunpack.c.l.b16 %v743
  %v879 = vunpack.c.h.b16 %v743
  %v880 = vunpack.c.l.b16 %v744
  %v881 = vunpack.c.h.b16 %v744
  %v882 = vunpack.c.l.b16 %v745
  %v883 = vunpack.c.h.b16 %v745
  %v884 = vunpack.c.l.b16 %v746
  %v885 = vunpack.c.h.b16 %v746
  %v886 = vunpack.c.l.b16 %v747
  %v887 = vunpack.c.h.b16 %v747
  %v888 = vunpack.c.l.b16 %v748
  %v889 = vunpack.c.h.b16 %v748
  %v890 = vunpack.c.l.b16 %v749
  %v891 = vunpack.c.h.b16 %v749
  %v892 = vunpack.c.l.b16 %v750
  %v893 = vunpack.c.h.b16 %v750
  %v894 = vunpack.c.l.b16 %v751
  %v895 = vunpack.c.h.b16 %v751
  %v896 = vunpack.c.l.b16 %v752
  %v897 = vunpack.c.h.b16 %v752
  %v898 = vunpack.c.l.b16 %v753
  %v899 = vunpack.c.h.b16 %v753
  %v900 = vunpack.c.l.b16 %v754
  %v901 = vunpack.c.h.b16 %v754
  %v902 = vunpack.c.l.b16 %v755
  %v903 = vunpack.c.h.b16 %v755
  %v904 = vunpack.c.l.b16 %v756
  %v905 = vunpack.c.h.b16 %v756
  %v906 = vunpack.c.l.b16 %v757
  %v907 = vunpack.c.h.b16 %v757
  %v908 = vunpack.c.l.b16 %v758
  %v909 = vunpack.c.h.b16 %v758
  %v910 = vunpack.c.l.b16 %v759
  %v911 = vunpack.c.h.b16 %v759
  %v912 = vunpack.c.l.b16 %v760
  %v913 = vunpack.c.h.b16 %v760
  %v914 = vunpack.c.l.b16 %v761
  %v915 = vunpack.c.h.b16 %v761
  %v916 = vunpack.c.l.b16 %v762
  %v917 = vunpack.c.h.b16 %v762
  %v918 = vunpack.c.l.b16 %v763
  %v919 = vunpack.c.h.b16 %v763
  %v920 = vunpack.c.l.b16 %v764
  %v921 = vunpack.c.h.b16 %v764
  %v922 = vunpack.c.l.b16 %v765
  %v923 = vunpack.c.h.b16 %v765
  %v924 = vunpack.c.l.b16 %v766
  %v925 = vunpack.c.h.b16 %v766
  %v926 = vunpack.c.l.b16 %v767
  %v927 = vunpack.c.h.b16 %v767
  %v928 = vunpack.c.l.b16 %v768
  %v929 = vunpack.c.h.b16 %v768
  %v930 = vpack.c.b16 %v870, %v866
  %v931 = vpack.c.b16 %v871, %v867
  %v932 = vpack.c.b16 %v872, %v868
  %v933 = vpack.c.b16 %v873, %v869
  %v934 = vpack.c.b16 %v878, %v874
  %v935 = vpack.c.b16 %v879, %v875
  %v936 = vpack.c.b16 %v880, %v876
  %v937 = vpack.c.b16 %v881, %v877
  %v938 = vpack.c.b16 %v886, %v882
  %v939 = vpack.c.b16 %v887, %v883
  %v940 = vpack.c.b16 %v888, %v884
  %v941 = vpack.c.b16 %v889, %v885
  %v942 = vpack.c.b16 %v894, %v890
  %v943 = vpack.c.b16 %v895, %v891
  %v944 = vpack.c.b16 %v896, %v892
  %v945 = vpack.c.b16 %v897, %v893
  %v946 = vpack.c.b16 %v902, %v898
  %v947 = vpack.c.b16 %v903, %v899
  %v948 = vpack.c.b16 %v904, %v900
  %v949 = vpack.c.b16 %v905, %v901
  %v950 = vpack.c.b16 %v910, %v906
  %v951 = vpack.c.b16 %v911, %v907
  %v952 = vpack.c.b16 %v912, %v908
  %v953 = vpack.c.b16 %v913, %v909
  %v954 = vpack.c.b16 %v918, %v914
  %v955 = vpack.c.b16 %v919, %v915
  %v956 = vpack.c.b16 %v920, %v916
  %v957 = vpack.c.b16 %v921, %v917
  %v958 = vpack.c.b16 %v926, %v922
  %v959 = vpack.c.b16 %v927, %v923
  %v960 = vpack.c.b16 %v928, %v924
  %v961 = vpack.c.b16 %v929, %v925
  %v1058 = vunpack.c.l.b16 %v770
  %v1059 = vunpack.c.l.b16 %v771
  %v1060 = vunpack.c.l.b16 %v772
  %v1061 = vunpack.c.l.b16 %v773
  %v1062 = vunpack.c.l.b16 %v774
  %v1063 = vunpack.c.l.b16 %v775
  %v1064 = vunpack.c.l.b16 %v776
  %v1065 = vunpack.c.l.b16 %v777
  %v1066 = vunpack.c.l.b16 %v778
  %v1067 = vunpack.c.l.b16 %v779
  %v1068 = vunpack.c.l.b16 %v780
  %v1069 = vunpack.c.l.b16 %v781
  %v1070 = vunpack.c.l.b16 %v782
  %v1071 = vunpack.c.l.b16 %v783
  %v1072 = vunpack.c.l.b16 %v784
  %v1073 = vunpack.c.l.b16 %v785
  %v1074 = vunpack.c.l.b16 %v786
  %v1075 = vunpack.c.l.b16 %v787
  %v1076 = vunpack.c.l.b16 %v788
  %v1077 = vunpack.c.l.b16 %v789
  %v1078 = vunpack.c.l.b16 %v790
  %v1079 = vunpack.c.l.b16 %v791
  %v1080 = vunpack.c.l.b16 %v792
  %v1081 = vunpack.c.l.b16 %v793
  %v1082 = vunpack.c.l.b16 %v794
  %v1083 = vunpack.c.l.b16 %v795
  %v1084 = vunpack.c.l.b16 %v796
  %v1085 = vunpack.c.l.b16 %v797
  %v1086 = vunpack.c.l.b16 %v798
  %v1087 = vunpack.c.l.b16 %v799
  %v1088 = vunpack.c.l.b16 %v800
  %v1089 = vunpack.c.l.b16 %v801
  %v1090 = vunpack.c.l.b16 %v802
  %v1091 = vunpack.c.l.b16 %v803
  %v1092 = vunpack.c.l.b16 %v804
  %v1093 = vunpack.c.l.b16 %v805
  %v1094 = vunpack.c.l.b16 %v806
  %v1095 = vunpack.c.l.b16 %v807
  %v1096 = vunpack.c.l.b16 %v808
  %v1097 = vunpack.c.l.b16 %v809
  %v1098 = vunpack.c.l.b16 %v810
  %v1099 = vunpack.c.l.b16 %v811
  %v1100 = vunpack.c.l.b16 %v812
  %v1101 = vunpack.c.l.b16 %v813
  %v1102 = vunpack.c.l.b16 %v814
  %v1103 = vunpack.c.l.b16 %v815
  %v1104 = vunpack.c.l.b16 %v816
  %v1105 = vunpack.c.l.b16 %v817
  %v1106 = vunpack.c.l.b16 %v818
  %v1107 = vunpack.c.l.b16 %v819
  %v1108 = vunpack.c.l.b16 %v820
  %v1109 = vunpack.c.l.b16 %v821
  %v1110 = vunpack.c.l.b16 %v822
  %v1111 = vunpack.c.l.b16 %v823
  %v1112 = vunpack.c.l.b16 %v824
  %v1113 = vunpack.c.l.b16 %v825
  %v1114 = vunpack.c.l.b16 %v826
  %v1115 = vunpack.c.l.b16 %v827
  %v1116 = vunpack.c.l.b16 %v828
  %v1117 = vunpack.c.l.b16 %v829
  %v1118 = vunpack.c.l.b16 %v830
  %v1119 = vunpack.c.l.b16 %v831
  %v1120 = vunpack.c.l.b16 %v832
  %v1121 = vunpack.c.l.b16 %v833
  %v1122 = vpack.c.b16 %v1059, %v1058
  %v1123 = vpack.c.b16 %v1061, %v1060
  %v1124 = vpack.c.b16 %v1063, %v1062
  %v1125 = vpack.c.b16 %v1065, %v1064
  %v1126 = vpack.c.b16 %v1067, %v1066
  %v1127 = vpack.c.b16 %v1069, %v1068
  %v1128 = vpack.c.b16 %v1071, %v1070
  %v1129 = vpack.c.b16 %v1073, %v1072
  %v1130 = vpack.c.b16 %v1075, %v1074
  %v1131 = vpack.c.b16 %v1077, %v1076
  %v1132 = vpack.c.b16 %v1079, %v1078
  %v1133 = vpack.c.b16 %v1081, %v1080
  %v1134 = vpack.c.b16 %v1083, %v1082
  %v1135 = vpack.c.b16 %v1085, %v1084
  %v1136 = vpack.c.b16 %v1087, %v1086
  %v1137 = vpack.c.b16 %v1089, %v1088
  %v1138 = vpack.c.b16 %v1091, %v1090
  %v1139 = vpack.c.b16 %v1093, %v1092
  %v1140 = vpack.c.b16 %v1095, %v1094
  %v1141 = vpack.c.b16 %v1097, %v1096
  %v1142 = vpack.c.b16 %v1099, %v1098
  %v1143 = vpack.c.b16 %v1101, %v1100
  %v1144 = vpack.c.b16 %v1103, %v1102
  %v1145 = vpack.c.b16 %v1105, %v1104
  %v1146 = vpack.c.b16 %v1107, %v1106
  %v1147 = vpack.c.b16 %v1109, %v1108
  %v1148 = vpack.c.b16 %v1111, %v1110
  %v1149 = vpack.c.b16 %v1113, %v1112
  %v1150 = vpack.c.b16 %v1115, %v1114
  %v1151 = vpack.c.b16 %v1117, %v1116
  %v1152 = vpack.c.b16 %v1119, %v1118
  %v1153 = vpack.c.b16 %v1121, %v1120
  %1186 = vmatprep.subr.bf16.mxu0 0
  %1187 = vmatpush1.bf16.msra.mxu0 %v1122
  %1188 = vmatprep.subr.bf16.mxu0 0
  %1189 = vmatpush1.bf16.msra.mxu0 %v1123
  %1190 = vmatprep.subr.bf16.mxu0 0
  %1191 = vmatpush1.bf16.msra.mxu0 %v1124
  %1192 = vmatprep.subr.bf16.mxu0 0
  %1193 = vmatpush1.bf16.msra.mxu0 %v1125
  %1194 = vmatprep.subr.bf16.mxu0 0
  %1195 = vmatpush1.bf16.msra.mxu0 %v1126
  %1196 = vmatprep.subr.bf16.mxu0 0
  %1197 = vmatpush1.bf16.msra.mxu0 %v1127
  %1198 = vmatprep.subr.bf16.mxu0 0
  %1199 = vmatpush1.bf16.msra.mxu0 %v1128
  %1200 = vmatprep.subr.bf16.mxu0 0
  %1201 = vmatpush1.bf16.msra.mxu0 %v1129
  %1202 = vmatprep.subr.bf16.mxu0 0
  %1203 = vmatpush1.bf16.msra.mxu0 %v1130
  %1204 = vmatprep.subr.bf16.mxu0 0
  %1205 = vmatpush1.bf16.msra.mxu0 %v1131
  %1206 = vmatprep.subr.bf16.mxu0 0
  %1207 = vmatpush1.bf16.msra.mxu0 %v1132
  %1208 = vmatprep.subr.bf16.mxu0 0
  %1209 = vmatpush1.bf16.msra.mxu0 %v1133
  %1210 = vmatprep.subr.bf16.mxu0 0
  %1211 = vmatpush1.bf16.msra.mxu0 %v1134
  %1212 = vmatprep.subr.bf16.mxu0 0
  %1213 = vmatpush1.bf16.msra.mxu0 %v1135
  %1214 = vmatprep.subr.bf16.mxu0 0
  %1215 = vmatpush1.bf16.msra.mxu0 %v1136
  %1216 = vmatprep.subr.bf16.mxu0 0
  %1217 = vmatpush1.bf16.msra.mxu0 %v1137
  %1218 = vmatprep.mubr.bf16.mxu0 %v931
  %1219 = vmatmul.mubr.bf16.gmra.mrb[0].mxu0 %v930
  %v1220 = vpop.f32.mrb[0].mxu0
  %v1221 = vadd.f32 0.0, %v1220
  %v1222 = vpop.f32.mrb[0].mxu0
  %v1223 = vpop.f32.mrb[0].mxu0
  %v1224 = vadd.f32 0.0, %v1223
  %v1225 = vpop.f32.mrb[0].mxu0
  %1226 = vmatprep.mubr.bf16.mxu0 %v935
  %1227 = vmatmul.mubr.bf16.gmra.mrb[0].mxu0 %v934
  %v1228 = vpop.f32.mrb[0].mxu0
  %v1229 = vadd.f32 0.0, %v1228
  %v1230 = vpop.f32.mrb[0].mxu0
  %v1231 = vpop.f32.mrb[0].mxu0
  %v1232 = vadd.f32 0.0, %v1231
  %v1233 = vpop.f32.mrb[0].mxu0
  %1234 = vmatprep.mubr.bf16.mxu0 %v939
  %1235 = vmatmul.mubr.bf16.gmra.mrb[0].mxu0 %v938
  %v1236 = vpop.f32.mrb[0].mxu0
  %v1237 = vadd.f32 0.0, %v1236
  %v1238 = vpop.f32.mrb[0].mxu0
  %v1239 = vpop.f32.mrb[0].mxu0
  %v1240 = vadd.f32 0.0, %v1239
  %v1241 = vpop.f32.mrb[0].mxu0
  %1242 = vmatprep.mubr.bf16.mxu0 %v943
  %1243 = vmatmul.mubr.bf16.gmra.mrb[0].mxu0 %v942
  %v1244 = vpop.f32.mrb[0].mxu0
  %v1245 = vadd.f32 0.0, %v1244
  %v1246 = vpop.f32.mrb[0].mxu0
  %v1247 = vpop.f32.mrb[0].mxu0
  %v1248 = vadd.f32 0.0, %v1247
  %v1249 = vpop.f32.mrb[0].mxu0
  %1250 = vmatprep.mubr.bf16.mxu0 %v947
  %1251 = vmatmul.mubr.bf16.gmra.mrb[0].mxu0 %v946
  %v1252 = vpop.f32.mrb[0].mxu0
  %v1253 = vadd.f32 0.0, %v1252
  %v1254 = vpop.f32.mrb[0].mxu0
  %v1255 = vpop.f32.mrb[0].mxu0
  %v1256 = vadd.f32 0.0, %v1255
  %v1257 = vpop.f32.mrb[0].mxu0
  %1258 = vmatprep.mubr.bf16.mxu0 %v951
  %1259 = vmatmul.mubr.bf16.gmra.mrb[0].mxu0 %v950
  %v1260 = vpop.f32.mrb[0].mxu0
  %v1261 = vadd.f32 0.0, %v1260
  %v1262 = vpop.f32.mrb[0].mxu0
  %v1263 = vpop.f32.mrb[0].mxu0
  %v1264 = vadd.f32 0.0, %v1263
  %v1265 = vpop.f32.mrb[0].mxu0
  %1266 = vmatprep.mubr.bf16.mxu0 %v955
  %1267 = vmatmul.mubr.bf16.gmra.mrb[0].mxu0 %v954
  %v1268 = vpop.f32.mrb[0].mxu0
  %v1269 = vadd.f32 0.0, %v1268
  %v1270 = vpop.f32.mrb[0].mxu0
  %v1271 = vpop.f32.mrb[0].mxu0
  %v1272 = vadd.f32 0.0, %v1271
  %v1273 = vpop.f32.mrb[0].mxu0
  %1274 = vmatprep.mubr.bf16.mxu0 %v959
  %1275 = vmatmul.mubr.bf16.gmra.mrb[0].mxu0 %v958
  %v1276 = vpop.f32.mrb[0].mxu0
  %v1277 = vadd.f32 0.0, %v1276
  %v1278 = vpop.f32.mrb[0].mxu0
  %v1279 = vpop.f32.mrb[0].mxu0
  %v1280 = vadd.f32 0.0, %v1279
  %v1281 = vpop.f32.mrb[0].mxu0
  %1282 = vdwg.mxu0
  %1283 = vmatprep.subr.bf16.mxu0 0
  %1284 = vmatpush1.bf16.msra.mxu0 %v1138
  %1285 = vmatprep.subr.bf16.mxu0 0
  %1286 = vmatpush1.bf16.msra.mxu0 %v1139
  %1287 = vmatprep.subr.bf16.mxu0 0
  %1288 = vmatpush1.bf16.msra.mxu0 %v1140
  %1289 = vmatprep.subr.bf16.mxu0 0
  %1290 = vmatpush1.bf16.msra.mxu0 %v1141
  %1291 = vmatprep.subr.bf16.mxu0 0
  %1292 = vmatpush1.bf16.msra.mxu0 %v1142
  %1293 = vmatprep.subr.bf16.mxu0 0
  %1294 = vmatpush1.bf16.msra.mxu0 %v1143
  %1295 = vmatprep.subr.bf16.mxu0 0
  %1296 = vmatpush1.bf16.msra.mxu0 %v1144
  %1297 = vmatprep.subr.bf16.mxu0 0
  %1298 = vmatpush1.bf16.msra.mxu0 %v1145
  %1299 = vmatprep.subr.bf16.mxu0 0
  %1300 = vmatpush1.bf16.msra.mxu0 %v1146
  %1301 = vmatprep.subr.bf16.mxu0 0
  %1302 = vmatpush1.bf16.msra.mxu0 %v1147
  %1303 = vmatprep.subr.bf16.mxu0 0
  %1304 = vmatpush1.bf16.msra.mxu0 %v1148
  %1305 = vmatprep.subr.bf16.mxu0 0
  %1306 = vmatpush1.bf16.msra.mxu0 %v1149
  %1307 = vmatprep.subr.bf16.mxu0 0
  %1308 = vmatpush1.bf16.msra.mxu0 %v1150
  %1309 = vmatprep.subr.bf16.mxu0 0
  %1310 = vmatpush1.bf16.msra.mxu0 %v1151
  %1311 = vmatprep.subr.bf16.mxu0 0
  %1312 = vmatpush1.bf16.msra.mxu0 %v1152
  %1313 = vmatprep.subr.bf16.mxu0 0
  %1314 = vmatpush1.bf16.msra.mxu0 %v1153
  %1315 = vmatprep.mubr.bf16.mxu0 %v933
  %1316 = vmatmul.mubr.bf16.gmra.mrb[0].mxu0 %v932
  %v1317 = vpop.f32.mrb[0].mxu0
  %v1318 = vadd.f32 %v1221, %v1317
  %v1319 = vpop.f32.mrb[0].mxu0
  %v1320 = vpop.f32.mrb[0].mxu0
  %v1321 = vadd.f32 %v1224, %v1320
  %v1322 = vpop.f32.mrb[0].mxu0
  %1323 = vmatprep.mubr.bf16.mxu0 %v937
  %1324 = vmatmul.mubr.bf16.gmra.mrb[0].mxu0 %v936
  %v1325 = vpop.f32.mrb[0].mxu0
  %v1326 = vadd.f32 %v1229, %v1325
  %v1327 = vpop.f32.mrb[0].mxu0
  %v1328 = vpop.f32.mrb[0].mxu0
  %v1329 = vadd.f32 %v1232, %v1328
  %v1330 = vpop.f32.mrb[0].mxu0
  %1331 = vmatprep.mubr.bf16.mxu0 %v941
  %1332 = vmatmul.mubr.bf16.gmra.mrb[0].mxu0 %v940
  %v1333 = vpop.f32.mrb[0].mxu0
  %v1334 = vadd.f32 %v1237, %v1333
  %v1335 = vpop.f32.mrb[0].mxu0
  %v1336 = vpop.f32.mrb[0].mxu0
  %v1337 = vadd.f32 %v1240, %v1336
  %v1338 = vpop.f32.mrb[0].mxu0
  %1339 = vmatprep.mubr.bf16.mxu0 %v945
  %1340 = vmatmul.mubr.bf16.gmra.mrb[0].mxu0 %v944
  %v1341 = vpop.f32.mrb[0].mxu0
  %v1342 = vadd.f32 %v1245, %v1341
  %v1343 = vpop.f32.mrb[0].mxu0
  %v1344 = vpop.f32.mrb[0].mxu0
  %v1345 = vadd.f32 %v1248, %v1344
  %v1346 = vpop.f32.mrb[0].mxu0
  %1347 = vmatprep.mubr.bf16.mxu0 %v949
  %1348 = vmatmul.mubr.bf16.gmra.mrb[0].mxu0 %v948
  %v1349 = vpop.f32.mrb[0].mxu0
  %v1350 = vadd.f32 %v1253, %v1349
  %v1351 = vpop.f32.mrb[0].mxu0
  %v1352 = vpop.f32.mrb[0].mxu0
  %v1353 = vadd.f32 %v1256, %v1352
  %v1354 = vpop.f32.mrb[0].mxu0
  %1355 = vmatprep.mubr.bf16.mxu0 %v953
  %1356 = vmatmul.mubr.bf16.gmra.mrb[0].mxu0 %v952
  %v1357 = vpop.f32.mrb[0].mxu0
  %v1358 = vadd.f32 %v1261, %v1357
  %v1359 = vpop.f32.mrb[0].mxu0
  %v1360 = vpop.f32.mrb[0].mxu0
  %v1361 = vadd.f32 %v1264, %v1360
  %v1362 = vpop.f32.mrb[0].mxu0
  %1363 = vmatprep.mubr.bf16.mxu0 %v957
  %1364 = vmatmul.mubr.bf16.gmra.mrb[0].mxu0 %v956
  %v1365 = vpop.f32.mrb[0].mxu0
  %v1366 = vadd.f32 %v1269, %v1365
  %v1367 = vpop.f32.mrb[0].mxu0
  %v1368 = vpop.f32.mrb[0].mxu0
  %v1369 = vadd.f32 %v1272, %v1368
  %v1370 = vpop.f32.mrb[0].mxu0
  %1371 = vmatprep.mubr.bf16.mxu0 %v961
  %1372 = vmatmul.mubr.bf16.gmra.mrb[0].mxu0 %v960
  %v1373 = vpop.f32.mrb[0].mxu0
  %v1374 = vadd.f32 %v1277, %v1373
  %v1375 = vpop.f32.mrb[0].mxu0
  %v1376 = vpop.f32.mrb[0].mxu0
  %v1377 = vadd.f32 %v1280, %v1376
  %v1378 = vpop.f32.mrb[0].mxu0
  %1379 = vdwg.mxu0
  %v1380 = vadd.f32 %v1318, %v1321
  %v1381 = vadd.f32 %v1380, %v1326
  %v1382 = vadd.f32 %v1381, %v1329
  %v1383 = vadd.f32 %v1382, %v1334
  %v1384 = vadd.f32 %v1383, %v1337
  %v1385 = vadd.f32 %v1384, %v1342
  %v1386 = vadd.f32 %v1385, %v1345
  %v1387 = vadd.f32 %v1386, %v1350
  %v1388 = vadd.f32 %v1387, %v1353
  %v1389 = vadd.f32 %v1388, %v1358
  %v1390 = vadd.f32 %v1389, %v1361
  %v1391 = vadd.f32 %v1390, %v1366
  %v1392 = vadd.f32 %v1391, %v1369
  %v1393 = vadd.f32 %v1392, %v1374
  %v1394 = vadd.f32 %v1393, %v1377
  %v1395 = vrot.slane %v1394, 4
  %v1396 = vadd.f32 %v1394, %v1395
  %v1397 = vrot.slane %v1396, 2
  %v1398 = vadd.f32 %v1396, %v1397
  %v1399 = vrot.slane %v1398, 1
  %v1400 = vadd.f32 %v1398, %v1399
  %v1401 = vadd.f32 %v681, %v1400
  %v1402 = vmul.f32 %v1318, %v1318
  %v1403 = vmul.f32 %v1321, %v1321
  %v1404 = vmul.f32 %v1326, %v1326
  %v1405 = vmul.f32 %v1329, %v1329
  %v1406 = vmul.f32 %v1334, %v1334
  %v1407 = vmul.f32 %v1337, %v1337
  %v1408 = vmul.f32 %v1342, %v1342
  %v1409 = vmul.f32 %v1345, %v1345
  %v1410 = vmul.f32 %v1350, %v1350
  %v1411 = vmul.f32 %v1353, %v1353
  %v1412 = vmul.f32 %v1358, %v1358
  %v1413 = vmul.f32 %v1361, %v1361
  %v1414 = vmul.f32 %v1366, %v1366
  %v1415 = vmul.f32 %v1369, %v1369
  %v1416 = vmul.f32 %v1374, %v1374
  %v1417 = vmul.f32 %v1377, %v1377
  %v1418 = vadd.f32 %v1402, %v1403
  %v1419 = vadd.f32 %v1418, %v1404
  %v1420 = vadd.f32 %v1419, %v1405
  %v1421 = vadd.f32 %v1420, %v1406
  %v1422 = vadd.f32 %v1421, %v1407
  %v1423 = vadd.f32 %v1422, %v1408
  %v1424 = vadd.f32 %v1423, %v1409
  %v1425 = vadd.f32 %v1424, %v1410
  %v1426 = vadd.f32 %v1425, %v1411
  %v1427 = vadd.f32 %v1426, %v1412
  %v1428 = vadd.f32 %v1427, %v1413
  %v1429 = vadd.f32 %v1428, %v1414
  %v1430 = vadd.f32 %v1429, %v1415
  %v1431 = vadd.f32 %v1430, %v1416
  %v1432 = vadd.f32 %v1431, %v1417
  %v1433 = vrot.slane %v1432, 4
  %v1434 = vadd.f32 %v1432, %v1433
  %v1435 = vrot.slane %v1434, 2
  %v1436 = vadd.f32 %v1434, %v1435
  %v1437 = vrot.slane %v1436, 1
  %v1438 = vadd.f32 %v1436, %v1437
  %v1439 = vadd.f32 %v719, %v1438
  %s1440 = scalar_lea.vmem %s4, 128
  %1441 = vst [vmem:[%s1440] sm:$0xff] %v1318
  %1442 = vst [vmem:[%s1440 + $0x8] sm:$0xff] %v1321
  %1443 = vst [vmem:[%s1440 + $0x10] sm:$0xff] %v1326
  %1444 = vst [vmem:[%s1440 + $0x18] sm:$0xff] %v1329
  %1445 = vst [vmem:[%s1440 + $0x20] sm:$0xff] %v1334
  %1446 = vst [vmem:[%s1440 + $0x28] sm:$0xff] %v1337
  %1447 = vst [vmem:[%s1440 + $0x30] sm:$0xff] %v1342
  %1448 = vst [vmem:[%s1440 + $0x38] sm:$0xff] %v1345
  %1449 = vst [vmem:[%s1440 + $0x40] sm:$0xff] %v1350
  %1450 = vst [vmem:[%s1440 + $0x48] sm:$0xff] %v1353
  %1451 = vst [vmem:[%s1440 + $0x50] sm:$0xff] %v1358
  %1452 = vst [vmem:[%s1440 + $0x58] sm:$0xff] %v1361
  %1453 = vst [vmem:[%s1440 + $0x60] sm:$0xff] %v1366
  %1454 = vst [vmem:[%s1440 + $0x68] sm:$0xff] %v1369
  %1455 = vst [vmem:[%s1440 + $0x70] sm:$0xff] %v1374
  %1456 = vst [vmem:[%s1440 + $0x78] sm:$0xff] %v1377
  %s1457 = scalar_lea.vmem %s0, 512
  %v1458 = vld [vmem:[%s1457] sm:$0xff]
  %v1459 = vld [vmem:[%s1457 + $0x8] sm:$0xff]
  %v1460 = vld [vmem:[%s1457 + $0x10] sm:$0xff]
  %v1461 = vld [vmem:[%s1457 + $0x18] sm:$0xff]
  %v1462 = vld [vmem:[%s1457 + $0x20] sm:$0xff]
  %v1463 = vld [vmem:[%s1457 + $0x28] sm:$0xff]
  %v1464 = vld [vmem:[%s1457 + $0x30] sm:$0xff]
  %v1465 = vld [vmem:[%s1457 + $0x38] sm:$0xff]
  %v1466 = vld [vmem:[%s1457 + $0x40] sm:$0xff]
  %v1467 = vld [vmem:[%s1457 + $0x48] sm:$0xff]
  %v1468 = vld [vmem:[%s1457 + $0x50] sm:$0xff]
  %v1469 = vld [vmem:[%s1457 + $0x58] sm:$0xff]
  %v1470 = vld [vmem:[%s1457 + $0x60] sm:$0xff]
  %v1471 = vld [vmem:[%s1457 + $0x68] sm:$0xff]
  %v1472 = vld [vmem:[%s1457 + $0x70] sm:$0xff]
  %v1473 = vld [vmem:[%s1457 + $0x78] sm:$0xff]
  %v1474 = vld [vmem:[%s1457 + $0x80] sm:$0xff]
  %v1475 = vld [vmem:[%s1457 + $0x88] sm:$0xff]
  %v1476 = vld [vmem:[%s1457 + $0x90] sm:$0xff]
  %v1477 = vld [vmem:[%s1457 + $0x98] sm:$0xff]
  %v1478 = vld [vmem:[%s1457 + $0xa0] sm:$0xff]
  %v1479 = vld [vmem:[%s1457 + $0xa8] sm:$0xff]
  %v1480 = vld [vmem:[%s1457 + $0xb0] sm:$0xff]
  %v1481 = vld [vmem:[%s1457 + $0xb8] sm:$0xff]
  %v1482 = vld [vmem:[%s1457 + $0xc0] sm:$0xff]
  %v1483 = vld [vmem:[%s1457 + $0xc8] sm:$0xff]
  %v1484 = vld [vmem:[%s1457 + $0xd0] sm:$0xff]
  %v1485 = vld [vmem:[%s1457 + $0xd8] sm:$0xff]
  %v1486 = vld [vmem:[%s1457 + $0xe0] sm:$0xff]
  %v1487 = vld [vmem:[%s1457 + $0xe8] sm:$0xff]
  %v1488 = vld [vmem:[%s1457 + $0xf0] sm:$0xff]
  %v1489 = vld [vmem:[%s1457 + $0xf8] sm:$0xff]
  %s1490 = scalar_lea.vmem %s1, 512
  %v1491 = vld [vmem:[%s1490] sm:$0xf]
  %v1492 = vld [vmem:[%s1490 + $0x4] sm:$0xf]
  %v1493 = vld [vmem:[%s1490 + $0x8] sm:$0xf]
  %v1494 = vld [vmem:[%s1490 + $0xc] sm:$0xf]
  %v1495 = vld [vmem:[%s1490 + $0x10] sm:$0xf]
  %v1496 = vld [vmem:[%s1490 + $0x14] sm:$0xf]
  %v1497 = vld [vmem:[%s1490 + $0x18] sm:$0xf]
  %v1498 = vld [vmem:[%s1490 + $0x1c] sm:$0xf]
  %v1499 = vld [vmem:[%s1490 + $0x20] sm:$0xf]
  %v1500 = vld [vmem:[%s1490 + $0x24] sm:$0xf]
  %v1501 = vld [vmem:[%s1490 + $0x28] sm:$0xf]
  %v1502 = vld [vmem:[%s1490 + $0x2c] sm:$0xf]
  %v1503 = vld [vmem:[%s1490 + $0x30] sm:$0xf]
  %v1504 = vld [vmem:[%s1490 + $0x34] sm:$0xf]
  %v1505 = vld [vmem:[%s1490 + $0x38] sm:$0xf]
  %v1506 = vld [vmem:[%s1490 + $0x3c] sm:$0xf]
  %v1507 = vld [vmem:[%s1490 + $0x40] sm:$0xf]
  %v1508 = vld [vmem:[%s1490 + $0x44] sm:$0xf]
  %v1509 = vld [vmem:[%s1490 + $0x48] sm:$0xf]
  %v1510 = vld [vmem:[%s1490 + $0x4c] sm:$0xf]
  %v1511 = vld [vmem:[%s1490 + $0x50] sm:$0xf]
  %v1512 = vld [vmem:[%s1490 + $0x54] sm:$0xf]
  %v1513 = vld [vmem:[%s1490 + $0x58] sm:$0xf]
  %v1514 = vld [vmem:[%s1490 + $0x5c] sm:$0xf]
  %v1515 = vld [vmem:[%s1490 + $0x60] sm:$0xf]
  %v1516 = vld [vmem:[%s1490 + $0x64] sm:$0xf]
  %v1517 = vld [vmem:[%s1490 + $0x68] sm:$0xf]
  %v1518 = vld [vmem:[%s1490 + $0x6c] sm:$0xf]
  %v1519 = vld [vmem:[%s1490 + $0x70] sm:$0xf]
  %v1520 = vld [vmem:[%s1490 + $0x74] sm:$0xf]
  %v1521 = vld [vmem:[%s1490 + $0x78] sm:$0xf]
  %v1522 = vld [vmem:[%s1490 + $0x7c] sm:$0xf]
  %v1523 = vld [vmem:[%s1490 + $0x80] sm:$0xf]
  %v1524 = vld [vmem:[%s1490 + $0x84] sm:$0xf]
  %v1525 = vld [vmem:[%s1490 + $0x88] sm:$0xf]
  %v1526 = vld [vmem:[%s1490 + $0x8c] sm:$0xf]
  %v1527 = vld [vmem:[%s1490 + $0x90] sm:$0xf]
  %v1528 = vld [vmem:[%s1490 + $0x94] sm:$0xf]
  %v1529 = vld [vmem:[%s1490 + $0x98] sm:$0xf]
  %v1530 = vld [vmem:[%s1490 + $0x9c] sm:$0xf]
  %v1531 = vld [vmem:[%s1490 + $0xa0] sm:$0xf]
  %v1532 = vld [vmem:[%s1490 + $0xa4] sm:$0xf]
  %v1533 = vld [vmem:[%s1490 + $0xa8] sm:$0xf]
  %v1534 = vld [vmem:[%s1490 + $0xac] sm:$0xf]
  %v1535 = vld [vmem:[%s1490 + $0xb0] sm:$0xf]
  %v1536 = vld [vmem:[%s1490 + $0xb4] sm:$0xf]
  %v1537 = vld [vmem:[%s1490 + $0xb8] sm:$0xf]
  %v1538 = vld [vmem:[%s1490 + $0xbc] sm:$0xf]
  %v1539 = vld [vmem:[%s1490 + $0xc0] sm:$0xf]
  %v1540 = vld [vmem:[%s1490 + $0xc4] sm:$0xf]
  %v1541 = vld [vmem:[%s1490 + $0xc8] sm:$0xf]
  %v1542 = vld [vmem:[%s1490 + $0xcc] sm:$0xf]
  %v1543 = vld [vmem:[%s1490 + $0xd0] sm:$0xf]
  %v1544 = vld [vmem:[%s1490 + $0xd4] sm:$0xf]
  %v1545 = vld [vmem:[%s1490 + $0xd8] sm:$0xf]
  %v1546 = vld [vmem:[%s1490 + $0xdc] sm:$0xf]
  %v1547 = vld [vmem:[%s1490 + $0xe0] sm:$0xf]
  %v1548 = vld [vmem:[%s1490 + $0xe4] sm:$0xf]
  %v1549 = vld [vmem:[%s1490 + $0xe8] sm:$0xf]
  %v1550 = vld [vmem:[%s1490 + $0xec] sm:$0xf]
  %v1551 = vld [vmem:[%s1490 + $0xf0] sm:$0xf]
  %v1552 = vld [vmem:[%s1490 + $0xf4] sm:$0xf]
  %v1553 = vld [vmem:[%s1490 + $0xf8] sm:$0xf]
  %v1554 = vld [vmem:[%s1490 + $0xfc] sm:$0xf]
  %v1587 = vunpack.c.l.b16 %v1458
  %v1588 = vunpack.c.h.b16 %v1458
  %v1589 = vunpack.c.l.b16 %v1459
  %v1590 = vunpack.c.h.b16 %v1459
  %v1591 = vunpack.c.l.b16 %v1460
  %v1592 = vunpack.c.h.b16 %v1460
  %v1593 = vunpack.c.l.b16 %v1461
  %v1594 = vunpack.c.h.b16 %v1461
  %v1595 = vunpack.c.l.b16 %v1462
  %v1596 = vunpack.c.h.b16 %v1462
  %v1597 = vunpack.c.l.b16 %v1463
  %v1598 = vunpack.c.h.b16 %v1463
  %v1599 = vunpack.c.l.b16 %v1464
  %v1600 = vunpack.c.h.b16 %v1464
  %v1601 = vunpack.c.l.b16 %v1465
  %v1602 = vunpack.c.h.b16 %v1465
  %v1603 = vunpack.c.l.b16 %v1466
  %v1604 = vunpack.c.h.b16 %v1466
  %v1605 = vunpack.c.l.b16 %v1467
  %v1606 = vunpack.c.h.b16 %v1467
  %v1607 = vunpack.c.l.b16 %v1468
  %v1608 = vunpack.c.h.b16 %v1468
  %v1609 = vunpack.c.l.b16 %v1469
  %v1610 = vunpack.c.h.b16 %v1469
  %v1611 = vunpack.c.l.b16 %v1470
  %v1612 = vunpack.c.h.b16 %v1470
  %v1613 = vunpack.c.l.b16 %v1471
  %v1614 = vunpack.c.h.b16 %v1471
  %v1615 = vunpack.c.l.b16 %v1472
  %v1616 = vunpack.c.h.b16 %v1472
  %v1617 = vunpack.c.l.b16 %v1473
  %v1618 = vunpack.c.h.b16 %v1473
  %v1619 = vunpack.c.l.b16 %v1474
  %v1620 = vunpack.c.h.b16 %v1474
  %v1621 = vunpack.c.l.b16 %v1475
  %v1622 = vunpack.c.h.b16 %v1475
  %v1623 = vunpack.c.l.b16 %v1476
  %v1624 = vunpack.c.h.b16 %v1476
  %v1625 = vunpack.c.l.b16 %v1477
  %v1626 = vunpack.c.h.b16 %v1477
  %v1627 = vunpack.c.l.b16 %v1478
  %v1628 = vunpack.c.h.b16 %v1478
  %v1629 = vunpack.c.l.b16 %v1479
  %v1630 = vunpack.c.h.b16 %v1479
  %v1631 = vunpack.c.l.b16 %v1480
  %v1632 = vunpack.c.h.b16 %v1480
  %v1633 = vunpack.c.l.b16 %v1481
  %v1634 = vunpack.c.h.b16 %v1481
  %v1635 = vunpack.c.l.b16 %v1482
  %v1636 = vunpack.c.h.b16 %v1482
  %v1637 = vunpack.c.l.b16 %v1483
  %v1638 = vunpack.c.h.b16 %v1483
  %v1639 = vunpack.c.l.b16 %v1484
  %v1640 = vunpack.c.h.b16 %v1484
  %v1641 = vunpack.c.l.b16 %v1485
  %v1642 = vunpack.c.h.b16 %v1485
  %v1643 = vunpack.c.l.b16 %v1486
  %v1644 = vunpack.c.h.b16 %v1486
  %v1645 = vunpack.c.l.b16 %v1487
  %v1646 = vunpack.c.h.b16 %v1487
  %v1647 = vunpack.c.l.b16 %v1488
  %v1648 = vunpack.c.h.b16 %v1488
  %v1649 = vunpack.c.l.b16 %v1489
  %v1650 = vunpack.c.h.b16 %v1489
  %v1651 = vpack.c.b16 %v1591, %v1587
  %v1652 = vpack.c.b16 %v1592, %v1588
  %v1653 = vpack.c.b16 %v1593, %v1589
  %v1654 = vpack.c.b16 %v1594, %v1590
  %v1655 = vpack.c.b16 %v1599, %v1595
  %v1656 = vpack.c.b16 %v1600, %v1596
  %v1657 = vpack.c.b16 %v1601, %v1597
  %v1658 = vpack.c.b16 %v1602, %v1598
  %v1659 = vpack.c.b16 %v1607, %v1603
  %v1660 = vpack.c.b16 %v1608, %v1604
  %v1661 = vpack.c.b16 %v1609, %v1605
  %v1662 = vpack.c.b16 %v1610, %v1606
  %v1663 = vpack.c.b16 %v1615, %v1611
  %v1664 = vpack.c.b16 %v1616, %v1612
  %v1665 = vpack.c.b16 %v1617, %v1613
  %v1666 = vpack.c.b16 %v1618, %v1614
  %v1667 = vpack.c.b16 %v1623, %v1619
  %v1668 = vpack.c.b16 %v1624, %v1620
  %v1669 = vpack.c.b16 %v1625, %v1621
  %v1670 = vpack.c.b16 %v1626, %v1622
  %v1671 = vpack.c.b16 %v1631, %v1627
  %v1672 = vpack.c.b16 %v1632, %v1628
  %v1673 = vpack.c.b16 %v1633, %v1629
  %v1674 = vpack.c.b16 %v1634, %v1630
  %v1675 = vpack.c.b16 %v1639, %v1635
  %v1676 = vpack.c.b16 %v1640, %v1636
  %v1677 = vpack.c.b16 %v1641, %v1637
  %v1678 = vpack.c.b16 %v1642, %v1638
  %v1679 = vpack.c.b16 %v1647, %v1643
  %v1680 = vpack.c.b16 %v1648, %v1644
  %v1681 = vpack.c.b16 %v1649, %v1645
  %v1682 = vpack.c.b16 %v1650, %v1646
  %v1779 = vunpack.c.l.b16 %v1491
  %v1780 = vunpack.c.l.b16 %v1492
  %v1781 = vunpack.c.l.b16 %v1493
  %v1782 = vunpack.c.l.b16 %v1494
  %v1783 = vunpack.c.l.b16 %v1495
  %v1784 = vunpack.c.l.b16 %v1496
  %v1785 = vunpack.c.l.b16 %v1497
  %v1786 = vunpack.c.l.b16 %v1498
  %v1787 = vunpack.c.l.b16 %v1499
  %v1788 = vunpack.c.l.b16 %v1500
  %v1789 = vunpack.c.l.b16 %v1501
  %v1790 = vunpack.c.l.b16 %v1502
  %v1791 = vunpack.c.l.b16 %v1503
  %v1792 = vunpack.c.l.b16 %v1504
  %v1793 = vunpack.c.l.b16 %v1505
  %v1794 = vunpack.c.l.b16 %v1506
  %v1795 = vunpack.c.l.b16 %v1507
  %v1796 = vunpack.c.l.b16 %v1508
  %v1797 = vunpack.c.l.b16 %v1509
  %v1798 = vunpack.c.l.b16 %v1510
  %v1799 = vunpack.c.l.b16 %v1511
  %v1800 = vunpack.c.l.b16 %v1512
  %v1801 = vunpack.c.l.b16 %v1513
  %v1802 = vunpack.c.l.b16 %v1514
  %v1803 = vunpack.c.l.b16 %v1515
  %v1804 = vunpack.c.l.b16 %v1516
  %v1805 = vunpack.c.l.b16 %v1517
  %v1806 = vunpack.c.l.b16 %v1518
  %v1807 = vunpack.c.l.b16 %v1519
  %v1808 = vunpack.c.l.b16 %v1520
  %v1809 = vunpack.c.l.b16 %v1521
  %v1810 = vunpack.c.l.b16 %v1522
  %v1811 = vunpack.c.l.b16 %v1523
  %v1812 = vunpack.c.l.b16 %v1524
  %v1813 = vunpack.c.l.b16 %v1525
  %v1814 = vunpack.c.l.b16 %v1526
  %v1815 = vunpack.c.l.b16 %v1527
  %v1816 = vunpack.c.l.b16 %v1528
  %v1817 = vunpack.c.l.b16 %v1529
  %v1818 = vunpack.c.l.b16 %v1530
  %v1819 = vunpack.c.l.b16 %v1531
  %v1820 = vunpack.c.l.b16 %v1532
  %v1821 = vunpack.c.l.b16 %v1533
  %v1822 = vunpack.c.l.b16 %v1534
  %v1823 = vunpack.c.l.b16 %v1535
  %v1824 = vunpack.c.l.b16 %v1536
  %v1825 = vunpack.c.l.b16 %v1537
  %v1826 = vunpack.c.l.b16 %v1538
  %v1827 = vunpack.c.l.b16 %v1539
  %v1828 = vunpack.c.l.b16 %v1540
  %v1829 = vunpack.c.l.b16 %v1541
  %v1830 = vunpack.c.l.b16 %v1542
  %v1831 = vunpack.c.l.b16 %v1543
  %v1832 = vunpack.c.l.b16 %v1544
  %v1833 = vunpack.c.l.b16 %v1545
  %v1834 = vunpack.c.l.b16 %v1546
  %v1835 = vunpack.c.l.b16 %v1547
  %v1836 = vunpack.c.l.b16 %v1548
  %v1837 = vunpack.c.l.b16 %v1549
  %v1838 = vunpack.c.l.b16 %v1550
  %v1839 = vunpack.c.l.b16 %v1551
  %v1840 = vunpack.c.l.b16 %v1552
  %v1841 = vunpack.c.l.b16 %v1553
  %v1842 = vunpack.c.l.b16 %v1554
  %v1843 = vpack.c.b16 %v1780, %v1779
  %v1844 = vpack.c.b16 %v1782, %v1781
  %v1845 = vpack.c.b16 %v1784, %v1783
  %v1846 = vpack.c.b16 %v1786, %v1785
  %v1847 = vpack.c.b16 %v1788, %v1787
  %v1848 = vpack.c.b16 %v1790, %v1789
  %v1849 = vpack.c.b16 %v1792, %v1791
  %v1850 = vpack.c.b16 %v1794, %v1793
  %v1851 = vpack.c.b16 %v1796, %v1795
  %v1852 = vpack.c.b16 %v1798, %v1797
  %v1853 = vpack.c.b16 %v1800, %v1799
  %v1854 = vpack.c.b16 %v1802, %v1801
  %v1855 = vpack.c.b16 %v1804, %v1803
  %v1856 = vpack.c.b16 %v1806, %v1805
  %v1857 = vpack.c.b16 %v1808, %v1807
  %v1858 = vpack.c.b16 %v1810, %v1809
  %v1859 = vpack.c.b16 %v1812, %v1811
  %v1860 = vpack.c.b16 %v1814, %v1813
  %v1861 = vpack.c.b16 %v1816, %v1815
  %v1862 = vpack.c.b16 %v1818, %v1817
  %v1863 = vpack.c.b16 %v1820, %v1819
  %v1864 = vpack.c.b16 %v1822, %v1821
  %v1865 = vpack.c.b16 %v1824, %v1823
  %v1866 = vpack.c.b16 %v1826, %v1825
  %v1867 = vpack.c.b16 %v1828, %v1827
  %v1868 = vpack.c.b16 %v1830, %v1829
  %v1869 = vpack.c.b16 %v1832, %v1831
  %v1870 = vpack.c.b16 %v1834, %v1833
  %v1871 = vpack.c.b16 %v1836, %v1835
  %v1872 = vpack.c.b16 %v1838, %v1837
  %v1873 = vpack.c.b16 %v1840, %v1839
  %v1874 = vpack.c.b16 %v1842, %v1841
  %1907 = vmatprep.subr.bf16.mxu0 0
  %1908 = vmatpush1.bf16.msra.mxu0 %v1843
  %1909 = vmatprep.subr.bf16.mxu0 0
  %1910 = vmatpush1.bf16.msra.mxu0 %v1844
  %1911 = vmatprep.subr.bf16.mxu0 0
  %1912 = vmatpush1.bf16.msra.mxu0 %v1845
  %1913 = vmatprep.subr.bf16.mxu0 0
  %1914 = vmatpush1.bf16.msra.mxu0 %v1846
  %1915 = vmatprep.subr.bf16.mxu0 0
  %1916 = vmatpush1.bf16.msra.mxu0 %v1847
  %1917 = vmatprep.subr.bf16.mxu0 0
  %1918 = vmatpush1.bf16.msra.mxu0 %v1848
  %1919 = vmatprep.subr.bf16.mxu0 0
  %1920 = vmatpush1.bf16.msra.mxu0 %v1849
  %1921 = vmatprep.subr.bf16.mxu0 0
  %1922 = vmatpush1.bf16.msra.mxu0 %v1850
  %1923 = vmatprep.subr.bf16.mxu0 0
  %1924 = vmatpush1.bf16.msra.mxu0 %v1851
  %1925 = vmatprep.subr.bf16.mxu0 0
  %1926 = vmatpush1.bf16.msra.mxu0 %v1852
  %1927 = vmatprep.subr.bf16.mxu0 0
  %1928 = vmatpush1.bf16.msra.mxu0 %v1853
  %1929 = vmatprep.subr.bf16.mxu0 0
  %1930 = vmatpush1.bf16.msra.mxu0 %v1854
  %1931 = vmatprep.subr.bf16.mxu0 0
  %1932 = vmatpush1.bf16.msra.mxu0 %v1855
  %1933 = vmatprep.subr.bf16.mxu0 0
  %1934 = vmatpush1.bf16.msra.mxu0 %v1856
  %1935 = vmatprep.subr.bf16.mxu0 0
  %1936 = vmatpush1.bf16.msra.mxu0 %v1857
  %1937 = vmatprep.subr.bf16.mxu0 0
  %1938 = vmatpush1.bf16.msra.mxu0 %v1858
  %1939 = vmatprep.mubr.bf16.mxu0 %v1652
  %1940 = vmatmul.mubr.bf16.gmra.mrb[0].mxu0 %v1651
  %v1941 = vpop.f32.mrb[0].mxu0
  %v1942 = vadd.f32 0.0, %v1941
  %v1943 = vpop.f32.mrb[0].mxu0
  %v1944 = vpop.f32.mrb[0].mxu0
  %v1945 = vadd.f32 0.0, %v1944
  %v1946 = vpop.f32.mrb[0].mxu0
  %1947 = vmatprep.mubr.bf16.mxu0 %v1656
  %1948 = vmatmul.mubr.bf16.gmra.mrb[0].mxu0 %v1655
  %v1949 = vpop.f32.mrb[0].mxu0
  %v1950 = vadd.f32 0.0, %v1949
  %v1951 = vpop.f32.mrb[0].mxu0
  %v1952 = vpop.f32.mrb[0].mxu0
  %v1953 = vadd.f32 0.0, %v1952
  %v1954 = vpop.f32.mrb[0].mxu0
  %1955 = vmatprep.mubr.bf16.mxu0 %v1660
  %1956 = vmatmul.mubr.bf16.gmra.mrb[0].mxu0 %v1659
  %v1957 = vpop.f32.mrb[0].mxu0
  %v1958 = vadd.f32 0.0, %v1957
  %v1959 = vpop.f32.mrb[0].mxu0
  %v1960 = vpop.f32.mrb[0].mxu0
  %v1961 = vadd.f32 0.0, %v1960
  %v1962 = vpop.f32.mrb[0].mxu0
  %1963 = vmatprep.mubr.bf16.mxu0 %v1664
  %1964 = vmatmul.mubr.bf16.gmra.mrb[0].mxu0 %v1663
  %v1965 = vpop.f32.mrb[0].mxu0
  %v1966 = vadd.f32 0.0, %v1965
  %v1967 = vpop.f32.mrb[0].mxu0
  %v1968 = vpop.f32.mrb[0].mxu0
  %v1969 = vadd.f32 0.0, %v1968
  %v1970 = vpop.f32.mrb[0].mxu0
  %1971 = vmatprep.mubr.bf16.mxu0 %v1668
  %1972 = vmatmul.mubr.bf16.gmra.mrb[0].mxu0 %v1667
  %v1973 = vpop.f32.mrb[0].mxu0
  %v1974 = vadd.f32 0.0, %v1973
  %v1975 = vpop.f32.mrb[0].mxu0
  %v1976 = vpop.f32.mrb[0].mxu0
  %v1977 = vadd.f32 0.0, %v1976
  %v1978 = vpop.f32.mrb[0].mxu0
  %1979 = vmatprep.mubr.bf16.mxu0 %v1672
  %1980 = vmatmul.mubr.bf16.gmra.mrb[0].mxu0 %v1671
  %v1981 = vpop.f32.mrb[0].mxu0
  %v1982 = vadd.f32 0.0, %v1981
  %v1983 = vpop.f32.mrb[0].mxu0
  %v1984 = vpop.f32.mrb[0].mxu0
  %v1985 = vadd.f32 0.0, %v1984
  %v1986 = vpop.f32.mrb[0].mxu0
  %1987 = vmatprep.mubr.bf16.mxu0 %v1676
  %1988 = vmatmul.mubr.bf16.gmra.mrb[0].mxu0 %v1675
  %v1989 = vpop.f32.mrb[0].mxu0
  %v1990 = vadd.f32 0.0, %v1989
  %v1991 = vpop.f32.mrb[0].mxu0
  %v1992 = vpop.f32.mrb[0].mxu0
  %v1993 = vadd.f32 0.0, %v1992
  %v1994 = vpop.f32.mrb[0].mxu0
  %1995 = vmatprep.mubr.bf16.mxu0 %v1680
  %1996 = vmatmul.mubr.bf16.gmra.mrb[0].mxu0 %v1679
  %v1997 = vpop.f32.mrb[0].mxu0
  %v1998 = vadd.f32 0.0, %v1997
  %v1999 = vpop.f32.mrb[0].mxu0
  %v2000 = vpop.f32.mrb[0].mxu0
  %v2001 = vadd.f32 0.0, %v2000
  %v2002 = vpop.f32.mrb[0].mxu0
  %2003 = vdwg.mxu0
  %2004 = vmatprep.subr.bf16.mxu0 0
  %2005 = vmatpush1.bf16.msra.mxu0 %v1859
  %2006 = vmatprep.subr.bf16.mxu0 0
  %2007 = vmatpush1.bf16.msra.mxu0 %v1860
  %2008 = vmatprep.subr.bf16.mxu0 0
  %2009 = vmatpush1.bf16.msra.mxu0 %v1861
  %2010 = vmatprep.subr.bf16.mxu0 0
  %2011 = vmatpush1.bf16.msra.mxu0 %v1862
  %2012 = vmatprep.subr.bf16.mxu0 0
  %2013 = vmatpush1.bf16.msra.mxu0 %v1863
  %2014 = vmatprep.subr.bf16.mxu0 0
  %2015 = vmatpush1.bf16.msra.mxu0 %v1864
  %2016 = vmatprep.subr.bf16.mxu0 0
  %2017 = vmatpush1.bf16.msra.mxu0 %v1865
  %2018 = vmatprep.subr.bf16.mxu0 0
  %2019 = vmatpush1.bf16.msra.mxu0 %v1866
  %2020 = vmatprep.subr.bf16.mxu0 0
  %2021 = vmatpush1.bf16.msra.mxu0 %v1867
  %2022 = vmatprep.subr.bf16.mxu0 0
  %2023 = vmatpush1.bf16.msra.mxu0 %v1868
  %2024 = vmatprep.subr.bf16.mxu0 0
  %2025 = vmatpush1.bf16.msra.mxu0 %v1869
  %2026 = vmatprep.subr.bf16.mxu0 0
  %2027 = vmatpush1.bf16.msra.mxu0 %v1870
  %2028 = vmatprep.subr.bf16.mxu0 0
  %2029 = vmatpush1.bf16.msra.mxu0 %v1871
  %2030 = vmatprep.subr.bf16.mxu0 0
  %2031 = vmatpush1.bf16.msra.mxu0 %v1872
  %2032 = vmatprep.subr.bf16.mxu0 0
  %2033 = vmatpush1.bf16.msra.mxu0 %v1873
  %2034 = vmatprep.subr.bf16.mxu0 0
  %2035 = vmatpush1.bf16.msra.mxu0 %v1874
  %2036 = vmatprep.mubr.bf16.mxu0 %v1654
  %2037 = vmatmul.mubr.bf16.gmra.mrb[0].mxu0 %v1653
  %v2038 = vpop.f32.mrb[0].mxu0
  %v2039 = vadd.f32 %v1942, %v2038
  %v2040 = vpop.f32.mrb[0].mxu0
  %v2041 = vpop.f32.mrb[0].mxu0
  %v2042 = vadd.f32 %v1945, %v2041
  %v2043 = vpop.f32.mrb[0].mxu0
  %2044 = vmatprep.mubr.bf16.mxu0 %v1658
  %2045 = vmatmul.mubr.bf16.gmra.mrb[0].mxu0 %v1657
  %v2046 = vpop.f32.mrb[0].mxu0
  %v2047 = vadd.f32 %v1950, %v2046
  %v2048 = vpop.f32.mrb[0].mxu0
  %v2049 = vpop.f32.mrb[0].mxu0
  %v2050 = vadd.f32 %v1953, %v2049
  %v2051 = vpop.f32.mrb[0].mxu0
  %2052 = vmatprep.mubr.bf16.mxu0 %v1662
  %2053 = vmatmul.mubr.bf16.gmra.mrb[0].mxu0 %v1661
  %v2054 = vpop.f32.mrb[0].mxu0
  %v2055 = vadd.f32 %v1958, %v2054
  %v2056 = vpop.f32.mrb[0].mxu0
  %v2057 = vpop.f32.mrb[0].mxu0
  %v2058 = vadd.f32 %v1961, %v2057
  %v2059 = vpop.f32.mrb[0].mxu0
  %2060 = vmatprep.mubr.bf16.mxu0 %v1666
  %2061 = vmatmul.mubr.bf16.gmra.mrb[0].mxu0 %v1665
  %v2062 = vpop.f32.mrb[0].mxu0
  %v2063 = vadd.f32 %v1966, %v2062
  %v2064 = vpop.f32.mrb[0].mxu0
  %v2065 = vpop.f32.mrb[0].mxu0
  %v2066 = vadd.f32 %v1969, %v2065
  %v2067 = vpop.f32.mrb[0].mxu0
  %2068 = vmatprep.mubr.bf16.mxu0 %v1670
  %2069 = vmatmul.mubr.bf16.gmra.mrb[0].mxu0 %v1669
  %v2070 = vpop.f32.mrb[0].mxu0
  %v2071 = vadd.f32 %v1974, %v2070
  %v2072 = vpop.f32.mrb[0].mxu0
  %v2073 = vpop.f32.mrb[0].mxu0
  %v2074 = vadd.f32 %v1977, %v2073
  %v2075 = vpop.f32.mrb[0].mxu0
  %2076 = vmatprep.mubr.bf16.mxu0 %v1674
  %2077 = vmatmul.mubr.bf16.gmra.mrb[0].mxu0 %v1673
  %v2078 = vpop.f32.mrb[0].mxu0
  %v2079 = vadd.f32 %v1982, %v2078
  %v2080 = vpop.f32.mrb[0].mxu0
  %v2081 = vpop.f32.mrb[0].mxu0
  %v2082 = vadd.f32 %v1985, %v2081
  %v2083 = vpop.f32.mrb[0].mxu0
  %2084 = vmatprep.mubr.bf16.mxu0 %v1678
  %2085 = vmatmul.mubr.bf16.gmra.mrb[0].mxu0 %v1677
  %v2086 = vpop.f32.mrb[0].mxu0
  %v2087 = vadd.f32 %v1990, %v2086
  %v2088 = vpop.f32.mrb[0].mxu0
  %v2089 = vpop.f32.mrb[0].mxu0
  %v2090 = vadd.f32 %v1993, %v2089
  %v2091 = vpop.f32.mrb[0].mxu0
  %2092 = vmatprep.mubr.bf16.mxu0 %v1682
  %2093 = vmatmul.mubr.bf16.gmra.mrb[0].mxu0 %v1681
  %v2094 = vpop.f32.mrb[0].mxu0
  %v2095 = vadd.f32 %v1998, %v2094
  %v2096 = vpop.f32.mrb[0].mxu0
  %v2097 = vpop.f32.mrb[0].mxu0
  %v2098 = vadd.f32 %v2001, %v2097
  %v2099 = vpop.f32.mrb[0].mxu0
  %2100 = vdwg.mxu0
  %v2101 = vadd.f32 %v2039, %v2042
  %v2102 = vadd.f32 %v2101, %v2047
  %v2103 = vadd.f32 %v2102, %v2050
  %v2104 = vadd.f32 %v2103, %v2055
  %v2105 = vadd.f32 %v2104, %v2058
  %v2106 = vadd.f32 %v2105, %v2063
  %v2107 = vadd.f32 %v2106, %v2066
  %v2108 = vadd.f32 %v2107, %v2071
  %v2109 = vadd.f32 %v2108, %v2074
  %v2110 = vadd.f32 %v2109, %v2079
  %v2111 = vadd.f32 %v2110, %v2082
  %v2112 = vadd.f32 %v2111, %v2087
  %v2113 = vadd.f32 %v2112, %v2090
  %v2114 = vadd.f32 %v2113, %v2095
  %v2115 = vadd.f32 %v2114, %v2098
  %v2116 = vrot.slane %v2115, 4
  %v2117 = vadd.f32 %v2115, %v2116
  %v2118 = vrot.slane %v2117, 2
  %v2119 = vadd.f32 %v2117, %v2118
  %v2120 = vrot.slane %v2119, 1
  %v2121 = vadd.f32 %v2119, %v2120
  %v2122 = vadd.f32 %v1401, %v2121
  %v2123 = vmul.f32 %v2039, %v2039
  %v2124 = vmul.f32 %v2042, %v2042
  %v2125 = vmul.f32 %v2047, %v2047
  %v2126 = vmul.f32 %v2050, %v2050
  %v2127 = vmul.f32 %v2055, %v2055
  %v2128 = vmul.f32 %v2058, %v2058
  %v2129 = vmul.f32 %v2063, %v2063
  %v2130 = vmul.f32 %v2066, %v2066
  %v2131 = vmul.f32 %v2071, %v2071
  %v2132 = vmul.f32 %v2074, %v2074
  %v2133 = vmul.f32 %v2079, %v2079
  %v2134 = vmul.f32 %v2082, %v2082
  %v2135 = vmul.f32 %v2087, %v2087
  %v2136 = vmul.f32 %v2090, %v2090
  %v2137 = vmul.f32 %v2095, %v2095
  %v2138 = vmul.f32 %v2098, %v2098
  %v2139 = vadd.f32 %v2123, %v2124
  %v2140 = vadd.f32 %v2139, %v2125
  %v2141 = vadd.f32 %v2140, %v2126
  %v2142 = vadd.f32 %v2141, %v2127
  %v2143 = vadd.f32 %v2142, %v2128
  %v2144 = vadd.f32 %v2143, %v2129
  %v2145 = vadd.f32 %v2144, %v2130
  %v2146 = vadd.f32 %v2145, %v2131
  %v2147 = vadd.f32 %v2146, %v2132
  %v2148 = vadd.f32 %v2147, %v2133
  %v2149 = vadd.f32 %v2148, %v2134
  %v2150 = vadd.f32 %v2149, %v2135
  %v2151 = vadd.f32 %v2150, %v2136
  %v2152 = vadd.f32 %v2151, %v2137
  %v2153 = vadd.f32 %v2152, %v2138
  %v2154 = vrot.slane %v2153, 4
  %v2155 = vadd.f32 %v2153, %v2154
  %v2156 = vrot.slane %v2155, 2
  %v2157 = vadd.f32 %v2155, %v2156
  %v2158 = vrot.slane %v2157, 1
  %v2159 = vadd.f32 %v2157, %v2158
  %v2160 = vadd.f32 %v1439, %v2159
  %s2161 = scalar_lea.vmem %s4, 256
  %2162 = vst [vmem:[%s2161] sm:$0xff] %v2039
  %2163 = vst [vmem:[%s2161 + $0x8] sm:$0xff] %v2042
  %2164 = vst [vmem:[%s2161 + $0x10] sm:$0xff] %v2047
  %2165 = vst [vmem:[%s2161 + $0x18] sm:$0xff] %v2050
  %2166 = vst [vmem:[%s2161 + $0x20] sm:$0xff] %v2055
  %2167 = vst [vmem:[%s2161 + $0x28] sm:$0xff] %v2058
  %2168 = vst [vmem:[%s2161 + $0x30] sm:$0xff] %v2063
  %2169 = vst [vmem:[%s2161 + $0x38] sm:$0xff] %v2066
  %2170 = vst [vmem:[%s2161 + $0x40] sm:$0xff] %v2071
  %2171 = vst [vmem:[%s2161 + $0x48] sm:$0xff] %v2074
  %2172 = vst [vmem:[%s2161 + $0x50] sm:$0xff] %v2079
  %2173 = vst [vmem:[%s2161 + $0x58] sm:$0xff] %v2082
  %2174 = vst [vmem:[%s2161 + $0x60] sm:$0xff] %v2087
  %2175 = vst [vmem:[%s2161 + $0x68] sm:$0xff] %v2090
  %2176 = vst [vmem:[%s2161 + $0x70] sm:$0xff] %v2095
  %2177 = vst [vmem:[%s2161 + $0x78] sm:$0xff] %v2098
  %s2178 = scalar_lea.vmem %s0, 768
  %v2179 = vld [vmem:[%s2178] sm:$0xff]
  %v2180 = vld [vmem:[%s2178 + $0x8] sm:$0xff]
  %v2181 = vld [vmem:[%s2178 + $0x10] sm:$0xff]
  %v2182 = vld [vmem:[%s2178 + $0x18] sm:$0xff]
  %v2183 = vld [vmem:[%s2178 + $0x20] sm:$0xff]
  %v2184 = vld [vmem:[%s2178 + $0x28] sm:$0xff]
  %v2185 = vld [vmem:[%s2178 + $0x30] sm:$0xff]
  %v2186 = vld [vmem:[%s2178 + $0x38] sm:$0xff]
  %v2187 = vld [vmem:[%s2178 + $0x40] sm:$0xff]
  %v2188 = vld [vmem:[%s2178 + $0x48] sm:$0xff]
  %v2189 = vld [vmem:[%s2178 + $0x50] sm:$0xff]
  %v2190 = vld [vmem:[%s2178 + $0x58] sm:$0xff]
  %v2191 = vld [vmem:[%s2178 + $0x60] sm:$0xff]
  %v2192 = vld [vmem:[%s2178 + $0x68] sm:$0xff]
  %v2193 = vld [vmem:[%s2178 + $0x70] sm:$0xff]
  %v2194 = vld [vmem:[%s2178 + $0x78] sm:$0xff]
  %v2195 = vld [vmem:[%s2178 + $0x80] sm:$0xff]
  %v2196 = vld [vmem:[%s2178 + $0x88] sm:$0xff]
  %v2197 = vld [vmem:[%s2178 + $0x90] sm:$0xff]
  %v2198 = vld [vmem:[%s2178 + $0x98] sm:$0xff]
  %v2199 = vld [vmem:[%s2178 + $0xa0] sm:$0xff]
  %v2200 = vld [vmem:[%s2178 + $0xa8] sm:$0xff]
  %v2201 = vld [vmem:[%s2178 + $0xb0] sm:$0xff]
  %v2202 = vld [vmem:[%s2178 + $0xb8] sm:$0xff]
  %v2203 = vld [vmem:[%s2178 + $0xc0] sm:$0xff]
  %v2204 = vld [vmem:[%s2178 + $0xc8] sm:$0xff]
  %v2205 = vld [vmem:[%s2178 + $0xd0] sm:$0xff]
  %v2206 = vld [vmem:[%s2178 + $0xd8] sm:$0xff]
  %v2207 = vld [vmem:[%s2178 + $0xe0] sm:$0xff]
  %v2208 = vld [vmem:[%s2178 + $0xe8] sm:$0xff]
  %v2209 = vld [vmem:[%s2178 + $0xf0] sm:$0xff]
  %v2210 = vld [vmem:[%s2178 + $0xf8] sm:$0xff]
  %s2211 = scalar_lea.vmem %s1, 768
  %v2212 = vld [vmem:[%s2211] sm:$0xf]
  %v2213 = vld [vmem:[%s2211 + $0x4] sm:$0xf]
  %v2214 = vld [vmem:[%s2211 + $0x8] sm:$0xf]
  %v2215 = vld [vmem:[%s2211 + $0xc] sm:$0xf]
  %v2216 = vld [vmem:[%s2211 + $0x10] sm:$0xf]
  %v2217 = vld [vmem:[%s2211 + $0x14] sm:$0xf]
  %v2218 = vld [vmem:[%s2211 + $0x18] sm:$0xf]
  %v2219 = vld [vmem:[%s2211 + $0x1c] sm:$0xf]
  %v2220 = vld [vmem:[%s2211 + $0x20] sm:$0xf]
  %v2221 = vld [vmem:[%s2211 + $0x24] sm:$0xf]
  %v2222 = vld [vmem:[%s2211 + $0x28] sm:$0xf]
  %v2223 = vld [vmem:[%s2211 + $0x2c] sm:$0xf]
  %v2224 = vld [vmem:[%s2211 + $0x30] sm:$0xf]
  %v2225 = vld [vmem:[%s2211 + $0x34] sm:$0xf]
  %v2226 = vld [vmem:[%s2211 + $0x38] sm:$0xf]
  %v2227 = vld [vmem:[%s2211 + $0x3c] sm:$0xf]
  %v2228 = vld [vmem:[%s2211 + $0x40] sm:$0xf]
  %v2229 = vld [vmem:[%s2211 + $0x44] sm:$0xf]
  %v2230 = vld [vmem:[%s2211 + $0x48] sm:$0xf]
  %v2231 = vld [vmem:[%s2211 + $0x4c] sm:$0xf]
  %v2232 = vld [vmem:[%s2211 + $0x50] sm:$0xf]
  %v2233 = vld [vmem:[%s2211 + $0x54] sm:$0xf]
  %v2234 = vld [vmem:[%s2211 + $0x58] sm:$0xf]
  %v2235 = vld [vmem:[%s2211 + $0x5c] sm:$0xf]
  %v2236 = vld [vmem:[%s2211 + $0x60] sm:$0xf]
  %v2237 = vld [vmem:[%s2211 + $0x64] sm:$0xf]
  %v2238 = vld [vmem:[%s2211 + $0x68] sm:$0xf]
  %v2239 = vld [vmem:[%s2211 + $0x6c] sm:$0xf]
  %v2240 = vld [vmem:[%s2211 + $0x70] sm:$0xf]
  %v2241 = vld [vmem:[%s2211 + $0x74] sm:$0xf]
  %v2242 = vld [vmem:[%s2211 + $0x78] sm:$0xf]
  %v2243 = vld [vmem:[%s2211 + $0x7c] sm:$0xf]
  %v2244 = vld [vmem:[%s2211 + $0x80] sm:$0xf]
  %v2245 = vld [vmem:[%s2211 + $0x84] sm:$0xf]
  %v2246 = vld [vmem:[%s2211 + $0x88] sm:$0xf]
  %v2247 = vld [vmem:[%s2211 + $0x8c] sm:$0xf]
  %v2248 = vld [vmem:[%s2211 + $0x90] sm:$0xf]
  %v2249 = vld [vmem:[%s2211 + $0x94] sm:$0xf]
  %v2250 = vld [vmem:[%s2211 + $0x98] sm:$0xf]
  %v2251 = vld [vmem:[%s2211 + $0x9c] sm:$0xf]
  %v2252 = vld [vmem:[%s2211 + $0xa0] sm:$0xf]
  %v2253 = vld [vmem:[%s2211 + $0xa4] sm:$0xf]
  %v2254 = vld [vmem:[%s2211 + $0xa8] sm:$0xf]
  %v2255 = vld [vmem:[%s2211 + $0xac] sm:$0xf]
  %v2256 = vld [vmem:[%s2211 + $0xb0] sm:$0xf]
  %v2257 = vld [vmem:[%s2211 + $0xb4] sm:$0xf]
  %v2258 = vld [vmem:[%s2211 + $0xb8] sm:$0xf]
  %v2259 = vld [vmem:[%s2211 + $0xbc] sm:$0xf]
  %v2260 = vld [vmem:[%s2211 + $0xc0] sm:$0xf]
  %v2261 = vld [vmem:[%s2211 + $0xc4] sm:$0xf]
  %v2262 = vld [vmem:[%s2211 + $0xc8] sm:$0xf]
  %v2263 = vld [vmem:[%s2211 + $0xcc] sm:$0xf]
  %v2264 = vld [vmem:[%s2211 + $0xd0] sm:$0xf]
  %v2265 = vld [vmem:[%s2211 + $0xd4] sm:$0xf]
  %v2266 = vld [vmem:[%s2211 + $0xd8] sm:$0xf]
  %v2267 = vld [vmem:[%s2211 + $0xdc] sm:$0xf]
  %v2268 = vld [vmem:[%s2211 + $0xe0] sm:$0xf]
  %v2269 = vld [vmem:[%s2211 + $0xe4] sm:$0xf]
  %v2270 = vld [vmem:[%s2211 + $0xe8] sm:$0xf]
  %v2271 = vld [vmem:[%s2211 + $0xec] sm:$0xf]
  %v2272 = vld [vmem:[%s2211 + $0xf0] sm:$0xf]
  %v2273 = vld [vmem:[%s2211 + $0xf4] sm:$0xf]
  %v2274 = vld [vmem:[%s2211 + $0xf8] sm:$0xf]
  %v2275 = vld [vmem:[%s2211 + $0xfc] sm:$0xf]
  %v2308 = vunpack.c.l.b16 %v2179
  %v2309 = vunpack.c.h.b16 %v2179
  %v2310 = vunpack.c.l.b16 %v2180
  %v2311 = vunpack.c.h.b16 %v2180
  %v2312 = vunpack.c.l.b16 %v2181
  %v2313 = vunpack.c.h.b16 %v2181
  %v2314 = vunpack.c.l.b16 %v2182
  %v2315 = vunpack.c.h.b16 %v2182
  %v2316 = vunpack.c.l.b16 %v2183
  %v2317 = vunpack.c.h.b16 %v2183
  %v2318 = vunpack.c.l.b16 %v2184
  %v2319 = vunpack.c.h.b16 %v2184
  %v2320 = vunpack.c.l.b16 %v2185
  %v2321 = vunpack.c.h.b16 %v2185
  %v2322 = vunpack.c.l.b16 %v2186
  %v2323 = vunpack.c.h.b16 %v2186
  %v2324 = vunpack.c.l.b16 %v2187
  %v2325 = vunpack.c.h.b16 %v2187
  %v2326 = vunpack.c.l.b16 %v2188
  %v2327 = vunpack.c.h.b16 %v2188
  %v2328 = vunpack.c.l.b16 %v2189
  %v2329 = vunpack.c.h.b16 %v2189
  %v2330 = vunpack.c.l.b16 %v2190
  %v2331 = vunpack.c.h.b16 %v2190
  %v2332 = vunpack.c.l.b16 %v2191
  %v2333 = vunpack.c.h.b16 %v2191
  %v2334 = vunpack.c.l.b16 %v2192
  %v2335 = vunpack.c.h.b16 %v2192
  %v2336 = vunpack.c.l.b16 %v2193
  %v2337 = vunpack.c.h.b16 %v2193
  %v2338 = vunpack.c.l.b16 %v2194
  %v2339 = vunpack.c.h.b16 %v2194
  %v2340 = vunpack.c.l.b16 %v2195
  %v2341 = vunpack.c.h.b16 %v2195
  %v2342 = vunpack.c.l.b16 %v2196
  %v2343 = vunpack.c.h.b16 %v2196
  %v2344 = vunpack.c.l.b16 %v2197
  %v2345 = vunpack.c.h.b16 %v2197
  %v2346 = vunpack.c.l.b16 %v2198
  %v2347 = vunpack.c.h.b16 %v2198
  %v2348 = vunpack.c.l.b16 %v2199
  %v2349 = vunpack.c.h.b16 %v2199
  %v2350 = vunpack.c.l.b16 %v2200
  %v2351 = vunpack.c.h.b16 %v2200
  %v2352 = vunpack.c.l.b16 %v2201
  %v2353 = vunpack.c.h.b16 %v2201
  %v2354 = vunpack.c.l.b16 %v2202
  %v2355 = vunpack.c.h.b16 %v2202
  %v2356 = vunpack.c.l.b16 %v2203
  %v2357 = vunpack.c.h.b16 %v2203
  %v2358 = vunpack.c.l.b16 %v2204
  %v2359 = vunpack.c.h.b16 %v2204
  %v2360 = vunpack.c.l.b16 %v2205
  %v2361 = vunpack.c.h.b16 %v2205
  %v2362 = vunpack.c.l.b16 %v2206
  %v2363 = vunpack.c.h.b16 %v2206
  %v2364 = vunpack.c.l.b16 %v2207
  %v2365 = vunpack.c.h.b16 %v2207
  %v2366 = vunpack.c.l.b16 %v2208
  %v2367 = vunpack.c.h.b16 %v2208
  %v2368 = vunpack.c.l.b16 %v2209
  %v2369 = vunpack.c.h.b16 %v2209
  %v2370 = vunpack.c.l.b16 %v2210
  %v2371 = vunpack.c.h.b16 %v2210
  %v2372 = vpack.c.b16 %v2312, %v2308
  %v2373 = vpack.c.b16 %v2313, %v2309
  %v2374 = vpack.c.b16 %v2314, %v2310
  %v2375 = vpack.c.b16 %v2315, %v2311
  %v2376 = vpack.c.b16 %v2320, %v2316
  %v2377 = vpack.c.b16 %v2321, %v2317
  %v2378 = vpack.c.b16 %v2322, %v2318
  %v2379 = vpack.c.b16 %v2323, %v2319
  %v2380 = vpack.c.b16 %v2328, %v2324
  %v2381 = vpack.c.b16 %v2329, %v2325
  %v2382 = vpack.c.b16 %v2330, %v2326
  %v2383 = vpack.c.b16 %v2331, %v2327
  %v2384 = vpack.c.b16 %v2336, %v2332
  %v2385 = vpack.c.b16 %v2337, %v2333
  %v2386 = vpack.c.b16 %v2338, %v2334
  %v2387 = vpack.c.b16 %v2339, %v2335
  %v2388 = vpack.c.b16 %v2344, %v2340
  %v2389 = vpack.c.b16 %v2345, %v2341
  %v2390 = vpack.c.b16 %v2346, %v2342
  %v2391 = vpack.c.b16 %v2347, %v2343
  %v2392 = vpack.c.b16 %v2352, %v2348
  %v2393 = vpack.c.b16 %v2353, %v2349
  %v2394 = vpack.c.b16 %v2354, %v2350
  %v2395 = vpack.c.b16 %v2355, %v2351
  %v2396 = vpack.c.b16 %v2360, %v2356
  %v2397 = vpack.c.b16 %v2361, %v2357
  %v2398 = vpack.c.b16 %v2362, %v2358
  %v2399 = vpack.c.b16 %v2363, %v2359
  %v2400 = vpack.c.b16 %v2368, %v2364
  %v2401 = vpack.c.b16 %v2369, %v2365
  %v2402 = vpack.c.b16 %v2370, %v2366
  %v2403 = vpack.c.b16 %v2371, %v2367
  %v2500 = vunpack.c.l.b16 %v2212
  %v2501 = vunpack.c.l.b16 %v2213
  %v2502 = vunpack.c.l.b16 %v2214
  %v2503 = vunpack.c.l.b16 %v2215
  %v2504 = vunpack.c.l.b16 %v2216
  %v2505 = vunpack.c.l.b16 %v2217
  %v2506 = vunpack.c.l.b16 %v2218
  %v2507 = vunpack.c.l.b16 %v2219
  %v2508 = vunpack.c.l.b16 %v2220
  %v2509 = vunpack.c.l.b16 %v2221
  %v2510 = vunpack.c.l.b16 %v2222
  %v2511 = vunpack.c.l.b16 %v2223
  %v2512 = vunpack.c.l.b16 %v2224
  %v2513 = vunpack.c.l.b16 %v2225
  %v2514 = vunpack.c.l.b16 %v2226
  %v2515 = vunpack.c.l.b16 %v2227
  %v2516 = vunpack.c.l.b16 %v2228
  %v2517 = vunpack.c.l.b16 %v2229
  %v2518 = vunpack.c.l.b16 %v2230
  %v2519 = vunpack.c.l.b16 %v2231
  %v2520 = vunpack.c.l.b16 %v2232
  %v2521 = vunpack.c.l.b16 %v2233
  %v2522 = vunpack.c.l.b16 %v2234
  %v2523 = vunpack.c.l.b16 %v2235
  %v2524 = vunpack.c.l.b16 %v2236
  %v2525 = vunpack.c.l.b16 %v2237
  %v2526 = vunpack.c.l.b16 %v2238
  %v2527 = vunpack.c.l.b16 %v2239
  %v2528 = vunpack.c.l.b16 %v2240
  %v2529 = vunpack.c.l.b16 %v2241
  %v2530 = vunpack.c.l.b16 %v2242
  %v2531 = vunpack.c.l.b16 %v2243
  %v2532 = vunpack.c.l.b16 %v2244
  %v2533 = vunpack.c.l.b16 %v2245
  %v2534 = vunpack.c.l.b16 %v2246
  %v2535 = vunpack.c.l.b16 %v2247
  %v2536 = vunpack.c.l.b16 %v2248
  %v2537 = vunpack.c.l.b16 %v2249
  %v2538 = vunpack.c.l.b16 %v2250
  %v2539 = vunpack.c.l.b16 %v2251
  %v2540 = vunpack.c.l.b16 %v2252
  %v2541 = vunpack.c.l.b16 %v2253
  %v2542 = vunpack.c.l.b16 %v2254
  %v2543 = vunpack.c.l.b16 %v2255
  %v2544 = vunpack.c.l.b16 %v2256
  %v2545 = vunpack.c.l.b16 %v2257
  %v2546 = vunpack.c.l.b16 %v2258
  %v2547 = vunpack.c.l.b16 %v2259
  %v2548 = vunpack.c.l.b16 %v2260
  %v2549 = vunpack.c.l.b16 %v2261
  %v2550 = vunpack.c.l.b16 %v2262
  %v2551 = vunpack.c.l.b16 %v2263
  %v2552 = vunpack.c.l.b16 %v2264
  %v2553 = vunpack.c.l.b16 %v2265
  %v2554 = vunpack.c.l.b16 %v2266
  %v2555 = vunpack.c.l.b16 %v2267
  %v2556 = vunpack.c.l.b16 %v2268
  %v2557 = vunpack.c.l.b16 %v2269
  %v2558 = vunpack.c.l.b16 %v2270
  %v2559 = vunpack.c.l.b16 %v2271
  %v2560 = vunpack.c.l.b16 %v2272
  %v2561 = vunpack.c.l.b16 %v2273
  %v2562 = vunpack.c.l.b16 %v2274
  %v2563 = vunpack.c.l.b16 %v2275
  %v2564 = vpack.c.b16 %v2501, %v2500
  %v2565 = vpack.c.b16 %v2503, %v2502
  %v2566 = vpack.c.b16 %v2505, %v2504
  %v2567 = vpack.c.b16 %v2507, %v2506
  %v2568 = vpack.c.b16 %v2509, %v2508
  %v2569 = vpack.c.b16 %v2511, %v2510
  %v2570 = vpack.c.b16 %v2513, %v2512
  %v2571 = vpack.c.b16 %v2515, %v2514
  %v2572 = vpack.c.b16 %v2517, %v2516
  %v2573 = vpack.c.b16 %v2519, %v2518
  %v2574 = vpack.c.b16 %v2521, %v2520
  %v2575 = vpack.c.b16 %v2523, %v2522
  %v2576 = vpack.c.b16 %v2525, %v2524
  %v2577 = vpack.c.b16 %v2527, %v2526
  %v2578 = vpack.c.b16 %v2529, %v2528
  %v2579 = vpack.c.b16 %v2531, %v2530
  %v2580 = vpack.c.b16 %v2533, %v2532
  %v2581 = vpack.c.b16 %v2535, %v2534
  %v2582 = vpack.c.b16 %v2537, %v2536
  %v2583 = vpack.c.b16 %v2539, %v2538
  %v2584 = vpack.c.b16 %v2541, %v2540
  %v2585 = vpack.c.b16 %v2543, %v2542
  %v2586 = vpack.c.b16 %v2545, %v2544
  %v2587 = vpack.c.b16 %v2547, %v2546
  %v2588 = vpack.c.b16 %v2549, %v2548
  %v2589 = vpack.c.b16 %v2551, %v2550
  %v2590 = vpack.c.b16 %v2553, %v2552
  %v2591 = vpack.c.b16 %v2555, %v2554
  %v2592 = vpack.c.b16 %v2557, %v2556
  %v2593 = vpack.c.b16 %v2559, %v2558
  %v2594 = vpack.c.b16 %v2561, %v2560
  %v2595 = vpack.c.b16 %v2563, %v2562
  %2628 = vmatprep.subr.bf16.mxu0 0
  %2629 = vmatpush1.bf16.msra.mxu0 %v2564
  %2630 = vmatprep.subr.bf16.mxu0 0
  %2631 = vmatpush1.bf16.msra.mxu0 %v2565
  %2632 = vmatprep.subr.bf16.mxu0 0
  %2633 = vmatpush1.bf16.msra.mxu0 %v2566
  %2634 = vmatprep.subr.bf16.mxu0 0
  %2635 = vmatpush1.bf16.msra.mxu0 %v2567
  %2636 = vmatprep.subr.bf16.mxu0 0
  %2637 = vmatpush1.bf16.msra.mxu0 %v2568
  %2638 = vmatprep.subr.bf16.mxu0 0
  %2639 = vmatpush1.bf16.msra.mxu0 %v2569
  %2640 = vmatprep.subr.bf16.mxu0 0
  %2641 = vmatpush1.bf16.msra.mxu0 %v2570
  %2642 = vmatprep.subr.bf16.mxu0 0
  %2643 = vmatpush1.bf16.msra.mxu0 %v2571
  %2644 = vmatprep.subr.bf16.mxu0 0
  %2645 = vmatpush1.bf16.msra.mxu0 %v2572
  %2646 = vmatprep.subr.bf16.mxu0 0
  %2647 = vmatpush1.bf16.msra.mxu0 %v2573
  %2648 = vmatprep.subr.bf16.mxu0 0
  %2649 = vmatpush1.bf16.msra.mxu0 %v2574
  %2650 = vmatprep.subr.bf16.mxu0 0
  %2651 = vmatpush1.bf16.msra.mxu0 %v2575
  %2652 = vmatprep.subr.bf16.mxu0 0
  %2653 = vmatpush1.bf16.msra.mxu0 %v2576
  %2654 = vmatprep.subr.bf16.mxu0 0
  %2655 = vmatpush1.bf16.msra.mxu0 %v2577
  %2656 = vmatprep.subr.bf16.mxu0 0
  %2657 = vmatpush1.bf16.msra.mxu0 %v2578
  %2658 = vmatprep.subr.bf16.mxu0 0
  %2659 = vmatpush1.bf16.msra.mxu0 %v2579
  %2660 = vmatprep.mubr.bf16.mxu0 %v2373
  %2661 = vmatmul.mubr.bf16.gmra.mrb[0].mxu0 %v2372
  %v2662 = vpop.f32.mrb[0].mxu0
  %v2663 = vadd.f32 0.0, %v2662
  %v2664 = vpop.f32.mrb[0].mxu0
  %v2665 = vpop.f32.mrb[0].mxu0
  %v2666 = vadd.f32 0.0, %v2665
  %v2667 = vpop.f32.mrb[0].mxu0
  %2668 = vmatprep.mubr.bf16.mxu0 %v2377
  %2669 = vmatmul.mubr.bf16.gmra.mrb[0].mxu0 %v2376
  %v2670 = vpop.f32.mrb[0].mxu0
  %v2671 = vadd.f32 0.0, %v2670
  %v2672 = vpop.f32.mrb[0].mxu0
  %v2673 = vpop.f32.mrb[0].mxu0
  %v2674 = vadd.f32 0.0, %v2673
  %v2675 = vpop.f32.mrb[0].mxu0
  %2676 = vmatprep.mubr.bf16.mxu0 %v2381
  %2677 = vmatmul.mubr.bf16.gmra.mrb[0].mxu0 %v2380
  %v2678 = vpop.f32.mrb[0].mxu0
  %v2679 = vadd.f32 0.0, %v2678
  %v2680 = vpop.f32.mrb[0].mxu0
  %v2681 = vpop.f32.mrb[0].mxu0
  %v2682 = vadd.f32 0.0, %v2681
  %v2683 = vpop.f32.mrb[0].mxu0
  %2684 = vmatprep.mubr.bf16.mxu0 %v2385
  %2685 = vmatmul.mubr.bf16.gmra.mrb[0].mxu0 %v2384
  %v2686 = vpop.f32.mrb[0].mxu0
  %v2687 = vadd.f32 0.0, %v2686
  %v2688 = vpop.f32.mrb[0].mxu0
  %v2689 = vpop.f32.mrb[0].mxu0
  %v2690 = vadd.f32 0.0, %v2689
  %v2691 = vpop.f32.mrb[0].mxu0
  %2692 = vmatprep.mubr.bf16.mxu0 %v2389
  %2693 = vmatmul.mubr.bf16.gmra.mrb[0].mxu0 %v2388
  %v2694 = vpop.f32.mrb[0].mxu0
  %v2695 = vadd.f32 0.0, %v2694
  %v2696 = vpop.f32.mrb[0].mxu0
  %v2697 = vpop.f32.mrb[0].mxu0
  %v2698 = vadd.f32 0.0, %v2697
  %v2699 = vpop.f32.mrb[0].mxu0
  %2700 = vmatprep.mubr.bf16.mxu0 %v2393
  %2701 = vmatmul.mubr.bf16.gmra.mrb[0].mxu0 %v2392
  %v2702 = vpop.f32.mrb[0].mxu0
  %v2703 = vadd.f32 0.0, %v2702
  %v2704 = vpop.f32.mrb[0].mxu0
  %v2705 = vpop.f32.mrb[0].mxu0
  %v2706 = vadd.f32 0.0, %v2705
  %v2707 = vpop.f32.mrb[0].mxu0
  %2708 = vmatprep.mubr.bf16.mxu0 %v2397
  %2709 = vmatmul.mubr.bf16.gmra.mrb[0].mxu0 %v2396
  %v2710 = vpop.f32.mrb[0].mxu0
  %v2711 = vadd.f32 0.0, %v2710
  %v2712 = vpop.f32.mrb[0].mxu0
  %v2713 = vpop.f32.mrb[0].mxu0
  %v2714 = vadd.f32 0.0, %v2713
  %v2715 = vpop.f32.mrb[0].mxu0
  %2716 = vmatprep.mubr.bf16.mxu0 %v2401
  %2717 = vmatmul.mubr.bf16.gmra.mrb[0].mxu0 %v2400
  %v2718 = vpop.f32.mrb[0].mxu0
  %v2719 = vadd.f32 0.0, %v2718
  %v2720 = vpop.f32.mrb[0].mxu0
  %v2721 = vpop.f32.mrb[0].mxu0
  %v2722 = vadd.f32 0.0, %v2721
  %v2723 = vpop.f32.mrb[0].mxu0
  %2724 = vdwg.mxu0
  %2725 = vmatprep.subr.bf16.mxu0 0
  %2726 = vmatpush1.bf16.msra.mxu0 %v2580
  %2727 = vmatprep.subr.bf16.mxu0 0
  %2728 = vmatpush1.bf16.msra.mxu0 %v2581
  %2729 = vmatprep.subr.bf16.mxu0 0
  %2730 = vmatpush1.bf16.msra.mxu0 %v2582
  %2731 = vmatprep.subr.bf16.mxu0 0
  %2732 = vmatpush1.bf16.msra.mxu0 %v2583
  %2733 = vmatprep.subr.bf16.mxu0 0
  %2734 = vmatpush1.bf16.msra.mxu0 %v2584
  %2735 = vmatprep.subr.bf16.mxu0 0
  %2736 = vmatpush1.bf16.msra.mxu0 %v2585
  %2737 = vmatprep.subr.bf16.mxu0 0
  %2738 = vmatpush1.bf16.msra.mxu0 %v2586
  %2739 = vmatprep.subr.bf16.mxu0 0
  %2740 = vmatpush1.bf16.msra.mxu0 %v2587
  %2741 = vmatprep.subr.bf16.mxu0 0
  %2742 = vmatpush1.bf16.msra.mxu0 %v2588
  %2743 = vmatprep.subr.bf16.mxu0 0
  %2744 = vmatpush1.bf16.msra.mxu0 %v2589
  %2745 = vmatprep.subr.bf16.mxu0 0
  %2746 = vmatpush1.bf16.msra.mxu0 %v2590
  %2747 = vmatprep.subr.bf16.mxu0 0
  %2748 = vmatpush1.bf16.msra.mxu0 %v2591
  %2749 = vmatprep.subr.bf16.mxu0 0
  %2750 = vmatpush1.bf16.msra.mxu0 %v2592
  %2751 = vmatprep.subr.bf16.mxu0 0
  %2752 = vmatpush1.bf16.msra.mxu0 %v2593
  %2753 = vmatprep.subr.bf16.mxu0 0
  %2754 = vmatpush1.bf16.msra.mxu0 %v2594
  %2755 = vmatprep.subr.bf16.mxu0 0
  %2756 = vmatpush1.bf16.msra.mxu0 %v2595
  %2757 = vmatprep.mubr.bf16.mxu0 %v2375
  %2758 = vmatmul.mubr.bf16.gmra.mrb[0].mxu0 %v2374
  %v2759 = vpop.f32.mrb[0].mxu0
  %v2760 = vadd.f32 %v2663, %v2759
  %v2761 = vpop.f32.mrb[0].mxu0
  %v2762 = vpop.f32.mrb[0].mxu0
  %v2763 = vadd.f32 %v2666, %v2762
  %v2764 = vpop.f32.mrb[0].mxu0
  %2765 = vmatprep.mubr.bf16.mxu0 %v2379
  %2766 = vmatmul.mubr.bf16.gmra.mrb[0].mxu0 %v2378
  %v2767 = vpop.f32.mrb[0].mxu0
  %v2768 = vadd.f32 %v2671, %v2767
  %v2769 = vpop.f32.mrb[0].mxu0
  %v2770 = vpop.f32.mrb[0].mxu0
  %v2771 = vadd.f32 %v2674, %v2770
  %v2772 = vpop.f32.mrb[0].mxu0
  %2773 = vmatprep.mubr.bf16.mxu0 %v2383
  %2774 = vmatmul.mubr.bf16.gmra.mrb[0].mxu0 %v2382
  %v2775 = vpop.f32.mrb[0].mxu0
  %v2776 = vadd.f32 %v2679, %v2775
  %v2777 = vpop.f32.mrb[0].mxu0
  %v2778 = vpop.f32.mrb[0].mxu0
  %v2779 = vadd.f32 %v2682, %v2778
  %v2780 = vpop.f32.mrb[0].mxu0
  %2781 = vmatprep.mubr.bf16.mxu0 %v2387
  %2782 = vmatmul.mubr.bf16.gmra.mrb[0].mxu0 %v2386
  %v2783 = vpop.f32.mrb[0].mxu0
  %v2784 = vadd.f32 %v2687, %v2783
  %v2785 = vpop.f32.mrb[0].mxu0
  %v2786 = vpop.f32.mrb[0].mxu0
  %v2787 = vadd.f32 %v2690, %v2786
  %v2788 = vpop.f32.mrb[0].mxu0
  %2789 = vmatprep.mubr.bf16.mxu0 %v2391
  %2790 = vmatmul.mubr.bf16.gmra.mrb[0].mxu0 %v2390
  %v2791 = vpop.f32.mrb[0].mxu0
  %v2792 = vadd.f32 %v2695, %v2791
  %v2793 = vpop.f32.mrb[0].mxu0
  %v2794 = vpop.f32.mrb[0].mxu0
  %v2795 = vadd.f32 %v2698, %v2794
  %v2796 = vpop.f32.mrb[0].mxu0
  %2797 = vmatprep.mubr.bf16.mxu0 %v2395
  %2798 = vmatmul.mubr.bf16.gmra.mrb[0].mxu0 %v2394
  %v2799 = vpop.f32.mrb[0].mxu0
  %v2800 = vadd.f32 %v2703, %v2799
  %v2801 = vpop.f32.mrb[0].mxu0
  %v2802 = vpop.f32.mrb[0].mxu0
  %v2803 = vadd.f32 %v2706, %v2802
  %v2804 = vpop.f32.mrb[0].mxu0
  %2805 = vmatprep.mubr.bf16.mxu0 %v2399
  %2806 = vmatmul.mubr.bf16.gmra.mrb[0].mxu0 %v2398
  %v2807 = vpop.f32.mrb[0].mxu0
  %v2808 = vadd.f32 %v2711, %v2807
  %v2809 = vpop.f32.mrb[0].mxu0
  %v2810 = vpop.f32.mrb[0].mxu0
  %v2811 = vadd.f32 %v2714, %v2810
  %v2812 = vpop.f32.mrb[0].mxu0
  %2813 = vmatprep.mubr.bf16.mxu0 %v2403
  %2814 = vmatmul.mubr.bf16.gmra.mrb[0].mxu0 %v2402
  %v2815 = vpop.f32.mrb[0].mxu0
  %v2816 = vadd.f32 %v2719, %v2815
  %v2817 = vpop.f32.mrb[0].mxu0
  %v2818 = vpop.f32.mrb[0].mxu0
  %v2819 = vadd.f32 %v2722, %v2818
  %v2820 = vpop.f32.mrb[0].mxu0
  %2821 = vdwg.mxu0
  %v2822 = vadd.f32 %v2760, %v2763
  %v2823 = vadd.f32 %v2822, %v2768
  %v2824 = vadd.f32 %v2823, %v2771
  %v2825 = vadd.f32 %v2824, %v2776
  %v2826 = vadd.f32 %v2825, %v2779
  %v2827 = vadd.f32 %v2826, %v2784
  %v2828 = vadd.f32 %v2827, %v2787
  %v2829 = vadd.f32 %v2828, %v2792
  %v2830 = vadd.f32 %v2829, %v2795
  %v2831 = vadd.f32 %v2830, %v2800
  %v2832 = vadd.f32 %v2831, %v2803
  %v2833 = vadd.f32 %v2832, %v2808
  %v2834 = vadd.f32 %v2833, %v2811
  %v2835 = vadd.f32 %v2834, %v2816
  %v2836 = vadd.f32 %v2835, %v2819
  %v2837 = vrot.slane %v2836, 4
  %v2838 = vadd.f32 %v2836, %v2837
  %v2839 = vrot.slane %v2838, 2
  %v2840 = vadd.f32 %v2838, %v2839
  %v2841 = vrot.slane %v2840, 1
  %v2842 = vadd.f32 %v2840, %v2841
  %v2843 = vadd.f32 %v2122, %v2842
  %v2844 = vmul.f32 %v2760, %v2760
  %v2845 = vmul.f32 %v2763, %v2763
  %v2846 = vmul.f32 %v2768, %v2768
  %v2847 = vmul.f32 %v2771, %v2771
  %v2848 = vmul.f32 %v2776, %v2776
  %v2849 = vmul.f32 %v2779, %v2779
  %v2850 = vmul.f32 %v2784, %v2784
  %v2851 = vmul.f32 %v2787, %v2787
  %v2852 = vmul.f32 %v2792, %v2792
  %v2853 = vmul.f32 %v2795, %v2795
  %v2854 = vmul.f32 %v2800, %v2800
  %v2855 = vmul.f32 %v2803, %v2803
  %v2856 = vmul.f32 %v2808, %v2808
  %v2857 = vmul.f32 %v2811, %v2811
  %v2858 = vmul.f32 %v2816, %v2816
  %v2859 = vmul.f32 %v2819, %v2819
  %v2860 = vadd.f32 %v2844, %v2845
  %v2861 = vadd.f32 %v2860, %v2846
  %v2862 = vadd.f32 %v2861, %v2847
  %v2863 = vadd.f32 %v2862, %v2848
  %v2864 = vadd.f32 %v2863, %v2849
  %v2865 = vadd.f32 %v2864, %v2850
  %v2866 = vadd.f32 %v2865, %v2851
  %v2867 = vadd.f32 %v2866, %v2852
  %v2868 = vadd.f32 %v2867, %v2853
  %v2869 = vadd.f32 %v2868, %v2854
  %v2870 = vadd.f32 %v2869, %v2855
  %v2871 = vadd.f32 %v2870, %v2856
  %v2872 = vadd.f32 %v2871, %v2857
  %v2873 = vadd.f32 %v2872, %v2858
  %v2874 = vadd.f32 %v2873, %v2859
  %v2875 = vrot.slane %v2874, 4
  %v2876 = vadd.f32 %v2874, %v2875
  %v2877 = vrot.slane %v2876, 2
  %v2878 = vadd.f32 %v2876, %v2877
  %v2879 = vrot.slane %v2878, 1
  %v2880 = vadd.f32 %v2878, %v2879
  %v2881 = vadd.f32 %v2160, %v2880
  %s2882 = scalar_lea.vmem %s4, 384
  %2883 = vst [vmem:[%s2882] sm:$0xff] %v2760
  %2884 = vst [vmem:[%s2882 + $0x8] sm:$0xff] %v2763
  %2885 = vst [vmem:[%s2882 + $0x10] sm:$0xff] %v2768
  %2886 = vst [vmem:[%s2882 + $0x18] sm:$0xff] %v2771
  %2887 = vst [vmem:[%s2882 + $0x20] sm:$0xff] %v2776
  %2888 = vst [vmem:[%s2882 + $0x28] sm:$0xff] %v2779
  %2889 = vst [vmem:[%s2882 + $0x30] sm:$0xff] %v2784
  %2890 = vst [vmem:[%s2882 + $0x38] sm:$0xff] %v2787
  %2891 = vst [vmem:[%s2882 + $0x40] sm:$0xff] %v2792
  %2892 = vst [vmem:[%s2882 + $0x48] sm:$0xff] %v2795
  %2893 = vst [vmem:[%s2882 + $0x50] sm:$0xff] %v2800
  %2894 = vst [vmem:[%s2882 + $0x58] sm:$0xff] %v2803
  %2895 = vst [vmem:[%s2882 + $0x60] sm:$0xff] %v2808
  %2896 = vst [vmem:[%s2882 + $0x68] sm:$0xff] %v2811
  %2897 = vst [vmem:[%s2882 + $0x70] sm:$0xff] %v2816
  %2898 = vst [vmem:[%s2882 + $0x78] sm:$0xff] %v2819
  %v2899 = vmul.f32 %v2843, 0.001953125
  %v2900 = vmul.f32 %v2881, 0.001953125
  %v2901 = vmul.f32 %v2899, %v2899
  %v2902 = vsub.f32 %v2900, %v2901
  %v2903 = vld [vmem:[%s2] sm:$0x1]
  %v2904 = vadd.f32 %v2902, 1e-05
  %v2905 = vrsqrt.pop %v2904
  %v2906 = vmul.f32 %v2903, %v2905
  %v2907 = vld [vmem:[%s3] sm:$0x1]
  %v2908 = vmul.f32 %v2899, %v2906
  %v2909 = vsub.f32 %v2907, %v2908
  %v2910 = vld [vmem:[%s4] sm:$0xff]
  %v2911 = vld [vmem:[%s4 + $0x8] sm:$0xff]
  %v2912 = vld [vmem:[%s4 + $0x10] sm:$0xff]
  %v2913 = vld [vmem:[%s4 + $0x18] sm:$0xff]
  %v2914 = vld [vmem:[%s4 + $0x20] sm:$0xff]
  %v2915 = vld [vmem:[%s4 + $0x28] sm:$0xff]
  %v2916 = vld [vmem:[%s4 + $0x30] sm:$0xff]
  %v2917 = vld [vmem:[%s4 + $0x38] sm:$0xff]
  %v2918 = vld [vmem:[%s4 + $0x40] sm:$0xff]
  %v2919 = vld [vmem:[%s4 + $0x48] sm:$0xff]
  %v2920 = vld [vmem:[%s4 + $0x50] sm:$0xff]
  %v2921 = vld [vmem:[%s4 + $0x58] sm:$0xff]
  %v2922 = vld [vmem:[%s4 + $0x60] sm:$0xff]
  %v2923 = vld [vmem:[%s4 + $0x68] sm:$0xff]
  %v2924 = vld [vmem:[%s4 + $0x70] sm:$0xff]
  %v2925 = vld [vmem:[%s4 + $0x78] sm:$0xff]
  %v2927 = vlaneseq
  %v2928 = vshrl.u32 %v2927, 7
  %v2929 = vsub.s32 0, %v2928
  %v2930 = vrot.slane %v2906, %v2929
  %v2932 = vmul.f32 %v2910, %v2930
  %v2933 = vmul.f32 %v2911, %v2930
  %v2934 = vmul.f32 %v2912, %v2930
  %v2935 = vmul.f32 %v2913, %v2930
  %v2936 = vmul.f32 %v2914, %v2930
  %v2937 = vmul.f32 %v2915, %v2930
  %v2938 = vmul.f32 %v2916, %v2930
  %v2939 = vmul.f32 %v2917, %v2930
  %v2940 = vmul.f32 %v2918, %v2930
  %v2941 = vmul.f32 %v2919, %v2930
  %v2942 = vmul.f32 %v2920, %v2930
  %v2943 = vmul.f32 %v2921, %v2930
  %v2944 = vmul.f32 %v2922, %v2930
  %v2945 = vmul.f32 %v2923, %v2930
  %v2946 = vmul.f32 %v2924, %v2930
  %v2947 = vmul.f32 %v2925, %v2930
  %v2949 = vlaneseq
  %v2950 = vshrl.u32 %v2949, 7
  %v2951 = vsub.s32 0, %v2950
  %v2952 = vrot.slane %v2909, %v2951
  %v2954 = vadd.f32 %v2932, %v2952
  %v2955 = vadd.f32 %v2933, %v2952
  %v2956 = vadd.f32 %v2934, %v2952
  %v2957 = vadd.f32 %v2935, %v2952
  %v2958 = vadd.f32 %v2936, %v2952
  %v2959 = vadd.f32 %v2937, %v2952
  %v2960 = vadd.f32 %v2938, %v2952
  %v2961 = vadd.f32 %v2939, %v2952
  %v2962 = vadd.f32 %v2940, %v2952
  %v2963 = vadd.f32 %v2941, %v2952
  %v2964 = vadd.f32 %v2942, %v2952
  %v2965 = vadd.f32 %v2943, %v2952
  %v2966 = vadd.f32 %v2944, %v2952
  %v2967 = vadd.f32 %v2945, %v2952
  %v2968 = vadd.f32 %v2946, %v2952
  %v2969 = vadd.f32 %v2947, %v2952
  %v2970 = vmax.f32 %v2954, 0.0
  %v2971 = vmax.f32 %v2955, 0.0
  %v2972 = vmax.f32 %v2956, 0.0
  %v2973 = vmax.f32 %v2957, 0.0
  %v2974 = vmax.f32 %v2958, 0.0
  %v2975 = vmax.f32 %v2959, 0.0
  %v2976 = vmax.f32 %v2960, 0.0
  %v2977 = vmax.f32 %v2961, 0.0
  %v2978 = vmax.f32 %v2962, 0.0
  %v2979 = vmax.f32 %v2963, 0.0
  %v2980 = vmax.f32 %v2964, 0.0
  %v2981 = vmax.f32 %v2965, 0.0
  %v2982 = vmax.f32 %v2966, 0.0
  %v2983 = vmax.f32 %v2967, 0.0
  %v2984 = vmax.f32 %v2968, 0.0
  %v2985 = vmax.f32 %v2969, 0.0
  %2986 = vst [vmem:[%s4] sm:$0xff] %v2970
  %2987 = vst [vmem:[%s4 + $0x8] sm:$0xff] %v2971
  %2988 = vst [vmem:[%s4 + $0x10] sm:$0xff] %v2972
  %2989 = vst [vmem:[%s4 + $0x18] sm:$0xff] %v2973
  %2990 = vst [vmem:[%s4 + $0x20] sm:$0xff] %v2974
  %2991 = vst [vmem:[%s4 + $0x28] sm:$0xff] %v2975
  %2992 = vst [vmem:[%s4 + $0x30] sm:$0xff] %v2976
  %2993 = vst [vmem:[%s4 + $0x38] sm:$0xff] %v2977
  %2994 = vst [vmem:[%s4 + $0x40] sm:$0xff] %v2978
  %2995 = vst [vmem:[%s4 + $0x48] sm:$0xff] %v2979
  %2996 = vst [vmem:[%s4 + $0x50] sm:$0xff] %v2980
  %2997 = vst [vmem:[%s4 + $0x58] sm:$0xff] %v2981
  %2998 = vst [vmem:[%s4 + $0x60] sm:$0xff] %v2982
  %2999 = vst [vmem:[%s4 + $0x68] sm:$0xff] %v2983
  %3000 = vst [vmem:[%s4 + $0x70] sm:$0xff] %v2984
  %3001 = vst [vmem:[%s4 + $0x78] sm:$0xff] %v2985
  %v3002 = vld [vmem:[%s1440] sm:$0xff]
  %v3003 = vld [vmem:[%s1440 + $0x8] sm:$0xff]
  %v3004 = vld [vmem:[%s1440 + $0x10] sm:$0xff]
  %v3005 = vld [vmem:[%s1440 + $0x18] sm:$0xff]
  %v3006 = vld [vmem:[%s1440 + $0x20] sm:$0xff]
  %v3007 = vld [vmem:[%s1440 + $0x28] sm:$0xff]
  %v3008 = vld [vmem:[%s1440 + $0x30] sm:$0xff]
  %v3009 = vld [vmem:[%s1440 + $0x38] sm:$0xff]
  %v3010 = vld [vmem:[%s1440 + $0x40] sm:$0xff]
  %v3011 = vld [vmem:[%s1440 + $0x48] sm:$0xff]
  %v3012 = vld [vmem:[%s1440 + $0x50] sm:$0xff]
  %v3013 = vld [vmem:[%s1440 + $0x58] sm:$0xff]
  %v3014 = vld [vmem:[%s1440 + $0x60] sm:$0xff]
  %v3015 = vld [vmem:[%s1440 + $0x68] sm:$0xff]
  %v3016 = vld [vmem:[%s1440 + $0x70] sm:$0xff]
  %v3017 = vld [vmem:[%s1440 + $0x78] sm:$0xff]
  %v3018 = vmul.f32 %v3002, %v2930
  %v3019 = vmul.f32 %v3003, %v2930
  %v3020 = vmul.f32 %v3004, %v2930
  %v3021 = vmul.f32 %v3005, %v2930
  %v3022 = vmul.f32 %v3006, %v2930
  %v3023 = vmul.f32 %v3007, %v2930
  %v3024 = vmul.f32 %v3008, %v2930
  %v3025 = vmul.f32 %v3009, %v2930
  %v3026 = vmul.f32 %v3010, %v2930
  %v3027 = vmul.f32 %v3011, %v2930
  %v3028 = vmul.f32 %v3012, %v2930
  %v3029 = vmul.f32 %v3013, %v2930
  %v3030 = vmul.f32 %v3014, %v2930
  %v3031 = vmul.f32 %v3015, %v2930
  %v3032 = vmul.f32 %v3016, %v2930
  %v3033 = vmul.f32 %v3017, %v2930
  %v3034 = vadd.f32 %v3018, %v2952
  %v3035 = vadd.f32 %v3019, %v2952
  %v3036 = vadd.f32 %v3020, %v2952
  %v3037 = vadd.f32 %v3021, %v2952
  %v3038 = vadd.f32 %v3022, %v2952
  %v3039 = vadd.f32 %v3023, %v2952
  %v3040 = vadd.f32 %v3024, %v2952
  %v3041 = vadd.f32 %v3025, %v2952
  %v3042 = vadd.f32 %v3026, %v2952
  %v3043 = vadd.f32 %v3027, %v2952
  %v3044 = vadd.f32 %v3028, %v2952
  %v3045 = vadd.f32 %v3029, %v2952
  %v3046 = vadd.f32 %v3030, %v2952
  %v3047 = vadd.f32 %v3031, %v2952
  %v3048 = vadd.f32 %v3032, %v2952
  %v3049 = vadd.f32 %v3033, %v2952
  %v3050 = vmax.f32 %v3034, 0.0
  %v3051 = vmax.f32 %v3035, 0.0
  %v3052 = vmax.f32 %v3036, 0.0
  %v3053 = vmax.f32 %v3037, 0.0
  %v3054 = vmax.f32 %v3038, 0.0
  %v3055 = vmax.f32 %v3039, 0.0
  %v3056 = vmax.f32 %v3040, 0.0
  %v3057 = vmax.f32 %v3041, 0.0
  %v3058 = vmax.f32 %v3042, 0.0
  %v3059 = vmax.f32 %v3043, 0.0
  %v3060 = vmax.f32 %v3044, 0.0
  %v3061 = vmax.f32 %v3045, 0.0
  %v3062 = vmax.f32 %v3046, 0.0
  %v3063 = vmax.f32 %v3047, 0.0
  %v3064 = vmax.f32 %v3048, 0.0
  %v3065 = vmax.f32 %v3049, 0.0
  %3066 = vst [vmem:[%s1440] sm:$0xff] %v3050
  %3067 = vst [vmem:[%s1440 + $0x8] sm:$0xff] %v3051
  %3068 = vst [vmem:[%s1440 + $0x10] sm:$0xff] %v3052
  %3069 = vst [vmem:[%s1440 + $0x18] sm:$0xff] %v3053
  %3070 = vst [vmem:[%s1440 + $0x20] sm:$0xff] %v3054
  %3071 = vst [vmem:[%s1440 + $0x28] sm:$0xff] %v3055
  %3072 = vst [vmem:[%s1440 + $0x30] sm:$0xff] %v3056
  %3073 = vst [vmem:[%s1440 + $0x38] sm:$0xff] %v3057
  %3074 = vst [vmem:[%s1440 + $0x40] sm:$0xff] %v3058
  %3075 = vst [vmem:[%s1440 + $0x48] sm:$0xff] %v3059
  %3076 = vst [vmem:[%s1440 + $0x50] sm:$0xff] %v3060
  %3077 = vst [vmem:[%s1440 + $0x58] sm:$0xff] %v3061
  %3078 = vst [vmem:[%s1440 + $0x60] sm:$0xff] %v3062
  %3079 = vst [vmem:[%s1440 + $0x68] sm:$0xff] %v3063
  %3080 = vst [vmem:[%s1440 + $0x70] sm:$0xff] %v3064
  %3081 = vst [vmem:[%s1440 + $0x78] sm:$0xff] %v3065
  %v3082 = vld [vmem:[%s2161] sm:$0xff]
  %v3083 = vld [vmem:[%s2161 + $0x8] sm:$0xff]
  %v3084 = vld [vmem:[%s2161 + $0x10] sm:$0xff]
  %v3085 = vld [vmem:[%s2161 + $0x18] sm:$0xff]
  %v3086 = vld [vmem:[%s2161 + $0x20] sm:$0xff]
  %v3087 = vld [vmem:[%s2161 + $0x28] sm:$0xff]
  %v3088 = vld [vmem:[%s2161 + $0x30] sm:$0xff]
  %v3089 = vld [vmem:[%s2161 + $0x38] sm:$0xff]
  %v3090 = vld [vmem:[%s2161 + $0x40] sm:$0xff]
  %v3091 = vld [vmem:[%s2161 + $0x48] sm:$0xff]
  %v3092 = vld [vmem:[%s2161 + $0x50] sm:$0xff]
  %v3093 = vld [vmem:[%s2161 + $0x58] sm:$0xff]
  %v3094 = vld [vmem:[%s2161 + $0x60] sm:$0xff]
  %v3095 = vld [vmem:[%s2161 + $0x68] sm:$0xff]
  %v3096 = vld [vmem:[%s2161 + $0x70] sm:$0xff]
  %v3097 = vld [vmem:[%s2161 + $0x78] sm:$0xff]
  %v3098 = vmul.f32 %v3082, %v2930
  %v3099 = vmul.f32 %v3083, %v2930
  %v3100 = vmul.f32 %v3084, %v2930
  %v3101 = vmul.f32 %v3085, %v2930
  %v3102 = vmul.f32 %v3086, %v2930
  %v3103 = vmul.f32 %v3087, %v2930
  %v3104 = vmul.f32 %v3088, %v2930
  %v3105 = vmul.f32 %v3089, %v2930
  %v3106 = vmul.f32 %v3090, %v2930
  %v3107 = vmul.f32 %v3091, %v2930
  %v3108 = vmul.f32 %v3092, %v2930
  %v3109 = vmul.f32 %v3093, %v2930
  %v3110 = vmul.f32 %v3094, %v2930
  %v3111 = vmul.f32 %v3095, %v2930
  %v3112 = vmul.f32 %v3096, %v2930
  %v3113 = vmul.f32 %v3097, %v2930
  %v3114 = vadd.f32 %v3098, %v2952
  %v3115 = vadd.f32 %v3099, %v2952
  %v3116 = vadd.f32 %v3100, %v2952
  %v3117 = vadd.f32 %v3101, %v2952
  %v3118 = vadd.f32 %v3102, %v2952
  %v3119 = vadd.f32 %v3103, %v2952
  %v3120 = vadd.f32 %v3104, %v2952
  %v3121 = vadd.f32 %v3105, %v2952
  %v3122 = vadd.f32 %v3106, %v2952
  %v3123 = vadd.f32 %v3107, %v2952
  %v3124 = vadd.f32 %v3108, %v2952
  %v3125 = vadd.f32 %v3109, %v2952
  %v3126 = vadd.f32 %v3110, %v2952
  %v3127 = vadd.f32 %v3111, %v2952
  %v3128 = vadd.f32 %v3112, %v2952
  %v3129 = vadd.f32 %v3113, %v2952
  %v3130 = vmax.f32 %v3114, 0.0
  %v3131 = vmax.f32 %v3115, 0.0
  %v3132 = vmax.f32 %v3116, 0.0
  %v3133 = vmax.f32 %v3117, 0.0
  %v3134 = vmax.f32 %v3118, 0.0
  %v3135 = vmax.f32 %v3119, 0.0
  %v3136 = vmax.f32 %v3120, 0.0
  %v3137 = vmax.f32 %v3121, 0.0
  %v3138 = vmax.f32 %v3122, 0.0
  %v3139 = vmax.f32 %v3123, 0.0
  %v3140 = vmax.f32 %v3124, 0.0
  %v3141 = vmax.f32 %v3125, 0.0
  %v3142 = vmax.f32 %v3126, 0.0
  %v3143 = vmax.f32 %v3127, 0.0
  %v3144 = vmax.f32 %v3128, 0.0
  %v3145 = vmax.f32 %v3129, 0.0
  %3146 = vst [vmem:[%s2161] sm:$0xff] %v3130
  %3147 = vst [vmem:[%s2161 + $0x8] sm:$0xff] %v3131
  %3148 = vst [vmem:[%s2161 + $0x10] sm:$0xff] %v3132
  %3149 = vst [vmem:[%s2161 + $0x18] sm:$0xff] %v3133
  %3150 = vst [vmem:[%s2161 + $0x20] sm:$0xff] %v3134
  %3151 = vst [vmem:[%s2161 + $0x28] sm:$0xff] %v3135
  %3152 = vst [vmem:[%s2161 + $0x30] sm:$0xff] %v3136
  %3153 = vst [vmem:[%s2161 + $0x38] sm:$0xff] %v3137
  %3154 = vst [vmem:[%s2161 + $0x40] sm:$0xff] %v3138
  %3155 = vst [vmem:[%s2161 + $0x48] sm:$0xff] %v3139
  %3156 = vst [vmem:[%s2161 + $0x50] sm:$0xff] %v3140
  %3157 = vst [vmem:[%s2161 + $0x58] sm:$0xff] %v3141
  %3158 = vst [vmem:[%s2161 + $0x60] sm:$0xff] %v3142
  %3159 = vst [vmem:[%s2161 + $0x68] sm:$0xff] %v3143
  %3160 = vst [vmem:[%s2161 + $0x70] sm:$0xff] %v3144
  %3161 = vst [vmem:[%s2161 + $0x78] sm:$0xff] %v3145
  %v3162 = vld [vmem:[%s2882] sm:$0xff]
  %v3163 = vld [vmem:[%s2882 + $0x8] sm:$0xff]
  %v3164 = vld [vmem:[%s2882 + $0x10] sm:$0xff]
  %v3165 = vld [vmem:[%s2882 + $0x18] sm:$0xff]
  %v3166 = vld [vmem:[%s2882 + $0x20] sm:$0xff]
  %v3167 = vld [vmem:[%s2882 + $0x28] sm:$0xff]
  %v3168 = vld [vmem:[%s2882 + $0x30] sm:$0xff]
  %v3169 = vld [vmem:[%s2882 + $0x38] sm:$0xff]
  %v3170 = vld [vmem:[%s2882 + $0x40] sm:$0xff]
  %v3171 = vld [vmem:[%s2882 + $0x48] sm:$0xff]
  %v3172 = vld [vmem:[%s2882 + $0x50] sm:$0xff]
  %v3173 = vld [vmem:[%s2882 + $0x58] sm:$0xff]
  %v3174 = vld [vmem:[%s2882 + $0x60] sm:$0xff]
  %v3175 = vld [vmem:[%s2882 + $0x68] sm:$0xff]
  %v3176 = vld [vmem:[%s2882 + $0x70] sm:$0xff]
  %v3177 = vld [vmem:[%s2882 + $0x78] sm:$0xff]
  %v3178 = vmul.f32 %v3162, %v2930
  %v3179 = vmul.f32 %v3163, %v2930
  %v3180 = vmul.f32 %v3164, %v2930
  %v3181 = vmul.f32 %v3165, %v2930
  %v3182 = vmul.f32 %v3166, %v2930
  %v3183 = vmul.f32 %v3167, %v2930
  %v3184 = vmul.f32 %v3168, %v2930
  %v3185 = vmul.f32 %v3169, %v2930
  %v3186 = vmul.f32 %v3170, %v2930
  %v3187 = vmul.f32 %v3171, %v2930
  %v3188 = vmul.f32 %v3172, %v2930
  %v3189 = vmul.f32 %v3173, %v2930
  %v3190 = vmul.f32 %v3174, %v2930
  %v3191 = vmul.f32 %v3175, %v2930
  %v3192 = vmul.f32 %v3176, %v2930
  %v3193 = vmul.f32 %v3177, %v2930
  %v3194 = vadd.f32 %v3178, %v2952
  %v3195 = vadd.f32 %v3179, %v2952
  %v3196 = vadd.f32 %v3180, %v2952
  %v3197 = vadd.f32 %v3181, %v2952
  %v3198 = vadd.f32 %v3182, %v2952
  %v3199 = vadd.f32 %v3183, %v2952
  %v3200 = vadd.f32 %v3184, %v2952
  %v3201 = vadd.f32 %v3185, %v2952
  %v3202 = vadd.f32 %v3186, %v2952
  %v3203 = vadd.f32 %v3187, %v2952
  %v3204 = vadd.f32 %v3188, %v2952
  %v3205 = vadd.f32 %v3189, %v2952
  %v3206 = vadd.f32 %v3190, %v2952
  %v3207 = vadd.f32 %v3191, %v2952
  %v3208 = vadd.f32 %v3192, %v2952
  %v3209 = vadd.f32 %v3193, %v2952
  %v3210 = vmax.f32 %v3194, 0.0
  %v3211 = vmax.f32 %v3195, 0.0
  %v3212 = vmax.f32 %v3196, 0.0
  %v3213 = vmax.f32 %v3197, 0.0
  %v3214 = vmax.f32 %v3198, 0.0
  %v3215 = vmax.f32 %v3199, 0.0
  %v3216 = vmax.f32 %v3200, 0.0
  %v3217 = vmax.f32 %v3201, 0.0
  %v3218 = vmax.f32 %v3202, 0.0
  %v3219 = vmax.f32 %v3203, 0.0
  %v3220 = vmax.f32 %v3204, 0.0
  %v3221 = vmax.f32 %v3205, 0.0
  %v3222 = vmax.f32 %v3206, 0.0
  %v3223 = vmax.f32 %v3207, 0.0
  %v3224 = vmax.f32 %v3208, 0.0
  %v3225 = vmax.f32 %v3209, 0.0
  %3226 = vst [vmem:[%s2882] sm:$0xff] %v3210
  %3227 = vst [vmem:[%s2882 + $0x8] sm:$0xff] %v3211
  %3228 = vst [vmem:[%s2882 + $0x10] sm:$0xff] %v3212
  %3229 = vst [vmem:[%s2882 + $0x18] sm:$0xff] %v3213
  %3230 = vst [vmem:[%s2882 + $0x20] sm:$0xff] %v3214
  %3231 = vst [vmem:[%s2882 + $0x28] sm:$0xff] %v3215
  %3232 = vst [vmem:[%s2882 + $0x30] sm:$0xff] %v3216
  %3233 = vst [vmem:[%s2882 + $0x38] sm:$0xff] %v3217
  %3234 = vst [vmem:[%s2882 + $0x40] sm:$0xff] %v3218
  %3235 = vst [vmem:[%s2882 + $0x48] sm:$0xff] %v3219
  %3236 = vst [vmem:[%s2882 + $0x50] sm:$0xff] %v3220
  %3237 = vst [vmem:[%s2882 + $0x58] sm:$0xff] %v3221
  %3238 = vst [vmem:[%s2882 + $0x60] sm:$0xff] %v3222
  %3239 = vst [vmem:[%s2882 + $0x68] sm:$0xff] %v3223
  %3240 = vst [vmem:[%s2882 + $0x70] sm:$0xff] %v3224
  %3241 = vst [vmem:[%s2882 + $0x78] sm:$0xff] %v3225
  // Predicated region
  $region18: #{generative_forward.6} parent=0 // pred_check
    _
  $region19: #{generative_forward.6} parent=0 // pred_check_branch
    %3243 = sbr.rel (0) target = $region21
  $region20: #{generative_forward.6} parent=0 // pred_region
    _
  $region21: #{generative_forward.6} parent=0 // pred_fallthru
    _
  // Predicated region
  $region22: #{generative_forward.6} parent=0 // pred_check
    _
  $region23: #{generative_forward.6} parent=0 // pred_check_branch
    %3245 = sbr.rel (0) target = $region25
  $region24: #{generative_forward.6} parent=0 // pred_region
    _
  $region25: #{generative_forward.6} parent=0 // pred_fallthru
    _

// kernel: generative_forward.7
$region0: #{generative_forward.7}
  #allocation0 [shape = 'u32[]', space=smem, size = 0x4, offset = 0x4, fixed_abs, tag = 'smem constant byte address 0x4 - core index']
  #allocation1 [shape = 'u32[144,128]{1,0:T(1,128)}', space=vmem, size = 0x12000, scoped, tag = 'internal scratch']
  %s0 = inlined_call_operand.vmem [shape: bf16[4,512,512], index: 0, kind: input, shape index: {}]
  %s1 = inlined_call_operand.vmem [shape: bf16[4,512,128], index: 1, kind: input, shape index: {}]
  %s2 = inlined_call_operand.vmem [shape: f32[4,512,128], index: 2, kind: output, shape index: {}]
  %s3 = sld [smem:[#allocation0]]
  $region41: #{generative_forward.7} parent=0
    _
  %s5 = ssub.s32 1, %s3
  %s6 = scalar_select 0, %s5, %s3
  loop: start=0, step=1, limit=6
  $region2: #{generative_forward.7} parent=0 // loop_pre_header
    _
  $region3: #{generative_forward.7} parent=0 // loop_header
    %s8 = sphi 0, %s12
    %p9 = scmp.ge.s32.totalorder %s8, 6
    %s18 = sphi 0, %s20
    %s21 = sphi 0, %s18
    %s22 = sphi 0, %s21
    %s38 = sphi 0, %s22
    %s44 = sphi 0, %s46
    %s47 = sphi 0, %s44
    %s48 = sphi 0, %s47
    %s64 = sphi 0, %s48
    %s70 = sphi 0, %s72
    %s73 = sphi 0, %s70
    %s74 = sphi 0, %s73
    %s90 = sphi 0, %s74
  $region4: #{generative_forward.7} parent=0 // loop_header_branch
    %11 = sbr.rel (%p9) target = $region8
  $region5: #{generative_forward.7} parent=0 // loop_body
    %s13 = ssub.s32 %s8, 1
    %s14 = ssub.s32 %s8, 2
    %s15 = sadd.s32 %s8, 1
    %s16 = ssub.s32 %s8, %s15
    %p17 = scmp.eq.s32.totalorder %s16, 0
    %s19 = sadd.s32 %s18, 1
    %s20 = scalar_select %p17, %s18, %s19
    %p23 = pneg %p17
    %p24 = scmp.eq.s32.totalorder %s8, 3
    %p25 = por %p23, %p24
    %p26 = scmp.ne.s32.totalorder %s18, %s21
    %p27 = scmp.eq.s32.totalorder %s8, 0
    %p28 = por %p26, %p27
    %p29 = scmp.ne.s32.totalorder %s18, %s21
    %p30 = scmp.eq.s32.totalorder %s13, 3
    %p31 = por %p29, %p30
    %p32 = scmp.ne.s32.totalorder %s21, %s22
    %p33 = scmp.eq.s32.totalorder %s13, 0
    %p34 = por %p32, %p33
    %p35 = scmp.ne.s32.totalorder %s21, %s22
    %p36 = scmp.eq.s32.totalorder %s14, 3
    %p37 = por %p35, %p36
    %p39 = scmp.ne.s32.totalorder %s22, %s38
    %p40 = scmp.eq.s32.totalorder %s14, 0
    %p41 = por %p39, %p40
    %s42 = ssub.s32 %s8, %s15
    %p43 = scmp.eq.s32.totalorder %s42, 0
    %s45 = sadd.s32 %s44, 1
    %s46 = scalar_select %p43, %s44, %s45
    %p49 = pneg %p43
    %p50 = scmp.eq.s32.totalorder %s8, 3
    %p51 = por %p49, %p50
    %p52 = scmp.ne.s32.totalorder %s44, %s47
    %p53 = scmp.eq.s32.totalorder %s8, 0
    %p54 = por %p52, %p53
    %p55 = scmp.ne.s32.totalorder %s44, %s47
    %p56 = scmp.eq.s32.totalorder %s13, 3
    %p57 = por %p55, %p56
    %p58 = scmp.ne.s32.totalorder %s47, %s48
    %p59 = scmp.eq.s32.totalorder %s13, 0
    %p60 = por %p58, %p59
    %p61 = scmp.ne.s32.totalorder %s47, %s48
    %p62 = scmp.eq.s32.totalorder %s14, 3
    %p63 = por %p61, %p62
    %p65 = scmp.ne.s32.totalorder %s48, %s64
    %p66 = scmp.eq.s32.totalorder %s14, 0
    %p67 = por %p65, %p66
    %s68 = ssub.s32 %s8, %s15
    %p69 = scmp.eq.s32.totalorder %s68, 0
    %s71 = sadd.s32 %s70, 1
    %s72 = scalar_select %p69, %s70, %s71
    %p75 = pneg %p69
    %p76 = scmp.eq.s32.totalorder %s8, 3
    %p77 = por %p75, %p76
    %p78 = scmp.ne.s32.totalorder %s70, %s73
    %p79 = scmp.eq.s32.totalorder %s8, 0
    %p80 = por %p78, %p79
    %p81 = scmp.ne.s32.totalorder %s70, %s73
    %p82 = scmp.eq.s32.totalorder %s13, 3
    %p83 = por %p81, %p82
    %p84 = scmp.ne.s32.totalorder %s73, %s74
    %p85 = scmp.eq.s32.totalorder %s13, 0
    %p86 = por %p84, %p85
    %p87 = scmp.ne.s32.totalorder %s73, %s74
    %p88 = scmp.eq.s32.totalorder %s14, 3
    %p89 = por %p87, %p88
    %p91 = scmp.ne.s32.totalorder %s74, %s90
    %p92 = scmp.eq.s32.totalorder %s14, 0
    %p93 = por %p91, %p92
    %p94 = scmp.le.s32.totalorder 1, %s8
    %p95 = scmp.lt.s32.totalorder %s8, 5
    %p96 = pnand %p94, %p95
    %p97 = pneg %p96
    // Predicated region
    $region9: #{generative_forward.7} parent=5 // pred_check
      _
    $region10: #{generative_forward.7} parent=5 // pred_check_branch
      %99 = sbr.rel (%p96) target = $region12
    $region11: #{generative_forward.7} parent=5 // pred_region
      %s100 = ssub.s32 %s8, 1
    $region12: #{generative_forward.7} parent=5 // pred_fallthru
      _
    %p101 = scmp.lt.s32.totalorder %s8, 4
    // Predicated region
    $region13: #{generative_forward.7} parent=5 // pred_check
      %p102 = pneg %p101
    $region14: #{generative_forward.7} parent=5 // pred_check_branch
      %104 = sbr.rel (%p102) target = $region16
    $region15: #{generative_forward.7} parent=5 // pred_region
      // Predicated region
      $region17: #{generative_forward.7} parent=15 // pred_check
        %p105 = pneg %p28
      $region18: #{generative_forward.7} parent=15 // pred_check_branch
        %107 = sbr.rel (%p105) target = $region20
      $region19: #{generative_forward.7} parent=15 // pred_region
        %p108 = scmp.lt.s32.totalorder %s8, 3
        %s109 = scalar_select %p108, %s8, 3
        %s110 = smul.addr %s109, 256
        %s111 = smul.addr %s110, 4
        %s112 = scalar_lea.vmem %s0, %s111
      $region20: #{generative_forward.7} parent=15 // pred_fallthru
        _
      // Predicated region
      $region21: #{generative_forward.7} parent=15 // pred_check
        %p113 = pneg %p54
      $region22: #{generative_forward.7} parent=15 // pred_check_branch
        %115 = sbr.rel (%p113) target = $region24
      $region23: #{generative_forward.7} parent=15 // pred_region
        %p116 = scmp.lt.s32.totalorder %s8, 3
        %s117 = scalar_select %p116, %s8, 3
        %s118 = smul.addr %s117, 64
        %s119 = smul.addr %s118, 4
        %s120 = scalar_lea.vmem %s1, %s119
      $region24: #{generative_forward.7} parent=15 // pred_fallthru
        _
    $region16: #{generative_forward.7} parent=5 // pred_fallthru
      _
    %p121 = scmp.le.s32.totalorder 1, %s8
    %p122 = scmp.lt.s32.totalorder %s8, 5
    %p123 = pnand %p121, %p122
    %p124 = pneg %p123
    // Predicated region
    $region25: #{generative_forward.7} parent=5 // pred_check
      _
    $region26: #{generative_forward.7} parent=5 // pred_check_branch
      %126 = sbr.rel (%p123) target = $region28
    $region27: #{generative_forward.7} parent=5 // pred_region
      %s127 = ssub.s32 %s8, 1
      %p128 = scmp.lt.s32.totalorder %s13, 3
      %s129 = scalar_select %p128, %s13, 3
      %s130 = smul.addr %s129, 256
      %s131 = smul.addr %s130, 4
      %s132 = scalar_lea.vmem %s0, %s131
      %p133 = pneg %p34
      %p134 = pneg %p31
      %p135 = scmp.lt.s32.totalorder %s13, 3
      %s136 = scalar_select %p135, %s13, 3
      %s137 = smul.addr %s136, 64
      %s138 = smul.addr %s137, 4
      %s139 = scalar_lea.vmem %s1, %s138
      %p140 = pneg %p60
      %p141 = pneg %p57
      %p142 = pneg %p86
      %p143 = pneg %p83
      %p144 = scmp.lt.s32.totalorder %s13, 3
      %s145 = scalar_select %p144, %s13, 3
      %s146 = smul.addr %s145, 64
      %s147 = smul.addr %s146, 8
      %s148 = scalar_lea.vmem %s2, %s147
      %p149 = scmp.lt.s32.totalorder %s13, 3
      %s150 = scalar_select %p149, %s13, 3
      %s151 = smul.addr %s150, 256
      %s152 = smul.addr %s151, 4
      %s153 = scalar_lea.vmem %s0, %s152
      %p154 = scmp.lt.s32.totalorder %s13, 3
      %s155 = scalar_select %p154, %s13, 3
      %s156 = smul.addr %s155, 64
      %s157 = smul.addr %s156, 4
      %s158 = scalar_lea.vmem %s1, %s157
      %p159 = scmp.lt.s32.totalorder %s13, 3
      %s160 = scalar_select %p159, %s13, 3
      %s161 = smul.addr %s160, 64
      %s162 = smul.addr %s161, 8
      %s163 = scalar_lea.vmem %s2, %s162
      %v165 = vld [vmem:[%s153] sm:$0xff]
      %v166 = vld [vmem:[%s153 + $0x8] sm:$0xff]
      %v167 = vld [vmem:[%s153 + $0x10] sm:$0xff]
      %v168 = vld [vmem:[%s153 + $0x18] sm:$0xff]
      %v169 = vld [vmem:[%s153 + $0x20] sm:$0xff]
      %v170 = vld [vmem:[%s153 + $0x28] sm:$0xff]
      %v171 = vld [vmem:[%s153 + $0x30] sm:$0xff]
      %v172 = vld [vmem:[%s153 + $0x38] sm:$0xff]
      %v173 = vld [vmem:[%s153 + $0x40] sm:$0xff]
      %v174 = vld [vmem:[%s153 + $0x48] sm:$0xff]
      %v175 = vld [vmem:[%s153 + $0x50] sm:$0xff]
      %v176 = vld [vmem:[%s153 + $0x58] sm:$0xff]
      %v177 = vld [vmem:[%s153 + $0x60] sm:$0xff]
      %v178 = vld [vmem:[%s153 + $0x68] sm:$0xff]
      %v179 = vld [vmem:[%s153 + $0x70] sm:$0xff]
      %v180 = vld [vmem:[%s153 + $0x78] sm:$0xff]
      %v181 = vld [vmem:[%s153 + $0x80] sm:$0xff]
      %v182 = vld [vmem:[%s153 + $0x88] sm:$0xff]
      %v183 = vld [vmem:[%s153 + $0x90] sm:$0xff]
      %v184 = vld [vmem:[%s153 + $0x98] sm:$0xff]
      %v185 = vld [vmem:[%s153 + $0xa0] sm:$0xff]
      %v186 = vld [vmem:[%s153 + $0xa8] sm:$0xff]
      %v187 = vld [vmem:[%s153 + $0xb0] sm:$0xff]
      %v188 = vld [vmem:[%s153 + $0xb8] sm:$0xff]
      %v189 = vld [vmem:[%s153 + $0xc0] sm:$0xff]
      %v190 = vld [vmem:[%s153 + $0xc8] sm:$0xff]
      %v191 = vld [vmem:[%s153 + $0xd0] sm:$0xff]
      %v192 = vld [vmem:[%s153 + $0xd8] sm:$0xff]
      %v193 = vld [vmem:[%s153 + $0xe0] sm:$0xff]
      %v194 = vld [vmem:[%s153 + $0xe8] sm:$0xff]
      %v195 = vld [vmem:[%s153 + $0xf0] sm:$0xff]
      %v196 = vld [vmem:[%s153 + $0xf8] sm:$0xff]
      %v197 = vld [vmem:[%s153 + $0x100] sm:$0xff]
      %v198 = vld [vmem:[%s153 + $0x108] sm:$0xff]
      %v199 = vld [vmem:[%s153 + $0x110] sm:$0xff]
      %v200 = vld [vmem:[%s153 + $0x118] sm:$0xff]
      %v201 = vld [vmem:[%s153 + $0x120] sm:$0xff]
      %v202 = vld [vmem:[%s153 + $0x128] sm:$0xff]
      %v203 = vld [vmem:[%s153 + $0x130] sm:$0xff]
      %v204 = vld [vmem:[%s153 + $0x138] sm:$0xff]
      %v205 = vld [vmem:[%s153 + $0x140] sm:$0xff]
      %v206 = vld [vmem:[%s153 + $0x148] sm:$0xff]
      %v207 = vld [vmem:[%s153 + $0x150] sm:$0xff]
      %v208 = vld [vmem:[%s153 + $0x158] sm:$0xff]
      %v209 = vld [vmem:[%s153 + $0x160] sm:$0xff]
      %v210 = vld [vmem:[%s153 + $0x168] sm:$0xff]
      %v211 = vld [vmem:[%s153 + $0x170] sm:$0xff]
      %v212 = vld [vmem:[%s153 + $0x178] sm:$0xff]
      %v213 = vld [vmem:[%s153 + $0x180] sm:$0xff]
      %v214 = vld [vmem:[%s153 + $0x188] sm:$0xff]
      %v215 = vld [vmem:[%s153 + $0x190] sm:$0xff]
      %v216 = vld [vmem:[%s153 + $0x198] sm:$0xff]
      %v217 = vld [vmem:[%s153 + $0x1a0] sm:$0xff]
      %v218 = vld [vmem:[%s153 + $0x1a8] sm:$0xff]
      %v219 = vld [vmem:[%s153 + $0x1b0] sm:$0xff]
      %v220 = vld [vmem:[%s153 + $0x1b8] sm:$0xff]
      %v221 = vld [vmem:[%s153 + $0x1c0] sm:$0xff]
      %v222 = vld [vmem:[%s153 + $0x1c8] sm:$0xff]
      %v223 = vld [vmem:[%s153 + $0x1d0] sm:$0xff]
      %v224 = vld [vmem:[%s153 + $0x1d8] sm:$0xff]
      %v225 = vld [vmem:[%s153 + $0x1e0] sm:$0xff]
      %v226 = vld [vmem:[%s153 + $0x1e8] sm:$0xff]
      %v227 = vld [vmem:[%s153 + $0x1f0] sm:$0xff]
      %v228 = vld [vmem:[%s153 + $0x1f8] sm:$0xff]
      %v229 = vld [vmem:[%s153 + $0x200] sm:$0xff]
      %v230 = vld [vmem:[%s153 + $0x208] sm:$0xff]
      %v231 = vld [vmem:[%s153 + $0x210] sm:$0xff]
      %v232 = vld [vmem:[%s153 + $0x218] sm:$0xff]
      %v233 = vld [vmem:[%s153 + $0x220] sm:$0xff]
      %v234 = vld [vmem:[%s153 + $0x228] sm:$0xff]
      %v235 = vld [vmem:[%s153 + $0x230] sm:$0xff]
      %v236 = vld [vmem:[%s153 + $0x238] sm:$0xff]
      %v237 = vld [vmem:[%s153 + $0x240] sm:$0xff]
      %v238 = vld [vmem:[%s153 + $0x248] sm:$0xff]
      %v239 = vld [vmem:[%s153 + $0x250] sm:$0xff]
      %v240 = vld [vmem:[%s153 + $0x258] sm:$0xff]
      %v241 = vld [vmem:[%s153 + $0x260] sm:$0xff]
      %v242 = vld [vmem:[%s153 + $0x268] sm:$0xff]
      %v243 = vld [vmem:[%s153 + $0x270] sm:$0xff]
      %v244 = vld [vmem:[%s153 + $0x278] sm:$0xff]
      %v245 = vld [vmem:[%s153 + $0x280] sm:$0xff]
      %v246 = vld [vmem:[%s153 + $0x288] sm:$0xff]
      %v247 = vld [vmem:[%s153 + $0x290] sm:$0xff]
      %v248 = vld [vmem:[%s153 + $0x298] sm:$0xff]
      %v249 = vld [vmem:[%s153 + $0x2a0] sm:$0xff]
      %v250 = vld [vmem:[%s153 + $0x2a8] sm:$0xff]
      %v251 = vld [vmem:[%s153 + $0x2b0] sm:$0xff]
      %v252 = vld [vmem:[%s153 + $0x2b8] sm:$0xff]
      %v253 = vld [vmem:[%s153 + $0x2c0] sm:$0xff]
      %v254 = vld [vmem:[%s153 + $0x2c8] sm:$0xff]
      %v255 = vld [vmem:[%s153 + $0x2d0] sm:$0xff]
      %v256 = vld [vmem:[%s153 + $0x2d8] sm:$0xff]
      %v257 = vld [vmem:[%s153 + $0x2e0] sm:$0xff]
      %v258 = vld [vmem:[%s153 + $0x2e8] sm:$0xff]
      %v259 = vld [vmem:[%s153 + $0x2f0] sm:$0xff]
      %v260 = vld [vmem:[%s153 + $0x2f8] sm:$0xff]
      %v261 = vld [vmem:[%s153 + $0x300] sm:$0xff]
      %v262 = vld [vmem:[%s153 + $0x308] sm:$0xff]
      %v263 = vld [vmem:[%s153 + $0x310] sm:$0xff]
      %v264 = vld [vmem:[%s153 + $0x318] sm:$0xff]
      %v265 = vld [vmem:[%s153 + $0x320] sm:$0xff]
      %v266 = vld [vmem:[%s153 + $0x328] sm:$0xff]
      %v267 = vld [vmem:[%s153 + $0x330] sm:$0xff]
      %v268 = vld [vmem:[%s153 + $0x338] sm:$0xff]
      %v269 = vld [vmem:[%s153 + $0x340] sm:$0xff]
      %v270 = vld [vmem:[%s153 + $0x348] sm:$0xff]
      %v271 = vld [vmem:[%s153 + $0x350] sm:$0xff]
      %v272 = vld [vmem:[%s153 + $0x358] sm:$0xff]
      %v273 = vld [vmem:[%s153 + $0x360] sm:$0xff]
      %v274 = vld [vmem:[%s153 + $0x368] sm:$0xff]
      %v275 = vld [vmem:[%s153 + $0x370] sm:$0xff]
      %v276 = vld [vmem:[%s153 + $0x378] sm:$0xff]
      %v277 = vld [vmem:[%s153 + $0x380] sm:$0xff]
      %v278 = vld [vmem:[%s153 + $0x388] sm:$0xff]
      %v279 = vld [vmem:[%s153 + $0x390] sm:$0xff]
      %v280 = vld [vmem:[%s153 + $0x398] sm:$0xff]
      %v281 = vld [vmem:[%s153 + $0x3a0] sm:$0xff]
      %v282 = vld [vmem:[%s153 + $0x3a8] sm:$0xff]
      %v283 = vld [vmem:[%s153 + $0x3b0] sm:$0xff]
      %v284 = vld [vmem:[%s153 + $0x3b8] sm:$0xff]
      %v285 = vld [vmem:[%s153 + $0x3c0] sm:$0xff]
      %v286 = vld [vmem:[%s153 + $0x3c8] sm:$0xff]
      %v287 = vld [vmem:[%s153 + $0x3d0] sm:$0xff]
      %v288 = vld [vmem:[%s153 + $0x3d8] sm:$0xff]
      %v289 = vld [vmem:[%s153 + $0x3e0] sm:$0xff]
      %v290 = vld [vmem:[%s153 + $0x3e8] sm:$0xff]
      %v291 = vld [vmem:[%s153 + $0x3f0] sm:$0xff]
      %v292 = vld [vmem:[%s153 + $0x3f8] sm:$0xff]
      %v293 = vld [vmem:[%s158] sm:$0xf]
      %v294 = vld [vmem:[%s158 + $0x4] sm:$0xf]
      %v295 = vld [vmem:[%s158 + $0x8] sm:$0xf]
      %v296 = vld [vmem:[%s158 + $0xc] sm:$0xf]
      %v297 = vld [vmem:[%s158 + $0x10] sm:$0xf]
      %v298 = vld [vmem:[%s158 + $0x14] sm:$0xf]
      %v299 = vld [vmem:[%s158 + $0x18] sm:$0xf]
      %v300 = vld [vmem:[%s158 + $0x1c] sm:$0xf]
      %v301 = vld [vmem:[%s158 + $0x20] sm:$0xf]
      %v302 = vld [vmem:[%s158 + $0x24] sm:$0xf]
      %v303 = vld [vmem:[%s158 + $0x28] sm:$0xf]
      %v304 = vld [vmem:[%s158 + $0x2c] sm:$0xf]
      %v305 = vld [vmem:[%s158 + $0x30] sm:$0xf]
      %v306 = vld [vmem:[%s158 + $0x34] sm:$0xf]
      %v307 = vld [vmem:[%s158 + $0x38] sm:$0xf]
      %v308 = vld [vmem:[%s158 + $0x3c] sm:$0xf]
      %v309 = vld [vmem:[%s158 + $0x40] sm:$0xf]
      %v310 = vld [vmem:[%s158 + $0x44] sm:$0xf]
      %v311 = vld [vmem:[%s158 + $0x48] sm:$0xf]
      %v312 = vld [vmem:[%s158 + $0x4c] sm:$0xf]
      %v313 = vld [vmem:[%s158 + $0x50] sm:$0xf]
      %v314 = vld [vmem:[%s158 + $0x54] sm:$0xf]
      %v315 = vld [vmem:[%s158 + $0x58] sm:$0xf]
      %v316 = vld [vmem:[%s158 + $0x5c] sm:$0xf]
      %v317 = vld [vmem:[%s158 + $0x60] sm:$0xf]
      %v318 = vld [vmem:[%s158 + $0x64] sm:$0xf]
      %v319 = vld [vmem:[%s158 + $0x68] sm:$0xf]
      %v320 = vld [vmem:[%s158 + $0x6c] sm:$0xf]
      %v321 = vld [vmem:[%s158 + $0x70] sm:$0xf]
      %v322 = vld [vmem:[%s158 + $0x74] sm:$0xf]
      %v323 = vld [vmem:[%s158 + $0x78] sm:$0xf]
      %v324 = vld [vmem:[%s158 + $0x7c] sm:$0xf]
      %v325 = vld [vmem:[%s158 + $0x80] sm:$0xf]
      %v326 = vld [vmem:[%s158 + $0x84] sm:$0xf]
      %v327 = vld [vmem:[%s158 + $0x88] sm:$0xf]
      %v328 = vld [vmem:[%s158 + $0x8c] sm:$0xf]
      %v329 = vld [vmem:[%s158 + $0x90] sm:$0xf]
      %v330 = vld [vmem:[%s158 + $0x94] sm:$0xf]
      %v331 = vld [vmem:[%s158 + $0x98] sm:$0xf]
      %v332 = vld [vmem:[%s158 + $0x9c] sm:$0xf]
      %v333 = vld [vmem:[%s158 + $0xa0] sm:$0xf]
      %v334 = vld [vmem:[%s158 + $0xa4] sm:$0xf]
      %v335 = vld [vmem:[%s158 + $0xa8] sm:$0xf]
      %v336 = vld [vmem:[%s158 + $0xac] sm:$0xf]
      %v337 = vld [vmem:[%s158 + $0xb0] sm:$0xf]
      %v338 = vld [vmem:[%s158 + $0xb4] sm:$0xf]
      %v339 = vld [vmem:[%s158 + $0xb8] sm:$0xf]
      %v340 = vld [vmem:[%s158 + $0xbc] sm:$0xf]
      %v341 = vld [vmem:[%s158 + $0xc0] sm:$0xf]
      %v342 = vld [vmem:[%s158 + $0xc4] sm:$0xf]
      %v343 = vld [vmem:[%s158 + $0xc8] sm:$0xf]
      %v344 = vld [vmem:[%s158 + $0xcc] sm:$0xf]
      %v345 = vld [vmem:[%s158 + $0xd0] sm:$0xf]
      %v346 = vld [vmem:[%s158 + $0xd4] sm:$0xf]
      %v347 = vld [vmem:[%s158 + $0xd8] sm:$0xf]
      %v348 = vld [vmem:[%s158 + $0xdc] sm:$0xf]
      %v349 = vld [vmem:[%s158 + $0xe0] sm:$0xf]
      %v350 = vld [vmem:[%s158 + $0xe4] sm:$0xf]
      %v351 = vld [vmem:[%s158 + $0xe8] sm:$0xf]
      %v352 = vld [vmem:[%s158 + $0xec] sm:$0xf]
      %v353 = vld [vmem:[%s158 + $0xf0] sm:$0xf]
      %v354 = vld [vmem:[%s158 + $0xf4] sm:$0xf]
      %v355 = vld [vmem:[%s158 + $0xf8] sm:$0xf]
      %v356 = vld [vmem:[%s158 + $0xfc] sm:$0xf]
      %v485 = vunpack.c.l.b16 %v165
      %v486 = vunpack.c.h.b16 %v165
      %v487 = vunpack.c.l.b16 %v166
      %v488 = vunpack.c.h.b16 %v166
      %v489 = vunpack.c.l.b16 %v167
      %v490 = vunpack.c.h.b16 %v167
      %v491 = vunpack.c.l.b16 %v168
      %v492 = vunpack.c.h.b16 %v168
      %v493 = vunpack.c.l.b16 %v169
      %v494 = vunpack.c.h.b16 %v169
      %v495 = vunpack.c.l.b16 %v170
      %v496 = vunpack.c.h.b16 %v170
      %v497 = vunpack.c.l.b16 %v171
      %v498 = vunpack.c.h.b16 %v171
      %v499 = vunpack.c.l.b16 %v172
      %v500 = vunpack.c.h.b16 %v172
      %v501 = vunpack.c.l.b16 %v173
      %v502 = vunpack.c.h.b16 %v173
      %v503 = vunpack.c.l.b16 %v174
      %v504 = vunpack.c.h.b16 %v174
      %v505 = vunpack.c.l.b16 %v175
      %v506 = vunpack.c.h.b16 %v175
      %v507 = vunpack.c.l.b16 %v176
      %v508 = vunpack.c.h.b16 %v176
      %v509 = vunpack.c.l.b16 %v177
      %v510 = vunpack.c.h.b16 %v177
      %v511 = vunpack.c.l.b16 %v178
      %v512 = vunpack.c.h.b16 %v178
      %v513 = vunpack.c.l.b16 %v179
      %v514 = vunpack.c.h.b16 %v179
      %v515 = vunpack.c.l.b16 %v180
      %v516 = vunpack.c.h.b16 %v180
      %v517 = vunpack.c.l.b16 %v181
      %v518 = vunpack.c.h.b16 %v181
      %v519 = vunpack.c.l.b16 %v182
      %v520 = vunpack.c.h.b16 %v182
      %v521 = vunpack.c.l.b16 %v183
      %v522 = vunpack.c.h.b16 %v183
      %v523 = vunpack.c.l.b16 %v184
      %v524 = vunpack.c.h.b16 %v184
      %v525 = vunpack.c.l.b16 %v185
      %v526 = vunpack.c.h.b16 %v185
      %v527 = vunpack.c.l.b16 %v186
      %v528 = vunpack.c.h.b16 %v186
      %v529 = vunpack.c.l.b16 %v187
      %v530 = vunpack.c.h.b16 %v187
      %v531 = vunpack.c.l.b16 %v188
      %v532 = vunpack.c.h.b16 %v188
      %v533 = vunpack.c.l.b16 %v189
      %v534 = vunpack.c.h.b16 %v189
      %v535 = vunpack.c.l.b16 %v190
      %v536 = vunpack.c.h.b16 %v190
      %v537 = vunpack.c.l.b16 %v191
      %v538 = vunpack.c.h.b16 %v191
      %v539 = vunpack.c.l.b16 %v192
      %v540 = vunpack.c.h.b16 %v192
      %v541 = vunpack.c.l.b16 %v193
      %v542 = vunpack.c.h.b16 %v193
      %v543 = vunpack.c.l.b16 %v194
      %v544 = vunpack.c.h.b16 %v194
      %v545 = vunpack.c.l.b16 %v195
      %v546 = vunpack.c.h.b16 %v195
      %v547 = vunpack.c.l.b16 %v196
      %v548 = vunpack.c.h.b16 %v196
      %v549 = vunpack.c.l.b16 %v197
      %v550 = vunpack.c.h.b16 %v197
      %v551 = vunpack.c.l.b16 %v198
      %v552 = vunpack.c.h.b16 %v198
      %v553 = vunpack.c.l.b16 %v199
      %v554 = vunpack.c.h.b16 %v199
      %v555 = vunpack.c.l.b16 %v200
      %v556 = vunpack.c.h.b16 %v200
      %v557 = vunpack.c.l.b16 %v201
      %v558 = vunpack.c.h.b16 %v201
      %v559 = vunpack.c.l.b16 %v202
      %v560 = vunpack.c.h.b16 %v202
      %v561 = vunpack.c.l.b16 %v203
      %v562 = vunpack.c.h.b16 %v203
      %v563 = vunpack.c.l.b16 %v204
      %v564 = vunpack.c.h.b16 %v204
      %v565 = vunpack.c.l.b16 %v205
      %v566 = vunpack.c.h.b16 %v205
      %v567 = vunpack.c.l.b16 %v206
      %v568 = vunpack.c.h.b16 %v206
      %v569 = vunpack.c.l.b16 %v207
      %v570 = vunpack.c.h.b16 %v207
      %v571 = vunpack.c.l.b16 %v208
      %v572 = vunpack.c.h.b16 %v208
      %v573 = vunpack.c.l.b16 %v209
      %v574 = vunpack.c.h.b16 %v209
      %v575 = vunpack.c.l.b16 %v210
      %v576 = vunpack.c.h.b16 %v210
      %v577 = vunpack.c.l.b16 %v211
      %v578 = vunpack.c.h.b16 %v211
      %v579 = vunpack.c.l.b16 %v212
      %v580 = vunpack.c.h.b16 %v212
      %v581 = vunpack.c.l.b16 %v213
      %v582 = vunpack.c.h.b16 %v213
      %v583 = vunpack.c.l.b16 %v214
      %v584 = vunpack.c.h.b16 %v214
      %v585 = vunpack.c.l.b16 %v215
      %v586 = vunpack.c.h.b16 %v215
      %v587 = vunpack.c.l.b16 %v216
      %v588 = vunpack.c.h.b16 %v216
      %v589 = vunpack.c.l.b16 %v217
      %v590 = vunpack.c.h.b16 %v217
      %v591 = vunpack.c.l.b16 %v218
      %v592 = vunpack.c.h.b16 %v218
      %v593 = vunpack.c.l.b16 %v219
      %v594 = vunpack.c.h.b16 %v219
      %v595 = vunpack.c.l.b16 %v220
      %v596 = vunpack.c.h.b16 %v220
      %v597 = vunpack.c.l.b16 %v221
      %v598 = vunpack.c.h.b16 %v221
      %v599 = vunpack.c.l.b16 %v222
      %v600 = vunpack.c.h.b16 %v222
      %v601 = vunpack.c.l.b16 %v223
      %v602 = vunpack.c.h.b16 %v223
      %v603 = vunpack.c.l.b16 %v224
      %v604 = vunpack.c.h.b16 %v224
      %v605 = vunpack.c.l.b16 %v225
      %v606 = vunpack.c.h.b16 %v225
      %v607 = vunpack.c.l.b16 %v226
      %v608 = vunpack.c.h.b16 %v226
      %v609 = vunpack.c.l.b16 %v227
      %v610 = vunpack.c.h.b16 %v227
      %v611 = vunpack.c.l.b16 %v228
      %v612 = vunpack.c.h.b16 %v228
      %v613 = vunpack.c.l.b16 %v229
      %v614 = vunpack.c.h.b16 %v229
      %v615 = vunpack.c.l.b16 %v230
      %v616 = vunpack.c.h.b16 %v230
      %v617 = vunpack.c.l.b16 %v231
      %v618 = vunpack.c.h.b16 %v231
      %v619 = vunpack.c.l.b16 %v232
      %v620 = vunpack.c.h.b16 %v232
      %v621 = vunpack.c.l.b16 %v233
      %v622 = vunpack.c.h.b16 %v233
      %v623 = vunpack.c.l.b16 %v234
      %v624 = vunpack.c.h.b16 %v234
      %v625 = vunpack.c.l.b16 %v235
      %v626 = vunpack.c.h.b16 %v235
      %v627 = vunpack.c.l.b16 %v236
      %v628 = vunpack.c.h.b16 %v236
      %v629 = vunpack.c.l.b16 %v237
      %v630 = vunpack.c.h.b16 %v237
      %v631 = vunpack.c.l.b16 %v238
      %v632 = vunpack.c.h.b16 %v238
      %v633 = vunpack.c.l.b16 %v239
      %v634 = vunpack.c.h.b16 %v239
      %v635 = vunpack.c.l.b16 %v240
      %v636 = vunpack.c.h.b16 %v240
      %v637 = vunpack.c.l.b16 %v241
      %v638 = vunpack.c.h.b16 %v241
      %v639 = vunpack.c.l.b16 %v242
      %v640 = vunpack.c.h.b16 %v242
      %v641 = vunpack.c.l.b16 %v243
      %v642 = vunpack.c.h.b16 %v243
      %v643 = vunpack.c.l.b16 %v244
      %v644 = vunpack.c.h.b16 %v244
      %v645 = vunpack.c.l.b16 %v245
      %v646 = vunpack.c.h.b16 %v245
      %v647 = vunpack.c.l.b16 %v246
      %v648 = vunpack.c.h.b16 %v246
      %v649 = vunpack.c.l.b16 %v247
      %v650 = vunpack.c.h.b16 %v247
      %v651 = vunpack.c.l.b16 %v248
      %v652 = vunpack.c.h.b16 %v248
      %v653 = vunpack.c.l.b16 %v249
      %v654 = vunpack.c.h.b16 %v249
      %v655 = vunpack.c.l.b16 %v250
      %v656 = vunpack.c.h.b16 %v250
      %v657 = vunpack.c.l.b16 %v251
      %v658 = vunpack.c.h.b16 %v251
      %v659 = vunpack.c.l.b16 %v252
      %v660 = vunpack.c.h.b16 %v252
      %v661 = vunpack.c.l.b16 %v253
      %v662 = vunpack.c.h.b16 %v253
      %v663 = vunpack.c.l.b16 %v254
      %v664 = vunpack.c.h.b16 %v254
      %v665 = vunpack.c.l.b16 %v255
      %v666 = vunpack.c.h.b16 %v255
      %v667 = vunpack.c.l.b16 %v256
      %v668 = vunpack.c.h.b16 %v256
      %v669 = vunpack.c.l.b16 %v257
      %v670 = vunpack.c.h.b16 %v257
      %v671 = vunpack.c.l.b16 %v258
      %v672 = vunpack.c.h.b16 %v258
      %v673 = vunpack.c.l.b16 %v259
      %v674 = vunpack.c.h.b16 %v259
      %v675 = vunpack.c.l.b16 %v260
      %v676 = vunpack.c.h.b16 %v260
      %v677 = vunpack.c.l.b16 %v261
      %v678 = vunpack.c.h.b16 %v261
      %v679 = vunpack.c.l.b16 %v262
      %v680 = vunpack.c.h.b16 %v262
      %v681 = vunpack.c.l.b16 %v263
      %v682 = vunpack.c.h.b16 %v263
      %v683 = vunpack.c.l.b16 %v264
      %v684 = vunpack.c.h.b16 %v264
      %v685 = vunpack.c.l.b16 %v265
      %v686 = vunpack.c.h.b16 %v265
      %v687 = vunpack.c.l.b16 %v266
      %v688 = vunpack.c.h.b16 %v266
      %v689 = vunpack.c.l.b16 %v267
      %v690 = vunpack.c.h.b16 %v267
      %v691 = vunpack.c.l.b16 %v268
      %v692 = vunpack.c.h.b16 %v268
      %v693 = vunpack.c.l.b16 %v269
      %v694 = vunpack.c.h.b16 %v269
      %v695 = vunpack.c.l.b16 %v270
      %v696 = vunpack.c.h.b16 %v270
      %v697 = vunpack.c.l.b16 %v271
      %v698 = vunpack.c.h.b16 %v271
      %v699 = vunpack.c.l.b16 %v272
      %v700 = vunpack.c.h.b16 %v272
      %v701 = vunpack.c.l.b16 %v273
      %v702 = vunpack.c.h.b16 %v273
      %v703 = vunpack.c.l.b16 %v274
      %v704 = vunpack.c.h.b16 %v274
      %v705 = vunpack.c.l.b16 %v275
      %v706 = vunpack.c.h.b16 %v275
      %v707 = vunpack.c.l.b16 %v276
      %v708 = vunpack.c.h.b16 %v276
      %v709 = vunpack.c.l.b16 %v277
      %v710 = vunpack.c.h.b16 %v277
      %v711 = vunpack.c.l.b16 %v278
      %v712 = vunpack.c.h.b16 %v278
      %v713 = vunpack.c.l.b16 %v279
      %v714 = vunpack.c.h.b16 %v279
      %v715 = vunpack.c.l.b16 %v280
      %v716 = vunpack.c.h.b16 %v280
      %v717 = vunpack.c.l.b16 %v281
      %v718 = vunpack.c.h.b16 %v281
      %v719 = vunpack.c.l.b16 %v282
      %v720 = vunpack.c.h.b16 %v282
      %v721 = vunpack.c.l.b16 %v283
      %v722 = vunpack.c.h.b16 %v283
      %v723 = vunpack.c.l.b16 %v284
      %v724 = vunpack.c.h.b16 %v284
      %v725 = vunpack.c.l.b16 %v285
      %v726 = vunpack.c.h.b16 %v285
      %v727 = vunpack.c.l.b16 %v286
      %v728 = vunpack.c.h.b16 %v286
      %v729 = vunpack.c.l.b16 %v287
      %v730 = vunpack.c.h.b16 %v287
      %v731 = vunpack.c.l.b16 %v288
      %v732 = vunpack.c.h.b16 %v288
      %v733 = vunpack.c.l.b16 %v289
      %v734 = vunpack.c.h.b16 %v289
      %v735 = vunpack.c.l.b16 %v290
      %v736 = vunpack.c.h.b16 %v290
      %v737 = vunpack.c.l.b16 %v291
      %v738 = vunpack.c.h.b16 %v291
      %v739 = vunpack.c.l.b16 %v292
      %v740 = vunpack.c.h.b16 %v292
      %v741 = vpack.c.b16 %v489, %v485
      %v742 = vpack.c.b16 %v490, %v486
      %v743 = vpack.c.b16 %v491, %v487
      %v744 = vpack.c.b16 %v492, %v488
      %v745 = vpack.c.b16 %v497, %v493
      %v746 = vpack.c.b16 %v498, %v494
      %v747 = vpack.c.b16 %v499, %v495
      %v748 = vpack.c.b16 %v500, %v496
      %v749 = vpack.c.b16 %v505, %v501
      %v750 = vpack.c.b16 %v506, %v502
      %v751 = vpack.c.b16 %v507, %v503
      %v752 = vpack.c.b16 %v508, %v504
      %v753 = vpack.c.b16 %v513, %v509
      %v754 = vpack.c.b16 %v514, %v510
      %v755 = vpack.c.b16 %v515, %v511
      %v756 = vpack.c.b16 %v516, %v512
      %v757 = vpack.c.b16 %v521, %v517
      %v758 = vpack.c.b16 %v522, %v518
      %v759 = vpack.c.b16 %v523, %v519
      %v760 = vpack.c.b16 %v524, %v520
      %v761 = vpack.c.b16 %v529, %v525
      %v762 = vpack.c.b16 %v530, %v526
      %v763 = vpack.c.b16 %v531, %v527
      %v764 = vpack.c.b16 %v532, %v528
      %v765 = vpack.c.b16 %v537, %v533
      %v766 = vpack.c.b16 %v538, %v534
      %v767 = vpack.c.b16 %v539, %v535
      %v768 = vpack.c.b16 %v540, %v536
      %v769 = vpack.c.b16 %v545, %v541
      %v770 = vpack.c.b16 %v546, %v542
      %v771 = vpack.c.b16 %v547, %v543
      %v772 = vpack.c.b16 %v548, %v544
      %v773 = vpack.c.b16 %v553, %v549
      %v774 = vpack.c.b16 %v554, %v550
      %v775 = vpack.c.b16 %v555, %v551
      %v776 = vpack.c.b16 %v556, %v552
      %v777 = vpack.c.b16 %v561, %v557
      %v778 = vpack.c.b16 %v562, %v558
      %v779 = vpack.c.b16 %v563, %v559
      %v780 = vpack.c.b16 %v564, %v560
      %v781 = vpack.c.b16 %v569, %v565
      %v782 = vpack.c.b16 %v570, %v566
      %v783 = vpack.c.b16 %v571, %v567
      %v784 = vpack.c.b16 %v572, %v568
      %v785 = vpack.c.b16 %v577, %v573
      %v786 = vpack.c.b16 %v578, %v574
      %v787 = vpack.c.b16 %v579, %v575
      %v788 = vpack.c.b16 %v580, %v576
      %v789 = vpack.c.b16 %v585, %v581
      %v790 = vpack.c.b16 %v586, %v582
      %v791 = vpack.c.b16 %v587, %v583
      %v792 = vpack.c.b16 %v588, %v584
      %v793 = vpack.c.b16 %v593, %v589
      %v794 = vpack.c.b16 %v594, %v590
      %v795 = vpack.c.b16 %v595, %v591
      %v796 = vpack.c.b16 %v596, %v592
      %v797 = vpack.c.b16 %v601, %v597
      %v798 = vpack.c.b16 %v602, %v598
      %v799 = vpack.c.b16 %v603, %v599
      %v800 = vpack.c.b16 %v604, %v600
      %v801 = vpack.c.b16 %v609, %v605
      %v802 = vpack.c.b16 %v610, %v606
      %v803 = vpack.c.b16 %v611, %v607
      %v804 = vpack.c.b16 %v612, %v608
      %v805 = vpack.c.b16 %v617, %v613
      %v806 = vpack.c.b16 %v618, %v614
      %v807 = vpack.c.b16 %v619, %v615
      %v808 = vpack.c.b16 %v620, %v616
      %v809 = vpack.c.b16 %v625, %v621
      %v810 = vpack.c.b16 %v626, %v622
      %v811 = vpack.c.b16 %v627, %v623
      %v812 = vpack.c.b16 %v628, %v624
      %v813 = vpack.c.b16 %v633, %v629
      %v814 = vpack.c.b16 %v634, %v630
      %v815 = vpack.c.b16 %v635, %v631
      %v816 = vpack.c.b16 %v636, %v632
      %v817 = vpack.c.b16 %v641, %v637
      %v818 = vpack.c.b16 %v642, %v638
      %v819 = vpack.c.b16 %v643, %v639
      %v820 = vpack.c.b16 %v644, %v640
      %v821 = vpack.c.b16 %v649, %v645
      %v822 = vpack.c.b16 %v650, %v646
      %v823 = vpack.c.b16 %v651, %v647
      %v824 = vpack.c.b16 %v652, %v648
      %v825 = vpack.c.b16 %v657, %v653
      %v826 = vpack.c.b16 %v658, %v654
      %v827 = vpack.c.b16 %v659, %v655
      %v828 = vpack.c.b16 %v660, %v656
      %v829 = vpack.c.b16 %v665, %v661
      %v830 = vpack.c.b16 %v666, %v662
      %v831 = vpack.c.b16 %v667, %v663
      %v832 = vpack.c.b16 %v668, %v664
      %v833 = vpack.c.b16 %v673, %v669
      %v834 = vpack.c.b16 %v674, %v670
      %v835 = vpack.c.b16 %v675, %v671
      %v836 = vpack.c.b16 %v676, %v672
      %v837 = vpack.c.b16 %v681, %v677
      %v838 = vpack.c.b16 %v682, %v678
      %v839 = vpack.c.b16 %v683, %v679
      %v840 = vpack.c.b16 %v684, %v680
      %v841 = vpack.c.b16 %v689, %v685
      %v842 = vpack.c.b16 %v690, %v686
      %v843 = vpack.c.b16 %v691, %v687
      %v844 = vpack.c.b16 %v692, %v688
      %v845 = vpack.c.b16 %v697, %v693
      %v846 = vpack.c.b16 %v698, %v694
      %v847 = vpack.c.b16 %v699, %v695
      %v848 = vpack.c.b16 %v700, %v696
      %v849 = vpack.c.b16 %v705, %v701
      %v850 = vpack.c.b16 %v706, %v702
      %v851 = vpack.c.b16 %v707, %v703
      %v852 = vpack.c.b16 %v708, %v704
      %v853 = vpack.c.b16 %v713, %v709
      %v854 = vpack.c.b16 %v714, %v710
      %v855 = vpack.c.b16 %v715, %v711
      %v856 = vpack.c.b16 %v716, %v712
      %v857 = vpack.c.b16 %v721, %v717
      %v858 = vpack.c.b16 %v722, %v718
      %v859 = vpack.c.b16 %v723, %v719
      %v860 = vpack.c.b16 %v724, %v720
      %v861 = vpack.c.b16 %v729, %v725
      %v862 = vpack.c.b16 %v730, %v726
      %v863 = vpack.c.b16 %v731, %v727
      %v864 = vpack.c.b16 %v732, %v728
      %v865 = vpack.c.b16 %v737, %v733
      %v866 = vpack.c.b16 %v738, %v734
      %v867 = vpack.c.b16 %v739, %v735
      %v868 = vpack.c.b16 %v740, %v736
      %v1061 = vunpack.c.l.b16 %v293
      %v1062 = vunpack.c.l.b16 %v294
      %v1063 = vunpack.c.l.b16 %v295
      %v1064 = vunpack.c.l.b16 %v296
      %v1065 = vunpack.c.l.b16 %v297
      %v1066 = vunpack.c.l.b16 %v298
      %v1067 = vunpack.c.l.b16 %v299
      %v1068 = vunpack.c.l.b16 %v300
      %v1069 = vunpack.c.l.b16 %v301
      %v1070 = vunpack.c.l.b16 %v302
      %v1071 = vunpack.c.l.b16 %v303
      %v1072 = vunpack.c.l.b16 %v304
      %v1073 = vunpack.c.l.b16 %v305
      %v1074 = vunpack.c.l.b16 %v306
      %v1075 = vunpack.c.l.b16 %v307
      %v1076 = vunpack.c.l.b16 %v308
      %v1077 = vunpack.c.l.b16 %v309
      %v1078 = vunpack.c.l.b16 %v310
      %v1079 = vunpack.c.l.b16 %v311
      %v1080 = vunpack.c.l.b16 %v312
      %v1081 = vunpack.c.l.b16 %v313
      %v1082 = vunpack.c.l.b16 %v314
      %v1083 = vunpack.c.l.b16 %v315
      %v1084 = vunpack.c.l.b16 %v316
      %v1085 = vunpack.c.l.b16 %v317
      %v1086 = vunpack.c.l.b16 %v318
      %v1087 = vunpack.c.l.b16 %v319
      %v1088 = vunpack.c.l.b16 %v320
      %v1089 = vunpack.c.l.b16 %v321
      %v1090 = vunpack.c.l.b16 %v322
      %v1091 = vunpack.c.l.b16 %v323
      %v1092 = vunpack.c.l.b16 %v324
      %v1093 = vunpack.c.l.b16 %v325
      %v1094 = vunpack.c.l.b16 %v326
      %v1095 = vunpack.c.l.b16 %v327
      %v1096 = vunpack.c.l.b16 %v328
      %v1097 = vunpack.c.l.b16 %v329
      %v1098 = vunpack.c.l.b16 %v330
      %v1099 = vunpack.c.l.b16 %v331
      %v1100 = vunpack.c.l.b16 %v332
      %v1101 = vunpack.c.l.b16 %v333
      %v1102 = vunpack.c.l.b16 %v334
      %v1103 = vunpack.c.l.b16 %v335
      %v1104 = vunpack.c.l.b16 %v336
      %v1105 = vunpack.c.l.b16 %v337
      %v1106 = vunpack.c.l.b16 %v338
      %v1107 = vunpack.c.l.b16 %v339
      %v1108 = vunpack.c.l.b16 %v340
      %v1109 = vunpack.c.l.b16 %v341
      %v1110 = vunpack.c.l.b16 %v342
      %v1111 = vunpack.c.l.b16 %v343
      %v1112 = vunpack.c.l.b16 %v344
      %v1113 = vunpack.c.l.b16 %v345
      %v1114 = vunpack.c.l.b16 %v346
      %v1115 = vunpack.c.l.b16 %v347
      %v1116 = vunpack.c.l.b16 %v348
      %v1117 = vunpack.c.l.b16 %v349
      %v1118 = vunpack.c.l.b16 %v350
      %v1119 = vunpack.c.l.b16 %v351
      %v1120 = vunpack.c.l.b16 %v352
      %v1121 = vunpack.c.l.b16 %v353
      %v1122 = vunpack.c.l.b16 %v354
      %v1123 = vunpack.c.l.b16 %v355
      %v1124 = vunpack.c.l.b16 %v356
      %v1125 = vpack.c.b16 %v1062, %v1061
      %v1126 = vpack.c.b16 %v1064, %v1063
      %v1127 = vpack.c.b16 %v1066, %v1065
      %v1128 = vpack.c.b16 %v1068, %v1067
      %v1129 = vpack.c.b16 %v1070, %v1069
      %v1130 = vpack.c.b16 %v1072, %v1071
      %v1131 = vpack.c.b16 %v1074, %v1073
      %v1132 = vpack.c.b16 %v1076, %v1075
      %v1133 = vpack.c.b16 %v1078, %v1077
      %v1134 = vpack.c.b16 %v1080, %v1079
      %v1135 = vpack.c.b16 %v1082, %v1081
      %v1136 = vpack.c.b16 %v1084, %v1083
      %v1137 = vpack.c.b16 %v1086, %v1085
      %v1138 = vpack.c.b16 %v1088, %v1087
      %v1139 = vpack.c.b16 %v1090, %v1089
      %v1140 = vpack.c.b16 %v1092, %v1091
      %v1141 = vpack.c.b16 %v1094, %v1093
      %v1142 = vpack.c.b16 %v1096, %v1095
      %v1143 = vpack.c.b16 %v1098, %v1097
      %v1144 = vpack.c.b16 %v1100, %v1099
      %v1145 = vpack.c.b16 %v1102, %v1101
      %v1146 = vpack.c.b16 %v1104, %v1103
      %v1147 = vpack.c.b16 %v1106, %v1105
      %v1148 = vpack.c.b16 %v1108, %v1107
      %v1149 = vpack.c.b16 %v1110, %v1109
      %v1150 = vpack.c.b16 %v1112, %v1111
      %v1151 = vpack.c.b16 %v1114, %v1113
      %v1152 = vpack.c.b16 %v1116, %v1115
      %v1153 = vpack.c.b16 %v1118, %v1117
      %v1154 = vpack.c.b16 %v1120, %v1119
      %v1155 = vpack.c.b16 %v1122, %v1121
      %v1156 = vpack.c.b16 %v1124, %v1123
      %1189 = vmatprep.subr.bf16.mxu0 0
      %1190 = vmatpush1.bf16.msra.mxu0 %v1125
      %1191 = vmatprep.subr.bf16.mxu0 0
      %1192 = vmatpush1.bf16.msra.mxu0 %v1126
      %1193 = vmatprep.subr.bf16.mxu0 0
      %1194 = vmatpush1.bf16.msra.mxu0 %v1127
      %1195 = vmatprep.subr.bf16.mxu0 0
      %1196 = vmatpush1.bf16.msra.mxu0 %v1128
      %1197 = vmatprep.subr.bf16.mxu0 0
      %1198 = vmatpush1.bf16.msra.mxu0 %v1129
      %1199 = vmatprep.subr.bf16.mxu0 0
      %1200 = vmatpush1.bf16.msra.mxu0 %v1130
      %1201 = vmatprep.subr.bf16.mxu0 0
      %1202 = vmatpush1.bf16.msra.mxu0 %v1131
      %1203 = vmatprep.subr.bf16.mxu0 0
      %1204 = vmatpush1.bf16.msra.mxu0 %v1132
      %1205 = vmatprep.subr.bf16.mxu0 0
      %1206 = vmatpush1.bf16.msra.mxu0 %v1133
      %1207 = vmatprep.subr.bf16.mxu0 0
      %1208 = vmatpush1.bf16.msra.mxu0 %v1134
      %1209 = vmatprep.subr.bf16.mxu0 0
      %1210 = vmatpush1.bf16.msra.mxu0 %v1135
      %1211 = vmatprep.subr.bf16.mxu0 0
      %1212 = vmatpush1.bf16.msra.mxu0 %v1136
      %1213 = vmatprep.subr.bf16.mxu0 0
      %1214 = vmatpush1.bf16.msra.mxu0 %v1137
      %1215 = vmatprep.subr.bf16.mxu0 0
      %1216 = vmatpush1.bf16.msra.mxu0 %v1138
      %1217 = vmatprep.subr.bf16.mxu0 0
      %1218 = vmatpush1.bf16.msra.mxu0 %v1139
      %1219 = vmatprep.subr.bf16.mxu0 0
      %1220 = vmatpush1.bf16.msra.mxu0 %v1140
      %1221 = vmatprep.mubr.bf16.mxu0 %v742
      %1222 = vmatmul.mubr.bf16.gmra.mrb[0].mxu0 %v741
      %v1223 = vpop.f32.mrb[0].mxu0
      %v1224 = vadd.f32 0.0, %v1223
      %v1225 = vpop.f32.mrb[0].mxu0
      %v1226 = vpop.f32.mrb[0].mxu0
      %v1227 = vadd.f32 0.0, %v1226
      %v1228 = vpop.f32.mrb[0].mxu0
      %1229 = vmatprep.mubr.bf16.mxu0 %v746
      %1230 = vmatmul.mubr.bf16.gmra.mrb[0].mxu0 %v745
      %v1231 = vpop.f32.mrb[0].mxu0
      %v1232 = vadd.f32 0.0, %v1231
      %v1233 = vpop.f32.mrb[0].mxu0
      %v1234 = vpop.f32.mrb[0].mxu0
      %v1235 = vadd.f32 0.0, %v1234
      %v1236 = vpop.f32.mrb[0].mxu0
      %1237 = vmatprep.mubr.bf16.mxu0 %v750
      %1238 = vmatmul.mubr.bf16.gmra.mrb[0].mxu0 %v749
      %v1239 = vpop.f32.mrb[0].mxu0
      %v1240 = vadd.f32 0.0, %v1239
      %v1241 = vpop.f32.mrb[0].mxu0
      %v1242 = vpop.f32.mrb[0].mxu0
      %v1243 = vadd.f32 0.0, %v1242
      %v1244 = vpop.f32.mrb[0].mxu0
      %1245 = vmatprep.mubr.bf16.mxu0 %v754
      %1246 = vmatmul.mubr.bf16.gmra.mrb[0].mxu0 %v753
      %v1247 = vpop.f32.mrb[0].mxu0
      %v1248 = vadd.f32 0.0, %v1247
      %v1249 = vpop.f32.mrb[0].mxu0
      %v1250 = vpop.f32.mrb[0].mxu0
      %v1251 = vadd.f32 0.0, %v1250
      %v1252 = vpop.f32.mrb[0].mxu0
      %1253 = vmatprep.mubr.bf16.mxu0 %v758
      %1254 = vmatmul.mubr.bf16.gmra.mrb[0].mxu0 %v757
      %v1255 = vpop.f32.mrb[0].mxu0
      %v1256 = vadd.f32 0.0, %v1255
      %v1257 = vpop.f32.mrb[0].mxu0
      %v1258 = vpop.f32.mrb[0].mxu0
      %v1259 = vadd.f32 0.0, %v1258
      %v1260 = vpop.f32.mrb[0].mxu0
      %1261 = vmatprep.mubr.bf16.mxu0 %v762
      %1262 = vmatmul.mubr.bf16.gmra.mrb[0].mxu0 %v761
      %v1263 = vpop.f32.mrb[0].mxu0
      %v1264 = vadd.f32 0.0, %v1263
      %v1265 = vpop.f32.mrb[0].mxu0
      %v1266 = vpop.f32.mrb[0].mxu0
      %v1267 = vadd.f32 0.0, %v1266
      %v1268 = vpop.f32.mrb[0].mxu0
      %1269 = vmatprep.mubr.bf16.mxu0 %v766
      %1270 = vmatmul.mubr.bf16.gmra.mrb[0].mxu0 %v765
      %v1271 = vpop.f32.mrb[0].mxu0
      %v1272 = vadd.f32 0.0, %v1271
      %v1273 = vpop.f32.mrb[0].mxu0
      %v1274 = vpop.f32.mrb[0].mxu0
      %v1275 = vadd.f32 0.0, %v1274
      %v1276 = vpop.f32.mrb[0].mxu0
      %1277 = vmatprep.mubr.bf16.mxu0 %v770
      %1278 = vmatmul.mubr.bf16.gmra.mrb[0].mxu0 %v769
      %v1279 = vpop.f32.mrb[0].mxu0
      %v1280 = vadd.f32 0.0, %v1279
      %v1281 = vpop.f32.mrb[0].mxu0
      %v1282 = vpop.f32.mrb[0].mxu0
      %v1283 = vadd.f32 0.0, %v1282
      %v1284 = vpop.f32.mrb[0].mxu0
      %1285 = vmatprep.mubr.bf16.mxu0 %v774
      %1286 = vmatmul.mubr.bf16.gmra.mrb[0].mxu0 %v773
      %v1287 = vpop.f32.mrb[0].mxu0
      %v1288 = vadd.f32 0.0, %v1287
      %v1289 = vpop.f32.mrb[0].mxu0
      %v1290 = vpop.f32.mrb[0].mxu0
      %v1291 = vadd.f32 0.0, %v1290
      %v1292 = vpop.f32.mrb[0].mxu0
      %1293 = vmatprep.mubr.bf16.mxu0 %v778
      %1294 = vmatmul.mubr.bf16.gmra.mrb[0].mxu0 %v777
      %v1295 = vpop.f32.mrb[0].mxu0
      %v1296 = vadd.f32 0.0, %v1295
      %v1297 = vpop.f32.mrb[0].mxu0
      %v1298 = vpop.f32.mrb[0].mxu0
      %v1299 = vadd.f32 0.0, %v1298
      %v1300 = vpop.f32.mrb[0].mxu0
      %1301 = vmatprep.mubr.bf16.mxu0 %v782
      %1302 = vmatmul.mubr.bf16.gmra.mrb[0].mxu0 %v781
      %v1303 = vpop.f32.mrb[0].mxu0
      %v1304 = vadd.f32 0.0, %v1303
      %v1305 = vpop.f32.mrb[0].mxu0
      %v1306 = vpop.f32.mrb[0].mxu0
      %v1307 = vadd.f32 0.0, %v1306
      %v1308 = vpop.f32.mrb[0].mxu0
      %1309 = vmatprep.mubr.bf16.mxu0 %v786
      %1310 = vmatmul.mubr.bf16.gmra.mrb[0].mxu0 %v785
      %v1311 = vpop.f32.mrb[0].mxu0
      %v1312 = vadd.f32 0.0, %v1311
      %v1313 = vpop.f32.mrb[0].mxu0
      %v1314 = vpop.f32.mrb[0].mxu0
      %v1315 = vadd.f32 0.0, %v1314
      %v1316 = vpop.f32.mrb[0].mxu0
      %1317 = vmatprep.mubr.bf16.mxu0 %v790
      %1318 = vmatmul.mubr.bf16.gmra.mrb[0].mxu0 %v789
      %v1319 = vpop.f32.mrb[0].mxu0
      %v1320 = vadd.f32 0.0, %v1319
      %v1321 = vpop.f32.mrb[0].mxu0
      %v1322 = vpop.f32.mrb[0].mxu0
      %v1323 = vadd.f32 0.0, %v1322
      %v1324 = vpop.f32.mrb[0].mxu0
      %1325 = vmatprep.mubr.bf16.mxu0 %v794
      %1326 = vmatmul.mubr.bf16.gmra.mrb[0].mxu0 %v793
      %v1327 = vpop.f32.mrb[0].mxu0
      %v1328 = vadd.f32 0.0, %v1327
      %v1329 = vpop.f32.mrb[0].mxu0
      %v1330 = vpop.f32.mrb[0].mxu0
      %v1331 = vadd.f32 0.0, %v1330
      %v1332 = vpop.f32.mrb[0].mxu0
      %1333 = vmatprep.mubr.bf16.mxu0 %v798
      %1334 = vmatmul.mubr.bf16.gmra.mrb[0].mxu0 %v797
      %v1335 = vpop.f32.mrb[0].mxu0
      %v1336 = vadd.f32 0.0, %v1335
      %v1337 = vpop.f32.mrb[0].mxu0
      %v1338 = vpop.f32.mrb[0].mxu0
      %v1339 = vadd.f32 0.0, %v1338
      %v1340 = vpop.f32.mrb[0].mxu0
      %1341 = vmatprep.mubr.bf16.mxu0 %v802
      %1342 = vmatmul.mubr.bf16.gmra.mrb[0].mxu0 %v801
      %v1343 = vpop.f32.mrb[0].mxu0
      %v1344 = vadd.f32 0.0, %v1343
      %v1345 = vpop.f32.mrb[0].mxu0
      %v1346 = vpop.f32.mrb[0].mxu0
      %v1347 = vadd.f32 0.0, %v1346
      %v1348 = vpop.f32.mrb[0].mxu0
      %1349 = vmatprep.mubr.bf16.mxu0 %v806
      %1350 = vmatmul.mubr.bf16.gmra.mrb[0].mxu0 %v805
      %v1351 = vpop.f32.mrb[0].mxu0
      %v1352 = vadd.f32 0.0, %v1351
      %v1353 = vpop.f32.mrb[0].mxu0
      %v1354 = vpop.f32.mrb[0].mxu0
      %v1355 = vadd.f32 0.0, %v1354
      %v1356 = vpop.f32.mrb[0].mxu0
      %1357 = vmatprep.mubr.bf16.mxu0 %v810
      %1358 = vmatmul.mubr.bf16.gmra.mrb[0].mxu0 %v809
      %v1359 = vpop.f32.mrb[0].mxu0
      %v1360 = vadd.f32 0.0, %v1359
      %v1361 = vpop.f32.mrb[0].mxu0
      %v1362 = vpop.f32.mrb[0].mxu0
      %v1363 = vadd.f32 0.0, %v1362
      %v1364 = vpop.f32.mrb[0].mxu0
      %1365 = vmatprep.mubr.bf16.mxu0 %v814
      %1366 = vmatmul.mubr.bf16.gmra.mrb[0].mxu0 %v813
      %v1367 = vpop.f32.mrb[0].mxu0
      %v1368 = vadd.f32 0.0, %v1367
      %v1369 = vpop.f32.mrb[0].mxu0
      %v1370 = vpop.f32.mrb[0].mxu0
      %v1371 = vadd.f32 0.0, %v1370
      %v1372 = vpop.f32.mrb[0].mxu0
      %1373 = vmatprep.mubr.bf16.mxu0 %v818
      %1374 = vmatmul.mubr.bf16.gmra.mrb[0].mxu0 %v817
      %v1375 = vpop.f32.mrb[0].mxu0
      %v1376 = vadd.f32 0.0, %v1375
      %v1377 = vpop.f32.mrb[0].mxu0
      %v1378 = vpop.f32.mrb[0].mxu0
      %v1379 = vadd.f32 0.0, %v1378
      %v1380 = vpop.f32.mrb[0].mxu0
      %1381 = vmatprep.mubr.bf16.mxu0 %v822
      %1382 = vmatmul.mubr.bf16.gmra.mrb[0].mxu0 %v821
      %v1383 = vpop.f32.mrb[0].mxu0
      %v1384 = vadd.f32 0.0, %v1383
      %v1385 = vpop.f32.mrb[0].mxu0
      %v1386 = vpop.f32.mrb[0].mxu0
      %v1387 = vadd.f32 0.0, %v1386
      %v1388 = vpop.f32.mrb[0].mxu0
      %1389 = vmatprep.mubr.bf16.mxu0 %v826
      %1390 = vmatmul.mubr.bf16.gmra.mrb[0].mxu0 %v825
      %v1391 = vpop.f32.mrb[0].mxu0
      %v1392 = vadd.f32 0.0, %v1391
      %v1393 = vpop.f32.mrb[0].mxu0
      %v1394 = vpop.f32.mrb[0].mxu0
      %v1395 = vadd.f32 0.0, %v1394
      %v1396 = vpop.f32.mrb[0].mxu0
      %1397 = vmatprep.mubr.bf16.mxu0 %v830
      %1398 = vmatmul.mubr.bf16.gmra.mrb[0].mxu0 %v829
      %v1399 = vpop.f32.mrb[0].mxu0
      %v1400 = vadd.f32 0.0, %v1399
      %v1401 = vpop.f32.mrb[0].mxu0
      %v1402 = vpop.f32.mrb[0].mxu0
      %v1403 = vadd.f32 0.0, %v1402
      %v1404 = vpop.f32.mrb[0].mxu0
      %1405 = vmatprep.mubr.bf16.mxu0 %v834
      %1406 = vmatmul.mubr.bf16.gmra.mrb[0].mxu0 %v833
      %v1407 = vpop.f32.mrb[0].mxu0
      %v1408 = vadd.f32 0.0, %v1407
      %v1409 = vpop.f32.mrb[0].mxu0
      %v1410 = vpop.f32.mrb[0].mxu0
      %v1411 = vadd.f32 0.0, %v1410
      %v1412 = vpop.f32.mrb[0].mxu0
      %1413 = vmatprep.mubr.bf16.mxu0 %v838
      %1414 = vmatmul.mubr.bf16.gmra.mrb[0].mxu0 %v837
      %v1415 = vpop.f32.mrb[0].mxu0
      %v1416 = vadd.f32 0.0, %v1415
      %v1417 = vpop.f32.mrb[0].mxu0
      %v1418 = vpop.f32.mrb[0].mxu0
      %v1419 = vadd.f32 0.0, %v1418
      %v1420 = vpop.f32.mrb[0].mxu0
      %1421 = vmatprep.mubr.bf16.mxu0 %v842
      %1422 = vmatmul.mubr.bf16.gmra.mrb[0].mxu0 %v841
      %v1423 = vpop.f32.mrb[0].mxu0
      %v1424 = vadd.f32 0.0, %v1423
      %v1425 = vpop.f32.mrb[0].mxu0
      %v1426 = vpop.f32.mrb[0].mxu0
      %v1427 = vadd.f32 0.0, %v1426
      %v1428 = vpop.f32.mrb[0].mxu0
      %1429 = vmatprep.mubr.bf16.mxu0 %v846
      %1430 = vmatmul.mubr.bf16.gmra.mrb[0].mxu0 %v845
      %v1431 = vpop.f32.mrb[0].mxu0
      %v1432 = vadd.f32 0.0, %v1431
      %v1433 = vpop.f32.mrb[0].mxu0
      %v1434 = vpop.f32.mrb[0].mxu0
      %v1435 = vadd.f32 0.0, %v1434
      %v1436 = vpop.f32.mrb[0].mxu0
      %1437 = vmatprep.mubr.bf16.mxu0 %v850
      %1438 = vmatmul.mubr.bf16.gmra.mrb[0].mxu0 %v849
      %v1439 = vpop.f32.mrb[0].mxu0
      %v1440 = vadd.f32 0.0, %v1439
      %v1441 = vpop.f32.mrb[0].mxu0
      %v1442 = vpop.f32.mrb[0].mxu0
      %v1443 = vadd.f32 0.0, %v1442
      %v1444 = vpop.f32.mrb[0].mxu0
      %1445 = vmatprep.mubr.bf16.mxu0 %v854
      %1446 = vmatmul.mubr.bf16.gmra.mrb[0].mxu0 %v853
      %v1447 = vpop.f32.mrb[0].mxu0
      %v1448 = vadd.f32 0.0, %v1447
      %v1449 = vpop.f32.mrb[0].mxu0
      %v1450 = vpop.f32.mrb[0].mxu0
      %v1451 = vadd.f32 0.0, %v1450
      %v1452 = vpop.f32.mrb[0].mxu0
      %1453 = vmatprep.mubr.bf16.mxu0 %v858
      %1454 = vmatmul.mubr.bf16.gmra.mrb[0].mxu0 %v857
      %v1455 = vpop.f32.mrb[0].mxu0
      %v1456 = vadd.f32 0.0, %v1455
      %v1457 = vpop.f32.mrb[0].mxu0
      %v1458 = vpop.f32.mrb[0].mxu0
      %v1459 = vadd.f32 0.0, %v1458
      %v1460 = vpop.f32.mrb[0].mxu0
      %1461 = vmatprep.mubr.bf16.mxu0 %v862
      %1462 = vmatmul.mubr.bf16.gmra.mrb[0].mxu0 %v861
      %v1463 = vpop.f32.mrb[0].mxu0
      %v1464 = vadd.f32 0.0, %v1463
      %v1465 = vpop.f32.mrb[0].mxu0
      %v1466 = vpop.f32.mrb[0].mxu0
      %v1467 = vadd.f32 0.0, %v1466
      %v1468 = vpop.f32.mrb[0].mxu0
      %1469 = vmatprep.mubr.bf16.mxu0 %v866
      %1470 = vmatmul.mubr.bf16.gmra.mrb[0].mxu0 %v865
      %v1471 = vpop.f32.mrb[0].mxu0
      %v1472 = vadd.f32 0.0, %v1471
      %v1473 = vpop.f32.mrb[0].mxu0
      %v1474 = vpop.f32.mrb[0].mxu0
      %v1475 = vadd.f32 0.0, %v1474
      %v1476 = vpop.f32.mrb[0].mxu0
      %1477 = vdwg.mxu0
      %1478 = vmatprep.subr.bf16.mxu0 0
      %1479 = vmatpush1.bf16.msra.mxu0 %v1141
      %1480 = vmatprep.subr.bf16.mxu0 0
      %1481 = vmatpush1.bf16.msra.mxu0 %v1142
      %1482 = vmatprep.subr.bf16.mxu0 0
      %1483 = vmatpush1.bf16.msra.mxu0 %v1143
      %1484 = vmatprep.subr.bf16.mxu0 0
      %1485 = vmatpush1.bf16.msra.mxu0 %v1144
      %1486 = vmatprep.subr.bf16.mxu0 0
      %1487 = vmatpush1.bf16.msra.mxu0 %v1145
      %1488 = vmatprep.subr.bf16.mxu0 0
      %1489 = vmatpush1.bf16.msra.mxu0 %v1146
      %1490 = vmatprep.subr.bf16.mxu0 0
      %1491 = vmatpush1.bf16.msra.mxu0 %v1147
      %1492 = vmatprep.subr.bf16.mxu0 0
      %1493 = vmatpush1.bf16.msra.mxu0 %v1148
      %1494 = vmatprep.subr.bf16.mxu0 0
      %1495 = vmatpush1.bf16.msra.mxu0 %v1149
      %1496 = vmatprep.subr.bf16.mxu0 0
      %1497 = vmatpush1.bf16.msra.mxu0 %v1150
      %1498 = vmatprep.subr.bf16.mxu0 0
      %1499 = vmatpush1.bf16.msra.mxu0 %v1151
      %1500 = vmatprep.subr.bf16.mxu0 0
      %1501 = vmatpush1.bf16.msra.mxu0 %v1152
      %1502 = vmatprep.subr.bf16.mxu0 0
      %1503 = vmatpush1.bf16.msra.mxu0 %v1153
      %1504 = vmatprep.subr.bf16.mxu0 0
      %1505 = vmatpush1.bf16.msra.mxu0 %v1154
      %1506 = vmatprep.subr.bf16.mxu0 0
      %1507 = vmatpush1.bf16.msra.mxu0 %v1155
      %1508 = vmatprep.subr.bf16.mxu0 0
      %1509 = vmatpush1.bf16.msra.mxu0 %v1156
      %1510 = vmatprep.mubr.bf16.mxu0 %v744
      %1511 = vmatmul.mubr.bf16.gmra.mrb[0].mxu0 %v743
      %v1512 = vpop.f32.mrb[0].mxu0
      %v1513 = vadd.f32 %v1224, %v1512
      %v1514 = vpop.f32.mrb[0].mxu0
      %v1515 = vpop.f32.mrb[0].mxu0
      %v1516 = vadd.f32 %v1227, %v1515
      %v1517 = vpop.f32.mrb[0].mxu0
      %1518 = vmatprep.mubr.bf16.mxu0 %v748
      %1519 = vmatmul.mubr.bf16.gmra.mrb[0].mxu0 %v747
      %v1520 = vpop.f32.mrb[0].mxu0
      %v1521 = vadd.f32 %v1232, %v1520
      %v1522 = vpop.f32.mrb[0].mxu0
      %v1523 = vpop.f32.mrb[0].mxu0
      %v1524 = vadd.f32 %v1235, %v1523
      %v1525 = vpop.f32.mrb[0].mxu0
      %1526 = vmatprep.mubr.bf16.mxu0 %v752
      %1527 = vmatmul.mubr.bf16.gmra.mrb[0].mxu0 %v751
      %v1528 = vpop.f32.mrb[0].mxu0
      %v1529 = vadd.f32 %v1240, %v1528
      %v1530 = vpop.f32.mrb[0].mxu0
      %v1531 = vpop.f32.mrb[0].mxu0
      %v1532 = vadd.f32 %v1243, %v1531
      %v1533 = vpop.f32.mrb[0].mxu0
      %1534 = vmatprep.mubr.bf16.mxu0 %v756
      %1535 = vmatmul.mubr.bf16.gmra.mrb[0].mxu0 %v755
      %v1536 = vpop.f32.mrb[0].mxu0
      %v1537 = vadd.f32 %v1248, %v1536
      %v1538 = vpop.f32.mrb[0].mxu0
      %v1539 = vpop.f32.mrb[0].mxu0
      %v1540 = vadd.f32 %v1251, %v1539
      %v1541 = vpop.f32.mrb[0].mxu0
      %1542 = vmatprep.mubr.bf16.mxu0 %v760
      %1543 = vmatmul.mubr.bf16.gmra.mrb[0].mxu0 %v759
      %v1544 = vpop.f32.mrb[0].mxu0
      %v1545 = vadd.f32 %v1256, %v1544
      %v1546 = vpop.f32.mrb[0].mxu0
      %v1547 = vpop.f32.mrb[0].mxu0
      %v1548 = vadd.f32 %v1259, %v1547
      %v1549 = vpop.f32.mrb[0].mxu0
      %1550 = vmatprep.mubr.bf16.mxu0 %v764
      %1551 = vmatmul.mubr.bf16.gmra.mrb[0].mxu0 %v763
      %v1552 = vpop.f32.mrb[0].mxu0
      %v1553 = vadd.f32 %v1264, %v1552
      %v1554 = vpop.f32.mrb[0].mxu0
      %v1555 = vpop.f32.mrb[0].mxu0
      %v1556 = vadd.f32 %v1267, %v1555
      %v1557 = vpop.f32.mrb[0].mxu0
      %1558 = vmatprep.mubr.bf16.mxu0 %v768
      %1559 = vmatmul.mubr.bf16.gmra.mrb[0].mxu0 %v767
      %v1560 = vpop.f32.mrb[0].mxu0
      %v1561 = vadd.f32 %v1272, %v1560
      %v1562 = vpop.f32.mrb[0].mxu0
      %v1563 = vpop.f32.mrb[0].mxu0
      %v1564 = vadd.f32 %v1275, %v1563
      %v1565 = vpop.f32.mrb[0].mxu0
      %1566 = vmatprep.mubr.bf16.mxu0 %v772
      %1567 = vmatmul.mubr.bf16.gmra.mrb[0].mxu0 %v771
      %v1568 = vpop.f32.mrb[0].mxu0
      %v1569 = vadd.f32 %v1280, %v1568
      %v1570 = vpop.f32.mrb[0].mxu0
      %v1571 = vpop.f32.mrb[0].mxu0
      %v1572 = vadd.f32 %v1283, %v1571
      %v1573 = vpop.f32.mrb[0].mxu0
      %1574 = vmatprep.mubr.bf16.mxu0 %v776
      %1575 = vmatmul.mubr.bf16.gmra.mrb[0].mxu0 %v775
      %v1576 = vpop.f32.mrb[0].mxu0
      %v1577 = vadd.f32 %v1288, %v1576
      %v1578 = vpop.f32.mrb[0].mxu0
      %v1579 = vpop.f32.mrb[0].mxu0
      %v1580 = vadd.f32 %v1291, %v1579
      %v1581 = vpop.f32.mrb[0].mxu0
      %1582 = vmatprep.mubr.bf16.mxu0 %v780
      %1583 = vmatmul.mubr.bf16.gmra.mrb[0].mxu0 %v779
      %v1584 = vpop.f32.mrb[0].mxu0
      %v1585 = vadd.f32 %v1296, %v1584
      %v1586 = vpop.f32.mrb[0].mxu0
      %v1587 = vpop.f32.mrb[0].mxu0
      %v1588 = vadd.f32 %v1299, %v1587
      %v1589 = vpop.f32.mrb[0].mxu0
      %1590 = vmatprep.mubr.bf16.mxu0 %v784
      %1591 = vmatmul.mubr.bf16.gmra.mrb[0].mxu0 %v783
      %v1592 = vpop.f32.mrb[0].mxu0
      %v1593 = vadd.f32 %v1304, %v1592
      %v1594 = vpop.f32.mrb[0].mxu0
      %v1595 = vpop.f32.mrb[0].mxu0
      %v1596 = vadd.f32 %v1307, %v1595
      %v1597 = vpop.f32.mrb[0].mxu0
      %1598 = vmatprep.mubr.bf16.mxu0 %v788
      %1599 = vmatmul.mubr.bf16.gmra.mrb[0].mxu0 %v787
      %v1600 = vpop.f32.mrb[0].mxu0
      %v1601 = vadd.f32 %v1312, %v1600
      %v1602 = vpop.f32.mrb[0].mxu0
      %v1603 = vpop.f32.mrb[0].mxu0
      %v1604 = vadd.f32 %v1315, %v1603
      %v1605 = vpop.f32.mrb[0].mxu0
      %1606 = vmatprep.mubr.bf16.mxu0 %v792
      %1607 = vmatmul.mubr.bf16.gmra.mrb[0].mxu0 %v791
      %v1608 = vpop.f32.mrb[0].mxu0
      %v1609 = vadd.f32 %v1320, %v1608
      %v1610 = vpop.f32.mrb[0].mxu0
      %v1611 = vpop.f32.mrb[0].mxu0
      %v1612 = vadd.f32 %v1323, %v1611
      %v1613 = vpop.f32.mrb[0].mxu0
      %1614 = vmatprep.mubr.bf16.mxu0 %v796
      %1615 = vmatmul.mubr.bf16.gmra.mrb[0].mxu0 %v795
      %v1616 = vpop.f32.mrb[0].mxu0
      %v1617 = vadd.f32 %v1328, %v1616
      %v1618 = vpop.f32.mrb[0].mxu0
      %v1619 = vpop.f32.mrb[0].mxu0
      %v1620 = vadd.f32 %v1331, %v1619
      %v1621 = vpop.f32.mrb[0].mxu0
      %1622 = vmatprep.mubr.bf16.mxu0 %v800
      %1623 = vmatmul.mubr.bf16.gmra.mrb[0].mxu0 %v799
      %v1624 = vpop.f32.mrb[0].mxu0
      %v1625 = vadd.f32 %v1336, %v1624
      %v1626 = vpop.f32.mrb[0].mxu0
      %v1627 = vpop.f32.mrb[0].mxu0
      %v1628 = vadd.f32 %v1339, %v1627
      %v1629 = vpop.f32.mrb[0].mxu0
      %1630 = vmatprep.mubr.bf16.mxu0 %v804
      %1631 = vmatmul.mubr.bf16.gmra.mrb[0].mxu0 %v803
      %v1632 = vpop.f32.mrb[0].mxu0
      %v1633 = vadd.f32 %v1344, %v1632
      %v1634 = vpop.f32.mrb[0].mxu0
      %v1635 = vpop.f32.mrb[0].mxu0
      %v1636 = vadd.f32 %v1347, %v1635
      %v1637 = vpop.f32.mrb[0].mxu0
      %1638 = vmatprep.mubr.bf16.mxu0 %v808
      %1639 = vmatmul.mubr.bf16.gmra.mrb[0].mxu0 %v807
      %v1640 = vpop.f32.mrb[0].mxu0
      %v1641 = vadd.f32 %v1352, %v1640
      %v1642 = vpop.f32.mrb[0].mxu0
      %v1643 = vpop.f32.mrb[0].mxu0
      %v1644 = vadd.f32 %v1355, %v1643
      %v1645 = vpop.f32.mrb[0].mxu0
      %1646 = vmatprep.mubr.bf16.mxu0 %v812
      %1647 = vmatmul.mubr.bf16.gmra.mrb[0].mxu0 %v811
      %v1648 = vpop.f32.mrb[0].mxu0
      %v1649 = vadd.f32 %v1360, %v1648
      %v1650 = vpop.f32.mrb[0].mxu0
      %v1651 = vpop.f32.mrb[0].mxu0
      %v1652 = vadd.f32 %v1363, %v1651
      %v1653 = vpop.f32.mrb[0].mxu0
      %1654 = vmatprep.mubr.bf16.mxu0 %v816
      %1655 = vmatmul.mubr.bf16.gmra.mrb[0].mxu0 %v815
      %v1656 = vpop.f32.mrb[0].mxu0
      %v1657 = vadd.f32 %v1368, %v1656
      %v1658 = vpop.f32.mrb[0].mxu0
      %v1659 = vpop.f32.mrb[0].mxu0
      %v1660 = vadd.f32 %v1371, %v1659
      %v1661 = vpop.f32.mrb[0].mxu0
      %1662 = vmatprep.mubr.bf16.mxu0 %v820
      %1663 = vmatmul.mubr.bf16.gmra.mrb[0].mxu0 %v819
      %v1664 = vpop.f32.mrb[0].mxu0
      %v1665 = vadd.f32 %v1376, %v1664
      %v1666 = vpop.f32.mrb[0].mxu0
      %v1667 = vpop.f32.mrb[0].mxu0
      %v1668 = vadd.f32 %v1379, %v1667
      %v1669 = vpop.f32.mrb[0].mxu0
      %1670 = vmatprep.mubr.bf16.mxu0 %v824
      %1671 = vmatmul.mubr.bf16.gmra.mrb[0].mxu0 %v823
      %v1672 = vpop.f32.mrb[0].mxu0
      %v1673 = vadd.f32 %v1384, %v1672
      %v1674 = vpop.f32.mrb[0].mxu0
      %v1675 = vpop.f32.mrb[0].mxu0
      %v1676 = vadd.f32 %v1387, %v1675
      %v1677 = vpop.f32.mrb[0].mxu0
      %1678 = vmatprep.mubr.bf16.mxu0 %v828
      %1679 = vmatmul.mubr.bf16.gmra.mrb[0].mxu0 %v827
      %v1680 = vpop.f32.mrb[0].mxu0
      %v1681 = vadd.f32 %v1392, %v1680
      %v1682 = vpop.f32.mrb[0].mxu0
      %v1683 = vpop.f32.mrb[0].mxu0
      %v1684 = vadd.f32 %v1395, %v1683
      %v1685 = vpop.f32.mrb[0].mxu0
      %1686 = vmatprep.mubr.bf16.mxu0 %v832
      %1687 = vmatmul.mubr.bf16.gmra.mrb[0].mxu0 %v831
      %v1688 = vpop.f32.mrb[0].mxu0
      %v1689 = vadd.f32 %v1400, %v1688
      %v1690 = vpop.f32.mrb[0].mxu0
      %v1691 = vpop.f32.mrb[0].mxu0
      %v1692 = vadd.f32 %v1403, %v1691
      %v1693 = vpop.f32.mrb[0].mxu0
      %1694 = vmatprep.mubr.bf16.mxu0 %v836
      %1695 = vmatmul.mubr.bf16.gmra.mrb[0].mxu0 %v835
      %v1696 = vpop.f32.mrb[0].mxu0
      %v1697 = vadd.f32 %v1408, %v1696
      %v1698 = vpop.f32.mrb[0].mxu0
      %v1699 = vpop.f32.mrb[0].mxu0
      %v1700 = vadd.f32 %v1411, %v1699
      %v1701 = vpop.f32.mrb[0].mxu0
      %1702 = vmatprep.mubr.bf16.mxu0 %v840
      %1703 = vmatmul.mubr.bf16.gmra.mrb[0].mxu0 %v839
      %v1704 = vpop.f32.mrb[0].mxu0
      %v1705 = vadd.f32 %v1416, %v1704
      %v1706 = vpop.f32.mrb[0].mxu0
      %v1707 = vpop.f32.mrb[0].mxu0
      %v1708 = vadd.f32 %v1419, %v1707
      %v1709 = vpop.f32.mrb[0].mxu0
      %1710 = vmatprep.mubr.bf16.mxu0 %v844
      %1711 = vmatmul.mubr.bf16.gmra.mrb[0].mxu0 %v843
      %v1712 = vpop.f32.mrb[0].mxu0
      %v1713 = vadd.f32 %v1424, %v1712
      %v1714 = vpop.f32.mrb[0].mxu0
      %v1715 = vpop.f32.mrb[0].mxu0
      %v1716 = vadd.f32 %v1427, %v1715
      %v1717 = vpop.f32.mrb[0].mxu0
      %1718 = vmatprep.mubr.bf16.mxu0 %v848
      %1719 = vmatmul.mubr.bf16.gmra.mrb[0].mxu0 %v847
      %v1720 = vpop.f32.mrb[0].mxu0
      %v1721 = vadd.f32 %v1432, %v1720
      %v1722 = vpop.f32.mrb[0].mxu0
      %v1723 = vpop.f32.mrb[0].mxu0
      %v1724 = vadd.f32 %v1435, %v1723
      %v1725 = vpop.f32.mrb[0].mxu0
      %1726 = vmatprep.mubr.bf16.mxu0 %v852
      %1727 = vmatmul.mubr.bf16.gmra.mrb[0].mxu0 %v851
      %v1728 = vpop.f32.mrb[0].mxu0
      %v1729 = vadd.f32 %v1440, %v1728
      %v1730 = vpop.f32.mrb[0].mxu0
      %v1731 = vpop.f32.mrb[0].mxu0
      %v1732 = vadd.f32 %v1443, %v1731
      %v1733 = vpop.f32.mrb[0].mxu0
      %1734 = vmatprep.mubr.bf16.mxu0 %v856
      %1735 = vmatmul.mubr.bf16.gmra.mrb[0].mxu0 %v855
      %v1736 = vpop.f32.mrb[0].mxu0
      %v1737 = vadd.f32 %v1448, %v1736
      %v1738 = vpop.f32.mrb[0].mxu0
      %v1739 = vpop.f32.mrb[0].mxu0
      %v1740 = vadd.f32 %v1451, %v1739
      %v1741 = vpop.f32.mrb[0].mxu0
      %1742 = vmatprep.mubr.bf16.mxu0 %v860
      %1743 = vmatmul.mubr.bf16.gmra.mrb[0].mxu0 %v859
      %v1744 = vpop.f32.mrb[0].mxu0
      %v1745 = vadd.f32 %v1456, %v1744
      %v1746 = vpop.f32.mrb[0].mxu0
      %v1747 = vpop.f32.mrb[0].mxu0
      %v1748 = vadd.f32 %v1459, %v1747
      %v1749 = vpop.f32.mrb[0].mxu0
      %1750 = vmatprep.mubr.bf16.mxu0 %v864
      %1751 = vmatmul.mubr.bf16.gmra.mrb[0].mxu0 %v863
      %v1752 = vpop.f32.mrb[0].mxu0
      %v1753 = vadd.f32 %v1464, %v1752
      %v1754 = vpop.f32.mrb[0].mxu0
      %v1755 = vpop.f32.mrb[0].mxu0
      %v1756 = vadd.f32 %v1467, %v1755
      %v1757 = vpop.f32.mrb[0].mxu0
      %1758 = vmatprep.mubr.bf16.mxu0 %v868
      %1759 = vmatmul.mubr.bf16.gmra.mrb[0].mxu0 %v867
      %v1760 = vpop.f32.mrb[0].mxu0
      %v1761 = vadd.f32 %v1472, %v1760
      %v1762 = vpop.f32.mrb[0].mxu0
      %v1763 = vpop.f32.mrb[0].mxu0
      %v1764 = vadd.f32 %v1475, %v1763
      %v1765 = vpop.f32.mrb[0].mxu0
      %1766 = vdwg.mxu0
      %v1767 = vtanh.pop %v1513
      %v1768 = vtanh.pop %v1516
      %v1769 = vtanh.pop %v1521
      %v1770 = vtanh.pop %v1524
      %v1771 = vtanh.pop %v1529
      %v1772 = vtanh.pop %v1532
      %v1773 = vtanh.pop %v1537
      %v1774 = vtanh.pop %v1540
      %v1775 = vtanh.pop %v1545
      %v1776 = vtanh.pop %v1548
      %v1777 = vtanh.pop %v1553
      %v1778 = vtanh.pop %v1556
      %v1779 = vtanh.pop %v1561
      %v1780 = vtanh.pop %v1564
      %v1781 = vtanh.pop %v1569
      %v1782 = vtanh.pop %v1572
      %v1783 = vtanh.pop %v1577
      %v1784 = vtanh.pop %v1580
      %v1785 = vtanh.pop %v1585
      %v1786 = vtanh.pop %v1588
      %v1787 = vtanh.pop %v1593
      %v1788 = vtanh.pop %v1596
      %v1789 = vtanh.pop %v1601
      %v1790 = vtanh.pop %v1604
      %v1791 = vtanh.pop %v1609
      %v1792 = vtanh.pop %v1612
      %v1793 = vtanh.pop %v1617
      %v1794 = vtanh.pop %v1620
      %v1795 = vtanh.pop %v1625
      %v1796 = vtanh.pop %v1628
      %v1797 = vtanh.pop %v1633
      %v1798 = vtanh.pop %v1636
      %v1799 = vtanh.pop %v1641
      %v1800 = vtanh.pop %v1644
      %v1801 = vtanh.pop %v1649
      %v1802 = vtanh.pop %v1652
      %v1803 = vtanh.pop %v1657
      %v1804 = vtanh.pop %v1660
      %v1805 = vtanh.pop %v1665
      %v1806 = vtanh.pop %v1668
      %v1807 = vtanh.pop %v1673
      %v1808 = vtanh.pop %v1676
      %v1809 = vtanh.pop %v1681
      %v1810 = vtanh.pop %v1684
      %v1811 = vtanh.pop %v1689
      %v1812 = vtanh.pop %v1692
      %v1813 = vtanh.pop %v1697
      %v1814 = vtanh.pop %v1700
      %v1815 = vtanh.pop %v1705
      %v1816 = vtanh.pop %v1708
      %v1817 = vtanh.pop %v1713
      %v1818 = vtanh.pop %v1716
      %v1819 = vtanh.pop %v1721
      %v1820 = vtanh.pop %v1724
      %v1821 = vtanh.pop %v1729
      %v1822 = vtanh.pop %v1732
      %v1823 = vtanh.pop %v1737
      %v1824 = vtanh.pop %v1740
      %v1825 = vtanh.pop %v1745
      %v1826 = vtanh.pop %v1748
      %v1827 = vtanh.pop %v1753
      %v1828 = vtanh.pop %v1756
      %v1829 = vtanh.pop %v1761
      %v1830 = vtanh.pop %v1764
      %1831 = vst [vmem:[%s163] sm:$0xff] %v1767
      %1832 = vst [vmem:[%s163 + $0x8] sm:$0xff] %v1768
      %1833 = vst [vmem:[%s163 + $0x10] sm:$0xff] %v1769
      %1834 = vst [vmem:[%s163 + $0x18] sm:$0xff] %v1770
      %1835 = vst [vmem:[%s163 + $0x20] sm:$0xff] %v1771
      %1836 = vst [vmem:[%s163 + $0x28] sm:$0xff] %v1772
      %1837 = vst [vmem:[%s163 + $0x30] sm:$0xff] %v1773
      %1838 = vst [vmem:[%s163 + $0x38] sm:$0xff] %v1774
      %1839 = vst [vmem:[%s163 + $0x40] sm:$0xff] %v1775
      %1840 = vst [vmem:[%s163 + $0x48] sm:$0xff] %v1776
      %1841 = vst [vmem:[%s163 + $0x50] sm:$0xff] %v1777
      %1842 = vst [vmem:[%s163 + $0x58] sm:$0xff] %v1778
      %1843 = vst [vmem:[%s163 + $0x60] sm:$0xff] %v1779
      %1844 = vst [vmem:[%s163 + $0x68] sm:$0xff] %v1780
      %1845 = vst [vmem:[%s163 + $0x70] sm:$0xff] %v1781
      %1846 = vst [vmem:[%s163 + $0x78] sm:$0xff] %v1782
      %1847 = vst [vmem:[%s163 + $0x80] sm:$0xff] %v1783
      %1848 = vst [vmem:[%s163 + $0x88] sm:$0xff] %v1784
      %1849 = vst [vmem:[%s163 + $0x90] sm:$0xff] %v1785
      %1850 = vst [vmem:[%s163 + $0x98] sm:$0xff] %v1786
      %1851 = vst [vmem:[%s163 + $0xa0] sm:$0xff] %v1787
      %1852 = vst [vmem:[%s163 + $0xa8] sm:$0xff] %v1788
      %1853 = vst [vmem:[%s163 + $0xb0] sm:$0xff] %v1789
      %1854 = vst [vmem:[%s163 + $0xb8] sm:$0xff] %v1790
      %1855 = vst [vmem:[%s163 + $0xc0] sm:$0xff] %v1791
      %1856 = vst [vmem:[%s163 + $0xc8] sm:$0xff] %v1792
      %1857 = vst [vmem:[%s163 + $0xd0] sm:$0xff] %v1793
      %1858 = vst [vmem:[%s163 + $0xd8] sm:$0xff] %v1794
      %1859 = vst [vmem:[%s163 + $0xe0] sm:$0xff] %v1795
      %1860 = vst [vmem:[%s163 + $0xe8] sm:$0xff] %v1796
      %1861 = vst [vmem:[%s163 + $0xf0] sm:$0xff] %v1797
      %1862 = vst [vmem:[%s163 + $0xf8] sm:$0xff] %v1798
      %1863 = vst [vmem:[%s163 + $0x100] sm:$0xff] %v1799
      %1864 = vst [vmem:[%s163 + $0x108] sm:$0xff] %v1800
      %1865 = vst [vmem:[%s163 + $0x110] sm:$0xff] %v1801
      %1866 = vst [vmem:[%s163 + $0x118] sm:$0xff] %v1802
      %1867 = vst [vmem:[%s163 + $0x120] sm:$0xff] %v1803
      %1868 = vst [vmem:[%s163 + $0x128] sm:$0xff] %v1804
      %1869 = vst [vmem:[%s163 + $0x130] sm:$0xff] %v1805
      %1870 = vst [vmem:[%s163 + $0x138] sm:$0xff] %v1806
      %1871 = vst [vmem:[%s163 + $0x140] sm:$0xff] %v1807
      %1872 = vst [vmem:[%s163 + $0x148] sm:$0xff] %v1808
      %1873 = vst [vmem:[%s163 + $0x150] sm:$0xff] %v1809
      %1874 = vst [vmem:[%s163 + $0x158] sm:$0xff] %v1810
      %1875 = vst [vmem:[%s163 + $0x160] sm:$0xff] %v1811
      %1876 = vst [vmem:[%s163 + $0x168] sm:$0xff] %v1812
      %1877 = vst [vmem:[%s163 + $0x170] sm:$0xff] %v1813
      %1878 = vst [vmem:[%s163 + $0x178] sm:$0xff] %v1814
      %1879 = vst [vmem:[%s163 + $0x180] sm:$0xff] %v1815
      %1880 = vst [vmem:[%s163 + $0x188] sm:$0xff] %v1816
      %1881 = vst [vmem:[%s163 + $0x190] sm:$0xff] %v1817
      %1882 = vst [vmem:[%s163 + $0x198] sm:$0xff] %v1818
      %1883 = vst [vmem:[%s163 + $0x1a0] sm:$0xff] %v1819
      %1884 = vst [vmem:[%s163 + $0x1a8] sm:$0xff] %v1820
      %1885 = vst [vmem:[%s163 + $0x1b0] sm:$0xff] %v1821
      %1886 = vst [vmem:[%s163 + $0x1b8] sm:$0xff] %v1822
      %1887 = vst [vmem:[%s163 + $0x1c0] sm:$0xff] %v1823
      %1888 = vst [vmem:[%s163 + $0x1c8] sm:$0xff] %v1824
      %1889 = vst [vmem:[%s163 + $0x1d0] sm:$0xff] %v1825
      %1890 = vst [vmem:[%s163 + $0x1d8] sm:$0xff] %v1826
      %1891 = vst [vmem:[%s163 + $0x1e0] sm:$0xff] %v1827
      %1892 = vst [vmem:[%s163 + $0x1e8] sm:$0xff] %v1828
      %1893 = vst [vmem:[%s163 + $0x1f0] sm:$0xff] %v1829
      %1894 = vst [vmem:[%s163 + $0x1f8] sm:$0xff] %v1830
      %p1895 = scmp.lt.s32.totalorder %s13, 3
      %s1896 = scalar_select %p1895, %s13, 3
      %s1897 = smul.addr %s1896, 64
      %s1898 = smul.addr %s1897, 8
      %s1899 = scalar_lea.vmem %s2, %s1898
      // Predicated region
      $region29: #{generative_forward.7} parent=27 // pred_check
        %p1900 = pneg %p83
      $region30: #{generative_forward.7} parent=27 // pred_check_branch
        %1902 = sbr.rel (%p1900) target = $region32
      $region31: #{generative_forward.7} parent=27 // pred_region
        _
      $region32: #{generative_forward.7} parent=27 // pred_fallthru
        _
    $region28: #{generative_forward.7} parent=5 // pred_fallthru
      _
    %p1903 = scmp.le.s32.totalorder 2, %s8
    // Predicated region
    $region33: #{generative_forward.7} parent=5 // pred_check
      %p1904 = pneg %p1903
    $region34: #{generative_forward.7} parent=5 // pred_check_branch
      %1906 = sbr.rel (%p1904) target = $region36
    $region35: #{generative_forward.7} parent=5 // pred_region
      %s1907 = ssub.s32 %s8, 2
      // Predicated region
      $region37: #{generative_forward.7} parent=35 // pred_check
        %p1908 = pneg %p89
      $region38: #{generative_forward.7} parent=35 // pred_check_branch
        %1910 = sbr.rel (%p1908) target = $region40
      $region39: #{generative_forward.7} parent=35 // pred_region
        %p1911 = scmp.lt.s32.totalorder %s14, 3
        %s1912 = scalar_select %p1911, %s14, 3
        %s1913 = smul.addr %s1912, 64
        %s1914 = smul.addr %s1913, 8
        %s1915 = scalar_lea.vmem %s2, %s1914
      $region40: #{generative_forward.7} parent=35 // pred_fallthru
        _
    $region36: #{generative_forward.7} parent=5 // pred_fallthru
      _
  $region6: #{generative_forward.7} parent=0 // loop_footer
    %s12 = sadd.s32 1, %s8
  $region7: #{generative_forward.7} parent=0 // loop_footer_branch
    %7 = sbr.rel target = $region3
  $region8: #{generative_forward.7} parent=0 // loop_exit
    _

</llo_original>
